<compile_context>
chip_gen: v6e
topology: v6e:2x2x1
jax: 0.10.0
libtpu: 0.0.40
codegen_flags: <defaults>
</compile_context>

<pallas_src>
import math

import jax
import jax.numpy as jnp
from jax import lax
from jax.experimental import pallas as pl
from jax.experimental.pallas import tpu as pltpu

HIDDEN = 128          # module hard-codes hidden_size=128
EMB = 200             # word_embedding_size


# ------------------------------- helpers ------------------------------------

def _nbytes(shape, dtype):
    return int(math.prod(shape)) * jnp.dtype(dtype).itemsize


def _vmem_limit(block_bytes):
    """Scoped-VMEM budget derived from actual per-step block bytes:
    2x (double buffering) + 8 MiB headroom, clamped under v7x's 64 MiB ceiling."""
    return int(min(max(2 * block_bytes + (8 << 20), 16 << 20), 48 << 20))


def _batch_split(B):
    # Leading "parallel" batch axis so v7x's two TensorCores split evenly (5/5 at B=10);
    # on single-core chips (v5e/v6e) it only adds ~1 extra ~0.35us grid step (neutral).
    return 2 if (B % 2 == 0 and B >= 2) else 1


def _softmax_lanes(x):
    """Numerically stable softmax over the last (lane) axis; exact divide for parity."""
    m = jnp.max(x, axis=-1, keepdims=True)
    e = jnp.exp(x - m)
    return e / jnp.sum(e, axis=-1, keepdims=True)


# ----------------------------- Pallas kernels -------------------------------

def match_kernel(q_ref, qg_ref, d_ref, dg_ref,
                 rnq_ref, qstats_ref, rnd_ref, dstats_ref):
    """Per-document matching for doc i (grid axis 1), batch block b (grid axis 0).

    q_ref:   (Bb, Lq, 2H)   bf16    qg_ref: (Bb, Lq, 1) f32   (reasoning gate values)
    d_ref:   (1, Bb, Lc, 2H) bf16   dg_ref: (1, Bb, Lc, 1) f32
    rnq_ref:   (1, Bb, Lq, 2H) f32  = gate * RnQ                 (lane-dense, gated)
    qstats_ref:(1, Bb, Lq, 2)  f32  = gate * [max_k M | mean_k M]
    rnd_ref:   (1, Bb, Lc, 2H) bf16 = RnD                        (ungated: crossdoc key/query)
    dstats_ref:(1, Bb, Lc, 2)  f32  = gate * [max_q M | mean_q M]
    """
    q = q_ref[...]                     # (Bb, Lq, 2H) bf16
    d = d_ref[0]                       # (Bb, Lc, 2H) bf16

    # Same dot products in both layouts: every softmax / pooling is a lane reduction.
    m_qk = jnp.einsum('bqh,bkh->bqk', q, d,
                      preferred_element_type=jnp.float32)        # (Bb, Lq, Lc)
    m_kq = jnp.einsum('bkh,bqh->bkq', d, q,
                      preferred_element_type=jnp.float32)        # (Bb, Lc, Lq)

    an = _softmax_lanes(m_qk)      # softmax over content positions (torch dim=2)
    bn_t = _softmax_lanes(m_kq)    # == transpose of softmax over question (torch dim=1)

    rnq = jnp.einsum('bqk,bkh->bqh', an.astype(jnp.bfloat16), d,
                     preferred_element_type=jnp.float32)         # (Bb, Lq, 2H)
    rnd = jnp.einsum('bkq,bqh->bkh', bn_t.astype(jnp.bfloat16), q,
                     preferred_element_type=jnp.float32)         # (Bb, Lc, 2H)

    qg = qg_ref[...]                   # (Bb, Lq, 1) f32
    dg = dg_ref[0]                     # (Bb, Lc, 1) f32

    # Lane-dense 256-wide store (fused reasoning gate — no XLA RMW pass downstream).
    rnq_ref[0] = rnq * qg
    # Pooled max|mean merged into a single 2-lane store.
    qstats_ref[0] = jnp.concatenate(
        [jnp.max(m_qk, axis=-1, keepdims=True),
         jnp.mean(m_qk, axis=-1, keepdims=True)], axis=-1) * qg

    rnd_ref[0] = rnd.astype(jnp.bfloat16)
    dstats_ref[0] = jnp.concatenate(
        [jnp.max(m_kq, axis=-1, keepdims=True),
         jnp.mean(m_kq, axis=-1, keepdims=True)], axis=-1) * dg


def crossdoc_kernel(dm_ref, rm_ref, dall_ref, rall_ref, dg_ref, out_ref):
    """Cross-document attention for query doc m (grid axis 1), batch block b (axis 0).

    The full key side (all N docs) is grid-resident, so the joint softmax over
    (doc j, key position) is computed in one shot — no streamed j axis, no online
    softmax bookkeeping. The [D | RnD] concatenation is never materialized.

    dm_ref:  (1, Bb, Lc, 2H) bf16   rm_ref:  (1, Bb, Lc, 2H) bf16    (query doc m)
    dall_ref:(N, Bb, Lc, 2H) bf16   rall_ref:(N, Bb, Lc, 2H) bf16    (all key docs, resident)
    dg_ref:  (1, Bb, Lc, 1)  f32                                      (fused reasoning gate)
    out_ref: (1, Bb, Lc, 4H) f32 = gate * [sum_j beta@D_j | sum_j beta@RnD_j]  (lane-dense)
    """
    dm = dm_ref[0]                              # (Bb, Lc, 2H) bf16
    rm = rm_ref[0]                              # (Bb, Lc, 2H) bf16
    n_docs = dall_ref.shape[0]                  # static
    h2 = dm.shape[-1]

    djs = [dall_ref[j] for j in range(n_docs)]  # each (Bb, Lc, 2H) bf16
    rjs = [rall_ref[j] for j in range(n_docs)]

    # Scores against every key doc; dot over the virtual concatenated [d | rnd] axis.
    scores = []
    for j in range(n_docs):
        s = (jnp.einsum('blh,bkh->blk', dm, djs[j], preferred_element_type=jnp.float32)
             + jnp.einsum('blh,bkh->blk', rm, rjs[j], preferred_element_type=jnp.float32))
        scores.append(s)                        # (Bb, Lc, Lc) f32

    # Joint softmax over all (doc, position) keys — lane reductions only.
    m = jnp.max(scores[0], axis=-1, keepdims=True)
    for s in scores[1:]:
        m = jnp.maximum(m, jnp.max(s, axis=-1, keepdims=True))
    ps = [jnp.exp(s - m) for s in scores]
    denom = jnp.sum(ps[0], axis=-1, keepdims=True)
    for p in ps[1:]:
        denom = denom + jnp.sum(p, axis=-1, keepdims=True)
    inv = 1.0 / denom                           # exact divide for reference parity

    accd = None
    accr = None
    for j in range(n_docs):
        pb = ps[j].astype(jnp.bfloat16)
        td = jnp.einsum('blk,bkh->blh', pb, djs[j], preferred_element_type=jnp.float32)
        tr = jnp.einsum('blk,bkh->blh', pb, rjs[j], preferred_element_type=jnp.float32)
        accd = td if accd is None else accd + td
        accr = tr if accr is None else accr + tr

    gate = dg_ref[0]                            # (Bb, Lc, 1) f32
    # Two aligned 256-lane stores into the 512-lane output (no masked partial stores).
    out_ref[0, :, :, 0:h2] = accd * inv * gate
    out_ref[0, :, :, h2:2 * h2] = accr * inv * gate


# --------------------------- Pallas call wrappers ----------------------------

def run_match(q_bf, d_bf, q_gate, d_gate):
    N, B, Lc, H2 = d_bf.shape
    Lq = q_bf.shape[1]
    nb = _batch_split(B)
    Bb = B // nb

    block_bytes = (
        _nbytes((Bb, Lq, H2), jnp.bfloat16) + _nbytes((Bb, Lq, 1), jnp.float32)
        + _nbytes((Bb, Lc, H2), jnp.bfloat16) + _nbytes((Bb, Lc, 1), jnp.float32)
        + _nbytes((Bb, Lq, H2), jnp.float32) + _nbytes((Bb, Lq, 2), jnp.float32)
        + _nbytes((Bb, Lc, H2), jnp.bfloat16) + _nbytes((Bb, Lc, 2), jnp.float32))

    return pl.pallas_call(
        match_kernel,
        grid=(nb, N),
        in_specs=[
            pl.BlockSpec((Bb, Lq, H2), lambda b, i: (b, 0, 0)),        # Q (bf16)
            pl.BlockSpec((Bb, Lq, 1), lambda b, i: (b, 0, 0)),         # q reasoning gate
            pl.BlockSpec((1, Bb, Lc, H2), lambda b, i: (i, b, 0, 0)),  # D_i (bf16)
            pl.BlockSpec((1, Bb, Lc, 1), lambda b, i: (i, b, 0, 0)),   # d reasoning gate
        ],
        out_specs=[
            pl.BlockSpec((1, Bb, Lq, H2), lambda b, i: (i, b, 0, 0)),  # gated RnQ (256 lanes)
            pl.BlockSpec((1, Bb, Lq, 2), lambda b, i: (i, b, 0, 0)),   # gated q stats
            pl.BlockSpec((1, Bb, Lc, H2), lambda b, i: (i, b, 0, 0)),  # RnD (bf16, 256 lanes)
            pl.BlockSpec((1, Bb, Lc, 2), lambda b, i: (i, b, 0, 0)),   # gated d stats
        ],
        out_shape=[
            jax.ShapeDtypeStruct((N, B, Lq, H2), jnp.float32),
            jax.ShapeDtypeStruct((N, B, Lq, 2), jnp.float32),
            jax.ShapeDtypeStruct((N, B, Lc, H2), jnp.bfloat16),
            jax.ShapeDtypeStruct((N, B, Lc, 2), jnp.float32),
        ],
        compiler_params=pltpu.CompilerParams(
            dimension_semantics=("parallel", "parallel"),
            vmem_limit_bytes=_vmem_limit(block_bytes)),
    )(q_bf, q_gate, d_bf, d_gate)


def run_crossdoc(d_bf, rnd_bf, d_gate):
    N, B, Lc, H2 = d_bf.shape
    nb = _batch_split(B)
    Bb = B // nb

    block_bytes = (
        2 * _nbytes((Bb, Lc, H2), jnp.bfloat16)          # D_m, RnD_m
        + 2 * _nbytes((N, Bb, Lc, H2), jnp.bfloat16)     # resident key slabs
        + _nbytes((Bb, Lc, 1), jnp.float32)
        + _nbytes((Bb, Lc, 2 * H2), jnp.float32))        # output slab

    return pl.pallas_call(
        crossdoc_kernel,
        grid=(nb, N),
        in_specs=[
            pl.BlockSpec((1, Bb, Lc, H2), lambda b, i: (i, b, 0, 0)),   # D_m
            pl.BlockSpec((1, Bb, Lc, H2), lambda b, i: (i, b, 0, 0)),   # RnD_m
            pl.BlockSpec((N, Bb, Lc, H2), lambda b, i: (0, b, 0, 0)),   # all D keys (resident)
            pl.BlockSpec((N, Bb, Lc, H2), lambda b, i: (0, b, 0, 0)),   # all RnD keys (resident)
            pl.BlockSpec((1, Bb, Lc, 1), lambda b, i: (i, b, 0, 0)),    # d reasoning gate
        ],
        out_specs=pl.BlockSpec((1, Bb, Lc, 2 * H2), lambda b, i: (i, b, 0, 0)),
        out_shape=jax.ShapeDtypeStruct((N, B, Lc, 2 * H2), jnp.float32),
        compiler_params=pltpu.CompilerParams(
            dimension_semantics=("parallel", "parallel"),
            vmem_limit_bytes=_vmem_limit(block_bytes)),
    )(d_bf, rnd_bf, d_bf, rnd_bf, d_gate)


# ------------------------- Plain-JAX glue (encoders) -------------------------

def _uniform(key, shape, scale):
    return jax.random.uniform(key, shape, jnp.float32, -scale, scale)


def init_lstm(key, in_dim, hidden):
    s = 1.0 / math.sqrt(hidden)
    ks = jax.random.split(key, 8)
    names = ['Wih_f', 'Whh_f', 'bih_f', 'bhh_f', 'Wih_b', 'Whh_b', 'bih_b', 'bhh_b']
    shapes = [(4 * hidden, in_dim), (4 * hidden, hidden), (4 * hidden,), (4 * hidden,)] * 2
    return {n: _uniform(k, sh, s) for n, k, sh in zip(names, ks, shapes)}


def _lstm_scan(Whh, xs_proj, hidden):
    # xs_proj: (L, B, 4H) = Wih@x + bih + bhh already applied; PyTorch gate order i,f,g,o.
    B = xs_proj.shape[1]

    def step(carry, xp):
        h, c = carry
        gates = xp + h @ Whh.T
        i, f, g, o = jnp.split(gates, 4, axis=-1)
        i = jax.nn.sigmoid(i)
        f = jax.nn.sigmoid(f)
        g = jnp.tanh(g)
        o = jax.nn.sigmoid(o)
        c = f * c + i * g
        h = o * jnp.tanh(c)
        return (h, c), h

    init = (jnp.zeros((B, hidden), xs_proj.dtype), jnp.zeros((B, hidden), xs_proj.dtype))
    _, hs = lax.scan(step, init, xs_proj)
    return hs


def bilstm(p, parts, hidden=HIDDEN):
    """BiLSTM over split input features.

    parts: list of (B, L, d_k) arrays whose feature dims concatenate to the LSTM input.
    Each part multiplies its own column slice of Wih, so the 258/514-lane concatenation
    of the reference is never materialized. Dropout disabled (eval mode).
    """
    def in_proj(Wih, bih, bhh):
        out = None
        off = 0
        for xk in parts:
            dk = xk.shape[-1]
            t = jnp.einsum('bld,gd->blg', xk.astype(jnp.float32), Wih[:, off:off + dk])
            out = t if out is None else out + t
            off += dk
        return out + (bih + bhh)

    xs_f = jnp.swapaxes(in_proj(p['Wih_f'], p['bih_f'], p['bhh_f']), 0, 1)  # (L,B,4H)
    xs_b = jnp.swapaxes(in_proj(p['Wih_b'], p['bih_b'], p['bhh_b']), 0, 1)
    fwd = _lstm_scan(p['Whh_f'], xs_f, hidden)
    bwd = _lstm_scan(p['Whh_b'], xs_b[::-1], hidden)[::-1]
    return jnp.swapaxes(jnp.concatenate([fwd, bwd], axis=-1), 0, 1)        # (B,L,2H)


def init_params(key, vocab):
    ks = jax.random.split(key, 10)
    return {
        # TODO(synk): Word2VecEmbedding loads pretrained vectors from HDF5; random init here.
        'fixed_emb': 0.1 * jax.random.normal(ks[0], (vocab, EMB), jnp.float32),
        'delta_emb': _uniform(ks[1], (vocab, EMB), 0.1),
        'context_lstm': init_lstm(ks[2], EMB, HIDDEN),
        'q_reason_lstm': init_lstm(ks[3], 2 * HIDDEN + 2, HIDDEN),
        'c_reason_lstm': init_lstm(ks[4], 4 * HIDDEN + 2, HIDDEN),
        'reason_gate_w': _uniform(ks[5], (2 * HIDDEN,), 1.0 / math.sqrt(2 * HIDDEN)),
        'reason_gate_b': jnp.zeros((), jnp.float32),
        'noise_gate_w': _uniform(ks[6], (1, 4 * HIDDEN), 1.0 / math.sqrt(4 * HIDDEN)),
        'noise_gate_b': jnp.zeros((1, 1), jnp.float32),
        'decision_w': _uniform(ks[7], (1, 8 * HIDDEN), math.sqrt(6.0 / (8 * HIDDEN + 1))),
        'decision_b': jnp.zeros((1, 1), jnp.float32),
    }


def seareader_forward(params, contents, question_ans, logics):
    B, N, Lc = contents.shape
    Lq = question_ans.shape[1]
    H2 = 2 * HIDDEN

    def embed(ids):
        # fixed Word2Vec embedding + trainable delta embedding
        return params['fixed_emb'][ids] + params['delta_emb'][ids]

    # ---- encoding (context_layer BiLSTM); doc axis folded into batch ----
    q_enc = bilstm(params['context_lstm'], [embed(question_ans)])            # (B, Lq, 2H)
    c_ids = jnp.transpose(contents, (1, 0, 2)).reshape(N * B, Lc)
    d_enc = bilstm(params['context_lstm'], [embed(c_ids)]).reshape(N, B, Lc, H2)

    # ---- reasoning gating values ----
    # TODO(synk): My_gate_layer internals unknown; assumed Linear(256,1)+sigmoid per position.
    gw = params['reason_gate_w'][:, None]
    gb = params['reason_gate_b']
    q_gate = jax.nn.sigmoid(q_enc @ gw + gb) + 1e-8                          # (B, Lq, 1)
    d_gate = jax.nn.sigmoid(d_enc @ gw + gb) + 1e-8                          # (N, B, Lc, 1)

    # bf16 I/O for the Pallas kernels (softmax/accumulation stays f32 in-kernel)
    q_bf = q_enc.astype(jnp.bfloat16)
    d_bf = d_enc.astype(jnp.bfloat16)

    # ---- matching stage (Pallas kernel; gate fused, lane-dense outputs) ----
    rnq_g, qstats_g, rnd_bf, dstats_g = run_match(q_bf, d_bf, q_gate, d_gate)

    # ---- cross-document attention (Pallas kernel; single joint softmax, gate fused) ----
    rmd_g = run_crossdoc(d_bf, rnd_bf, d_gate)                               # (N, B, Lc, 4H)

    # ---- per-document reasoning BiLSTMs, batched over docs, split-feature inputs ----
    # TODO(synk): sequence masks from compute_mask are ignored (no padding in these inputs).
    rnq_out = bilstm(params['q_reason_lstm'],
                     [rnq_g.reshape(N * B, Lq, H2),
                      qstats_g.reshape(N * B, Lq, 2)]).reshape(N, B, Lq, H2)
    rmd_out = bilstm(params['c_reason_lstm'],
                     [rmd_g.reshape(N * B, Lc, 2 * H2),
                      dstats_g.reshape(N * B, Lc, 2)]).reshape(N, B, Lc, H2)

    feats = jnp.concatenate(
        [jnp.max(rnq_out, axis=2), jnp.max(rmd_out, axis=2)], axis=-1)       # (N, B, 4H)
    reasoning_feature = jnp.transpose(feats, (1, 0, 2))                      # (B, N, 4H)

    # ---- decision stage (plain JAX: tiny, launch overhead would dominate a kernel) ----
    # TODO(synk): Noise_gate internals unknown; assumed Linear(512,1)+sigmoid.
    ngate = jax.nn.sigmoid(
        jnp.einsum('bnh,oh->bno', reasoning_feature, params['noise_gate_w'])
        + params['noise_gate_b'])                                            # (B, N, 1)
    gated = reasoning_feature * ngate
    pooled = jnp.concatenate([jnp.max(gated, axis=1), jnp.mean(gated, axis=1)], axis=-1)
    decision = pooled @ params['decision_w'].T + params['decision_b']        # (B, 1)

    output = decision * logics.reshape(B, 1)
    return output.reshape(B // 5, 5)


if __name__ == "__main__":
    key = jax.random.PRNGKey(0)
    B, N, Lc, Lq, V = 10, 3, 16, 16, 128   # batch must be a multiple of 5 (final view B/5 x 5)
    kp, kc, kq, kl = jax.random.split(key, 4)

    params = init_params(kp, V)
    contents = jax.random.randint(kc, (B, N, Lc), 1, V, dtype=jnp.int32)
    question_ans = jax.random.randint(kq, (B, Lq), 1, V, dtype=jnp.int32)
    logics = jnp.where(jax.random.bernoulli(kl, 0.5, (B,)), 1.0, -1.0).astype(jnp.float32)

    fwd = jax.jit(seareader_forward)
    out = fwd(params, contents, question_ans, logics)
    jax.block_until_ready(out)
    assert out.shape == (B // 5, 5) and out.dtype == jnp.float32
    print("KERNEL_OK")
</pallas_src>

<mosaic_0001>
module attributes {stable_mosaic.version = 11 : i64} {
  func.func @match_kernel(%arg0: i32, %arg1: i32, %arg2: memref<5x16x256xbf16, #tpu.memory_space<vmem>>, %arg3: memref<5x16x1xf32, #tpu.memory_space<vmem>>, %arg4: memref<1x5x16x256xbf16, #tpu.memory_space<vmem>>, %arg5: memref<1x5x16x1xf32, #tpu.memory_space<vmem>>, %arg6: memref<1x5x16x256xf32, #tpu.memory_space<vmem>>, %arg7: memref<1x5x16x2xf32, #tpu.memory_space<vmem>>, %arg8: memref<1x5x16x256xbf16, #tpu.memory_space<vmem>>, %arg9: memref<1x5x16x2xf32, #tpu.memory_space<vmem>>) attributes {dimension_semantics = [#tpu.dimension_semantics<parallel>, #tpu.dimension_semantics<parallel>], iteration_bounds = array<i64: 2, 3>, scalar_prefetch = 0 : i64, scratch_operands = 0 : i64, tpu.core_type = #tpu.core_type<tc>, window_params = [{transform_indices = @transform_0, window_bounds = array<i64: 5, 16, 256>}, {transform_indices = @transform_1, window_bounds = array<i64: 5, 16, 1>}, {transform_indices = @transform_2, window_bounds = array<i64: 1, 5, 16, 256>}, {transform_indices = @transform_3, window_bounds = array<i64: 1, 5, 16, 1>}, {transform_indices = @transform_4, window_bounds = array<i64: 1, 5, 16, 256>}, {transform_indices = @transform_5, window_bounds = array<i64: 1, 5, 16, 2>}, {transform_indices = @transform_6, window_bounds = array<i64: 1, 5, 16, 256>}, {transform_indices = @transform_7, window_bounds = array<i64: 1, 5, 16, 2>}]} {
    %c0 = arith.constant 0 : index
    %c0_0 = arith.constant 0 : index
    %c0_1 = arith.constant 0 : index
    %0 = vector.load %arg2[%c0, %c0_0, %c0_1] : memref<5x16x256xbf16, #tpu.memory_space<vmem>>, vector<5x16x256xbf16>
    %c0_2 = arith.constant 0 : index
    %c0_3 = arith.constant 0 : index
    %c0_4 = arith.constant 0 : index
    %c0_5 = arith.constant 0 : index
    %1 = vector.load %arg4[%c0_2, %c0_3, %c0_4, %c0_5] : memref<1x5x16x256xbf16, #tpu.memory_space<vmem>>, vector<1x5x16x256xbf16>
    %2 = vector.shape_cast %1 : vector<1x5x16x256xbf16> to vector<5x16x256xbf16>
    "tpu.trace_start"() <{level = 10 : i32, message = "bqh,bkh->bqk"}> : () -> ()
    %cst = arith.constant dense<0.000000e+00> : vector<5x16x16xf32>
    %3 = tpu.matmul %0, %2, %cst {dimension_numbers = #tpu.dot_dimension_numbers<[2], [2], [1], [1], [0, 0, 0, 1, 1, 1], [0], [0]>} : vector<5x16x256xbf16>, vector<5x16x256xbf16>, vector<5x16x16xf32> -> vector<5x16x16xf32>
    "tpu.trace_stop"() : () -> ()
    "tpu.trace_start"() <{level = 10 : i32, message = "bkh,bqh->bkq"}> : () -> ()
    %cst_6 = arith.constant dense<0.000000e+00> : vector<5x16x16xf32>
    %4 = tpu.matmul %2, %0, %cst_6 {dimension_numbers = #tpu.dot_dimension_numbers<[2], [2], [1], [1], [0, 0, 0, 1, 1, 1], [0], [0]>} : vector<5x16x256xbf16>, vector<5x16x256xbf16>, vector<5x16x16xf32> -> vector<5x16x16xf32>
    "tpu.trace_stop"() : () -> ()
    %cst_7 = arith.constant dense<0xFF800000> : vector<5x16xf32>
    %5 = vector.multi_reduction <maximumf>, %3, %cst_7 [2] : vector<5x16x16xf32> to vector<5x16xf32>
    %6 = vector.shape_cast %5 : vector<5x16xf32> to vector<5x16x1xf32>
    %7 = vector.broadcast %6 : vector<5x16x1xf32> to vector<5x16x16xf32>
    %8 = arith.subf %3, %7 : vector<5x16x16xf32>
    %9 = math.exp %8 : vector<5x16x16xf32>
    %cst_8 = arith.constant dense<0.000000e+00> : vector<5x16xf32>
    %10 = vector.multi_reduction <add>, %9, %cst_8 [2] : vector<5x16x16xf32> to vector<5x16xf32>
    %11 = vector.shape_cast %10 : vector<5x16xf32> to vector<5x16x1xf32>
    %12 = vector.broadcast %11 : vector<5x16x1xf32> to vector<5x16x16xf32>
    %13 = arith.divf %9, %12 : vector<5x16x16xf32>
    %cst_9 = arith.constant dense<0xFF800000> : vector<5x16xf32>
    %14 = vector.multi_reduction <maximumf>, %4, %cst_9 [2] : vector<5x16x16xf32> to vector<5x16xf32>
    %15 = vector.shape_cast %14 : vector<5x16xf32> to vector<5x16x1xf32>
    %16 = vector.broadcast %15 : vector<5x16x1xf32> to vector<5x16x16xf32>
    %17 = arith.subf %4, %16 : vector<5x16x16xf32>
    %18 = math.exp %17 : vector<5x16x16xf32>
    %cst_10 = arith.constant dense<0.000000e+00> : vector<5x16xf32>
    %19 = vector.multi_reduction <add>, %18, %cst_10 [2] : vector<5x16x16xf32> to vector<5x16xf32>
    %20 = vector.shape_cast %19 : vector<5x16xf32> to vector<5x16x1xf32>
    %21 = vector.broadcast %20 : vector<5x16x1xf32> to vector<5x16x16xf32>
    %22 = arith.divf %18, %21 : vector<5x16x16xf32>
    %23 = arith.truncf %13 : vector<5x16x16xf32> to vector<5x16x16xbf16>
    "tpu.trace_start"() <{level = 10 : i32, message = "bqk,bkh->bqh"}> : () -> ()
    %cst_11 = arith.constant dense<0.000000e+00> : vector<5x16x256xf32>
    %24 = tpu.matmul %23, %2, %cst_11 {dimension_numbers = #tpu.dot_dimension_numbers<[2], [1], [1], [2], [0, 0, 0, 1, 1, 2], [0], [0]>} : vector<5x16x16xbf16>, vector<5x16x256xbf16>, vector<5x16x256xf32> -> vector<5x16x256xf32>
    "tpu.trace_stop"() : () -> ()
    %25 = arith.truncf %22 : vector<5x16x16xf32> to vector<5x16x16xbf16>
    "tpu.trace_start"() <{level = 10 : i32, message = "bkq,bqh->bkh"}> : () -> ()
    %cst_12 = arith.constant dense<0.000000e+00> : vector<5x16x256xf32>
    %26 = tpu.matmul %25, %0, %cst_12 {dimension_numbers = #tpu.dot_dimension_numbers<[2], [1], [1], [2], [0, 0, 0, 1, 1, 2], [0], [0]>} : vector<5x16x16xbf16>, vector<5x16x256xbf16>, vector<5x16x256xf32> -> vector<5x16x256xf32>
    "tpu.trace_stop"() : () -> ()
    %c0_13 = arith.constant 0 : index
    %c0_14 = arith.constant 0 : index
    %c0_15 = arith.constant 0 : index
    %27 = vector.load %arg3[%c0_13, %c0_14, %c0_15] : memref<5x16x1xf32, #tpu.memory_space<vmem>>, vector<5x16x1xf32>
    %c0_16 = arith.constant 0 : index
    %c0_17 = arith.constant 0 : index
    %c0_18 = arith.constant 0 : index
    %c0_19 = arith.constant 0 : index
    %28 = vector.load %arg5[%c0_16, %c0_17, %c0_18, %c0_19] : memref<1x5x16x1xf32, #tpu.memory_space<vmem>>, vector<1x5x16x1xf32>
    %29 = vector.shape_cast %28 : vector<1x5x16x1xf32> to vector<5x16x1xf32>
    %30 = vector.broadcast %27 : vector<5x16x1xf32> to vector<5x16x256xf32>
    %31 = arith.mulf %24, %30 : vector<5x16x256xf32>
    %c0_20 = arith.constant 0 : index
    %c0_21 = arith.constant 0 : index
    %c0_22 = arith.constant 0 : index
    %c0_23 = arith.constant 0 : index
    %32 = vector.load %arg6[%c0_20, %c0_21, %c0_22, %c0_23] : memref<1x5x16x256xf32, #tpu.memory_space<vmem>>, vector<1x5x16x256xf32>
    %33 = vector.shape_cast %32 : vector<1x5x16x256xf32> to vector<5x16x256xf32>
    %34 = vector.shape_cast %31 : vector<5x16x256xf32> to vector<1x5x16x256xf32>
    tpu.vector_store %arg6[%c0_20, %c0_21, %c0_22, %c0_23], %34 {strides = array<i32>} : memref<1x5x16x256xf32, #tpu.memory_space<vmem>>, vector<1x5x16x256xf32>,
    %cst_24 = arith.constant dense<0xFF800000> : vector<5x16xf32>
    %35 = vector.multi_reduction <maximumf>, %3, %cst_24 [2] : vector<5x16x16xf32> to vector<5x16xf32>
    %36 = vector.shape_cast %35 : vector<5x16xf32> to vector<5x16x1xf32>
    %cst_25 = arith.constant dense<0.000000e+00> : vector<5x16xf32>
    %37 = vector.multi_reduction <add>, %3, %cst_25 [2] : vector<5x16x16xf32> to vector<5x16xf32>
    %38 = vector.shape_cast %37 : vector<5x16xf32> to vector<5x16x1xf32>
    %cst_26 = arith.constant 1.600000e+01 : f32
    %39 = vector.broadcast %cst_26 : f32 to vector<5x16x1xf32>
    %40 = arith.divf %38, %39 : vector<5x16x1xf32>
    %41 = tpu.concatenate %36, %40 in 2 : vector<5x16x1xf32>, vector<5x16x1xf32> -> vector<5x16x2xf32>
    %42 = vector.broadcast %27 : vector<5x16x1xf32> to vector<5x16x2xf32>
    %43 = arith.mulf %41, %42 : vector<5x16x2xf32>
    %c0_27 = arith.constant 0 : index
    %c0_28 = arith.constant 0 : index
    %c0_29 = arith.constant 0 : index
    %c0_30 = arith.constant 0 : index
    %44 = vector.load %arg7[%c0_27, %c0_28, %c0_29, %c0_30] : memref<1x5x16x2xf32, #tpu.memory_space<vmem>>, vector<1x5x16x2xf32>
    %45 = vector.shape_cast %44 : vector<1x5x16x2xf32> to vector<5x16x2xf32>
    %46 = vector.shape_cast %43 : vector<5x16x2xf32> to vector<1x5x16x2xf32>
    tpu.vector_store %arg7[%c0_27, %c0_28, %c0_29, %c0_30], %46 {strides = array<i32>} : memref<1x5x16x2xf32, #tpu.memory_space<vmem>>, vector<1x5x16x2xf32>,
    %47 = arith.truncf %26 : vector<5x16x256xf32> to vector<5x16x256xbf16>
    %c0_31 = arith.constant 0 : index
    %c0_32 = arith.constant 0 : index
    %c0_33 = arith.constant 0 : index
    %c0_34 = arith.constant 0 : index
    %48 = vector.load %arg8[%c0_31, %c0_32, %c0_33, %c0_34] : memref<1x5x16x256xbf16, #tpu.memory_space<vmem>>, vector<1x5x16x256xbf16>
    %49 = vector.shape_cast %48 : vector<1x5x16x256xbf16> to vector<5x16x256xbf16>
    %50 = vector.shape_cast %47 : vector<5x16x256xbf16> to vector<1x5x16x256xbf16>
    tpu.vector_store %arg8[%c0_31, %c0_32, %c0_33, %c0_34], %50 {strides = array<i32>} : memref<1x5x16x256xbf16, #tpu.memory_space<vmem>>, vector<1x5x16x256xbf16>,
    %cst_35 = arith.constant dense<0xFF800000> : vector<5x16xf32>
    %51 = vector.multi_reduction <maximumf>, %4, %cst_35 [2] : vector<5x16x16xf32> to vector<5x16xf32>
    %52 = vector.shape_cast %51 : vector<5x16xf32> to vector<5x16x1xf32>
    %cst_36 = arith.constant dense<0.000000e+00> : vector<5x16xf32>
    %53 = vector.multi_reduction <add>, %4, %cst_36 [2] : vector<5x16x16xf32> to vector<5x16xf32>
    %54 = vector.shape_cast %53 : vector<5x16xf32> to vector<5x16x1xf32>
    %cst_37 = arith.constant 1.600000e+01 : f32
    %55 = vector.broadcast %cst_37 : f32 to vector<5x16x1xf32>
    %56 = arith.divf %54, %55 : vector<5x16x1xf32>
    %57 = tpu.concatenate %52, %56 in 2 : vector<5x16x1xf32>, vector<5x16x1xf32> -> vector<5x16x2xf32>
    %58 = vector.broadcast %29 : vector<5x16x1xf32> to vector<5x16x2xf32>
    %59 = arith.mulf %57, %58 : vector<5x16x2xf32>
    %c0_38 = arith.constant 0 : index
    %c0_39 = arith.constant 0 : index
    %c0_40 = arith.constant 0 : index
    %c0_41 = arith.constant 0 : index
    %60 = vector.load %arg9[%c0_38, %c0_39, %c0_40, %c0_41] : memref<1x5x16x2xf32, #tpu.memory_space<vmem>>, vector<1x5x16x2xf32>
    %61 = vector.shape_cast %60 : vector<1x5x16x2xf32> to vector<5x16x2xf32>
    %62 = vector.shape_cast %59 : vector<5x16x2xf32> to vector<1x5x16x2xf32>
    tpu.vector_store %arg9[%c0_38, %c0_39, %c0_40, %c0_41], %62 {strides = array<i32>} : memref<1x5x16x2xf32, #tpu.memory_space<vmem>>, vector<1x5x16x2xf32>,
    return
  }
  func.func @transform_0(%arg0: i32, %arg1: i32) -> (i32, i32, i32) {
    %c0_i32 = arith.constant 0 : i32
    %c0_i32_0 = arith.constant 0 : i32
    %c0_i32_1 = arith.constant 0 : i32
    return %arg0, %c0_i32, %c0_i32_0 : i32, i32, i32
  }
  func.func @transform_1(%arg0: i32, %arg1: i32) -> (i32, i32, i32) {
    %c0_i32 = arith.constant 0 : i32
    %c0_i32_0 = arith.constant 0 : i32
    %c0_i32_1 = arith.constant 0 : i32
    return %arg0, %c0_i32, %c0_i32_0 : i32, i32, i32
  }
  func.func @transform_2(%arg0: i32, %arg1: i32) -> (i32, i32, i32, i32) {
    %c0_i32 = arith.constant 0 : i32
    %c0_i32_0 = arith.constant 0 : i32
    %c0_i32_1 = arith.constant 0 : i32
    return %arg1, %arg0, %c0_i32, %c0_i32_0 : i32, i32, i32, i32
  }
  func.func @transform_3(%arg0: i32, %arg1: i32) -> (i32, i32, i32, i32) {
    %c0_i32 = arith.constant 0 : i32
    %c0_i32_0 = arith.constant 0 : i32
    %c0_i32_1 = arith.constant 0 : i32
    return %arg1, %arg0, %c0_i32, %c0_i32_0 : i32, i32, i32, i32
  }
  func.func @transform_4(%arg0: i32, %arg1: i32) -> (i32, i32, i32, i32) {
    %c0_i32 = arith.constant 0 : i32
    %c0_i32_0 = arith.constant 0 : i32
    %c0_i32_1 = arith.constant 0 : i32
    return %arg1, %arg0, %c0_i32, %c0_i32_0 : i32, i32, i32, i32
  }
  func.func @transform_5(%arg0: i32, %arg1: i32) -> (i32, i32, i32, i32) {
    %c0_i32 = arith.constant 0 : i32
    %c0_i32_0 = arith.constant 0 : i32
    %c0_i32_1 = arith.constant 0 : i32
    return %arg1, %arg0, %c0_i32, %c0_i32_0 : i32, i32, i32, i32
  }
  func.func @transform_6(%arg0: i32, %arg1: i32) -> (i32, i32, i32, i32) {
    %c0_i32 = arith.constant 0 : i32
    %c0_i32_0 = arith.constant 0 : i32
    %c0_i32_1 = arith.constant 0 : i32
    return %arg1, %arg0, %c0_i32, %c0_i32_0 : i32, i32, i32, i32
  }
  func.func @transform_7(%arg0: i32, %arg1: i32) -> (i32, i32, i32, i32) {
    %c0_i32 = arith.constant 0 : i32
    %c0_i32_0 = arith.constant 0 : i32
    %c0_i32_1 = arith.constant 0 : i32
    return %arg1, %arg0, %c0_i32, %c0_i32_0 : i32, i32, i32, i32
  }
}

module attributes {stable_mosaic.version = 11 : i64} {
  func.func @crossdoc_kernel(%arg0: i32, %arg1: i32, %arg2: memref<1x5x16x256xbf16, #tpu.memory_space<vmem>>, %arg3: memref<1x5x16x256xbf16, #tpu.memory_space<vmem>>, %arg4: memref<3x5x16x256xbf16, #tpu.memory_space<vmem>>, %arg5: memref<3x5x16x256xbf16, #tpu.memory_space<vmem>>, %arg6: memref<1x5x16x1xf32, #tpu.memory_space<vmem>>, %arg7: memref<1x5x16x512xf32, #tpu.memory_space<vmem>>) attributes {dimension_semantics = [#tpu.dimension_semantics<parallel>, #tpu.dimension_semantics<parallel>], iteration_bounds = array<i64: 2, 3>, scalar_prefetch = 0 : i64, scratch_operands = 0 : i64, tpu.core_type = #tpu.core_type<tc>, window_params = [{transform_indices = @transform_0, window_bounds = array<i64: 1, 5, 16, 256>}, {transform_indices = @transform_1, window_bounds = array<i64: 1, 5, 16, 256>}, {transform_indices = @transform_2, window_bounds = array<i64: 3, 5, 16, 256>}, {transform_indices = @transform_3, window_bounds = array<i64: 3, 5, 16, 256>}, {transform_indices = @transform_4, window_bounds = array<i64: 1, 5, 16, 1>}, {transform_indices = @transform_5, window_bounds = array<i64: 1, 5, 16, 512>}]} {
    %c0 = arith.constant 0 : index
    %c0_0 = arith.constant 0 : index
    %c0_1 = arith.constant 0 : index
    %c0_2 = arith.constant 0 : index
    %0 = vector.load %arg2[%c0, %c0_0, %c0_1, %c0_2] : memref<1x5x16x256xbf16, #tpu.memory_space<vmem>>, vector<1x5x16x256xbf16>
    %1 = vector.shape_cast %0 : vector<1x5x16x256xbf16> to vector<5x16x256xbf16>
    %c0_3 = arith.constant 0 : index
    %c0_4 = arith.constant 0 : index
    %c0_5 = arith.constant 0 : index
    %c0_6 = arith.constant 0 : index
    %2 = vector.load %arg3[%c0_3, %c0_4, %c0_5, %c0_6] : memref<1x5x16x256xbf16, #tpu.memory_space<vmem>>, vector<1x5x16x256xbf16>
    %3 = vector.shape_cast %2 : vector<1x5x16x256xbf16> to vector<5x16x256xbf16>
    %c0_7 = arith.constant 0 : index
    %c0_8 = arith.constant 0 : index
    %c0_9 = arith.constant 0 : index
    %c0_10 = arith.constant 0 : index
    %4 = vector.load %arg4[%c0_7, %c0_8, %c0_9, %c0_10] : memref<3x5x16x256xbf16, #tpu.memory_space<vmem>>, vector<1x5x16x256xbf16>
    %5 = vector.shape_cast %4 : vector<1x5x16x256xbf16> to vector<5x16x256xbf16>
    %c1 = arith.constant 1 : index
    %c0_11 = arith.constant 0 : index
    %c0_12 = arith.constant 0 : index
    %c0_13 = arith.constant 0 : index
    %6 = vector.load %arg4[%c1, %c0_11, %c0_12, %c0_13] : memref<3x5x16x256xbf16, #tpu.memory_space<vmem>>, vector<1x5x16x256xbf16>
    %7 = vector.shape_cast %6 : vector<1x5x16x256xbf16> to vector<5x16x256xbf16>
    %c2 = arith.constant 2 : index
    %c0_14 = arith.constant 0 : index
    %c0_15 = arith.constant 0 : index
    %c0_16 = arith.constant 0 : index
    %8 = vector.load %arg4[%c2, %c0_14, %c0_15, %c0_16] : memref<3x5x16x256xbf16, #tpu.memory_space<vmem>>, vector<1x5x16x256xbf16>
    %9 = vector.shape_cast %8 : vector<1x5x16x256xbf16> to vector<5x16x256xbf16>
    %c0_17 = arith.constant 0 : index
    %c0_18 = arith.constant 0 : index
    %c0_19 = arith.constant 0 : index
    %c0_20 = arith.constant 0 : index
    %10 = vector.load %arg5[%c0_17, %c0_18, %c0_19, %c0_20] : memref<3x5x16x256xbf16, #tpu.memory_space<vmem>>, vector<1x5x16x256xbf16>
    %11 = vector.shape_cast %10 : vector<1x5x16x256xbf16> to vector<5x16x256xbf16>
    %c1_21 = arith.constant 1 : index
    %c0_22 = arith.constant 0 : index
    %c0_23 = arith.constant 0 : index
    %c0_24 = arith.constant 0 : index
    %12 = vector.load %arg5[%c1_21, %c0_22, %c0_23, %c0_24] : memref<3x5x16x256xbf16, #tpu.memory_space<vmem>>, vector<1x5x16x256xbf16>
    %13 = vector.shape_cast %12 : vector<1x5x16x256xbf16> to vector<5x16x256xbf16>
    %c2_25 = arith.constant 2 : index
    %c0_26 = arith.constant 0 : index
    %c0_27 = arith.constant 0 : index
    %c0_28 = arith.constant 0 : index
    %14 = vector.load %arg5[%c2_25, %c0_26, %c0_27, %c0_28] : memref<3x5x16x256xbf16, #tpu.memory_space<vmem>>, vector<1x5x16x256xbf16>
    %15 = vector.shape_cast %14 : vector<1x5x16x256xbf16> to vector<5x16x256xbf16>
    "tpu.trace_start"() <{level = 10 : i32, message = "blh,bkh->blk"}> : () -> ()
    %cst = arith.constant dense<0.000000e+00> : vector<5x16x16xf32>
    %16 = tpu.matmul %1, %5, %cst {dimension_numbers = #tpu.dot_dimension_numbers<[2], [2], [1], [1], [0, 0, 0, 1, 1, 1], [0], [0]>} : vector<5x16x256xbf16>, vector<5x16x256xbf16>, vector<5x16x16xf32> -> vector<5x16x16xf32>
    %cst_29 = arith.constant dense<0.000000e+00> : vector<5x16x16xf32>
    %17 = tpu.matmul %3, %11, %cst_29 {dimension_numbers = #tpu.dot_dimension_numbers<[2], [2], [1], [1], [0, 0, 0, 1, 1, 1], [0], [0]>} : vector<5x16x256xbf16>, vector<5x16x256xbf16>, vector<5x16x16xf32> -> vector<5x16x16xf32>
    "tpu.trace_stop"() : () -> ()
    %18 = arith.addf %16, %17 : vector<5x16x16xf32>
    "tpu.trace_start"() <{level = 10 : i32, message = "blh,bkh->blk"}> : () -> ()
    %cst_30 = arith.constant dense<0.000000e+00> : vector<5x16x16xf32>
    %19 = tpu.matmul %1, %7, %cst_30 {dimension_numbers = #tpu.dot_dimension_numbers<[2], [2], [1], [1], [0, 0, 0, 1, 1, 1], [0], [0]>} : vector<5x16x256xbf16>, vector<5x16x256xbf16>, vector<5x16x16xf32> -> vector<5x16x16xf32>
    %cst_31 = arith.constant dense<0.000000e+00> : vector<5x16x16xf32>
    %20 = tpu.matmul %3, %13, %cst_31 {dimension_numbers = #tpu.dot_dimension_numbers<[2], [2], [1], [1], [0, 0, 0, 1, 1, 1], [0], [0]>} : vector<5x16x256xbf16>, vector<5x16x256xbf16>, vector<5x16x16xf32> -> vector<5x16x16xf32>
    "tpu.trace_stop"() : () -> ()
    %21 = arith.addf %19, %20 : vector<5x16x16xf32>
    "tpu.trace_start"() <{level = 10 : i32, message = "blh,bkh->blk"}> : () -> ()
    %cst_32 = arith.constant dense<0.000000e+00> : vector<5x16x16xf32>
    %22 = tpu.matmul %1, %9, %cst_32 {dimension_numbers = #tpu.dot_dimension_numbers<[2], [2], [1], [1], [0, 0, 0, 1, 1, 1], [0], [0]>} : vector<5x16x256xbf16>, vector<5x16x256xbf16>, vector<5x16x16xf32> -> vector<5x16x16xf32>
    %cst_33 = arith.constant dense<0.000000e+00> : vector<5x16x16xf32>
    %23 = tpu.matmul %3, %15, %cst_33 {dimension_numbers = #tpu.dot_dimension_numbers<[2], [2], [1], [1], [0, 0, 0, 1, 1, 1], [0], [0]>} : vector<5x16x256xbf16>, vector<5x16x256xbf16>, vector<5x16x16xf32> -> vector<5x16x16xf32>
    "tpu.trace_stop"() : () -> ()
    %24 = arith.addf %22, %23 : vector<5x16x16xf32>
    %cst_34 = arith.constant dense<0xFF800000> : vector<5x16xf32>
    %25 = vector.multi_reduction <maximumf>, %18, %cst_34 [2] : vector<5x16x16xf32> to vector<5x16xf32>
    %26 = vector.shape_cast %25 : vector<5x16xf32> to vector<5x16x1xf32>
    %cst_35 = arith.constant dense<0xFF800000> : vector<5x16xf32>
    %27 = vector.multi_reduction <maximumf>, %21, %cst_35 [2] : vector<5x16x16xf32> to vector<5x16xf32>
    %28 = vector.shape_cast %27 : vector<5x16xf32> to vector<5x16x1xf32>
    %29 = arith.maximumf %26, %28 : vector<5x16x1xf32>
    %cst_36 = arith.constant dense<0xFF800000> : vector<5x16xf32>
    %30 = vector.multi_reduction <maximumf>, %24, %cst_36 [2] : vector<5x16x16xf32> to vector<5x16xf32>
    %31 = vector.shape_cast %30 : vector<5x16xf32> to vector<5x16x1xf32>
    %32 = arith.maximumf %29, %31 : vector<5x16x1xf32>
    %33 = vector.broadcast %32 : vector<5x16x1xf32> to vector<5x16x16xf32>
    %34 = arith.subf %18, %33 : vector<5x16x16xf32>
    %35 = math.exp %34 : vector<5x16x16xf32>
    %36 = vector.broadcast %32 : vector<5x16x1xf32> to vector<5x16x16xf32>
    %37 = arith.subf %21, %36 : vector<5x16x16xf32>
    %38 = math.exp %37 : vector<5x16x16xf32>
    %39 = vector.broadcast %32 : vector<5x16x1xf32> to vector<5x16x16xf32>
    %40 = arith.subf %24, %39 : vector<5x16x16xf32>
    %41 = math.exp %40 : vector<5x16x16xf32>
    %cst_37 = arith.constant dense<0.000000e+00> : vector<5x16xf32>
    %42 = vector.multi_reduction <add>, %35, %cst_37 [2] : vector<5x16x16xf32> to vector<5x16xf32>
    %43 = vector.shape_cast %42 : vector<5x16xf32> to vector<5x16x1xf32>
    %cst_38 = arith.constant dense<0.000000e+00> : vector<5x16xf32>
    %44 = vector.multi_reduction <add>, %38, %cst_38 [2] : vector<5x16x16xf32> to vector<5x16xf32>
    %45 = vector.shape_cast %44 : vector<5x16xf32> to vector<5x16x1xf32>
    %46 = arith.addf %43, %45 : vector<5x16x1xf32>
    %cst_39 = arith.constant dense<0.000000e+00> : vector<5x16xf32>
    %47 = vector.multi_reduction <add>, %41, %cst_39 [2] : vector<5x16x16xf32> to vector<5x16xf32>
    %48 = vector.shape_cast %47 : vector<5x16xf32> to vector<5x16x1xf32>
    %49 = arith.addf %46, %48 : vector<5x16x1xf32>
    %cst_40 = arith.constant 1.000000e+00 : f32
    %50 = vector.broadcast %cst_40 : f32 to vector<5x16x1xf32>
    %51 = arith.divf %50, %49 : vector<5x16x1xf32>
    %52 = arith.truncf %35 : vector<5x16x16xf32> to vector<5x16x16xbf16>
    "tpu.trace_start"() <{level = 10 : i32, message = "blk,bkh->blh"}> : () -> ()
    %cst_41 = arith.constant dense<0.000000e+00> : vector<5x16x256xf32>
    %53 = tpu.matmul %52, %5, %cst_41 {dimension_numbers = #tpu.dot_dimension_numbers<[2], [1], [1], [2], [0, 0, 0, 1, 1, 2], [0], [0]>} : vector<5x16x16xbf16>, vector<5x16x256xbf16>, vector<5x16x256xf32> -> vector<5x16x256xf32>
    %cst_42 = arith.constant dense<0.000000e+00> : vector<5x16x256xf32>
    %54 = tpu.matmul %52, %11, %cst_42 {dimension_numbers = #tpu.dot_dimension_numbers<[2], [1], [1], [2], [0, 0, 0, 1, 1, 2], [0], [0]>} : vector<5x16x16xbf16>, vector<5x16x256xbf16>, vector<5x16x256xf32> -> vector<5x16x256xf32>
    "tpu.trace_stop"() : () -> ()
    %55 = arith.truncf %38 : vector<5x16x16xf32> to vector<5x16x16xbf16>
    "tpu.trace_start"() <{level = 10 : i32, message = "blk,bkh->blh"}> : () -> ()
    %cst_43 = arith.constant dense<0.000000e+00> : vector<5x16x256xf32>
    %56 = tpu.matmul %55, %7, %cst_43 {dimension_numbers = #tpu.dot_dimension_numbers<[2], [1], [1], [2], [0, 0, 0, 1, 1, 2], [0], [0]>} : vector<5x16x16xbf16>, vector<5x16x256xbf16>, vector<5x16x256xf32> -> vector<5x16x256xf32>
    %cst_44 = arith.constant dense<0.000000e+00> : vector<5x16x256xf32>
    %57 = tpu.matmul %55, %13, %cst_44 {dimension_numbers = #tpu.dot_dimension_numbers<[2], [1], [1], [2], [0, 0, 0, 1, 1, 2], [0], [0]>} : vector<5x16x16xbf16>, vector<5x16x256xbf16>, vector<5x16x256xf32> -> vector<5x16x256xf32>
    "tpu.trace_stop"() : () -> ()
    %58 = arith.addf %53, %56 : vector<5x16x256xf32>
    %59 = arith.addf %54, %57 : vector<5x16x256xf32>
    %60 = arith.truncf %41 : vector<5x16x16xf32> to vector<5x16x16xbf16>
    "tpu.trace_start"() <{level = 10 : i32, message = "blk,bkh->blh"}> : () -> ()
    %cst_45 = arith.constant dense<0.000000e+00> : vector<5x16x256xf32>
    %61 = tpu.matmul %60, %9, %cst_45 {dimension_numbers = #tpu.dot_dimension_numbers<[2], [1], [1], [2], [0, 0, 0, 1, 1, 2], [0], [0]>} : vector<5x16x16xbf16>, vector<5x16x256xbf16>, vector<5x16x256xf32> -> vector<5x16x256xf32>
    %cst_46 = arith.constant dense<0.000000e+00> : vector<5x16x256xf32>
    %62 = tpu.matmul %60, %15, %cst_46 {dimension_numbers = #tpu.dot_dimension_numbers<[2], [1], [1], [2], [0, 0, 0, 1, 1, 2], [0], [0]>} : vector<5x16x16xbf16>, vector<5x16x256xbf16>, vector<5x16x256xf32> -> vector<5x16x256xf32>
    "tpu.trace_stop"() : () -> ()
    %63 = arith.addf %58, %61 : vector<5x16x256xf32>
    %64 = arith.addf %59, %62 : vector<5x16x256xf32>
    %c0_47 = arith.constant 0 : index
    %c0_48 = arith.constant 0 : index
    %c0_49 = arith.constant 0 : index
    %c0_50 = arith.constant 0 : index
    %65 = vector.load %arg6[%c0_47, %c0_48, %c0_49, %c0_50] : memref<1x5x16x1xf32, #tpu.memory_space<vmem>>, vector<1x5x16x1xf32>
    %66 = vector.shape_cast %65 : vector<1x5x16x1xf32> to vector<5x16x1xf32>
    %67 = vector.broadcast %51 : vector<5x16x1xf32> to vector<5x16x256xf32>
    %68 = arith.mulf %63, %67 : vector<5x16x256xf32>
    %69 = vector.broadcast %66 : vector<5x16x1xf32> to vector<5x16x256xf32>
    %70 = arith.mulf %68, %69 : vector<5x16x256xf32>
    %c0_51 = arith.constant 0 : index
    %c0_52 = arith.constant 0 : index
    %c0_53 = arith.constant 0 : index
    %c0_54 = arith.constant 0 : index
    %71 = vector.load %arg7[%c0_51, %c0_52, %c0_53, %c0_54] : memref<1x5x16x512xf32, #tpu.memory_space<vmem>>, vector<1x5x16x256xf32>
    %72 = vector.shape_cast %71 : vector<1x5x16x256xf32> to vector<5x16x256xf32>
    %73 = vector.shape_cast %70 : vector<5x16x256xf32> to vector<1x5x16x256xf32>
    tpu.vector_store %arg7[%c0_51, %c0_52, %c0_53, %c0_54], %73 {strides = array<i32>} : memref<1x5x16x512xf32, #tpu.memory_space<vmem>>, vector<1x5x16x256xf32>,
    %74 = vector.broadcast %51 : vector<5x16x1xf32> to vector<5x16x256xf32>
    %75 = arith.mulf %64, %74 : vector<5x16x256xf32>
    %76 = vector.broadcast %66 : vector<5x16x1xf32> to vector<5x16x256xf32>
    %77 = arith.mulf %75, %76 : vector<5x16x256xf32>
    %c0_55 = arith.constant 0 : index
    %c0_56 = arith.constant 0 : index
    %c0_57 = arith.constant 0 : index
    %c256 = arith.constant 256 : index
    %78 = vector.load %arg7[%c0_55, %c0_56, %c0_57, %c256] : memref<1x5x16x512xf32, #tpu.memory_space<vmem>>, vector<1x5x16x256xf32>
    %79 = vector.shape_cast %78 : vector<1x5x16x256xf32> to vector<5x16x256xf32>
    %80 = vector.shape_cast %77 : vector<5x16x256xf32> to vector<1x5x16x256xf32>
    tpu.vector_store %arg7[%c0_55, %c0_56, %c0_57, %c256], %80 {strides = array<i32>} : memref<1x5x16x512xf32, #tpu.memory_space<vmem>>, vector<1x5x16x256xf32>,
    return
  }
  func.func @transform_0(%arg0: i32, %arg1: i32) -> (i32, i32, i32, i32) {
    %c0_i32 = arith.constant 0 : i32
    %c0_i32_0 = arith.constant 0 : i32
    %c0_i32_1 = arith.constant 0 : i32
    return %arg1, %arg0, %c0_i32, %c0_i32_0 : i32, i32, i32, i32
  }
  func.func @transform_1(%arg0: i32, %arg1: i32) -> (i32, i32, i32, i32) {
    %c0_i32 = arith.constant 0 : i32
    %c0_i32_0 = arith.constant 0 : i32
    %c0_i32_1 = arith.constant 0 : i32
    return %arg1, %arg0, %c0_i32, %c0_i32_0 : i32, i32, i32, i32
  }
  func.func @transform_2(%arg0: i32, %arg1: i32) -> (i32, i32, i32, i32) {
    %c0_i32 = arith.constant 0 : i32
    %c0_i32_0 = arith.constant 0 : i32
    %c0_i32_1 = arith.constant 0 : i32
    %c0_i32_2 = arith.constant 0 : i32
    return %c0_i32, %arg0, %c0_i32_0, %c0_i32_1 : i32, i32, i32, i32
  }
  func.func @transform_3(%arg0: i32, %arg1: i32) -> (i32, i32, i32, i32) {
    %c0_i32 = arith.constant 0 : i32
    %c0_i32_0 = arith.constant 0 : i32
    %c0_i32_1 = arith.constant 0 : i32
    %c0_i32_2 = arith.constant 0 : i32
    return %c0_i32, %arg0, %c0_i32_0, %c0_i32_1 : i32, i32, i32, i32
  }
  func.func @transform_4(%arg0: i32, %arg1: i32) -> (i32, i32, i32, i32) {
    %c0_i32 = arith.constant 0 : i32
    %c0_i32_0 = arith.constant 0 : i32
    %c0_i32_1 = arith.constant 0 : i32
    return %arg1, %arg0, %c0_i32, %c0_i32_0 : i32, i32, i32, i32
  }
  func.func @transform_5(%arg0: i32, %arg1: i32) -> (i32, i32, i32, i32) {
    %c0_i32 = arith.constant 0 : i32
    %c0_i32_0 = arith.constant 0 : i32
    %c0_i32_1 = arith.constant 0 : i32
    return %arg1, %arg0, %c0_i32, %c0_i32_0 : i32, i32, i32, i32
  }
}

</mosaic_0001>

<llo_original>
// kernel: custom-call.7
$region0: #{custom-call.7}
  %s0 = inlined_call_operand.vmem [shape: f32[30,128], index: 0, kind: output, shape index: {}]

// kernel: custom-call.6
$region0: #{custom-call.6}
  %s0 = inlined_call_operand.vmem [shape: bf16[30,128], index: 0, kind: output, shape index: {}]

// kernel: custom-call.2
$region0: #{custom-call.2}
  %s0 = inlined_call_operand.vmem [shape: f32[10,128], index: 0, kind: output, shape index: {}]

// kernel: seareader_forward.2
$region0: #{seareader_forward.2}
  #allocation0 [shape = 'u32[]', space=smem, size = 0x4, offset = 0x4, fixed_abs, tag = 'smem constant byte address 0x4 - core index']
  #allocation1 [shape = 'u32[144,128]{1,0:T(1,128)}', space=vmem, size = 0x12000, scoped, tag = 'internal scratch']
  %s0 = inlined_call_operand.vmem [shape: bf16[10,16,256], index: 0, kind: input, shape index: {}]
  %s1 = inlined_call_operand.vmem [shape: f32[10,16,1], index: 1, kind: input, shape index: {}]
  %s2 = inlined_call_operand.vmem [shape: bf16[3,10,16,256], index: 2, kind: input, shape index: {}]
  %s3 = inlined_call_operand.vmem [shape: f32[3,10,16,1], index: 3, kind: input, shape index: {}]
  %s4 = inlined_call_operand.vmem [shape: f32[3,10,16,256], index: 4, kind: output, shape index: {0}]
  %s5 = inlined_call_operand.vmem [shape: f32[3,10,16,2], index: 5, kind: output, shape index: {1}]
  %s6 = inlined_call_operand.vmem [shape: bf16[3,10,16,256], index: 6, kind: output, shape index: {2}]
  %s7 = inlined_call_operand.vmem [shape: f32[3,10,16,2], index: 7, kind: output, shape index: {3}]
  %8 = xla_tuple %s4, %s5, %s6, %s7
  %s9 = sld [smem:[#allocation0]]
  $region73: #{seareader_forward.2} parent=0
    _
  %s11 = ssub.s32 1, %s9
  %s12 = scalar_select 0, %s11, %s9
  loop: start=0, step=1, limit=8
  $region2: #{seareader_forward.2} parent=0 // loop_pre_header
    _
  $region3: #{seareader_forward.2} parent=0 // loop_header
    %s14 = sphi 0, %s18
    %p15 = scmp.ge.s32.totalorder %s14, 8
    %s21 = sphi 0, %s33
    %s22 = sphi 0, %s29
    %s23 = sphi 0, %s21
    %s24 = sphi 0, %s22
    %s25 = sphi 0, %s23
    %s26 = sphi 0, %s24
    %s36 = sphi 0, %s38
    %s39 = sphi 0, %s36
    %s40 = sphi 0, %s39
    %s56 = sphi 0, %s40
    %s62 = sphi 0, %s64
    %s65 = sphi 0, %s62
    %s66 = sphi 0, %s65
    %s82 = sphi 0, %s66
    %s90 = sphi 0, %s92
    %s93 = sphi 0, %s90
    %s94 = sphi 0, %s93
    %s110 = sphi 0, %s94
    %s118 = sphi 0, %s120
    %s121 = sphi 0, %s118
    %s122 = sphi 0, %s121
    %s138 = sphi 0, %s122
    %s146 = sphi 0, %s148
    %s149 = sphi 0, %s146
    %s150 = sphi 0, %s149
    %s166 = sphi 0, %s150
    %s174 = sphi 0, %s176
    %s177 = sphi 0, %s174
    %s178 = sphi 0, %s177
    %s194 = sphi 0, %s178
    %s202 = sphi 0, %s204
    %s205 = sphi 0, %s202
    %s206 = sphi 0, %s205
    %s222 = sphi 0, %s206
    %s230 = sphi 0, %s232
    %s233 = sphi 0, %s230
    %s234 = sphi 0, %s233
    %s250 = sphi 0, %s234
  $region4: #{seareader_forward.2} parent=0 // loop_header_branch
    %17 = sbr.rel (%p15) target = $region8
  $region5: #{seareader_forward.2} parent=0 // loop_body
    %s19 = ssub.s32 %s14, 1
    %s20 = ssub.s32 %s14, 2
    %s27 = sadd.s32 1, %s22
    %p28 = scmp.ge.s32.totalorder %s27, 3
    %s29 = scalar_select %p28, 0, %s27
    %s30 = sadd.s32 1, %s21
    %s31 = scalar_select %p28, %s30, %s21
    %p32 = scmp.ge.s32.totalorder %s31, 2
    %s33 = scalar_select %p32, 0, %s31
    %s34 = ssub.s32 %s21, %s33
    %p35 = scmp.eq.s32.totalorder %s34, 0
    %s37 = sadd.s32 %s36, 1
    %s38 = scalar_select %p35, %s36, %s37
    %p41 = pneg %p35
    %p42 = scmp.eq.s32.totalorder %s14, 5
    %p43 = por %p41, %p42
    %p44 = scmp.ne.s32.totalorder %s36, %s39
    %p45 = scmp.eq.s32.totalorder %s14, 0
    %p46 = por %p44, %p45
    %p47 = scmp.ne.s32.totalorder %s36, %s39
    %p48 = scmp.eq.s32.totalorder %s19, 5
    %p49 = por %p47, %p48
    %p50 = scmp.ne.s32.totalorder %s39, %s40
    %p51 = scmp.eq.s32.totalorder %s19, 0
    %p52 = por %p50, %p51
    %p53 = scmp.ne.s32.totalorder %s39, %s40
    %p54 = scmp.eq.s32.totalorder %s20, 5
    %p55 = por %p53, %p54
    %p57 = scmp.ne.s32.totalorder %s40, %s56
    %p58 = scmp.eq.s32.totalorder %s20, 0
    %p59 = por %p57, %p58
    %s60 = ssub.s32 %s21, %s33
    %p61 = scmp.eq.s32.totalorder %s60, 0
    %s63 = sadd.s32 %s62, 1
    %s64 = scalar_select %p61, %s62, %s63
    %p67 = pneg %p61
    %p68 = scmp.eq.s32.totalorder %s14, 5
    %p69 = por %p67, %p68
    %p70 = scmp.ne.s32.totalorder %s62, %s65
    %p71 = scmp.eq.s32.totalorder %s14, 0
    %p72 = por %p70, %p71
    %p73 = scmp.ne.s32.totalorder %s62, %s65
    %p74 = scmp.eq.s32.totalorder %s19, 5
    %p75 = por %p73, %p74
    %p76 = scmp.ne.s32.totalorder %s65, %s66
    %p77 = scmp.eq.s32.totalorder %s19, 0
    %p78 = por %p76, %p77
    %p79 = scmp.ne.s32.totalorder %s65, %s66
    %p80 = scmp.eq.s32.totalorder %s20, 5
    %p81 = por %p79, %p80
    %p83 = scmp.ne.s32.totalorder %s66, %s82
    %p84 = scmp.eq.s32.totalorder %s20, 0
    %p85 = por %p83, %p84
    %s86 = ssub.s32 %s22, %s29
    %s87 = ssub.s32 %s21, %s33
    %s88 = sor.u32 %s86, %s87
    %p89 = scmp.eq.s32.totalorder %s88, 0
    %s91 = sadd.s32 %s90, 1
    %s92 = scalar_select %p89, %s90, %s91
    %p95 = pneg %p89
    %p96 = scmp.eq.s32.totalorder %s14, 5
    %p97 = por %p95, %p96
    %p98 = scmp.ne.s32.totalorder %s90, %s93
    %p99 = scmp.eq.s32.totalorder %s14, 0
    %p100 = por %p98, %p99
    %p101 = scmp.ne.s32.totalorder %s90, %s93
    %p102 = scmp.eq.s32.totalorder %s19, 5
    %p103 = por %p101, %p102
    %p104 = scmp.ne.s32.totalorder %s93, %s94
    %p105 = scmp.eq.s32.totalorder %s19, 0
    %p106 = por %p104, %p105
    %p107 = scmp.ne.s32.totalorder %s93, %s94
    %p108 = scmp.eq.s32.totalorder %s20, 5
    %p109 = por %p107, %p108
    %p111 = scmp.ne.s32.totalorder %s94, %s110
    %p112 = scmp.eq.s32.totalorder %s20, 0
    %p113 = por %p111, %p112
    %s114 = ssub.s32 %s22, %s29
    %s115 = ssub.s32 %s21, %s33
    %s116 = sor.u32 %s114, %s115
    %p117 = scmp.eq.s32.totalorder %s116, 0
    %s119 = sadd.s32 %s118, 1
    %s120 = scalar_select %p117, %s118, %s119
    %p123 = pneg %p117
    %p124 = scmp.eq.s32.totalorder %s14, 5
    %p125 = por %p123, %p124
    %p126 = scmp.ne.s32.totalorder %s118, %s121
    %p127 = scmp.eq.s32.totalorder %s14, 0
    %p128 = por %p126, %p127
    %p129 = scmp.ne.s32.totalorder %s118, %s121
    %p130 = scmp.eq.s32.totalorder %s19, 5
    %p131 = por %p129, %p130
    %p132 = scmp.ne.s32.totalorder %s121, %s122
    %p133 = scmp.eq.s32.totalorder %s19, 0
    %p134 = por %p132, %p133
    %p135 = scmp.ne.s32.totalorder %s121, %s122
    %p136 = scmp.eq.s32.totalorder %s20, 5
    %p137 = por %p135, %p136
    %p139 = scmp.ne.s32.totalorder %s122, %s138
    %p140 = scmp.eq.s32.totalorder %s20, 0
    %p141 = por %p139, %p140
    %s142 = ssub.s32 %s22, %s29
    %s143 = ssub.s32 %s21, %s33
    %s144 = sor.u32 %s142, %s143
    %p145 = scmp.eq.s32.totalorder %s144, 0
    %s147 = sadd.s32 %s146, 1
    %s148 = scalar_select %p145, %s146, %s147
    %p151 = pneg %p145
    %p152 = scmp.eq.s32.totalorder %s14, 5
    %p153 = por %p151, %p152
    %p154 = scmp.ne.s32.totalorder %s146, %s149
    %p155 = scmp.eq.s32.totalorder %s14, 0
    %p156 = por %p154, %p155
    %p157 = scmp.ne.s32.totalorder %s146, %s149
    %p158 = scmp.eq.s32.totalorder %s19, 5
    %p159 = por %p157, %p158
    %p160 = scmp.ne.s32.totalorder %s149, %s150
    %p161 = scmp.eq.s32.totalorder %s19, 0
    %p162 = por %p160, %p161
    %p163 = scmp.ne.s32.totalorder %s149, %s150
    %p164 = scmp.eq.s32.totalorder %s20, 5
    %p165 = por %p163, %p164
    %p167 = scmp.ne.s32.totalorder %s150, %s166
    %p168 = scmp.eq.s32.totalorder %s20, 0
    %p169 = por %p167, %p168
    %s170 = ssub.s32 %s22, %s29
    %s171 = ssub.s32 %s21, %s33
    %s172 = sor.u32 %s170, %s171
    %p173 = scmp.eq.s32.totalorder %s172, 0
    %s175 = sadd.s32 %s174, 1
    %s176 = scalar_select %p173, %s174, %s175
    %p179 = pneg %p173
    %p180 = scmp.eq.s32.totalorder %s14, 5
    %p181 = por %p179, %p180
    %p182 = scmp.ne.s32.totalorder %s174, %s177
    %p183 = scmp.eq.s32.totalorder %s14, 0
    %p184 = por %p182, %p183
    %p185 = scmp.ne.s32.totalorder %s174, %s177
    %p186 = scmp.eq.s32.totalorder %s19, 5
    %p187 = por %p185, %p186
    %p188 = scmp.ne.s32.totalorder %s177, %s178
    %p189 = scmp.eq.s32.totalorder %s19, 0
    %p190 = por %p188, %p189
    %p191 = scmp.ne.s32.totalorder %s177, %s178
    %p192 = scmp.eq.s32.totalorder %s20, 5
    %p193 = por %p191, %p192
    %p195 = scmp.ne.s32.totalorder %s178, %s194
    %p196 = scmp.eq.s32.totalorder %s20, 0
    %p197 = por %p195, %p196
    %s198 = ssub.s32 %s22, %s29
    %s199 = ssub.s32 %s21, %s33
    %s200 = sor.u32 %s198, %s199
    %p201 = scmp.eq.s32.totalorder %s200, 0
    %s203 = sadd.s32 %s202, 1
    %s204 = scalar_select %p201, %s202, %s203
    %p207 = pneg %p201
    %p208 = scmp.eq.s32.totalorder %s14, 5
    %p209 = por %p207, %p208
    %p210 = scmp.ne.s32.totalorder %s202, %s205
    %p211 = scmp.eq.s32.totalorder %s14, 0
    %p212 = por %p210, %p211
    %p213 = scmp.ne.s32.totalorder %s202, %s205
    %p214 = scmp.eq.s32.totalorder %s19, 5
    %p215 = por %p213, %p214
    %p216 = scmp.ne.s32.totalorder %s205, %s206
    %p217 = scmp.eq.s32.totalorder %s19, 0
    %p218 = por %p216, %p217
    %p219 = scmp.ne.s32.totalorder %s205, %s206
    %p220 = scmp.eq.s32.totalorder %s20, 5
    %p221 = por %p219, %p220
    %p223 = scmp.ne.s32.totalorder %s206, %s222
    %p224 = scmp.eq.s32.totalorder %s20, 0
    %p225 = por %p223, %p224
    %s226 = ssub.s32 %s22, %s29
    %s227 = ssub.s32 %s21, %s33
    %s228 = sor.u32 %s226, %s227
    %p229 = scmp.eq.s32.totalorder %s228, 0
    %s231 = sadd.s32 %s230, 1
    %s232 = scalar_select %p229, %s230, %s231
    %p235 = pneg %p229
    %p236 = scmp.eq.s32.totalorder %s14, 5
    %p237 = por %p235, %p236
    %p238 = scmp.ne.s32.totalorder %s230, %s233
    %p239 = scmp.eq.s32.totalorder %s14, 0
    %p240 = por %p238, %p239
    %p241 = scmp.ne.s32.totalorder %s230, %s233
    %p242 = scmp.eq.s32.totalorder %s19, 5
    %p243 = por %p241, %p242
    %p244 = scmp.ne.s32.totalorder %s233, %s234
    %p245 = scmp.eq.s32.totalorder %s19, 0
    %p246 = por %p244, %p245
    %p247 = scmp.ne.s32.totalorder %s233, %s234
    %p248 = scmp.eq.s32.totalorder %s20, 5
    %p249 = por %p247, %p248
    %p251 = scmp.ne.s32.totalorder %s234, %s250
    %p252 = scmp.eq.s32.totalorder %s20, 0
    %p253 = por %p251, %p252
    %p254 = scmp.le.s32.totalorder 1, %s14
    %p255 = scmp.lt.s32.totalorder %s14, 7
    %p256 = pnand %p254, %p255
    %p257 = pneg %p256
    // Predicated region
    $region9: #{seareader_forward.2} parent=5 // pred_check
      _
    $region10: #{seareader_forward.2} parent=5 // pred_check_branch
      %259 = sbr.rel (%p256) target = $region12
    $region11: #{seareader_forward.2} parent=5 // pred_region
      %s260 = ssub.s32 %s14, 1
    $region12: #{seareader_forward.2} parent=5 // pred_fallthru
      _
    %p261 = scmp.lt.s32.totalorder %s14, 6
    // Predicated region
    $region13: #{seareader_forward.2} parent=5 // pred_check
      %p262 = pneg %p261
    $region14: #{seareader_forward.2} parent=5 // pred_check_branch
      %264 = sbr.rel (%p262) target = $region16
    $region15: #{seareader_forward.2} parent=5 // pred_region
      // Predicated region
      $region17: #{seareader_forward.2} parent=15 // pred_check
        %p265 = pneg %p46
      $region18: #{seareader_forward.2} parent=15 // pred_check_branch
        %267 = sbr.rel (%p265) target = $region20
      $region19: #{seareader_forward.2} parent=15 // pred_region
        %s268 = smul.u32 5, %s21
        %p269 = scmp.lt.s32.totalorder %s268, 9
        %s270 = scalar_select %p269, %s268, 9
        %s271 = smul.addr %s270, 4
        %s272 = smul.addr %s271, 4
        %s273 = scalar_lea.vmem %s0, %s272
        %s274 = smul.u32 5, %s21
      $region20: #{seareader_forward.2} parent=15 // pred_fallthru
        _
      // Predicated region
      $region21: #{seareader_forward.2} parent=15 // pred_check
        %p275 = pneg %p72
      $region22: #{seareader_forward.2} parent=15 // pred_check_branch
        %277 = sbr.rel (%p275) target = $region24
      $region23: #{seareader_forward.2} parent=15 // pred_region
        %s278 = smul.u32 5, %s21
        %p279 = scmp.lt.s32.totalorder %s278, 9
        %s280 = scalar_select %p279, %s278, 9
        %s281 = smul.addr %s280, 2
        %s282 = smul.addr %s281, 8
        %s283 = scalar_lea.vmem %s1, %s282
        %s284 = smul.u32 5, %s21
      $region24: #{seareader_forward.2} parent=15 // pred_fallthru
        _
      // Predicated region
      $region25: #{seareader_forward.2} parent=15 // pred_check
        %p285 = pneg %p100
      $region26: #{seareader_forward.2} parent=15 // pred_check_branch
        %287 = sbr.rel (%p285) target = $region28
      $region27: #{seareader_forward.2} parent=15 // pred_region
        %s288 = smul.u32 5, %s21
        %p289 = scmp.lt.s32.totalorder %s22, 2
        %s290 = scalar_select %p289, %s22, 2
        %p291 = scmp.lt.s32.totalorder %s288, 9
        %s292 = scalar_select %p291, %s288, 9
        %s293 = smul.addr %s292, 4
        %s294 = smul.addr %s290, 40
        %s295 = sadd.s32 %s293, %s294
        %s296 = smul.addr %s295, 4
        %s297 = scalar_lea.vmem %s2, %s296
        %s298 = smul.u32 5, %s21
      $region28: #{seareader_forward.2} parent=15 // pred_fallthru
        _
      // Predicated region
      $region29: #{seareader_forward.2} parent=15 // pred_check
        %p299 = pneg %p128
      $region30: #{seareader_forward.2} parent=15 // pred_check_branch
        %301 = sbr.rel (%p299) target = $region32
      $region31: #{seareader_forward.2} parent=15 // pred_region
        %s302 = smul.u32 5, %s21
        %p303 = scmp.lt.s32.totalorder %s22, 2
        %s304 = scalar_select %p303, %s22, 2
        %p305 = scmp.lt.s32.totalorder %s302, 9
        %s306 = scalar_select %p305, %s302, 9
        %s307 = smul.addr %s306, 2
        %s308 = smul.addr %s304, 20
        %s309 = sadd.s32 %s307, %s308
        %s310 = smul.addr %s309, 8
        %s311 = scalar_lea.vmem %s3, %s310
        %s312 = smul.u32 5, %s21
      $region32: #{seareader_forward.2} parent=15 // pred_fallthru
        _
    $region16: #{seareader_forward.2} parent=5 // pred_fallthru
      _
    %p313 = scmp.le.s32.totalorder 1, %s14
    %p314 = scmp.lt.s32.totalorder %s14, 7
    %p315 = pnand %p313, %p314
    %p316 = pneg %p315
    // Predicated region
    $region33: #{seareader_forward.2} parent=5 // pred_check
      _
    $region34: #{seareader_forward.2} parent=5 // pred_check_branch
      %318 = sbr.rel (%p315) target = $region36
    $region35: #{seareader_forward.2} parent=5 // pred_region
      %s319 = ssub.s32 %s14, 1
      %s320 = smul.u32 5, %s23
      %p321 = scmp.lt.s32.totalorder %s320, 9
      %s322 = scalar_select %p321, %s320, 9
      %s323 = smul.addr %s322, 4
      %s324 = smul.addr %s323, 4
      %s325 = scalar_lea.vmem %s0, %s324
      %p326 = pneg %p52
      %p327 = pneg %p49
      %s328 = smul.u32 5, %s23
      %p329 = scmp.lt.s32.totalorder %s328, 9
      %s330 = scalar_select %p329, %s328, 9
      %s331 = smul.addr %s330, 2
      %s332 = smul.addr %s331, 8
      %s333 = scalar_lea.vmem %s1, %s332
      %p334 = pneg %p78
      %p335 = pneg %p75
      %s336 = smul.u32 5, %s23
      %p337 = scmp.lt.s32.totalorder %s24, 2
      %s338 = scalar_select %p337, %s24, 2
      %p339 = scmp.lt.s32.totalorder %s336, 9
      %s340 = scalar_select %p339, %s336, 9
      %s341 = smul.addr %s340, 4
      %s342 = smul.addr %s338, 40
      %s343 = sadd.s32 %s341, %s342
      %s344 = smul.addr %s343, 4
      %s345 = scalar_lea.vmem %s2, %s344
      %p346 = pneg %p106
      %p347 = pneg %p103
      %s348 = smul.u32 5, %s23
      %p349 = scmp.lt.s32.totalorder %s24, 2
      %s350 = scalar_select %p349, %s24, 2
      %p351 = scmp.lt.s32.totalorder %s348, 9
      %s352 = scalar_select %p351, %s348, 9
      %s353 = smul.addr %s352, 2
      %s354 = smul.addr %s350, 20
      %s355 = sadd.s32 %s353, %s354
      %s356 = smul.addr %s355, 8
      %s357 = scalar_lea.vmem %s3, %s356
      %p358 = pneg %p134
      %p359 = pneg %p131
      %p360 = pneg %p162
      %p361 = pneg %p159
      %s362 = smul.u32 5, %s23
      %p363 = scmp.lt.s32.totalorder %s24, 2
      %s364 = scalar_select %p363, %s24, 2
      %p365 = scmp.lt.s32.totalorder %s362, 9
      %s366 = scalar_select %p365, %s362, 9
      %s367 = smul.addr %s366, 4
      %s368 = smul.addr %s364, 40
      %s369 = sadd.s32 %s367, %s368
      %s370 = smul.addr %s369, 8
      %s371 = scalar_lea.vmem %s4, %s370
      %p372 = pneg %p190
      %p373 = pneg %p187
      %s374 = smul.u32 5, %s23
      %p375 = scmp.lt.s32.totalorder %s24, 2
      %s376 = scalar_select %p375, %s24, 2
      %p377 = scmp.lt.s32.totalorder %s374, 9
      %s378 = scalar_select %p377, %s374, 9
      %s379 = smul.addr %s378, 2
      %s380 = smul.addr %s376, 20
      %s381 = sadd.s32 %s379, %s380
      %s382 = smul.addr %s381, 8
      %s383 = scalar_lea.vmem %s5, %s382
      %p384 = pneg %p218
      %p385 = pneg %p215
      %s386 = smul.u32 5, %s23
      %p387 = scmp.lt.s32.totalorder %s24, 2
      %s388 = scalar_select %p387, %s24, 2
      %p389 = scmp.lt.s32.totalorder %s386, 9
      %s390 = scalar_select %p389, %s386, 9
      %s391 = smul.addr %s390, 4
      %s392 = smul.addr %s388, 40
      %s393 = sadd.s32 %s391, %s392
      %s394 = smul.addr %s393, 4
      %s395 = scalar_lea.vmem %s6, %s394
      %p396 = pneg %p246
      %p397 = pneg %p243
      %s398 = smul.u32 5, %s23
      %p399 = scmp.lt.s32.totalorder %s24, 2
      %s400 = scalar_select %p399, %s24, 2
      %p401 = scmp.lt.s32.totalorder %s398, 9
      %s402 = scalar_select %p401, %s398, 9
      %s403 = smul.addr %s402, 2
      %s404 = smul.addr %s400, 20
      %s405 = sadd.s32 %s403, %s404
      %s406 = smul.addr %s405, 8
      %s407 = scalar_lea.vmem %s7, %s406
      %s408 = smul.u32 5, %s23
      %p409 = scmp.lt.s32.totalorder %s408, 9
      %s410 = scalar_select %p409, %s408, 9
      %s411 = smul.addr %s410, 4
      %s412 = smul.addr %s411, 4
      %s413 = scalar_lea.vmem %s0, %s412
      %s414 = smul.u32 5, %s23
      %s415 = smul.u32 5, %s23
      %p416 = scmp.lt.s32.totalorder %s415, 9
      %s417 = scalar_select %p416, %s415, 9
      %s418 = smul.addr %s417, 2
      %s419 = smul.addr %s418, 8
      %s420 = scalar_lea.vmem %s1, %s419
      %s421 = smul.u32 5, %s23
      %s422 = smul.u32 5, %s23
      %p423 = scmp.lt.s32.totalorder %s24, 2
      %s424 = scalar_select %p423, %s24, 2
      %p425 = scmp.lt.s32.totalorder %s422, 9
      %s426 = scalar_select %p425, %s422, 9
      %s427 = smul.addr %s426, 4
      %s428 = smul.addr %s424, 40
      %s429 = sadd.s32 %s427, %s428
      %s430 = smul.addr %s429, 4
      %s431 = scalar_lea.vmem %s2, %s430
      %s432 = smul.u32 5, %s23
      %s433 = smul.u32 5, %s23
      %p434 = scmp.lt.s32.totalorder %s24, 2
      %s435 = scalar_select %p434, %s24, 2
      %p436 = scmp.lt.s32.totalorder %s433, 9
      %s437 = scalar_select %p436, %s433, 9
      %s438 = smul.addr %s437, 2
      %s439 = smul.addr %s435, 20
      %s440 = sadd.s32 %s438, %s439
      %s441 = smul.addr %s440, 8
      %s442 = scalar_lea.vmem %s3, %s441
      %s443 = smul.u32 5, %s23
      %s444 = smul.u32 5, %s23
      %p445 = scmp.lt.s32.totalorder %s24, 2
      %s446 = scalar_select %p445, %s24, 2
      %p447 = scmp.lt.s32.totalorder %s444, 9
      %s448 = scalar_select %p447, %s444, 9
      %s449 = smul.addr %s448, 4
      %s450 = smul.addr %s446, 40
      %s451 = sadd.s32 %s449, %s450
      %s452 = smul.addr %s451, 8
      %s453 = scalar_lea.vmem %s4, %s452
      %s454 = smul.u32 5, %s23
      %s455 = smul.u32 5, %s23
      %p456 = scmp.lt.s32.totalorder %s24, 2
      %s457 = scalar_select %p456, %s24, 2
      %p458 = scmp.lt.s32.totalorder %s455, 9
      %s459 = scalar_select %p458, %s455, 9
      %s460 = smul.addr %s459, 2
      %s461 = smul.addr %s457, 20
      %s462 = sadd.s32 %s460, %s461
      %s463 = smul.addr %s462, 8
      %s464 = scalar_lea.vmem %s5, %s463
      %s465 = smul.u32 5, %s23
      %s466 = smul.u32 5, %s23
      %p467 = scmp.lt.s32.totalorder %s24, 2
      %s468 = scalar_select %p467, %s24, 2
      %p469 = scmp.lt.s32.totalorder %s466, 9
      %s470 = scalar_select %p469, %s466, 9
      %s471 = smul.addr %s470, 4
      %s472 = smul.addr %s468, 40
      %s473 = sadd.s32 %s471, %s472
      %s474 = smul.addr %s473, 4
      %s475 = scalar_lea.vmem %s6, %s474
      %s476 = smul.u32 5, %s23
      %s477 = smul.u32 5, %s23
      %p478 = scmp.lt.s32.totalorder %s24, 2
      %s479 = scalar_select %p478, %s24, 2
      %p480 = scmp.lt.s32.totalorder %s477, 9
      %s481 = scalar_select %p480, %s477, 9
      %s482 = smul.addr %s481, 2
      %s483 = smul.addr %s479, 20
      %s484 = sadd.s32 %s482, %s483
      %s485 = smul.addr %s484, 8
      %s486 = scalar_lea.vmem %s7, %s485
      %s487 = smul.u32 5, %s23
      %v489 = vld [vmem:[%s413] sm:$0xff]
      %v490 = vld [vmem:[%s413 + $0x8] sm:$0xff]
      %v491 = vld [vmem:[%s413 + $0x10] sm:$0xff]
      %v492 = vld [vmem:[%s413 + $0x18] sm:$0xff]
      %v493 = vld [vmem:[%s413 + $0x20] sm:$0xff]
      %v494 = vld [vmem:[%s413 + $0x28] sm:$0xff]
      %v495 = vld [vmem:[%s413 + $0x30] sm:$0xff]
      %v496 = vld [vmem:[%s413 + $0x38] sm:$0xff]
      %v497 = vld [vmem:[%s413 + $0x40] sm:$0xff]
      %v498 = vld [vmem:[%s413 + $0x48] sm:$0xff]
      %v499 = vld [vmem:[%s431] sm:$0xff]
      %v500 = vld [vmem:[%s431 + $0x8] sm:$0xff]
      %v501 = vld [vmem:[%s431 + $0x10] sm:$0xff]
      %v502 = vld [vmem:[%s431 + $0x18] sm:$0xff]
      %v503 = vld [vmem:[%s431 + $0x20] sm:$0xff]
      %v504 = vld [vmem:[%s431 + $0x28] sm:$0xff]
      %v505 = vld [vmem:[%s431 + $0x30] sm:$0xff]
      %v506 = vld [vmem:[%s431 + $0x38] sm:$0xff]
      %v507 = vld [vmem:[%s431 + $0x40] sm:$0xff]
      %v508 = vld [vmem:[%s431 + $0x48] sm:$0xff]
      %v511 = vunpack.c.l.b16 %v489
      %v512 = vunpack.c.h.b16 %v489
      %v513 = vunpack.c.l.b16 %v490
      %v514 = vunpack.c.h.b16 %v490
      %v515 = vpack.c.b16 %v513, %v511
      %v516 = vpack.c.b16 %v514, %v512
      %v521 = vunpack.c.l.b16 %v499
      %v522 = vunpack.c.h.b16 %v499
      %v523 = vunpack.c.l.b16 %v500
      %v524 = vunpack.c.h.b16 %v500
      %v525 = vpack.c.b16 %v523, %v521
      %v526 = vpack.c.b16 %v524, %v522
      %529 = vmatprep.subr.bf16.mxu0 0
      %530 = vmatpush1.bf16.xpose.msra.mxu0 0
      %531 = vmatprep.subr.bf16.mxu0 0
      %532 = vmatpush1.bf16.xpose.msra.mxu0 0
      %533 = vmatprep.subr.bf16.mxu0 0
      %534 = vmatpush1.bf16.xpose.msra.mxu0 0
      %535 = vmatprep.subr.bf16.mxu0 0
      %536 = vmatpush1.bf16.xpose.msra.mxu0 0
      %537 = vmatprep.subr.bf16.mxu0 0
      %538 = vmatpush1.bf16.xpose.msra.mxu0 0
      %539 = vmatprep.subr.bf16.mxu0 0
      %540 = vmatpush1.bf16.xpose.msra.mxu0 0
      %541 = vmatprep.subr.bf16.mxu0 0
      %542 = vmatpush1.bf16.xpose.msra.mxu0 0
      %543 = vmatprep.subr.bf16.mxu0 %v526
      %544 = vmatpush1.bf16.xpose.msra.mxu0 %v525
      %545 = vmatprep.subr.bf16.mxu0 0
      %546 = vmatpush2.bf16.xpose.msra.mxu0 0
      %547 = vmatprep.subr.bf16.mxu0 0
      %548 = vmatpush2.bf16.xpose.msra.mxu0 0
      %549 = vmatprep.subr.bf16.mxu0 0
      %550 = vmatpush2.bf16.xpose.msra.mxu0 0
      %551 = vmatprep.subr.bf16.mxu0 0
      %552 = vmatpush2.bf16.xpose.msra.mxu0 0
      %553 = vmatprep.subr.bf16.mxu0 0
      %554 = vmatpush2.bf16.xpose.msra.mxu0 0
      %555 = vmatprep.subr.bf16.mxu0 0
      %556 = vmatpush2.bf16.xpose.msra.mxu0 0
      %557 = vmatprep.subr.bf16.mxu0 0
      %558 = vmatpush2.bf16.xpose.msra.mxu0 0
      %559 = vmatprep.subr.bf16.mxu0 0
      %560 = vmatpush2.bf16.xpose.msra.mxu0 0
      %561 = vmatprep.mubr.bf16.mxu0 %v516
      %562 = vmatmul.mubr.bf16.gmra.mxu0 %v515
      %v563 = vpop.f32.mrf.mxu0
      %v564 = vadd.f32 0.0, %v563
      %v565 = vpop.f32.mrf.mxu0
      %v566 = vpop.f32.mrf.mxu0
      %v567 = vadd.f32 0.0, %v566
      %v568 = vpop.f32.mrf.mxu0
      %569 = vdwg.mxu0
      %v572 = vunpack.c.l.b16 %v491
      %v573 = vunpack.c.h.b16 %v491
      %v574 = vunpack.c.l.b16 %v492
      %v575 = vunpack.c.h.b16 %v492
      %v576 = vpack.c.b16 %v574, %v572
      %v577 = vpack.c.b16 %v575, %v573
      %v582 = vunpack.c.l.b16 %v501
      %v583 = vunpack.c.h.b16 %v501
      %v584 = vunpack.c.l.b16 %v502
      %v585 = vunpack.c.h.b16 %v502
      %v586 = vpack.c.b16 %v584, %v582
      %v587 = vpack.c.b16 %v585, %v583
      %590 = vmatprep.subr.bf16.mxu0 0
      %591 = vmatpush1.bf16.xpose.msra.mxu0 0
      %592 = vmatprep.subr.bf16.mxu0 0
      %593 = vmatpush1.bf16.xpose.msra.mxu0 0
      %594 = vmatprep.subr.bf16.mxu0 0
      %595 = vmatpush1.bf16.xpose.msra.mxu0 0
      %596 = vmatprep.subr.bf16.mxu0 0
      %597 = vmatpush1.bf16.xpose.msra.mxu0 0
      %598 = vmatprep.subr.bf16.mxu0 0
      %599 = vmatpush1.bf16.xpose.msra.mxu0 0
      %600 = vmatprep.subr.bf16.mxu0 0
      %601 = vmatpush1.bf16.xpose.msra.mxu0 0
      %602 = vmatprep.subr.bf16.mxu0 0
      %603 = vmatpush1.bf16.xpose.msra.mxu0 0
      %604 = vmatprep.subr.bf16.mxu0 %v587
      %605 = vmatpush1.bf16.xpose.msra.mxu0 %v586
      %606 = vmatprep.subr.bf16.mxu0 0
      %607 = vmatpush2.bf16.xpose.msra.mxu0 0
      %608 = vmatprep.subr.bf16.mxu0 0
      %609 = vmatpush2.bf16.xpose.msra.mxu0 0
      %610 = vmatprep.subr.bf16.mxu0 0
      %611 = vmatpush2.bf16.xpose.msra.mxu0 0
      %612 = vmatprep.subr.bf16.mxu0 0
      %613 = vmatpush2.bf16.xpose.msra.mxu0 0
      %614 = vmatprep.subr.bf16.mxu0 0
      %615 = vmatpush2.bf16.xpose.msra.mxu0 0
      %616 = vmatprep.subr.bf16.mxu0 0
      %617 = vmatpush2.bf16.xpose.msra.mxu0 0
      %618 = vmatprep.subr.bf16.mxu0 0
      %619 = vmatpush2.bf16.xpose.msra.mxu0 0
      %620 = vmatprep.subr.bf16.mxu0 0
      %621 = vmatpush2.bf16.xpose.msra.mxu0 0
      %622 = vmatprep.mubr.bf16.mxu0 %v577
      %623 = vmatmul.mubr.bf16.gmra.mxu0 %v576
      %v624 = vpop.f32.mrf.mxu0
      %v625 = vadd.f32 0.0, %v624
      %v626 = vpop.f32.mrf.mxu0
      %v627 = vpop.f32.mrf.mxu0
      %v628 = vadd.f32 0.0, %v627
      %v629 = vpop.f32.mrf.mxu0
      %630 = vdwg.mxu0
      %v633 = vunpack.c.l.b16 %v493
      %v634 = vunpack.c.h.b16 %v493
      %v635 = vunpack.c.l.b16 %v494
      %v636 = vunpack.c.h.b16 %v494
      %v637 = vpack.c.b16 %v635, %v633
      %v638 = vpack.c.b16 %v636, %v634
      %v643 = vunpack.c.l.b16 %v503
      %v644 = vunpack.c.h.b16 %v503
      %v645 = vunpack.c.l.b16 %v504
      %v646 = vunpack.c.h.b16 %v504
      %v647 = vpack.c.b16 %v645, %v643
      %v648 = vpack.c.b16 %v646, %v644
      %651 = vmatprep.subr.bf16.mxu0 0
      %652 = vmatpush1.bf16.xpose.msra.mxu0 0
      %653 = vmatprep.subr.bf16.mxu0 0
      %654 = vmatpush1.bf16.xpose.msra.mxu0 0
      %655 = vmatprep.subr.bf16.mxu0 0
      %656 = vmatpush1.bf16.xpose.msra.mxu0 0
      %657 = vmatprep.subr.bf16.mxu0 0
      %658 = vmatpush1.bf16.xpose.msra.mxu0 0
      %659 = vmatprep.subr.bf16.mxu0 0
      %660 = vmatpush1.bf16.xpose.msra.mxu0 0
      %661 = vmatprep.subr.bf16.mxu0 0
      %662 = vmatpush1.bf16.xpose.msra.mxu0 0
      %663 = vmatprep.subr.bf16.mxu0 0
      %664 = vmatpush1.bf16.xpose.msra.mxu0 0
      %665 = vmatprep.subr.bf16.mxu0 %v648
      %666 = vmatpush1.bf16.xpose.msra.mxu0 %v647
      %667 = vmatprep.subr.bf16.mxu0 0
      %668 = vmatpush2.bf16.xpose.msra.mxu0 0
      %669 = vmatprep.subr.bf16.mxu0 0
      %670 = vmatpush2.bf16.xpose.msra.mxu0 0
      %671 = vmatprep.subr.bf16.mxu0 0
      %672 = vmatpush2.bf16.xpose.msra.mxu0 0
      %673 = vmatprep.subr.bf16.mxu0 0
      %674 = vmatpush2.bf16.xpose.msra.mxu0 0
      %675 = vmatprep.subr.bf16.mxu0 0
      %676 = vmatpush2.bf16.xpose.msra.mxu0 0
      %677 = vmatprep.subr.bf16.mxu0 0
      %678 = vmatpush2.bf16.xpose.msra.mxu0 0
      %679 = vmatprep.subr.bf16.mxu0 0
      %680 = vmatpush2.bf16.xpose.msra.mxu0 0
      %681 = vmatprep.subr.bf16.mxu0 0
      %682 = vmatpush2.bf16.xpose.msra.mxu0 0
      %683 = vmatprep.mubr.bf16.mxu0 %v638
      %684 = vmatmul.mubr.bf16.gmra.mxu0 %v637
      %v685 = vpop.f32.mrf.mxu0
      %v686 = vadd.f32 0.0, %v685
      %v687 = vpop.f32.mrf.mxu0
      %v688 = vpop.f32.mrf.mxu0
      %v689 = vadd.f32 0.0, %v688
      %v690 = vpop.f32.mrf.mxu0
      %691 = vdwg.mxu0
      %v694 = vunpack.c.l.b16 %v495
      %v695 = vunpack.c.h.b16 %v495
      %v696 = vunpack.c.l.b16 %v496
      %v697 = vunpack.c.h.b16 %v496
      %v698 = vpack.c.b16 %v696, %v694
      %v699 = vpack.c.b16 %v697, %v695
      %v704 = vunpack.c.l.b16 %v505
      %v705 = vunpack.c.h.b16 %v505
      %v706 = vunpack.c.l.b16 %v506
      %v707 = vunpack.c.h.b16 %v506
      %v708 = vpack.c.b16 %v706, %v704
      %v709 = vpack.c.b16 %v707, %v705
      %712 = vmatprep.subr.bf16.mxu0 0
      %713 = vmatpush1.bf16.xpose.msra.mxu0 0
      %714 = vmatprep.subr.bf16.mxu0 0
      %715 = vmatpush1.bf16.xpose.msra.mxu0 0
      %716 = vmatprep.subr.bf16.mxu0 0
      %717 = vmatpush1.bf16.xpose.msra.mxu0 0
      %718 = vmatprep.subr.bf16.mxu0 0
      %719 = vmatpush1.bf16.xpose.msra.mxu0 0
      %720 = vmatprep.subr.bf16.mxu0 0
      %721 = vmatpush1.bf16.xpose.msra.mxu0 0
      %722 = vmatprep.subr.bf16.mxu0 0
      %723 = vmatpush1.bf16.xpose.msra.mxu0 0
      %724 = vmatprep.subr.bf16.mxu0 0
      %725 = vmatpush1.bf16.xpose.msra.mxu0 0
      %726 = vmatprep.subr.bf16.mxu0 %v709
      %727 = vmatpush1.bf16.xpose.msra.mxu0 %v708
      %728 = vmatprep.subr.bf16.mxu0 0
      %729 = vmatpush2.bf16.xpose.msra.mxu0 0
      %730 = vmatprep.subr.bf16.mxu0 0
      %731 = vmatpush2.bf16.xpose.msra.mxu0 0
      %732 = vmatprep.subr.bf16.mxu0 0
      %733 = vmatpush2.bf16.xpose.msra.mxu0 0
      %734 = vmatprep.subr.bf16.mxu0 0
      %735 = vmatpush2.bf16.xpose.msra.mxu0 0
      %736 = vmatprep.subr.bf16.mxu0 0
      %737 = vmatpush2.bf16.xpose.msra.mxu0 0
      %738 = vmatprep.subr.bf16.mxu0 0
      %739 = vmatpush2.bf16.xpose.msra.mxu0 0
      %740 = vmatprep.subr.bf16.mxu0 0
      %741 = vmatpush2.bf16.xpose.msra.mxu0 0
      %742 = vmatprep.subr.bf16.mxu0 0
      %743 = vmatpush2.bf16.xpose.msra.mxu0 0
      %744 = vmatprep.mubr.bf16.mxu0 %v699
      %745 = vmatmul.mubr.bf16.gmra.mxu0 %v698
      %v746 = vpop.f32.mrf.mxu0
      %v747 = vadd.f32 0.0, %v746
      %v748 = vpop.f32.mrf.mxu0
      %v749 = vpop.f32.mrf.mxu0
      %v750 = vadd.f32 0.0, %v749
      %v751 = vpop.f32.mrf.mxu0
      %752 = vdwg.mxu0
      %v755 = vunpack.c.l.b16 %v497
      %v756 = vunpack.c.h.b16 %v497
      %v757 = vunpack.c.l.b16 %v498
      %v758 = vunpack.c.h.b16 %v498
      %v759 = vpack.c.b16 %v757, %v755
      %v760 = vpack.c.b16 %v758, %v756
      %v765 = vunpack.c.l.b16 %v507
      %v766 = vunpack.c.h.b16 %v507
      %v767 = vunpack.c.l.b16 %v508
      %v768 = vunpack.c.h.b16 %v508
      %v769 = vpack.c.b16 %v767, %v765
      %v770 = vpack.c.b16 %v768, %v766
      %773 = vmatprep.subr.bf16.mxu0 0
      %774 = vmatpush1.bf16.xpose.msra.mxu0 0
      %775 = vmatprep.subr.bf16.mxu0 0
      %776 = vmatpush1.bf16.xpose.msra.mxu0 0
      %777 = vmatprep.subr.bf16.mxu0 0
      %778 = vmatpush1.bf16.xpose.msra.mxu0 0
      %779 = vmatprep.subr.bf16.mxu0 0
      %780 = vmatpush1.bf16.xpose.msra.mxu0 0
      %781 = vmatprep.subr.bf16.mxu0 0
      %782 = vmatpush1.bf16.xpose.msra.mxu0 0
      %783 = vmatprep.subr.bf16.mxu0 0
      %784 = vmatpush1.bf16.xpose.msra.mxu0 0
      %785 = vmatprep.subr.bf16.mxu0 0
      %786 = vmatpush1.bf16.xpose.msra.mxu0 0
      %787 = vmatprep.subr.bf16.mxu0 %v770
      %788 = vmatpush1.bf16.xpose.msra.mxu0 %v769
      %789 = vmatprep.subr.bf16.mxu0 0
      %790 = vmatpush2.bf16.xpose.msra.mxu0 0
      %791 = vmatprep.subr.bf16.mxu0 0
      %792 = vmatpush2.bf16.xpose.msra.mxu0 0
      %793 = vmatprep.subr.bf16.mxu0 0
      %794 = vmatpush2.bf16.xpose.msra.mxu0 0
      %795 = vmatprep.subr.bf16.mxu0 0
      %796 = vmatpush2.bf16.xpose.msra.mxu0 0
      %797 = vmatprep.subr.bf16.mxu0 0
      %798 = vmatpush2.bf16.xpose.msra.mxu0 0
      %799 = vmatprep.subr.bf16.mxu0 0
      %800 = vmatpush2.bf16.xpose.msra.mxu0 0
      %801 = vmatprep.subr.bf16.mxu0 0
      %802 = vmatpush2.bf16.xpose.msra.mxu0 0
      %803 = vmatprep.subr.bf16.mxu0 0
      %804 = vmatpush2.bf16.xpose.msra.mxu0 0
      %805 = vmatprep.mubr.bf16.mxu0 %v760
      %806 = vmatmul.mubr.bf16.gmra.mxu0 %v759
      %v807 = vpop.f32.mrf.mxu0
      %v808 = vadd.f32 0.0, %v807
      %v809 = vpop.f32.mrf.mxu0
      %v810 = vpop.f32.mrf.mxu0
      %v811 = vadd.f32 0.0, %v810
      %v812 = vpop.f32.mrf.mxu0
      %813 = vdwg.mxu0
      %814 = vmatprep.subr.bf16.mxu0 0
      %815 = vmatpush1.bf16.xpose.msra.mxu0 0
      %816 = vmatprep.subr.bf16.mxu0 0
      %817 = vmatpush1.bf16.xpose.msra.mxu0 0
      %818 = vmatprep.subr.bf16.mxu0 0
      %819 = vmatpush1.bf16.xpose.msra.mxu0 0
      %820 = vmatprep.subr.bf16.mxu0 0
      %821 = vmatpush1.bf16.xpose.msra.mxu0 0
      %822 = vmatprep.subr.bf16.mxu0 0
      %823 = vmatpush1.bf16.xpose.msra.mxu0 0
      %824 = vmatprep.subr.bf16.mxu0 0
      %825 = vmatpush1.bf16.xpose.msra.mxu0 0
      %826 = vmatprep.subr.bf16.mxu0 0
      %827 = vmatpush1.bf16.xpose.msra.mxu0 0
      %828 = vmatprep.subr.bf16.mxu0 %v516
      %829 = vmatpush1.bf16.xpose.msra.mxu0 %v515
      %830 = vmatprep.subr.bf16.mxu0 0
      %831 = vmatpush2.bf16.xpose.msra.mxu0 0
      %832 = vmatprep.subr.bf16.mxu0 0
      %833 = vmatpush2.bf16.xpose.msra.mxu0 0
      %834 = vmatprep.subr.bf16.mxu0 0
      %835 = vmatpush2.bf16.xpose.msra.mxu0 0
      %836 = vmatprep.subr.bf16.mxu0 0
      %837 = vmatpush2.bf16.xpose.msra.mxu0 0
      %838 = vmatprep.subr.bf16.mxu0 0
      %839 = vmatpush2.bf16.xpose.msra.mxu0 0
      %840 = vmatprep.subr.bf16.mxu0 0
      %841 = vmatpush2.bf16.xpose.msra.mxu0 0
      %842 = vmatprep.subr.bf16.mxu0 0
      %843 = vmatpush2.bf16.xpose.msra.mxu0 0
      %844 = vmatprep.subr.bf16.mxu0 0
      %845 = vmatpush2.bf16.xpose.msra.mxu0 0
      %846 = vmatprep.mubr.bf16.mxu0 %v526
      %847 = vmatmul.mubr.bf16.gmra.mxu0 %v525
      %v848 = vpop.f32.mrf.mxu0
      %v849 = vadd.f32 0.0, %v848
      %v850 = vpop.f32.mrf.mxu0
      %v851 = vpop.f32.mrf.mxu0
      %v852 = vadd.f32 0.0, %v851
      %v853 = vpop.f32.mrf.mxu0
      %854 = vdwg.mxu0
      %855 = vmatprep.subr.bf16.mxu0 0
      %856 = vmatpush1.bf16.xpose.msra.mxu0 0
      %857 = vmatprep.subr.bf16.mxu0 0
      %858 = vmatpush1.bf16.xpose.msra.mxu0 0
      %859 = vmatprep.subr.bf16.mxu0 0
      %860 = vmatpush1.bf16.xpose.msra.mxu0 0
      %861 = vmatprep.subr.bf16.mxu0 0
      %862 = vmatpush1.bf16.xpose.msra.mxu0 0
      %863 = vmatprep.subr.bf16.mxu0 0
      %864 = vmatpush1.bf16.xpose.msra.mxu0 0
      %865 = vmatprep.subr.bf16.mxu0 0
      %866 = vmatpush1.bf16.xpose.msra.mxu0 0
      %867 = vmatprep.subr.bf16.mxu0 0
      %868 = vmatpush1.bf16.xpose.msra.mxu0 0
      %869 = vmatprep.subr.bf16.mxu0 %v577
      %870 = vmatpush1.bf16.xpose.msra.mxu0 %v576
      %871 = vmatprep.subr.bf16.mxu0 0
      %872 = vmatpush2.bf16.xpose.msra.mxu0 0
      %873 = vmatprep.subr.bf16.mxu0 0
      %874 = vmatpush2.bf16.xpose.msra.mxu0 0
      %875 = vmatprep.subr.bf16.mxu0 0
      %876 = vmatpush2.bf16.xpose.msra.mxu0 0
      %877 = vmatprep.subr.bf16.mxu0 0
      %878 = vmatpush2.bf16.xpose.msra.mxu0 0
      %879 = vmatprep.subr.bf16.mxu0 0
      %880 = vmatpush2.bf16.xpose.msra.mxu0 0
      %881 = vmatprep.subr.bf16.mxu0 0
      %882 = vmatpush2.bf16.xpose.msra.mxu0 0
      %883 = vmatprep.subr.bf16.mxu0 0
      %884 = vmatpush2.bf16.xpose.msra.mxu0 0
      %885 = vmatprep.subr.bf16.mxu0 0
      %886 = vmatpush2.bf16.xpose.msra.mxu0 0
      %887 = vmatprep.mubr.bf16.mxu0 %v587
      %888 = vmatmul.mubr.bf16.gmra.mxu0 %v586
      %v889 = vpop.f32.mrf.mxu0
      %v890 = vadd.f32 0.0, %v889
      %v891 = vpop.f32.mrf.mxu0
      %v892 = vpop.f32.mrf.mxu0
      %v893 = vadd.f32 0.0, %v892
      %v894 = vpop.f32.mrf.mxu0
      %895 = vdwg.mxu0
      %896 = vmatprep.subr.bf16.mxu0 0
      %897 = vmatpush1.bf16.xpose.msra.mxu0 0
      %898 = vmatprep.subr.bf16.mxu0 0
      %899 = vmatpush1.bf16.xpose.msra.mxu0 0
      %900 = vmatprep.subr.bf16.mxu0 0
      %901 = vmatpush1.bf16.xpose.msra.mxu0 0
      %902 = vmatprep.subr.bf16.mxu0 0
      %903 = vmatpush1.bf16.xpose.msra.mxu0 0
      %904 = vmatprep.subr.bf16.mxu0 0
      %905 = vmatpush1.bf16.xpose.msra.mxu0 0
      %906 = vmatprep.subr.bf16.mxu0 0
      %907 = vmatpush1.bf16.xpose.msra.mxu0 0
      %908 = vmatprep.subr.bf16.mxu0 0
      %909 = vmatpush1.bf16.xpose.msra.mxu0 0
      %910 = vmatprep.subr.bf16.mxu0 %v638
      %911 = vmatpush1.bf16.xpose.msra.mxu0 %v637
      %912 = vmatprep.subr.bf16.mxu0 0
      %913 = vmatpush2.bf16.xpose.msra.mxu0 0
      %914 = vmatprep.subr.bf16.mxu0 0
      %915 = vmatpush2.bf16.xpose.msra.mxu0 0
      %916 = vmatprep.subr.bf16.mxu0 0
      %917 = vmatpush2.bf16.xpose.msra.mxu0 0
      %918 = vmatprep.subr.bf16.mxu0 0
      %919 = vmatpush2.bf16.xpose.msra.mxu0 0
      %920 = vmatprep.subr.bf16.mxu0 0
      %921 = vmatpush2.bf16.xpose.msra.mxu0 0
      %922 = vmatprep.subr.bf16.mxu0 0
      %923 = vmatpush2.bf16.xpose.msra.mxu0 0
      %924 = vmatprep.subr.bf16.mxu0 0
      %925 = vmatpush2.bf16.xpose.msra.mxu0 0
      %926 = vmatprep.subr.bf16.mxu0 0
      %927 = vmatpush2.bf16.xpose.msra.mxu0 0
      %928 = vmatprep.mubr.bf16.mxu0 %v648
      %929 = vmatmul.mubr.bf16.gmra.mxu0 %v647
      %v930 = vpop.f32.mrf.mxu0
      %v931 = vadd.f32 0.0, %v930
      %v932 = vpop.f32.mrf.mxu0
      %v933 = vpop.f32.mrf.mxu0
      %v934 = vadd.f32 0.0, %v933
      %v935 = vpop.f32.mrf.mxu0
      %936 = vdwg.mxu0
      %937 = vmatprep.subr.bf16.mxu0 0
      %938 = vmatpush1.bf16.xpose.msra.mxu0 0
      %939 = vmatprep.subr.bf16.mxu0 0
      %940 = vmatpush1.bf16.xpose.msra.mxu0 0
      %941 = vmatprep.subr.bf16.mxu0 0
      %942 = vmatpush1.bf16.xpose.msra.mxu0 0
      %943 = vmatprep.subr.bf16.mxu0 0
      %944 = vmatpush1.bf16.xpose.msra.mxu0 0
      %945 = vmatprep.subr.bf16.mxu0 0
      %946 = vmatpush1.bf16.xpose.msra.mxu0 0
      %947 = vmatprep.subr.bf16.mxu0 0
      %948 = vmatpush1.bf16.xpose.msra.mxu0 0
      %949 = vmatprep.subr.bf16.mxu0 0
      %950 = vmatpush1.bf16.xpose.msra.mxu0 0
      %951 = vmatprep.subr.bf16.mxu0 %v699
      %952 = vmatpush1.bf16.xpose.msra.mxu0 %v698
      %953 = vmatprep.subr.bf16.mxu0 0
      %954 = vmatpush2.bf16.xpose.msra.mxu0 0
      %955 = vmatprep.subr.bf16.mxu0 0
      %956 = vmatpush2.bf16.xpose.msra.mxu0 0
      %957 = vmatprep.subr.bf16.mxu0 0
      %958 = vmatpush2.bf16.xpose.msra.mxu0 0
      %959 = vmatprep.subr.bf16.mxu0 0
      %960 = vmatpush2.bf16.xpose.msra.mxu0 0
      %961 = vmatprep.subr.bf16.mxu0 0
      %962 = vmatpush2.bf16.xpose.msra.mxu0 0
      %963 = vmatprep.subr.bf16.mxu0 0
      %964 = vmatpush2.bf16.xpose.msra.mxu0 0
      %965 = vmatprep.subr.bf16.mxu0 0
      %966 = vmatpush2.bf16.xpose.msra.mxu0 0
      %967 = vmatprep.subr.bf16.mxu0 0
      %968 = vmatpush2.bf16.xpose.msra.mxu0 0
      %969 = vmatprep.mubr.bf16.mxu0 %v709
      %970 = vmatmul.mubr.bf16.gmra.mxu0 %v708
      %v971 = vpop.f32.mrf.mxu0
      %v972 = vadd.f32 0.0, %v971
      %v973 = vpop.f32.mrf.mxu0
      %v974 = vpop.f32.mrf.mxu0
      %v975 = vadd.f32 0.0, %v974
      %v976 = vpop.f32.mrf.mxu0
      %977 = vdwg.mxu0
      %978 = vmatprep.subr.bf16.mxu0 0
      %979 = vmatpush1.bf16.xpose.msra.mxu0 0
      %980 = vmatprep.subr.bf16.mxu0 0
      %981 = vmatpush1.bf16.xpose.msra.mxu0 0
      %982 = vmatprep.subr.bf16.mxu0 0
      %983 = vmatpush1.bf16.xpose.msra.mxu0 0
      %984 = vmatprep.subr.bf16.mxu0 0
      %985 = vmatpush1.bf16.xpose.msra.mxu0 0
      %986 = vmatprep.subr.bf16.mxu0 0
      %987 = vmatpush1.bf16.xpose.msra.mxu0 0
      %988 = vmatprep.subr.bf16.mxu0 0
      %989 = vmatpush1.bf16.xpose.msra.mxu0 0
      %990 = vmatprep.subr.bf16.mxu0 0
      %991 = vmatpush1.bf16.xpose.msra.mxu0 0
      %992 = vmatprep.subr.bf16.mxu0 %v760
      %993 = vmatpush1.bf16.xpose.msra.mxu0 %v759
      %994 = vmatprep.subr.bf16.mxu0 0
      %995 = vmatpush2.bf16.xpose.msra.mxu0 0
      %996 = vmatprep.subr.bf16.mxu0 0
      %997 = vmatpush2.bf16.xpose.msra.mxu0 0
      %998 = vmatprep.subr.bf16.mxu0 0
      %999 = vmatpush2.bf16.xpose.msra.mxu0 0
      %1000 = vmatprep.subr.bf16.mxu0 0
      %1001 = vmatpush2.bf16.xpose.msra.mxu0 0
      %1002 = vmatprep.subr.bf16.mxu0 0
      %1003 = vmatpush2.bf16.xpose.msra.mxu0 0
      %1004 = vmatprep.subr.bf16.mxu0 0
      %1005 = vmatpush2.bf16.xpose.msra.mxu0 0
      %1006 = vmatprep.subr.bf16.mxu0 0
      %1007 = vmatpush2.bf16.xpose.msra.mxu0 0
      %1008 = vmatprep.subr.bf16.mxu0 0
      %1009 = vmatpush2.bf16.xpose.msra.mxu0 0
      %1010 = vmatprep.mubr.bf16.mxu0 %v770
      %1011 = vmatmul.mubr.bf16.gmra.mxu0 %v769
      %v1012 = vpop.f32.mrf.mxu0
      %v1013 = vadd.f32 0.0, %v1012
      %v1014 = vpop.f32.mrf.mxu0
      %v1015 = vpop.f32.mrf.mxu0
      %v1016 = vadd.f32 0.0, %v1015
      %v1017 = vpop.f32.mrf.mxu0
      %1018 = vdwg.mxu0
      %vm1019 = vcmask 130048
      %v1020 = vsel %vm1019, %v564, -inf
      %1021 = vmax.xlane.f32.xlu0 %v1020
      %v1022 = vpop.xlane.xlu0 %1021
      %v1023 = vsel %vm1019, %v567, -inf
      %1024 = vmax.xlane.f32.xlu0 %v1023
      %v1025 = vpop.xlane.xlu0 %1024
      %v1026 = vsel %vm1019, %v625, -inf
      %1027 = vmax.xlane.f32.xlu0 %v1026
      %v1028 = vpop.xlane.xlu0 %1027
      %v1029 = vsel %vm1019, %v628, -inf
      %1030 = vmax.xlane.f32.xlu0 %v1029
      %v1031 = vpop.xlane.xlu0 %1030
      %v1032 = vsel %vm1019, %v686, -inf
      %1033 = vmax.xlane.f32.xlu0 %v1032
      %v1034 = vpop.xlane.xlu0 %1033
      %v1035 = vsel %vm1019, %v689, -inf
      %1036 = vmax.xlane.f32.xlu0 %v1035
      %v1037 = vpop.xlane.xlu0 %1036
      %v1038 = vsel %vm1019, %v747, -inf
      %1039 = vmax.xlane.f32.xlu0 %v1038
      %v1040 = vpop.xlane.xlu0 %1039
      %v1041 = vsel %vm1019, %v750, -inf
      %1042 = vmax.xlane.f32.xlu0 %v1041
      %v1043 = vpop.xlane.xlu0 %1042
      %v1044 = vsel %vm1019, %v808, -inf
      %1045 = vmax.xlane.f32.xlu0 %v1044
      %v1046 = vpop.xlane.xlu0 %1045
      %v1047 = vsel %vm1019, %v811, -inf
      %1048 = vmax.xlane.f32.xlu0 %v1047
      %v1049 = vpop.xlane.xlu0 %1048
      %v1050 = vsub.f32 %v564, %v1022
      %v1051 = vsub.f32 %v567, %v1025
      %v1052 = vsub.f32 %v625, %v1028
      %v1053 = vsub.f32 %v628, %v1031
      %v1054 = vsub.f32 %v686, %v1034
      %v1055 = vsub.f32 %v689, %v1037
      %v1056 = vsub.f32 %v747, %v1040
      %v1057 = vsub.f32 %v750, %v1043
      %v1058 = vsub.f32 %v808, %v1046
      %v1059 = vsub.f32 %v811, %v1049
      %v1060 = vmul.f32 %v1050, 1.442695
      %v1061 = vpow.pop %v1060
      %v1062 = vmul.f32 %v1051, 1.442695
      %v1063 = vpow.pop %v1062
      %v1064 = vmul.f32 %v1052, 1.442695
      %v1065 = vpow.pop %v1064
      %v1066 = vmul.f32 %v1053, 1.442695
      %v1067 = vpow.pop %v1066
      %v1068 = vmul.f32 %v1054, 1.442695
      %v1069 = vpow.pop %v1068
      %v1070 = vmul.f32 %v1055, 1.442695
      %v1071 = vpow.pop %v1070
      %v1072 = vmul.f32 %v1056, 1.442695
      %v1073 = vpow.pop %v1072
      %v1074 = vmul.f32 %v1057, 1.442695
      %v1075 = vpow.pop %v1074
      %v1076 = vmul.f32 %v1058, 1.442695
      %v1077 = vpow.pop %v1076
      %v1078 = vmul.f32 %v1059, 1.442695
      %v1079 = vpow.pop %v1078
      %v1080 = vsel %vm1019, %v1061, 0.0
      %1081 = vadd.xlane.f32.xlu0 %v1080
      %v1082 = vpop.xlane.xlu0 %1081
      %v1083 = vsel %vm1019, %v1063, 0.0
      %1084 = vadd.xlane.f32.xlu0 %v1083
      %v1085 = vpop.xlane.xlu0 %1084
      %v1086 = vsel %vm1019, %v1065, 0.0
      %1087 = vadd.xlane.f32.xlu0 %v1086
      %v1088 = vpop.xlane.xlu0 %1087
      %v1089 = vsel %vm1019, %v1067, 0.0
      %1090 = vadd.xlane.f32.xlu0 %v1089
      %v1091 = vpop.xlane.xlu0 %1090
      %v1092 = vsel %vm1019, %v1069, 0.0
      %1093 = vadd.xlane.f32.xlu0 %v1092
      %v1094 = vpop.xlane.xlu0 %1093
      %v1095 = vsel %vm1019, %v1071, 0.0
      %1096 = vadd.xlane.f32.xlu0 %v1095
      %v1097 = vpop.xlane.xlu0 %1096
      %v1098 = vsel %vm1019, %v1073, 0.0
      %1099 = vadd.xlane.f32.xlu0 %v1098
      %v1100 = vpop.xlane.xlu0 %1099
      %v1101 = vsel %vm1019, %v1075, 0.0
      %1102 = vadd.xlane.f32.xlu0 %v1101
      %v1103 = vpop.xlane.xlu0 %1102
      %v1104 = vsel %vm1019, %v1077, 0.0
      %1105 = vadd.xlane.f32.xlu0 %v1104
      %v1106 = vpop.xlane.xlu0 %1105
      %v1107 = vsel %vm1019, %v1079, 0.0
      %1108 = vadd.xlane.f32.xlu0 %v1107
      %v1109 = vpop.xlane.xlu0 %1108
      %v1110 = vrcp.pop %v1082
      %v1111 = vmul.f32 %v1061, %v1110
      %v1112 = vrcp.pop %v1085
      %v1113 = vmul.f32 %v1063, %v1112
      %v1114 = vrcp.pop %v1088
      %v1115 = vmul.f32 %v1065, %v1114
      %v1116 = vrcp.pop %v1091
      %v1117 = vmul.f32 %v1067, %v1116
      %v1118 = vrcp.pop %v1094
      %v1119 = vmul.f32 %v1069, %v1118
      %v1120 = vrcp.pop %v1097
      %v1121 = vmul.f32 %v1071, %v1120
      %v1122 = vrcp.pop %v1100
      %v1123 = vmul.f32 %v1073, %v1122
      %v1124 = vrcp.pop %v1103
      %v1125 = vmul.f32 %v1075, %v1124
      %v1126 = vrcp.pop %v1106
      %v1127 = vmul.f32 %v1077, %v1126
      %v1128 = vrcp.pop %v1109
      %v1129 = vmul.f32 %v1079, %v1128
      %v1130 = vsel %vm1019, %v849, -inf
      %1131 = vmax.xlane.f32.xlu0 %v1130
      %v1132 = vpop.xlane.xlu0 %1131
      %v1133 = vsel %vm1019, %v852, -inf
      %1134 = vmax.xlane.f32.xlu0 %v1133
      %v1135 = vpop.xlane.xlu0 %1134
      %v1136 = vsel %vm1019, %v890, -inf
      %1137 = vmax.xlane.f32.xlu0 %v1136
      %v1138 = vpop.xlane.xlu0 %1137
      %v1139 = vsel %vm1019, %v893, -inf
      %1140 = vmax.xlane.f32.xlu0 %v1139
      %v1141 = vpop.xlane.xlu0 %1140
      %v1142 = vsel %vm1019, %v931, -inf
      %1143 = vmax.xlane.f32.xlu0 %v1142
      %v1144 = vpop.xlane.xlu0 %1143
      %v1145 = vsel %vm1019, %v934, -inf
      %1146 = vmax.xlane.f32.xlu0 %v1145
      %v1147 = vpop.xlane.xlu0 %1146
      %v1148 = vsel %vm1019, %v972, -inf
      %1149 = vmax.xlane.f32.xlu0 %v1148
      %v1150 = vpop.xlane.xlu0 %1149
      %v1151 = vsel %vm1019, %v975, -inf
      %1152 = vmax.xlane.f32.xlu0 %v1151
      %v1153 = vpop.xlane.xlu0 %1152
      %v1154 = vsel %vm1019, %v1013, -inf
      %1155 = vmax.xlane.f32.xlu0 %v1154
      %v1156 = vpop.xlane.xlu0 %1155
      %v1157 = vsel %vm1019, %v1016, -inf
      %1158 = vmax.xlane.f32.xlu0 %v1157
      %v1159 = vpop.xlane.xlu0 %1158
      %v1160 = vsub.f32 %v849, %v1132
      %v1161 = vsub.f32 %v852, %v1135
      %v1162 = vsub.f32 %v890, %v1138
      %v1163 = vsub.f32 %v893, %v1141
      %v1164 = vsub.f32 %v931, %v1144
      %v1165 = vsub.f32 %v934, %v1147
      %v1166 = vsub.f32 %v972, %v1150
      %v1167 = vsub.f32 %v975, %v1153
      %v1168 = vsub.f32 %v1013, %v1156
      %v1169 = vsub.f32 %v1016, %v1159
      %v1170 = vmul.f32 %v1160, 1.442695
      %v1171 = vpow.pop %v1170
      %v1172 = vmul.f32 %v1161, 1.442695
      %v1173 = vpow.pop %v1172
      %v1174 = vmul.f32 %v1162, 1.442695
      %v1175 = vpow.pop %v1174
      %v1176 = vmul.f32 %v1163, 1.442695
      %v1177 = vpow.pop %v1176
      %v1178 = vmul.f32 %v1164, 1.442695
      %v1179 = vpow.pop %v1178
      %v1180 = vmul.f32 %v1165, 1.442695
      %v1181 = vpow.pop %v1180
      %v1182 = vmul.f32 %v1166, 1.442695
      %v1183 = vpow.pop %v1182
      %v1184 = vmul.f32 %v1167, 1.442695
      %v1185 = vpow.pop %v1184
      %v1186 = vmul.f32 %v1168, 1.442695
      %v1187 = vpow.pop %v1186
      %v1188 = vmul.f32 %v1169, 1.442695
      %v1189 = vpow.pop %v1188
      %v1190 = vsel %vm1019, %v1171, 0.0
      %1191 = vadd.xlane.f32.xlu0 %v1190
      %v1192 = vpop.xlane.xlu0 %1191
      %v1193 = vsel %vm1019, %v1173, 0.0
      %1194 = vadd.xlane.f32.xlu0 %v1193
      %v1195 = vpop.xlane.xlu0 %1194
      %v1196 = vsel %vm1019, %v1175, 0.0
      %1197 = vadd.xlane.f32.xlu0 %v1196
      %v1198 = vpop.xlane.xlu0 %1197
      %v1199 = vsel %vm1019, %v1177, 0.0
      %1200 = vadd.xlane.f32.xlu0 %v1199
      %v1201 = vpop.xlane.xlu0 %1200
      %v1202 = vsel %vm1019, %v1179, 0.0
      %1203 = vadd.xlane.f32.xlu0 %v1202
      %v1204 = vpop.xlane.xlu0 %1203
      %v1205 = vsel %vm1019, %v1181, 0.0
      %1206 = vadd.xlane.f32.xlu0 %v1205
      %v1207 = vpop.xlane.xlu0 %1206
      %v1208 = vsel %vm1019, %v1183, 0.0
      %1209 = vadd.xlane.f32.xlu0 %v1208
      %v1210 = vpop.xlane.xlu0 %1209
      %v1211 = vsel %vm1019, %v1185, 0.0
      %1212 = vadd.xlane.f32.xlu0 %v1211
      %v1213 = vpop.xlane.xlu0 %1212
      %v1214 = vsel %vm1019, %v1187, 0.0
      %1215 = vadd.xlane.f32.xlu0 %v1214
      %v1216 = vpop.xlane.xlu0 %1215
      %v1217 = vsel %vm1019, %v1189, 0.0
      %1218 = vadd.xlane.f32.xlu0 %v1217
      %v1219 = vpop.xlane.xlu0 %1218
      %v1220 = vrcp.pop %v1192
      %v1221 = vmul.f32 %v1171, %v1220
      %v1222 = vrcp.pop %v1195
      %v1223 = vmul.f32 %v1173, %v1222
      %v1224 = vrcp.pop %v1198
      %v1225 = vmul.f32 %v1175, %v1224
      %v1226 = vrcp.pop %v1201
      %v1227 = vmul.f32 %v1177, %v1226
      %v1228 = vrcp.pop %v1204
      %v1229 = vmul.f32 %v1179, %v1228
      %v1230 = vrcp.pop %v1207
      %v1231 = vmul.f32 %v1181, %v1230
      %v1232 = vrcp.pop %v1210
      %v1233 = vmul.f32 %v1183, %v1232
      %v1234 = vrcp.pop %v1213
      %v1235 = vmul.f32 %v1185, %v1234
      %v1236 = vrcp.pop %v1216
      %v1237 = vmul.f32 %v1187, %v1236
      %v1238 = vrcp.pop %v1219
      %v1239 = vmul.f32 %v1189, %v1238
      %v1240 = vpack.c.bf16 %v1113, %v1111
      %v1241 = vpack.c.bf16 %v1117, %v1115
      %v1242 = vpack.c.bf16 %v1121, %v1119
      %v1243 = vpack.c.bf16 %v1125, %v1123
      %v1244 = vpack.c.bf16 %v1129, %v1127
      %v1246 = vsel %vm1019, %v1240, 0
      %1248 = vmatprep.subr.bf16.mxu0 0
      %1249 = vmatpush1.bf16.msra.mxu0 0
      %1250 = vmatprep.subr.bf16.mxu0 0
      %1251 = vmatpush1.bf16.msra.mxu0 0
      %1252 = vmatprep.subr.bf16.mxu0 0
      %1253 = vmatpush1.bf16.msra.mxu0 0
      %1254 = vmatprep.subr.bf16.mxu0 0
      %1255 = vmatpush1.bf16.msra.mxu0 0
      %1256 = vmatprep.subr.bf16.mxu0 0
      %1257 = vmatpush1.bf16.msra.mxu0 0
      %1258 = vmatprep.subr.bf16.mxu0 0
      %1259 = vmatpush1.bf16.msra.mxu0 0
      %1260 = vmatprep.subr.bf16.mxu0 0
      %1261 = vmatpush1.bf16.msra.mxu0 0
      %1262 = vmatprep.subr.bf16.mxu0 %v526
      %1263 = vmatpush1.bf16.msra.mxu0 %v525
      %1264 = vmatprep.subr.bf16.mxu0 0
      %1265 = vmatpush2.bf16.msra.mxu0 0
      %1266 = vmatprep.subr.bf16.mxu0 0
      %1267 = vmatpush2.bf16.msra.mxu0 0
      %1268 = vmatprep.subr.bf16.mxu0 0
      %1269 = vmatpush2.bf16.msra.mxu0 0
      %1270 = vmatprep.subr.bf16.mxu0 0
      %1271 = vmatpush2.bf16.msra.mxu0 0
      %1272 = vmatprep.subr.bf16.mxu0 0
      %1273 = vmatpush2.bf16.msra.mxu0 0
      %1274 = vmatprep.subr.bf16.mxu0 0
      %1275 = vmatpush2.bf16.msra.mxu0 0
      %1276 = vmatprep.subr.bf16.mxu0 0
      %1277 = vmatpush2.bf16.msra.mxu0 0
      %1278 = vmatprep.subr.bf16.mxu0 0
      %1279 = vmatpush2.bf16.msra.mxu0 0
      %1280 = vmatprep.mubr.bf16.mxu0 0
      %1281 = vmatmul.mubr.bf16.gmra.mxu0 %v1246
      %v1282 = vpop.f32.mrf.mxu0
      %v1283 = vadd.f32 0.0, %v1282
      %v1284 = vpop.f32.mrf.mxu0
      %v1285 = vadd.f32 0.0, %v1284
      %v1286 = vpop.f32.mrf.mxu0
      %v1287 = vadd.f32 0.0, %v1286
      %v1288 = vpop.f32.mrf.mxu0
      %v1289 = vadd.f32 0.0, %v1288
      %1290 = vdwg.mxu0
      %v1292 = vsel %vm1019, %v1241, 0
      %1294 = vmatprep.subr.bf16.mxu0 0
      %1295 = vmatpush1.bf16.msra.mxu0 0
      %1296 = vmatprep.subr.bf16.mxu0 0
      %1297 = vmatpush1.bf16.msra.mxu0 0
      %1298 = vmatprep.subr.bf16.mxu0 0
      %1299 = vmatpush1.bf16.msra.mxu0 0
      %1300 = vmatprep.subr.bf16.mxu0 0
      %1301 = vmatpush1.bf16.msra.mxu0 0
      %1302 = vmatprep.subr.bf16.mxu0 0
      %1303 = vmatpush1.bf16.msra.mxu0 0
      %1304 = vmatprep.subr.bf16.mxu0 0
      %1305 = vmatpush1.bf16.msra.mxu0 0
      %1306 = vmatprep.subr.bf16.mxu0 0
      %1307 = vmatpush1.bf16.msra.mxu0 0
      %1308 = vmatprep.subr.bf16.mxu0 %v587
      %1309 = vmatpush1.bf16.msra.mxu0 %v586
      %1310 = vmatprep.subr.bf16.mxu0 0
      %1311 = vmatpush2.bf16.msra.mxu0 0
      %1312 = vmatprep.subr.bf16.mxu0 0
      %1313 = vmatpush2.bf16.msra.mxu0 0
      %1314 = vmatprep.subr.bf16.mxu0 0
      %1315 = vmatpush2.bf16.msra.mxu0 0
      %1316 = vmatprep.subr.bf16.mxu0 0
      %1317 = vmatpush2.bf16.msra.mxu0 0
      %1318 = vmatprep.subr.bf16.mxu0 0
      %1319 = vmatpush2.bf16.msra.mxu0 0
      %1320 = vmatprep.subr.bf16.mxu0 0
      %1321 = vmatpush2.bf16.msra.mxu0 0
      %1322 = vmatprep.subr.bf16.mxu0 0
      %1323 = vmatpush2.bf16.msra.mxu0 0
      %1324 = vmatprep.subr.bf16.mxu0 0
      %1325 = vmatpush2.bf16.msra.mxu0 0
      %1326 = vmatprep.mubr.bf16.mxu0 0
      %1327 = vmatmul.mubr.bf16.gmra.mxu0 %v1292
      %v1328 = vpop.f32.mrf.mxu0
      %v1329 = vadd.f32 0.0, %v1328
      %v1330 = vpop.f32.mrf.mxu0
      %v1331 = vadd.f32 0.0, %v1330
      %v1332 = vpop.f32.mrf.mxu0
      %v1333 = vadd.f32 0.0, %v1332
      %v1334 = vpop.f32.mrf.mxu0
      %v1335 = vadd.f32 0.0, %v1334
      %1336 = vdwg.mxu0
      %v1338 = vsel %vm1019, %v1242, 0
      %1340 = vmatprep.subr.bf16.mxu0 0
      %1341 = vmatpush1.bf16.msra.mxu0 0
      %1342 = vmatprep.subr.bf16.mxu0 0
      %1343 = vmatpush1.bf16.msra.mxu0 0
      %1344 = vmatprep.subr.bf16.mxu0 0
      %1345 = vmatpush1.bf16.msra.mxu0 0
      %1346 = vmatprep.subr.bf16.mxu0 0
      %1347 = vmatpush1.bf16.msra.mxu0 0
      %1348 = vmatprep.subr.bf16.mxu0 0
      %1349 = vmatpush1.bf16.msra.mxu0 0
      %1350 = vmatprep.subr.bf16.mxu0 0
      %1351 = vmatpush1.bf16.msra.mxu0 0
      %1352 = vmatprep.subr.bf16.mxu0 0
      %1353 = vmatpush1.bf16.msra.mxu0 0
      %1354 = vmatprep.subr.bf16.mxu0 %v648
      %1355 = vmatpush1.bf16.msra.mxu0 %v647
      %1356 = vmatprep.subr.bf16.mxu0 0
      %1357 = vmatpush2.bf16.msra.mxu0 0
      %1358 = vmatprep.subr.bf16.mxu0 0
      %1359 = vmatpush2.bf16.msra.mxu0 0
      %1360 = vmatprep.subr.bf16.mxu0 0
      %1361 = vmatpush2.bf16.msra.mxu0 0
      %1362 = vmatprep.subr.bf16.mxu0 0
      %1363 = vmatpush2.bf16.msra.mxu0 0
      %1364 = vmatprep.subr.bf16.mxu0 0
      %1365 = vmatpush2.bf16.msra.mxu0 0
      %1366 = vmatprep.subr.bf16.mxu0 0
      %1367 = vmatpush2.bf16.msra.mxu0 0
      %1368 = vmatprep.subr.bf16.mxu0 0
      %1369 = vmatpush2.bf16.msra.mxu0 0
      %1370 = vmatprep.subr.bf16.mxu0 0
      %1371 = vmatpush2.bf16.msra.mxu0 0
      %1372 = vmatprep.mubr.bf16.mxu0 0
      %1373 = vmatmul.mubr.bf16.gmra.mxu0 %v1338
      %v1374 = vpop.f32.mrf.mxu0
      %v1375 = vadd.f32 0.0, %v1374
      %v1376 = vpop.f32.mrf.mxu0
      %v1377 = vadd.f32 0.0, %v1376
      %v1378 = vpop.f32.mrf.mxu0
      %v1379 = vadd.f32 0.0, %v1378
      %v1380 = vpop.f32.mrf.mxu0
      %v1381 = vadd.f32 0.0, %v1380
      %1382 = vdwg.mxu0
      %v1384 = vsel %vm1019, %v1243, 0
      %1386 = vmatprep.subr.bf16.mxu0 0
      %1387 = vmatpush1.bf16.msra.mxu0 0
      %1388 = vmatprep.subr.bf16.mxu0 0
      %1389 = vmatpush1.bf16.msra.mxu0 0
      %1390 = vmatprep.subr.bf16.mxu0 0
      %1391 = vmatpush1.bf16.msra.mxu0 0
      %1392 = vmatprep.subr.bf16.mxu0 0
      %1393 = vmatpush1.bf16.msra.mxu0 0
      %1394 = vmatprep.subr.bf16.mxu0 0
      %1395 = vmatpush1.bf16.msra.mxu0 0
      %1396 = vmatprep.subr.bf16.mxu0 0
      %1397 = vmatpush1.bf16.msra.mxu0 0
      %1398 = vmatprep.subr.bf16.mxu0 0
      %1399 = vmatpush1.bf16.msra.mxu0 0
      %1400 = vmatprep.subr.bf16.mxu0 %v709
      %1401 = vmatpush1.bf16.msra.mxu0 %v708
      %1402 = vmatprep.subr.bf16.mxu0 0
      %1403 = vmatpush2.bf16.msra.mxu0 0
      %1404 = vmatprep.subr.bf16.mxu0 0
      %1405 = vmatpush2.bf16.msra.mxu0 0
      %1406 = vmatprep.subr.bf16.mxu0 0
      %1407 = vmatpush2.bf16.msra.mxu0 0
      %1408 = vmatprep.subr.bf16.mxu0 0
      %1409 = vmatpush2.bf16.msra.mxu0 0
      %1410 = vmatprep.subr.bf16.mxu0 0
      %1411 = vmatpush2.bf16.msra.mxu0 0
      %1412 = vmatprep.subr.bf16.mxu0 0
      %1413 = vmatpush2.bf16.msra.mxu0 0
      %1414 = vmatprep.subr.bf16.mxu0 0
      %1415 = vmatpush2.bf16.msra.mxu0 0
      %1416 = vmatprep.subr.bf16.mxu0 0
      %1417 = vmatpush2.bf16.msra.mxu0 0
      %1418 = vmatprep.mubr.bf16.mxu0 0
      %1419 = vmatmul.mubr.bf16.gmra.mxu0 %v1384
      %v1420 = vpop.f32.mrf.mxu0
      %v1421 = vadd.f32 0.0, %v1420
      %v1422 = vpop.f32.mrf.mxu0
      %v1423 = vadd.f32 0.0, %v1422
      %v1424 = vpop.f32.mrf.mxu0
      %v1425 = vadd.f32 0.0, %v1424
      %v1426 = vpop.f32.mrf.mxu0
      %v1427 = vadd.f32 0.0, %v1426
      %1428 = vdwg.mxu0
      %v1430 = vsel %vm1019, %v1244, 0
      %1432 = vmatprep.subr.bf16.mxu0 0
      %1433 = vmatpush1.bf16.msra.mxu0 0
      %1434 = vmatprep.subr.bf16.mxu0 0
      %1435 = vmatpush1.bf16.msra.mxu0 0
      %1436 = vmatprep.subr.bf16.mxu0 0
      %1437 = vmatpush1.bf16.msra.mxu0 0
      %1438 = vmatprep.subr.bf16.mxu0 0
      %1439 = vmatpush1.bf16.msra.mxu0 0
      %1440 = vmatprep.subr.bf16.mxu0 0
      %1441 = vmatpush1.bf16.msra.mxu0 0
      %1442 = vmatprep.subr.bf16.mxu0 0
      %1443 = vmatpush1.bf16.msra.mxu0 0
      %1444 = vmatprep.subr.bf16.mxu0 0
      %1445 = vmatpush1.bf16.msra.mxu0 0
      %1446 = vmatprep.subr.bf16.mxu0 %v770
      %1447 = vmatpush1.bf16.msra.mxu0 %v769
      %1448 = vmatprep.subr.bf16.mxu0 0
      %1449 = vmatpush2.bf16.msra.mxu0 0
      %1450 = vmatprep.subr.bf16.mxu0 0
      %1451 = vmatpush2.bf16.msra.mxu0 0
      %1452 = vmatprep.subr.bf16.mxu0 0
      %1453 = vmatpush2.bf16.msra.mxu0 0
      %1454 = vmatprep.subr.bf16.mxu0 0
      %1455 = vmatpush2.bf16.msra.mxu0 0
      %1456 = vmatprep.subr.bf16.mxu0 0
      %1457 = vmatpush2.bf16.msra.mxu0 0
      %1458 = vmatprep.subr.bf16.mxu0 0
      %1459 = vmatpush2.bf16.msra.mxu0 0
      %1460 = vmatprep.subr.bf16.mxu0 0
      %1461 = vmatpush2.bf16.msra.mxu0 0
      %1462 = vmatprep.subr.bf16.mxu0 0
      %1463 = vmatpush2.bf16.msra.mxu0 0
      %1464 = vmatprep.mubr.bf16.mxu0 0
      %1465 = vmatmul.mubr.bf16.gmra.mxu0 %v1430
      %v1466 = vpop.f32.mrf.mxu0
      %v1467 = vadd.f32 0.0, %v1466
      %v1468 = vpop.f32.mrf.mxu0
      %v1469 = vadd.f32 0.0, %v1468
      %v1470 = vpop.f32.mrf.mxu0
      %v1471 = vadd.f32 0.0, %v1470
      %v1472 = vpop.f32.mrf.mxu0
      %v1473 = vadd.f32 0.0, %v1472
      %1474 = vdwg.mxu0
      %v1475 = vpack.c.bf16 %v1223, %v1221
      %v1476 = vpack.c.bf16 %v1227, %v1225
      %v1477 = vpack.c.bf16 %v1231, %v1229
      %v1478 = vpack.c.bf16 %v1235, %v1233
      %v1479 = vpack.c.bf16 %v1239, %v1237
      %v1481 = vsel %vm1019, %v1475, 0
      %1483 = vmatprep.subr.bf16.mxu0 0
      %1484 = vmatpush1.bf16.msra.mxu0 0
      %1485 = vmatprep.subr.bf16.mxu0 0
      %1486 = vmatpush1.bf16.msra.mxu0 0
      %1487 = vmatprep.subr.bf16.mxu0 0
      %1488 = vmatpush1.bf16.msra.mxu0 0
      %1489 = vmatprep.subr.bf16.mxu0 0
      %1490 = vmatpush1.bf16.msra.mxu0 0
      %1491 = vmatprep.subr.bf16.mxu0 0
      %1492 = vmatpush1.bf16.msra.mxu0 0
      %1493 = vmatprep.subr.bf16.mxu0 0
      %1494 = vmatpush1.bf16.msra.mxu0 0
      %1495 = vmatprep.subr.bf16.mxu0 0
      %1496 = vmatpush1.bf16.msra.mxu0 0
      %1497 = vmatprep.subr.bf16.mxu0 %v516
      %1498 = vmatpush1.bf16.msra.mxu0 %v515
      %1499 = vmatprep.subr.bf16.mxu0 0
      %1500 = vmatpush2.bf16.msra.mxu0 0
      %1501 = vmatprep.subr.bf16.mxu0 0
      %1502 = vmatpush2.bf16.msra.mxu0 0
      %1503 = vmatprep.subr.bf16.mxu0 0
      %1504 = vmatpush2.bf16.msra.mxu0 0
      %1505 = vmatprep.subr.bf16.mxu0 0
      %1506 = vmatpush2.bf16.msra.mxu0 0
      %1507 = vmatprep.subr.bf16.mxu0 0
      %1508 = vmatpush2.bf16.msra.mxu0 0
      %1509 = vmatprep.subr.bf16.mxu0 0
      %1510 = vmatpush2.bf16.msra.mxu0 0
      %1511 = vmatprep.subr.bf16.mxu0 0
      %1512 = vmatpush2.bf16.msra.mxu0 0
      %1513 = vmatprep.subr.bf16.mxu0 0
      %1514 = vmatpush2.bf16.msra.mxu0 0
      %1515 = vmatprep.mubr.bf16.mxu0 0
      %1516 = vmatmul.mubr.bf16.gmra.mxu0 %v1481
      %v1517 = vpop.f32.mrf.mxu0
      %v1518 = vadd.f32 0.0, %v1517
      %v1519 = vpop.f32.mrf.mxu0
      %v1520 = vadd.f32 0.0, %v1519
      %v1521 = vpop.f32.mrf.mxu0
      %v1522 = vadd.f32 0.0, %v1521
      %v1523 = vpop.f32.mrf.mxu0
      %v1524 = vadd.f32 0.0, %v1523
      %1525 = vdwg.mxu0
      %v1527 = vsel %vm1019, %v1476, 0
      %1529 = vmatprep.subr.bf16.mxu0 0
      %1530 = vmatpush1.bf16.msra.mxu0 0
      %1531 = vmatprep.subr.bf16.mxu0 0
      %1532 = vmatpush1.bf16.msra.mxu0 0
      %1533 = vmatprep.subr.bf16.mxu0 0
      %1534 = vmatpush1.bf16.msra.mxu0 0
      %1535 = vmatprep.subr.bf16.mxu0 0
      %1536 = vmatpush1.bf16.msra.mxu0 0
      %1537 = vmatprep.subr.bf16.mxu0 0
      %1538 = vmatpush1.bf16.msra.mxu0 0
      %1539 = vmatprep.subr.bf16.mxu0 0
      %1540 = vmatpush1.bf16.msra.mxu0 0
      %1541 = vmatprep.subr.bf16.mxu0 0
      %1542 = vmatpush1.bf16.msra.mxu0 0
      %1543 = vmatprep.subr.bf16.mxu0 %v577
      %1544 = vmatpush1.bf16.msra.mxu0 %v576
      %1545 = vmatprep.subr.bf16.mxu0 0
      %1546 = vmatpush2.bf16.msra.mxu0 0
      %1547 = vmatprep.subr.bf16.mxu0 0
      %1548 = vmatpush2.bf16.msra.mxu0 0
      %1549 = vmatprep.subr.bf16.mxu0 0
      %1550 = vmatpush2.bf16.msra.mxu0 0
      %1551 = vmatprep.subr.bf16.mxu0 0
      %1552 = vmatpush2.bf16.msra.mxu0 0
      %1553 = vmatprep.subr.bf16.mxu0 0
      %1554 = vmatpush2.bf16.msra.mxu0 0
      %1555 = vmatprep.subr.bf16.mxu0 0
      %1556 = vmatpush2.bf16.msra.mxu0 0
      %1557 = vmatprep.subr.bf16.mxu0 0
      %1558 = vmatpush2.bf16.msra.mxu0 0
      %1559 = vmatprep.subr.bf16.mxu0 0
      %1560 = vmatpush2.bf16.msra.mxu0 0
      %1561 = vmatprep.mubr.bf16.mxu0 0
      %1562 = vmatmul.mubr.bf16.gmra.mxu0 %v1527
      %v1563 = vpop.f32.mrf.mxu0
      %v1564 = vadd.f32 0.0, %v1563
      %v1565 = vpop.f32.mrf.mxu0
      %v1566 = vadd.f32 0.0, %v1565
      %v1567 = vpop.f32.mrf.mxu0
      %v1568 = vadd.f32 0.0, %v1567
      %v1569 = vpop.f32.mrf.mxu0
      %v1570 = vadd.f32 0.0, %v1569
      %1571 = vdwg.mxu0
      %v1573 = vsel %vm1019, %v1477, 0
      %1575 = vmatprep.subr.bf16.mxu0 0
      %1576 = vmatpush1.bf16.msra.mxu0 0
      %1577 = vmatprep.subr.bf16.mxu0 0
      %1578 = vmatpush1.bf16.msra.mxu0 0
      %1579 = vmatprep.subr.bf16.mxu0 0
      %1580 = vmatpush1.bf16.msra.mxu0 0
      %1581 = vmatprep.subr.bf16.mxu0 0
      %1582 = vmatpush1.bf16.msra.mxu0 0
      %1583 = vmatprep.subr.bf16.mxu0 0
      %1584 = vmatpush1.bf16.msra.mxu0 0
      %1585 = vmatprep.subr.bf16.mxu0 0
      %1586 = vmatpush1.bf16.msra.mxu0 0
      %1587 = vmatprep.subr.bf16.mxu0 0
      %1588 = vmatpush1.bf16.msra.mxu0 0
      %1589 = vmatprep.subr.bf16.mxu0 %v638
      %1590 = vmatpush1.bf16.msra.mxu0 %v637
      %1591 = vmatprep.subr.bf16.mxu0 0
      %1592 = vmatpush2.bf16.msra.mxu0 0
      %1593 = vmatprep.subr.bf16.mxu0 0
      %1594 = vmatpush2.bf16.msra.mxu0 0
      %1595 = vmatprep.subr.bf16.mxu0 0
      %1596 = vmatpush2.bf16.msra.mxu0 0
      %1597 = vmatprep.subr.bf16.mxu0 0
      %1598 = vmatpush2.bf16.msra.mxu0 0
      %1599 = vmatprep.subr.bf16.mxu0 0
      %1600 = vmatpush2.bf16.msra.mxu0 0
      %1601 = vmatprep.subr.bf16.mxu0 0
      %1602 = vmatpush2.bf16.msra.mxu0 0
      %1603 = vmatprep.subr.bf16.mxu0 0
      %1604 = vmatpush2.bf16.msra.mxu0 0
      %1605 = vmatprep.subr.bf16.mxu0 0
      %1606 = vmatpush2.bf16.msra.mxu0 0
      %1607 = vmatprep.mubr.bf16.mxu0 0
      %1608 = vmatmul.mubr.bf16.gmra.mxu0 %v1573
      %v1609 = vpop.f32.mrf.mxu0
      %v1610 = vadd.f32 0.0, %v1609
      %v1611 = vpop.f32.mrf.mxu0
      %v1612 = vadd.f32 0.0, %v1611
      %v1613 = vpop.f32.mrf.mxu0
      %v1614 = vadd.f32 0.0, %v1613
      %v1615 = vpop.f32.mrf.mxu0
      %v1616 = vadd.f32 0.0, %v1615
      %1617 = vdwg.mxu0
      %v1619 = vsel %vm1019, %v1478, 0
      %1621 = vmatprep.subr.bf16.mxu0 0
      %1622 = vmatpush1.bf16.msra.mxu0 0
      %1623 = vmatprep.subr.bf16.mxu0 0
      %1624 = vmatpush1.bf16.msra.mxu0 0
      %1625 = vmatprep.subr.bf16.mxu0 0
      %1626 = vmatpush1.bf16.msra.mxu0 0
      %1627 = vmatprep.subr.bf16.mxu0 0
      %1628 = vmatpush1.bf16.msra.mxu0 0
      %1629 = vmatprep.subr.bf16.mxu0 0
      %1630 = vmatpush1.bf16.msra.mxu0 0
      %1631 = vmatprep.subr.bf16.mxu0 0
      %1632 = vmatpush1.bf16.msra.mxu0 0
      %1633 = vmatprep.subr.bf16.mxu0 0
      %1634 = vmatpush1.bf16.msra.mxu0 0
      %1635 = vmatprep.subr.bf16.mxu0 %v699
      %1636 = vmatpush1.bf16.msra.mxu0 %v698
      %1637 = vmatprep.subr.bf16.mxu0 0
      %1638 = vmatpush2.bf16.msra.mxu0 0
      %1639 = vmatprep.subr.bf16.mxu0 0
      %1640 = vmatpush2.bf16.msra.mxu0 0
      %1641 = vmatprep.subr.bf16.mxu0 0
      %1642 = vmatpush2.bf16.msra.mxu0 0
      %1643 = vmatprep.subr.bf16.mxu0 0
      %1644 = vmatpush2.bf16.msra.mxu0 0
      %1645 = vmatprep.subr.bf16.mxu0 0
      %1646 = vmatpush2.bf16.msra.mxu0 0
      %1647 = vmatprep.subr.bf16.mxu0 0
      %1648 = vmatpush2.bf16.msra.mxu0 0
      %1649 = vmatprep.subr.bf16.mxu0 0
      %1650 = vmatpush2.bf16.msra.mxu0 0
      %1651 = vmatprep.subr.bf16.mxu0 0
      %1652 = vmatpush2.bf16.msra.mxu0 0
      %1653 = vmatprep.mubr.bf16.mxu0 0
      %1654 = vmatmul.mubr.bf16.gmra.mxu0 %v1619
      %v1655 = vpop.f32.mrf.mxu0
      %v1656 = vadd.f32 0.0, %v1655
      %v1657 = vpop.f32.mrf.mxu0
      %v1658 = vadd.f32 0.0, %v1657
      %v1659 = vpop.f32.mrf.mxu0
      %v1660 = vadd.f32 0.0, %v1659
      %v1661 = vpop.f32.mrf.mxu0
      %v1662 = vadd.f32 0.0, %v1661
      %1663 = vdwg.mxu0
      %v1665 = vsel %vm1019, %v1479, 0
      %1667 = vmatprep.subr.bf16.mxu0 0
      %1668 = vmatpush1.bf16.msra.mxu0 0
      %1669 = vmatprep.subr.bf16.mxu0 0
      %1670 = vmatpush1.bf16.msra.mxu0 0
      %1671 = vmatprep.subr.bf16.mxu0 0
      %1672 = vmatpush1.bf16.msra.mxu0 0
      %1673 = vmatprep.subr.bf16.mxu0 0
      %1674 = vmatpush1.bf16.msra.mxu0 0
      %1675 = vmatprep.subr.bf16.mxu0 0
      %1676 = vmatpush1.bf16.msra.mxu0 0
      %1677 = vmatprep.subr.bf16.mxu0 0
      %1678 = vmatpush1.bf16.msra.mxu0 0
      %1679 = vmatprep.subr.bf16.mxu0 0
      %1680 = vmatpush1.bf16.msra.mxu0 0
      %1681 = vmatprep.subr.bf16.mxu0 %v760
      %1682 = vmatpush1.bf16.msra.mxu0 %v759
      %1683 = vmatprep.subr.bf16.mxu0 0
      %1684 = vmatpush2.bf16.msra.mxu0 0
      %1685 = vmatprep.subr.bf16.mxu0 0
      %1686 = vmatpush2.bf16.msra.mxu0 0
      %1687 = vmatprep.subr.bf16.mxu0 0
      %1688 = vmatpush2.bf16.msra.mxu0 0
      %1689 = vmatprep.subr.bf16.mxu0 0
      %1690 = vmatpush2.bf16.msra.mxu0 0
      %1691 = vmatprep.subr.bf16.mxu0 0
      %1692 = vmatpush2.bf16.msra.mxu0 0
      %1693 = vmatprep.subr.bf16.mxu0 0
      %1694 = vmatpush2.bf16.msra.mxu0 0
      %1695 = vmatprep.subr.bf16.mxu0 0
      %1696 = vmatpush2.bf16.msra.mxu0 0
      %1697 = vmatprep.subr.bf16.mxu0 0
      %1698 = vmatpush2.bf16.msra.mxu0 0
      %1699 = vmatprep.mubr.bf16.mxu0 0
      %1700 = vmatmul.mubr.bf16.gmra.mxu0 %v1665
      %v1701 = vpop.f32.mrf.mxu0
      %v1702 = vadd.f32 0.0, %v1701
      %v1703 = vpop.f32.mrf.mxu0
      %v1704 = vadd.f32 0.0, %v1703
      %v1705 = vpop.f32.mrf.mxu0
      %v1706 = vadd.f32 0.0, %v1705
      %v1707 = vpop.f32.mrf.mxu0
      %v1708 = vadd.f32 0.0, %v1707
      %1709 = vdwg.mxu0
      %v1710 = vld [vmem:[%s420] sm:$0xff]
      %v1711 = vld [vmem:[%s420 + $0x8] sm:$0xff]
      %v1712 = vld [vmem:[%s420 + $0x10] sm:$0xff]
      %v1713 = vld [vmem:[%s420 + $0x18] sm:$0xff]
      %v1714 = vld [vmem:[%s420 + $0x20] sm:$0xff]
      %v1715 = vld [vmem:[%s420 + $0x28] sm:$0xff]
      %v1716 = vld [vmem:[%s420 + $0x30] sm:$0xff]
      %v1717 = vld [vmem:[%s420 + $0x38] sm:$0xff]
      %v1718 = vld [vmem:[%s420 + $0x40] sm:$0xff]
      %v1719 = vld [vmem:[%s420 + $0x48] sm:$0xff]
      %v1720 = vld [vmem:[%s442] sm:$0xff]
      %v1721 = vld [vmem:[%s442 + $0x8] sm:$0xff]
      %v1722 = vld [vmem:[%s442 + $0x10] sm:$0xff]
      %v1723 = vld [vmem:[%s442 + $0x18] sm:$0xff]
      %v1724 = vld [vmem:[%s442 + $0x20] sm:$0xff]
      %v1725 = vld [vmem:[%s442 + $0x28] sm:$0xff]
      %v1726 = vld [vmem:[%s442 + $0x30] sm:$0xff]
      %v1727 = vld [vmem:[%s442 + $0x38] sm:$0xff]
      %v1728 = vld [vmem:[%s442 + $0x40] sm:$0xff]
      %v1729 = vld [vmem:[%s442 + $0x48] sm:$0xff]
      %1731 = vset.pattern.permute.xlu0 0
      %1732 = vperm.xlu0 %1731, %v1710
      %v1733 = vpop.permute.xlu0 %1732
      %1736 = vset.pattern.permute.xlu0 0
      %1737 = vperm.xlu0 %1736, %v1711
      %v1738 = vpop.permute.xlu0 %1737
      %1741 = vset.pattern.permute.xlu0 0
      %1742 = vperm.xlu0 %1741, %v1712
      %v1743 = vpop.permute.xlu0 %1742
      %1746 = vset.pattern.permute.xlu0 0
      %1747 = vperm.xlu0 %1746, %v1713
      %v1748 = vpop.permute.xlu0 %1747
      %1751 = vset.pattern.permute.xlu0 0
      %1752 = vperm.xlu0 %1751, %v1714
      %v1753 = vpop.permute.xlu0 %1752
      %1756 = vset.pattern.permute.xlu0 0
      %1757 = vperm.xlu0 %1756, %v1715
      %v1758 = vpop.permute.xlu0 %1757
      %1761 = vset.pattern.permute.xlu0 0
      %1762 = vperm.xlu0 %1761, %v1716
      %v1763 = vpop.permute.xlu0 %1762
      %1766 = vset.pattern.permute.xlu0 0
      %1767 = vperm.xlu0 %1766, %v1717
      %v1768 = vpop.permute.xlu0 %1767
      %1771 = vset.pattern.permute.xlu0 0
      %1772 = vperm.xlu0 %1771, %v1718
      %v1773 = vpop.permute.xlu0 %1772
      %1776 = vset.pattern.permute.xlu0 0
      %1777 = vperm.xlu0 %1776, %v1719
      %v1778 = vpop.permute.xlu0 %1777
      %v1780 = vmul.f32 %v1283, %v1733
      %v1781 = vmul.f32 %v1285, %v1733
      %v1782 = vmul.f32 %v1287, %v1738
      %v1783 = vmul.f32 %v1289, %v1738
      %v1784 = vmul.f32 %v1329, %v1743
      %v1785 = vmul.f32 %v1331, %v1743
      %v1786 = vmul.f32 %v1333, %v1748
      %v1787 = vmul.f32 %v1335, %v1748
      %v1788 = vmul.f32 %v1375, %v1753
      %v1789 = vmul.f32 %v1377, %v1753
      %v1790 = vmul.f32 %v1379, %v1758
      %v1791 = vmul.f32 %v1381, %v1758
      %v1792 = vmul.f32 %v1421, %v1763
      %v1793 = vmul.f32 %v1423, %v1763
      %v1794 = vmul.f32 %v1425, %v1768
      %v1795 = vmul.f32 %v1427, %v1768
      %v1796 = vmul.f32 %v1467, %v1773
      %v1797 = vmul.f32 %v1469, %v1773
      %v1798 = vmul.f32 %v1471, %v1778
      %v1799 = vmul.f32 %v1473, %v1778
      %1800 = vst [vmem:[%s453] sm:$0xff] %v1780
      %1801 = vst [vmem:[%s453 + $0x8] sm:$0xff] %v1781
      %1802 = vst [vmem:[%s453 + $0x10] sm:$0xff] %v1782
      %1803 = vst [vmem:[%s453 + $0x18] sm:$0xff] %v1783
      %1804 = vst [vmem:[%s453 + $0x20] sm:$0xff] %v1784
      %1805 = vst [vmem:[%s453 + $0x28] sm:$0xff] %v1785
      %1806 = vst [vmem:[%s453 + $0x30] sm:$0xff] %v1786
      %1807 = vst [vmem:[%s453 + $0x38] sm:$0xff] %v1787
      %1808 = vst [vmem:[%s453 + $0x40] sm:$0xff] %v1788
      %1809 = vst [vmem:[%s453 + $0x48] sm:$0xff] %v1789
      %1810 = vst [vmem:[%s453 + $0x50] sm:$0xff] %v1790
      %1811 = vst [vmem:[%s453 + $0x58] sm:$0xff] %v1791
      %1812 = vst [vmem:[%s453 + $0x60] sm:$0xff] %v1792
      %1813 = vst [vmem:[%s453 + $0x68] sm:$0xff] %v1793
      %1814 = vst [vmem:[%s453 + $0x70] sm:$0xff] %v1794
      %1815 = vst [vmem:[%s453 + $0x78] sm:$0xff] %v1795
      %1816 = vst [vmem:[%s453 + $0x80] sm:$0xff] %v1796
      %1817 = vst [vmem:[%s453 + $0x88] sm:$0xff] %v1797
      %1818 = vst [vmem:[%s453 + $0x90] sm:$0xff] %v1798
      %1819 = vst [vmem:[%s453 + $0x98] sm:$0xff] %v1799
      %v1820 = vsel %vm1019, %v564, 0.0
      %1821 = vadd.xlane.f32.xlu0 %v1820
      %v1822 = vpop.xlane.xlu0 %1821
      %v1823 = vsel %vm1019, %v567, 0.0
      %1824 = vadd.xlane.f32.xlu0 %v1823
      %v1825 = vpop.xlane.xlu0 %1824
      %v1826 = vsel %vm1019, %v625, 0.0
      %1827 = vadd.xlane.f32.xlu0 %v1826
      %v1828 = vpop.xlane.xlu0 %1827
      %v1829 = vsel %vm1019, %v628, 0.0
      %1830 = vadd.xlane.f32.xlu0 %v1829
      %v1831 = vpop.xlane.xlu0 %1830
      %v1832 = vsel %vm1019, %v686, 0.0
      %1833 = vadd.xlane.f32.xlu0 %v1832
      %v1834 = vpop.xlane.xlu0 %1833
      %v1835 = vsel %vm1019, %v689, 0.0
      %1836 = vadd.xlane.f32.xlu0 %v1835
      %v1837 = vpop.xlane.xlu0 %1836
      %v1838 = vsel %vm1019, %v747, 0.0
      %1839 = vadd.xlane.f32.xlu0 %v1838
      %v1840 = vpop.xlane.xlu0 %1839
      %v1841 = vsel %vm1019, %v750, 0.0
      %1842 = vadd.xlane.f32.xlu0 %v1841
      %v1843 = vpop.xlane.xlu0 %1842
      %v1844 = vsel %vm1019, %v808, 0.0
      %1845 = vadd.xlane.f32.xlu0 %v1844
      %v1846 = vpop.xlane.xlu0 %1845
      %v1847 = vsel %vm1019, %v811, 0.0
      %1848 = vadd.xlane.f32.xlu0 %v1847
      %v1849 = vpop.xlane.xlu0 %1848
      %v1850 = vrcp.pop 16.0
      %v1851 = vmul.f32 %v1822, %v1850
      %v1852 = vmul.f32 %v1825, %v1850
      %v1853 = vmul.f32 %v1828, %v1850
      %v1854 = vmul.f32 %v1831, %v1850
      %v1855 = vmul.f32 %v1834, %v1850
      %v1856 = vmul.f32 %v1837, %v1850
      %v1857 = vmul.f32 %v1840, %v1850
      %v1858 = vmul.f32 %v1843, %v1850
      %v1859 = vmul.f32 %v1846, %v1850
      %v1860 = vmul.f32 %v1849, %v1850
      %vm1861 = vcmask 7168
      %v1862 = vsel %vm1861, %v1022, %v1851
      %v1863 = vsel %vm1861, %v1025, %v1852
      %v1864 = vsel %vm1861, %v1028, %v1853
      %v1865 = vsel %vm1861, %v1031, %v1854
      %v1866 = vsel %vm1861, %v1034, %v1855
      %v1867 = vsel %vm1861, %v1037, %v1856
      %v1868 = vsel %vm1861, %v1040, %v1857
      %v1869 = vsel %vm1861, %v1043, %v1858
      %v1870 = vsel %vm1861, %v1046, %v1859
      %v1871 = vsel %vm1861, %v1049, %v1860
      %v1872 = vmul.f32 %v1862, %v1733
      %v1873 = vmul.f32 %v1863, %v1738
      %v1874 = vmul.f32 %v1864, %v1743
      %v1875 = vmul.f32 %v1865, %v1748
      %v1876 = vmul.f32 %v1866, %v1753
      %v1877 = vmul.f32 %v1867, %v1758
      %v1878 = vmul.f32 %v1868, %v1763
      %v1879 = vmul.f32 %v1869, %v1768
      %v1880 = vmul.f32 %v1870, %v1773
      %v1881 = vmul.f32 %v1871, %v1778
      %vm1882 = vcmask 15360
      %1883 = vst.msk [vmem:[%s464] sm:$0xff] %vm1882, %v1872
      %1884 = vst.msk [vmem:[%s464 + $0x8] sm:$0xff] %vm1882, %v1873
      %1885 = vst.msk [vmem:[%s464 + $0x10] sm:$0xff] %vm1882, %v1874
      %1886 = vst.msk [vmem:[%s464 + $0x18] sm:$0xff] %vm1882, %v1875
      %1887 = vst.msk [vmem:[%s464 + $0x20] sm:$0xff] %vm1882, %v1876
      %1888 = vst.msk [vmem:[%s464 + $0x28] sm:$0xff] %vm1882, %v1877
      %1889 = vst.msk [vmem:[%s464 + $0x30] sm:$0xff] %vm1882, %v1878
      %1890 = vst.msk [vmem:[%s464 + $0x38] sm:$0xff] %vm1882, %v1879
      %1891 = vst.msk [vmem:[%s464 + $0x40] sm:$0xff] %vm1882, %v1880
      %1892 = vst.msk [vmem:[%s464 + $0x48] sm:$0xff] %vm1882, %v1881
      %v1893 = vpack.c.bf16 %v1522, %v1518
      %v1894 = vpack.c.bf16 %v1524, %v1520
      %v1895 = vpack.c.bf16 %v1568, %v1564
      %v1896 = vpack.c.bf16 %v1570, %v1566
      %v1897 = vpack.c.bf16 %v1614, %v1610
      %v1898 = vpack.c.bf16 %v1616, %v1612
      %v1899 = vpack.c.bf16 %v1660, %v1656
      %v1900 = vpack.c.bf16 %v1662, %v1658
      %v1901 = vpack.c.bf16 %v1706, %v1702
      %v1902 = vpack.c.bf16 %v1708, %v1704
      %v1913 = vunpack.c.l.b16 %v1893
      %v1914 = vunpack.c.l.b16 %v1894
      %v1915 = vunpack.c.h.b16 %v1893
      %v1916 = vunpack.c.h.b16 %v1894
      %v1917 = vunpack.c.l.b16 %v1895
      %v1918 = vunpack.c.l.b16 %v1896
      %v1919 = vunpack.c.h.b16 %v1895
      %v1920 = vunpack.c.h.b16 %v1896
      %v1921 = vunpack.c.l.b16 %v1897
      %v1922 = vunpack.c.l.b16 %v1898
      %v1923 = vunpack.c.h.b16 %v1897
      %v1924 = vunpack.c.h.b16 %v1898
      %v1925 = vunpack.c.l.b16 %v1899
      %v1926 = vunpack.c.l.b16 %v1900
      %v1927 = vunpack.c.h.b16 %v1899
      %v1928 = vunpack.c.h.b16 %v1900
      %v1929 = vunpack.c.l.b16 %v1901
      %v1930 = vunpack.c.l.b16 %v1902
      %v1931 = vunpack.c.h.b16 %v1901
      %v1932 = vunpack.c.h.b16 %v1902
      %v1933 = vpack.c.b16 %v1914, %v1913
      %v1934 = vpack.c.b16 %v1916, %v1915
      %v1935 = vpack.c.b16 %v1918, %v1917
      %v1936 = vpack.c.b16 %v1920, %v1919
      %v1937 = vpack.c.b16 %v1922, %v1921
      %v1938 = vpack.c.b16 %v1924, %v1923
      %v1939 = vpack.c.b16 %v1926, %v1925
      %v1940 = vpack.c.b16 %v1928, %v1927
      %v1941 = vpack.c.b16 %v1930, %v1929
      %v1942 = vpack.c.b16 %v1932, %v1931
      %1953 = vst [vmem:[%s475] sm:$0xff] %v1933
      %1954 = vst [vmem:[%s475 + $0x8] sm:$0xff] %v1934
      %1955 = vst [vmem:[%s475 + $0x10] sm:$0xff] %v1935
      %1956 = vst [vmem:[%s475 + $0x18] sm:$0xff] %v1936
      %1957 = vst [vmem:[%s475 + $0x20] sm:$0xff] %v1937
      %1958 = vst [vmem:[%s475 + $0x28] sm:$0xff] %v1938
      %1959 = vst [vmem:[%s475 + $0x30] sm:$0xff] %v1939
      %1960 = vst [vmem:[%s475 + $0x38] sm:$0xff] %v1940
      %1961 = vst [vmem:[%s475 + $0x40] sm:$0xff] %v1941
      %1962 = vst [vmem:[%s475 + $0x48] sm:$0xff] %v1942
      %v1963 = vsel %vm1019, %v849, 0.0
      %1964 = vadd.xlane.f32.xlu0 %v1963
      %v1965 = vpop.xlane.xlu0 %1964
      %v1966 = vsel %vm1019, %v852, 0.0
      %1967 = vadd.xlane.f32.xlu0 %v1966
      %v1968 = vpop.xlane.xlu0 %1967
      %v1969 = vsel %vm1019, %v890, 0.0
      %1970 = vadd.xlane.f32.xlu0 %v1969
      %v1971 = vpop.xlane.xlu0 %1970
      %v1972 = vsel %vm1019, %v893, 0.0
      %1973 = vadd.xlane.f32.xlu0 %v1972
      %v1974 = vpop.xlane.xlu0 %1973
      %v1975 = vsel %vm1019, %v931, 0.0
      %1976 = vadd.xlane.f32.xlu0 %v1975
      %v1977 = vpop.xlane.xlu0 %1976
      %v1978 = vsel %vm1019, %v934, 0.0
      %1979 = vadd.xlane.f32.xlu0 %v1978
      %v1980 = vpop.xlane.xlu0 %1979
      %v1981 = vsel %vm1019, %v972, 0.0
      %1982 = vadd.xlane.f32.xlu0 %v1981
      %v1983 = vpop.xlane.xlu0 %1982
      %v1984 = vsel %vm1019, %v975, 0.0
      %1985 = vadd.xlane.f32.xlu0 %v1984
      %v1986 = vpop.xlane.xlu0 %1985
      %v1987 = vsel %vm1019, %v1013, 0.0
      %1988 = vadd.xlane.f32.xlu0 %v1987
      %v1989 = vpop.xlane.xlu0 %1988
      %v1990 = vsel %vm1019, %v1016, 0.0
      %1991 = vadd.xlane.f32.xlu0 %v1990
      %v1992 = vpop.xlane.xlu0 %1991
      %v1993 = vmul.f32 %v1965, %v1850
      %v1994 = vmul.f32 %v1968, %v1850
      %v1995 = vmul.f32 %v1971, %v1850
      %v1996 = vmul.f32 %v1974, %v1850
      %v1997 = vmul.f32 %v1977, %v1850
      %v1998 = vmul.f32 %v1980, %v1850
      %v1999 = vmul.f32 %v1983, %v1850
      %v2000 = vmul.f32 %v1986, %v1850
      %v2001 = vmul.f32 %v1989, %v1850
      %v2002 = vmul.f32 %v1992, %v1850
      %v2003 = vsel %vm1861, %v1132, %v1993
      %v2004 = vsel %vm1861, %v1135, %v1994
      %v2005 = vsel %vm1861, %v1138, %v1995
      %v2006 = vsel %vm1861, %v1141, %v1996
      %v2007 = vsel %vm1861, %v1144, %v1997
      %v2008 = vsel %vm1861, %v1147, %v1998
      %v2009 = vsel %vm1861, %v1150, %v1999
      %v2010 = vsel %vm1861, %v1153, %v2000
      %v2011 = vsel %vm1861, %v1156, %v2001
      %v2012 = vsel %vm1861, %v1159, %v2002
      %2014 = vset.pattern.permute.xlu0 0
      %2015 = vperm.xlu0 %2014, %v1720
      %v2016 = vpop.permute.xlu0 %2015
      %2019 = vset.pattern.permute.xlu0 0
      %2020 = vperm.xlu0 %2019, %v1721
      %v2021 = vpop.permute.xlu0 %2020
      %2024 = vset.pattern.permute.xlu0 0
      %2025 = vperm.xlu0 %2024, %v1722
      %v2026 = vpop.permute.xlu0 %2025
      %2029 = vset.pattern.permute.xlu0 0
      %2030 = vperm.xlu0 %2029, %v1723
      %v2031 = vpop.permute.xlu0 %2030
      %2034 = vset.pattern.permute.xlu0 0
      %2035 = vperm.xlu0 %2034, %v1724
      %v2036 = vpop.permute.xlu0 %2035
      %2039 = vset.pattern.permute.xlu0 0
      %2040 = vperm.xlu0 %2039, %v1725
      %v2041 = vpop.permute.xlu0 %2040
      %2044 = vset.pattern.permute.xlu0 0
      %2045 = vperm.xlu0 %2044, %v1726
      %v2046 = vpop.permute.xlu0 %2045
      %2049 = vset.pattern.permute.xlu0 0
      %2050 = vperm.xlu0 %2049, %v1727
      %v2051 = vpop.permute.xlu0 %2050
      %2054 = vset.pattern.permute.xlu0 0
      %2055 = vperm.xlu0 %2054, %v1728
      %v2056 = vpop.permute.xlu0 %2055
      %2059 = vset.pattern.permute.xlu0 0
      %2060 = vperm.xlu0 %2059, %v1729
      %v2061 = vpop.permute.xlu0 %2060
      %v2063 = vmul.f32 %v2003, %v2016
      %v2064 = vmul.f32 %v2004, %v2021
      %v2065 = vmul.f32 %v2005, %v2026
      %v2066 = vmul.f32 %v2006, %v2031
      %v2067 = vmul.f32 %v2007, %v2036
      %v2068 = vmul.f32 %v2008, %v2041
      %v2069 = vmul.f32 %v2009, %v2046
      %v2070 = vmul.f32 %v2010, %v2051
      %v2071 = vmul.f32 %v2011, %v2056
      %v2072 = vmul.f32 %v2012, %v2061
      %2073 = vst.msk [vmem:[%s486] sm:$0xff] %vm1882, %v2063
      %2074 = vst.msk [vmem:[%s486 + $0x8] sm:$0xff] %vm1882, %v2064
      %2075 = vst.msk [vmem:[%s486 + $0x10] sm:$0xff] %vm1882, %v2065
      %2076 = vst.msk [vmem:[%s486 + $0x18] sm:$0xff] %vm1882, %v2066
      %2077 = vst.msk [vmem:[%s486 + $0x20] sm:$0xff] %vm1882, %v2067
      %2078 = vst.msk [vmem:[%s486 + $0x28] sm:$0xff] %vm1882, %v2068
      %2079 = vst.msk [vmem:[%s486 + $0x30] sm:$0xff] %vm1882, %v2069
      %2080 = vst.msk [vmem:[%s486 + $0x38] sm:$0xff] %vm1882, %v2070
      %2081 = vst.msk [vmem:[%s486 + $0x40] sm:$0xff] %vm1882, %v2071
      %2082 = vst.msk [vmem:[%s486 + $0x48] sm:$0xff] %vm1882, %v2072
      %s2083 = smul.u32 5, %s23
      %p2084 = scmp.lt.s32.totalorder %s24, 2
      %s2085 = scalar_select %p2084, %s24, 2
      %p2086 = scmp.lt.s32.totalorder %s2083, 9
      %s2087 = scalar_select %p2086, %s2083, 9
      %s2088 = smul.addr %s2087, 4
      %s2089 = smul.addr %s2085, 40
      %s2090 = sadd.s32 %s2088, %s2089
      %s2091 = smul.addr %s2090, 8
      %s2092 = scalar_lea.vmem %s4, %s2091
      %s2093 = smul.u32 5, %s23
      %p2094 = scmp.lt.s32.totalorder %s24, 2
      %s2095 = scalar_select %p2094, %s24, 2
      %p2096 = scmp.lt.s32.totalorder %s2093, 9
      %s2097 = scalar_select %p2096, %s2093, 9
      %s2098 = smul.addr %s2097, 2
      %s2099 = smul.addr %s2095, 20
      %s2100 = sadd.s32 %s2098, %s2099
      %s2101 = smul.addr %s2100, 8
      %s2102 = scalar_lea.vmem %s5, %s2101
      %s2103 = smul.u32 5, %s23
      %p2104 = scmp.lt.s32.totalorder %s24, 2
      %s2105 = scalar_select %p2104, %s24, 2
      %p2106 = scmp.lt.s32.totalorder %s2103, 9
      %s2107 = scalar_select %p2106, %s2103, 9
      %s2108 = smul.addr %s2107, 4
      %s2109 = smul.addr %s2105, 40
      %s2110 = sadd.s32 %s2108, %s2109
      %s2111 = smul.addr %s2110, 4
      %s2112 = scalar_lea.vmem %s6, %s2111
      %s2113 = smul.u32 5, %s23
      %p2114 = scmp.lt.s32.totalorder %s24, 2
      %s2115 = scalar_select %p2114, %s24, 2
      %p2116 = scmp.lt.s32.totalorder %s2113, 9
      %s2117 = scalar_select %p2116, %s2113, 9
      %s2118 = smul.addr %s2117, 2
      %s2119 = smul.addr %s2115, 20
      %s2120 = sadd.s32 %s2118, %s2119
      %s2121 = smul.addr %s2120, 8
      %s2122 = scalar_lea.vmem %s7, %s2121
      // Predicated region
      $region37: #{seareader_forward.2} parent=35 // pred_check
        %p2123 = pneg %p159
      $region38: #{seareader_forward.2} parent=35 // pred_check_branch
        %2125 = sbr.rel (%p2123) target = $region40
      $region39: #{seareader_forward.2} parent=35 // pred_region
        %s2126 = smul.u32 5, %s23
      $region40: #{seareader_forward.2} parent=35 // pred_fallthru
        _
      // Predicated region
      $region41: #{seareader_forward.2} parent=35 // pred_check
        %p2127 = pneg %p187
      $region42: #{seareader_forward.2} parent=35 // pred_check_branch
        %2129 = sbr.rel (%p2127) target = $region44
      $region43: #{seareader_forward.2} parent=35 // pred_region
        %s2130 = smul.u32 5, %s23
      $region44: #{seareader_forward.2} parent=35 // pred_fallthru
        _
      // Predicated region
      $region45: #{seareader_forward.2} parent=35 // pred_check
        %p2131 = pneg %p215
      $region46: #{seareader_forward.2} parent=35 // pred_check_branch
        %2133 = sbr.rel (%p2131) target = $region48
      $region47: #{seareader_forward.2} parent=35 // pred_region
        %s2134 = smul.u32 5, %s23
      $region48: #{seareader_forward.2} parent=35 // pred_fallthru
        _
      // Predicated region
      $region49: #{seareader_forward.2} parent=35 // pred_check
        %p2135 = pneg %p243
      $region50: #{seareader_forward.2} parent=35 // pred_check_branch
        %2137 = sbr.rel (%p2135) target = $region52
      $region51: #{seareader_forward.2} parent=35 // pred_region
        %s2138 = smul.u32 5, %s23
      $region52: #{seareader_forward.2} parent=35 // pred_fallthru
        _
    $region36: #{seareader_forward.2} parent=5 // pred_fallthru
      _
    %p2139 = scmp.le.s32.totalorder 2, %s14
    // Predicated region
    $region53: #{seareader_forward.2} parent=5 // pred_check
      %p2140 = pneg %p2139
    $region54: #{seareader_forward.2} parent=5 // pred_check_branch
      %2142 = sbr.rel (%p2140) target = $region56
    $region55: #{seareader_forward.2} parent=5 // pred_region
      %s2143 = ssub.s32 %s14, 2
      // Predicated region
      $region57: #{seareader_forward.2} parent=55 // pred_check
        %p2144 = pneg %p165
      $region58: #{seareader_forward.2} parent=55 // pred_check_branch
        %2146 = sbr.rel (%p2144) target = $region60
      $region59: #{seareader_forward.2} parent=55 // pred_region
        %s2147 = smul.u32 5, %s25
        %p2148 = scmp.lt.s32.totalorder %s26, 2
        %s2149 = scalar_select %p2148, %s26, 2
        %p2150 = scmp.lt.s32.totalorder %s2147, 9
        %s2151 = scalar_select %p2150, %s2147, 9
        %s2152 = smul.addr %s2151, 4
        %s2153 = smul.addr %s2149, 40
        %s2154 = sadd.s32 %s2152, %s2153
        %s2155 = smul.addr %s2154, 8
        %s2156 = scalar_lea.vmem %s4, %s2155
      $region60: #{seareader_forward.2} parent=55 // pred_fallthru
        _
      // Predicated region
      $region61: #{seareader_forward.2} parent=55 // pred_check
        %p2157 = pneg %p193
      $region62: #{seareader_forward.2} parent=55 // pred_check_branch
        %2159 = sbr.rel (%p2157) target = $region64
      $region63: #{seareader_forward.2} parent=55 // pred_region
        %s2160 = smul.u32 5, %s25
        %p2161 = scmp.lt.s32.totalorder %s26, 2
        %s2162 = scalar_select %p2161, %s26, 2
        %p2163 = scmp.lt.s32.totalorder %s2160, 9
        %s2164 = scalar_select %p2163, %s2160, 9
        %s2165 = smul.addr %s2164, 2
        %s2166 = smul.addr %s2162, 20
        %s2167 = sadd.s32 %s2165, %s2166
        %s2168 = smul.addr %s2167, 8
        %s2169 = scalar_lea.vmem %s5, %s2168
      $region64: #{seareader_forward.2} parent=55 // pred_fallthru
        _
      // Predicated region
      $region65: #{seareader_forward.2} parent=55 // pred_check
        %p2170 = pneg %p221
      $region66: #{seareader_forward.2} parent=55 // pred_check_branch
        %2172 = sbr.rel (%p2170) target = $region68
      $region67: #{seareader_forward.2} parent=55 // pred_region
        %s2173 = smul.u32 5, %s25
        %p2174 = scmp.lt.s32.totalorder %s26, 2
        %s2175 = scalar_select %p2174, %s26, 2
        %p2176 = scmp.lt.s32.totalorder %s2173, 9
        %s2177 = scalar_select %p2176, %s2173, 9
        %s2178 = smul.addr %s2177, 4
        %s2179 = smul.addr %s2175, 40
        %s2180 = sadd.s32 %s2178, %s2179
        %s2181 = smul.addr %s2180, 4
        %s2182 = scalar_lea.vmem %s6, %s2181
      $region68: #{seareader_forward.2} parent=55 // pred_fallthru
        _
      // Predicated region
      $region69: #{seareader_forward.2} parent=55 // pred_check
        %p2183 = pneg %p249
      $region70: #{seareader_forward.2} parent=55 // pred_check_branch
        %2185 = sbr.rel (%p2183) target = $region72
      $region71: #{seareader_forward.2} parent=55 // pred_region
        %s2186 = smul.u32 5, %s25
        %p2187 = scmp.lt.s32.totalorder %s26, 2
        %s2188 = scalar_select %p2187, %s26, 2
        %p2189 = scmp.lt.s32.totalorder %s2186, 9
        %s2190 = scalar_select %p2189, %s2186, 9
        %s2191 = smul.addr %s2190, 2
        %s2192 = smul.addr %s2188, 20
        %s2193 = sadd.s32 %s2191, %s2192
        %s2194 = smul.addr %s2193, 8
        %s2195 = scalar_lea.vmem %s7, %s2194
      $region72: #{seareader_forward.2} parent=55 // pred_fallthru
        _
    $region56: #{seareader_forward.2} parent=5 // pred_fallthru
      _
  $region6: #{seareader_forward.2} parent=0 // loop_footer
    %s18 = sadd.s32 1, %s14
  $region7: #{seareader_forward.2} parent=0 // loop_footer_branch
    %13 = sbr.rel target = $region3
  $region8: #{seareader_forward.2} parent=0 // loop_exit
    _

// kernel: seareader_forward.3
$region0: #{seareader_forward.3}
  #allocation0 [shape = 'u32[]', space=smem, size = 0x4, offset = 0x4, fixed_abs, tag = 'smem constant byte address 0x4 - core index']
  #allocation1 [shape = 'u32[144,128]{1,0:T(1,128)}', space=vmem, size = 0x12000, scoped, tag = 'internal scratch']
  %s0 = inlined_call_operand.vmem [shape: bf16[3,10,16,256], index: 0, kind: input, shape index: {}, may-alias: {0,2}]
  %s1 = inlined_call_operand.vmem [shape: bf16[3,10,16,256], index: 1, kind: input, shape index: {}, may-alias: {1,3}]
  %s2 = inlined_call_operand.vmem [shape: bf16[3,10,16,256], index: 2, kind: input, shape index: {}, may-alias: {0,2}]
  %s3 = inlined_call_operand.vmem [shape: bf16[3,10,16,256], index: 3, kind: input, shape index: {}, may-alias: {1,3}]
  %s4 = inlined_call_operand.vmem [shape: f32[3,10,16,1], index: 4, kind: input, shape index: {}]
  %s5 = inlined_call_operand.vmem [shape: f32[3,10,16,512], index: 5, kind: output, shape index: {}]
  %s6 = sld [smem:[#allocation0]]
  $region129: #{seareader_forward.3} parent=0
    _
  %s8 = ssub.s32 1, %s6
  %s9 = scalar_select 0, %s8, %s6
  $region1: #{seareader_forward.3} parent=0
    #allocation2 [shape = 'u8[245760]{0}', space=vmem, size = 0x3c000, scoped, tag = 'input window, operand 2']
    #allocation3 [shape = 'u8[245760]{0}', space=vmem, size = 0x3c000, scoped, tag = 'input window, operand 3']
    loop: start=0, step=1, limit=8
    $region2: #{seareader_forward.3} parent=1 // loop_pre_header
      _
    $region3: #{seareader_forward.3} parent=1 // loop_header
      %s11 = sphi 0, %s15
      %p12 = scmp.ge.s32.totalorder %s11, 8
      %s18 = sphi 0, %s30
      %s19 = sphi 0, %s26
      %s20 = sphi 0, %s18
      %s21 = sphi 0, %s19
      %s22 = sphi 0, %s20
      %s23 = sphi 0, %s21
      %s35 = sphi 0, %s37
      %s38 = sphi 0, %s35
      %s39 = sphi 0, %s38
      %s55 = sphi 0, %s39
      %s63 = sphi 0, %s65
      %s66 = sphi 0, %s63
      %s67 = sphi 0, %s66
      %s83 = sphi 0, %s67
      %s89 = sphi 0, %s91
      %s92 = sphi 0, %s89
      %s93 = sphi 0, %s92
      %s109 = sphi 0, %s93
      %s115 = sphi 0, %s117
      %s118 = sphi 0, %s115
      %s119 = sphi 0, %s118
      %s135 = sphi 0, %s119
      %s143 = sphi 0, %s145
      %s146 = sphi 0, %s143
      %s147 = sphi 0, %s146
      %s163 = sphi 0, %s147
      %s171 = sphi 0, %s173
      %s174 = sphi 0, %s171
      %s175 = sphi 0, %s174
      %s191 = sphi 0, %s175
    $region4: #{seareader_forward.3} parent=1 // loop_header_branch
      %14 = sbr.rel (%p12) target = $region8
    $region5: #{seareader_forward.3} parent=1 // loop_body
      %s16 = ssub.s32 %s11, 1
      %s17 = ssub.s32 %s11, 2
      %s24 = sadd.s32 1, %s19
      %p25 = scmp.ge.s32.totalorder %s24, 3
      %s26 = scalar_select %p25, 0, %s24
      %s27 = sadd.s32 1, %s18
      %s28 = scalar_select %p25, %s27, %s18
      %p29 = scmp.ge.s32.totalorder %s28, 2
      %s30 = scalar_select %p29, 0, %s28
      %s31 = ssub.s32 %s19, %s26
      %s32 = ssub.s32 %s18, %s30
      %s33 = sor.u32 %s31, %s32
      %p34 = scmp.eq.s32.totalorder %s33, 0
      %s36 = sadd.s32 %s35, 1
      %s37 = scalar_select %p34, %s35, %s36
      %p40 = pneg %p34
      %p41 = scmp.eq.s32.totalorder %s11, 5
      %p42 = por %p40, %p41
      %p43 = scmp.ne.s32.totalorder %s35, %s38
      %p44 = scmp.eq.s32.totalorder %s11, 0
      %p45 = por %p43, %p44
      %p46 = scmp.ne.s32.totalorder %s35, %s38
      %p47 = scmp.eq.s32.totalorder %s16, 5
      %p48 = por %p46, %p47
      %p49 = scmp.ne.s32.totalorder %s38, %s39
      %p50 = scmp.eq.s32.totalorder %s16, 0
      %p51 = por %p49, %p50
      %p52 = scmp.ne.s32.totalorder %s38, %s39
      %p53 = scmp.eq.s32.totalorder %s17, 5
      %p54 = por %p52, %p53
      %p56 = scmp.ne.s32.totalorder %s39, %s55
      %p57 = scmp.eq.s32.totalorder %s17, 0
      %p58 = por %p56, %p57
      %s59 = ssub.s32 %s19, %s26
      %s60 = ssub.s32 %s18, %s30
      %s61 = sor.u32 %s59, %s60
      %p62 = scmp.eq.s32.totalorder %s61, 0
      %s64 = sadd.s32 %s63, 1
      %s65 = scalar_select %p62, %s63, %s64
      %p68 = pneg %p62
      %p69 = scmp.eq.s32.totalorder %s11, 5
      %p70 = por %p68, %p69
      %p71 = scmp.ne.s32.totalorder %s63, %s66
      %p72 = scmp.eq.s32.totalorder %s11, 0
      %p73 = por %p71, %p72
      %p74 = scmp.ne.s32.totalorder %s63, %s66
      %p75 = scmp.eq.s32.totalorder %s16, 5
      %p76 = por %p74, %p75
      %p77 = scmp.ne.s32.totalorder %s66, %s67
      %p78 = scmp.eq.s32.totalorder %s16, 0
      %p79 = por %p77, %p78
      %p80 = scmp.ne.s32.totalorder %s66, %s67
      %p81 = scmp.eq.s32.totalorder %s17, 5
      %p82 = por %p80, %p81
      %p84 = scmp.ne.s32.totalorder %s67, %s83
      %p85 = scmp.eq.s32.totalorder %s17, 0
      %p86 = por %p84, %p85
      %s87 = ssub.s32 %s18, %s30
      %p88 = scmp.eq.s32.totalorder %s87, 0
      %s90 = sadd.s32 %s89, 1
      %s91 = scalar_select %p88, %s89, %s90
      %p94 = pneg %p88
      %p95 = scmp.eq.s32.totalorder %s11, 5
      %p96 = por %p94, %p95
      %p97 = scmp.ne.s32.totalorder %s89, %s92
      %p98 = scmp.eq.s32.totalorder %s11, 0
      %p99 = por %p97, %p98
      %p100 = scmp.ne.s32.totalorder %s89, %s92
      %p101 = scmp.eq.s32.totalorder %s16, 5
      %p102 = por %p100, %p101
      %p103 = scmp.ne.s32.totalorder %s92, %s93
      %p104 = scmp.eq.s32.totalorder %s16, 0
      %p105 = por %p103, %p104
      %p106 = scmp.ne.s32.totalorder %s92, %s93
      %p107 = scmp.eq.s32.totalorder %s17, 5
      %p108 = por %p106, %p107
      %p110 = scmp.ne.s32.totalorder %s93, %s109
      %p111 = scmp.eq.s32.totalorder %s17, 0
      %p112 = por %p110, %p111
      %s113 = ssub.s32 %s18, %s30
      %p114 = scmp.eq.s32.totalorder %s113, 0
      %s116 = sadd.s32 %s115, 1
      %s117 = scalar_select %p114, %s115, %s116
      %p120 = pneg %p114
      %p121 = scmp.eq.s32.totalorder %s11, 5
      %p122 = por %p120, %p121
      %p123 = scmp.ne.s32.totalorder %s115, %s118
      %p124 = scmp.eq.s32.totalorder %s11, 0
      %p125 = por %p123, %p124
      %p126 = scmp.ne.s32.totalorder %s115, %s118
      %p127 = scmp.eq.s32.totalorder %s16, 5
      %p128 = por %p126, %p127
      %p129 = scmp.ne.s32.totalorder %s118, %s119
      %p130 = scmp.eq.s32.totalorder %s16, 0
      %p131 = por %p129, %p130
      %p132 = scmp.ne.s32.totalorder %s118, %s119
      %p133 = scmp.eq.s32.totalorder %s17, 5
      %p134 = por %p132, %p133
      %p136 = scmp.ne.s32.totalorder %s119, %s135
      %p137 = scmp.eq.s32.totalorder %s17, 0
      %p138 = por %p136, %p137
      %s139 = ssub.s32 %s19, %s26
      %s140 = ssub.s32 %s18, %s30
      %s141 = sor.u32 %s139, %s140
      %p142 = scmp.eq.s32.totalorder %s141, 0
      %s144 = sadd.s32 %s143, 1
      %s145 = scalar_select %p142, %s143, %s144
      %p148 = pneg %p142
      %p149 = scmp.eq.s32.totalorder %s11, 5
      %p150 = por %p148, %p149
      %p151 = scmp.ne.s32.totalorder %s143, %s146
      %p152 = scmp.eq.s32.totalorder %s11, 0
      %p153 = por %p151, %p152
      %p154 = scmp.ne.s32.totalorder %s143, %s146
      %p155 = scmp.eq.s32.totalorder %s16, 5
      %p156 = por %p154, %p155
      %p157 = scmp.ne.s32.totalorder %s146, %s147
      %p158 = scmp.eq.s32.totalorder %s16, 0
      %p159 = por %p157, %p158
      %p160 = scmp.ne.s32.totalorder %s146, %s147
      %p161 = scmp.eq.s32.totalorder %s17, 5
      %p162 = por %p160, %p161
      %p164 = scmp.ne.s32.totalorder %s147, %s163
      %p165 = scmp.eq.s32.totalorder %s17, 0
      %p166 = por %p164, %p165
      %s167 = ssub.s32 %s19, %s26
      %s168 = ssub.s32 %s18, %s30
      %s169 = sor.u32 %s167, %s168
      %p170 = scmp.eq.s32.totalorder %s169, 0
      %s172 = sadd.s32 %s171, 1
      %s173 = scalar_select %p170, %s171, %s172
      %p176 = pneg %p170
      %p177 = scmp.eq.s32.totalorder %s11, 5
      %p178 = por %p176, %p177
      %p179 = scmp.ne.s32.totalorder %s171, %s174
      %p180 = scmp.eq.s32.totalorder %s11, 0
      %p181 = por %p179, %p180
      %p182 = scmp.ne.s32.totalorder %s171, %s174
      %p183 = scmp.eq.s32.totalorder %s16, 5
      %p184 = por %p182, %p183
      %p185 = scmp.ne.s32.totalorder %s174, %s175
      %p186 = scmp.eq.s32.totalorder %s16, 0
      %p187 = por %p185, %p186
      %p188 = scmp.ne.s32.totalorder %s174, %s175
      %p189 = scmp.eq.s32.totalorder %s17, 5
      %p190 = por %p188, %p189
      %p192 = scmp.ne.s32.totalorder %s175, %s191
      %p193 = scmp.eq.s32.totalorder %s17, 0
      %p194 = por %p192, %p193
      %p195 = scmp.le.s32.totalorder 1, %s11
      %p196 = scmp.lt.s32.totalorder %s11, 7
      %p197 = pnand %p195, %p196
      %p198 = pneg %p197
      // Predicated region
      $region9: #{seareader_forward.3} parent=5 // pred_check
        _
      $region10: #{seareader_forward.3} parent=5 // pred_check_branch
        %200 = sbr.rel (%p197) target = $region12
      $region11: #{seareader_forward.3} parent=5 // pred_region
        %s201 = ssub.s32 %s11, 1
      $region12: #{seareader_forward.3} parent=5 // pred_fallthru
        _
      %p202 = scmp.lt.s32.totalorder %s11, 6
      // Predicated region
      $region13: #{seareader_forward.3} parent=5 // pred_check
        %p203 = pneg %p202
      $region14: #{seareader_forward.3} parent=5 // pred_check_branch
        %205 = sbr.rel (%p203) target = $region16
      $region15: #{seareader_forward.3} parent=5 // pred_region
        // Predicated region
        $region17: #{seareader_forward.3} parent=15 // pred_check
          %p206 = pneg %p45
        $region18: #{seareader_forward.3} parent=15 // pred_check_branch
          %208 = sbr.rel (%p206) target = $region20
        $region19: #{seareader_forward.3} parent=15 // pred_region
          %s209 = smul.u32 5, %s18
          %p210 = scmp.lt.s32.totalorder %s19, 2
          %s211 = scalar_select %p210, %s19, 2
          %p212 = scmp.lt.s32.totalorder %s209, 9
          %s213 = scalar_select %p212, %s209, 9
          %s214 = smul.addr %s213, 4
          %s215 = smul.addr %s211, 40
          %s216 = sadd.s32 %s214, %s215
          %s217 = smul.addr %s216, 4
          %s218 = scalar_lea.vmem %s0, %s217
          %s219 = smul.u32 5, %s18
        $region20: #{seareader_forward.3} parent=15 // pred_fallthru
          _
        // Predicated region
        $region21: #{seareader_forward.3} parent=15 // pred_check
          %p220 = pneg %p73
        $region22: #{seareader_forward.3} parent=15 // pred_check_branch
          %222 = sbr.rel (%p220) target = $region24
        $region23: #{seareader_forward.3} parent=15 // pred_region
          %s223 = smul.u32 5, %s18
          %p224 = scmp.lt.s32.totalorder %s19, 2
          %s225 = scalar_select %p224, %s19, 2
          %p226 = scmp.lt.s32.totalorder %s223, 9
          %s227 = scalar_select %p226, %s223, 9
          %s228 = smul.addr %s227, 4
          %s229 = smul.addr %s225, 40
          %s230 = sadd.s32 %s228, %s229
          %s231 = smul.addr %s230, 4
          %s232 = scalar_lea.vmem %s1, %s231
          %s233 = smul.u32 5, %s18
        $region24: #{seareader_forward.3} parent=15 // pred_fallthru
          _
        // Predicated region
        $region25: #{seareader_forward.3} parent=15 // pred_check
          %p234 = pneg %p99
        $region26: #{seareader_forward.3} parent=15 // pred_check_branch
          %236 = sbr.rel (%p234) target = $region28
        $region27: #{seareader_forward.3} parent=15 // pred_region
          %s237 = sand.u32 %s89, 1
          %s238 = sand.u32 %s89, 1
          %s239 = smul.addr %s238, 240
          %s240 = scalar_lea.vmem [#allocation2], %s239
          %s241 = smul.u32 5, %s18
          %s242 = smul.addr %s241, 4
          %s243 = smul.addr %s242, 4
          %s244 = scalar_lea.vmem %s2, %s243
          // Predicated region
          $region29: #{seareader_forward.3} parent=27 // pred_check
            _
          $region30: #{seareader_forward.3} parent=27 // pred_check_branch
            %246 = sbr.rel (0) target = $region32
          $region31: #{seareader_forward.3} parent=27 // pred_region
            // Predicated region
            $region33: #{seareader_forward.3} parent=31 // pred_check
              _
            $region34: #{seareader_forward.3} parent=31 // pred_check_branch
              %248 = sbr.rel (0) target = $region36
            $region35: #{seareader_forward.3} parent=31 // pred_region
              // Predicated region
              $region48: #{seareader_forward.3} parent=35 // pred_check
                _
              $region49: #{seareader_forward.3} parent=35 // pred_check_branch
                %322 = sbr.rel (0) target = $region51
              $region50: #{seareader_forward.3} parent=35 // pred_region
                loop: start=0, step=1, limit=1
                $region52: #{seareader_forward.3} parent=50 // loop_pre_header
                  _
                $region53: #{seareader_forward.3} parent=50 // loop_header
                  %s324 = sphi 0, %s328
                  %p325 = scmp.ge.s32.totalorder %s324, 1
                  %s329 = sphi %s244, %s244
                  %s330 = sphi %s240, %s240
                $region54: #{seareader_forward.3} parent=50 // loop_header_branch
                  %327 = sbr.rel (%p325) target = $region58
                $region55: #{seareader_forward.3} parent=50 // loop_body
                  %v331 = vld [vmem:[%s329] sm:$0xff]
                  %332 = vst [vmem:[%s330] sm:$0xff] %v331
                  %v333 = vld [vmem:[%s329 + $0x8] sm:$0xff]
                  %334 = vst [vmem:[%s330 + $0x8] sm:$0xff] %v333
                  %v335 = vld [vmem:[%s329 + $0x10] sm:$0xff]
                  %336 = vst [vmem:[%s330 + $0x10] sm:$0xff] %v335
                  %v337 = vld [vmem:[%s329 + $0x18] sm:$0xff]
                  %338 = vst [vmem:[%s330 + $0x18] sm:$0xff] %v337
                  %v339 = vld [vmem:[%s329 + $0x20] sm:$0xff]
                  %340 = vst [vmem:[%s330 + $0x20] sm:$0xff] %v339
                  %v341 = vld [vmem:[%s329 + $0x28] sm:$0xff]
                  %342 = vst [vmem:[%s330 + $0x28] sm:$0xff] %v341
                  %v343 = vld [vmem:[%s329 + $0x30] sm:$0xff]
                  %344 = vst [vmem:[%s330 + $0x30] sm:$0xff] %v343
                  %v345 = vld [vmem:[%s329 + $0x38] sm:$0xff]
                  %346 = vst [vmem:[%s330 + $0x38] sm:$0xff] %v345
                  %v347 = vld [vmem:[%s329 + $0x40] sm:$0xff]
                  %348 = vst [vmem:[%s330 + $0x40] sm:$0xff] %v347
                  %v349 = vld [vmem:[%s329 + $0x48] sm:$0xff]
                  %350 = vst [vmem:[%s330 + $0x48] sm:$0xff] %v349
                  %v351 = vld [vmem:[%s329 + $0xa0] sm:$0xff]
                  %352 = vst [vmem:[%s330 + $0x50] sm:$0xff] %v351
                  %v353 = vld [vmem:[%s329 + $0xa8] sm:$0xff]
                  %354 = vst [vmem:[%s330 + $0x58] sm:$0xff] %v353
                  %v355 = vld [vmem:[%s329 + $0xb0] sm:$0xff]
                  %356 = vst [vmem:[%s330 + $0x60] sm:$0xff] %v355
                  %v357 = vld [vmem:[%s329 + $0xb8] sm:$0xff]
                  %358 = vst [vmem:[%s330 + $0x68] sm:$0xff] %v357
                  %v359 = vld [vmem:[%s329 + $0xc0] sm:$0xff]
                  %360 = vst [vmem:[%s330 + $0x70] sm:$0xff] %v359
                  %v361 = vld [vmem:[%s329 + $0xc8] sm:$0xff]
                  %362 = vst [vmem:[%s330 + $0x78] sm:$0xff] %v361
                  %v363 = vld [vmem:[%s329 + $0xd0] sm:$0xff]
                  %364 = vst [vmem:[%s330 + $0x80] sm:$0xff] %v363
                  %v365 = vld [vmem:[%s329 + $0xd8] sm:$0xff]
                  %366 = vst [vmem:[%s330 + $0x88] sm:$0xff] %v365
                  %v367 = vld [vmem:[%s329 + $0xe0] sm:$0xff]
                  %368 = vst [vmem:[%s330 + $0x90] sm:$0xff] %v367
                  %v369 = vld [vmem:[%s329 + $0xe8] sm:$0xff]
                  %370 = vst [vmem:[%s330 + $0x98] sm:$0xff] %v369
                  %v371 = vld [vmem:[%s329 + $0x140] sm:$0xff]
                  %372 = vst [vmem:[%s330 + $0xa0] sm:$0xff] %v371
                  %v373 = vld [vmem:[%s329 + $0x148] sm:$0xff]
                  %374 = vst [vmem:[%s330 + $0xa8] sm:$0xff] %v373
                  %v375 = vld [vmem:[%s329 + $0x150] sm:$0xff]
                  %376 = vst [vmem:[%s330 + $0xb0] sm:$0xff] %v375
                  %v377 = vld [vmem:[%s329 + $0x158] sm:$0xff]
                  %378 = vst [vmem:[%s330 + $0xb8] sm:$0xff] %v377
                  %v379 = vld [vmem:[%s329 + $0x160] sm:$0xff]
                  %380 = vst [vmem:[%s330 + $0xc0] sm:$0xff] %v379
                  %v381 = vld [vmem:[%s329 + $0x168] sm:$0xff]
                  %382 = vst [vmem:[%s330 + $0xc8] sm:$0xff] %v381
                  %v383 = vld [vmem:[%s329 + $0x170] sm:$0xff]
                  %384 = vst [vmem:[%s330 + $0xd0] sm:$0xff] %v383
                  %v385 = vld [vmem:[%s329 + $0x178] sm:$0xff]
                  %386 = vst [vmem:[%s330 + $0xd8] sm:$0xff] %v385
                  %v387 = vld [vmem:[%s329 + $0x180] sm:$0xff]
                  %388 = vst [vmem:[%s330 + $0xe0] sm:$0xff] %v387
                  %v389 = vld [vmem:[%s329 + $0x188] sm:$0xff]
                  %390 = vst [vmem:[%s330 + $0xe8] sm:$0xff] %v389
                $region56: #{seareader_forward.3} parent=50 // loop_footer
                  %s328 = sadd.s32 1, %s324
                $region57: #{seareader_forward.3} parent=50 // loop_footer_branch
                  %323 = sbr.rel target = $region53
                $region58: #{seareader_forward.3} parent=50 // loop_exit
                  _
              $region51: #{seareader_forward.3} parent=35 // pred_fallthru
                _
              // Predicated region
              $region59: #{seareader_forward.3} parent=35 // pred_check
                _
              $region60: #{seareader_forward.3} parent=35 // pred_check_branch
                %392 = sbr.rel target = $region62
              $region61: #{seareader_forward.3} parent=35 // pred_region
                _
              $region62: #{seareader_forward.3} parent=35 // pred_fallthru
                _
            $region36: #{seareader_forward.3} parent=31 // pred_fallthru
              _
            // Predicated region
            $region37: #{seareader_forward.3} parent=31 // pred_check
              _
            $region38: #{seareader_forward.3} parent=31 // pred_check_branch
              %250 = sbr.rel target = $region40
            $region39: #{seareader_forward.3} parent=31 // pred_region
              %s252 = ssub.s32 256, 1
              loop: start=0, step=1, limit=1
              $region41: #{seareader_forward.3} parent=39 // loop_pre_header
                _
              $region42: #{seareader_forward.3} parent=39 // loop_header
                %s254 = sphi 0, %s258
                %p255 = scmp.ge.s32.totalorder %s254, 1
                %s259 = sphi %s244, %s244
                %s260 = sphi %s240, %s240
              $region43: #{seareader_forward.3} parent=39 // loop_header_branch
                %257 = sbr.rel (%p255) target = $region47
              $region44: #{seareader_forward.3} parent=39 // loop_body
                %v261 = vld [vmem:[%s259] sm:%s252]
                %262 = vst [vmem:[%s260] sm:%s252] %v261
                %v263 = vld [vmem:[%s259 + $0x8] sm:%s252]
                %264 = vst [vmem:[%s260 + $0x8] sm:%s252] %v263
                %v265 = vld [vmem:[%s259 + $0x10] sm:%s252]
                %266 = vst [vmem:[%s260 + $0x10] sm:%s252] %v265
                %v267 = vld [vmem:[%s259 + $0x18] sm:%s252]
                %268 = vst [vmem:[%s260 + $0x18] sm:%s252] %v267
                %v269 = vld [vmem:[%s259 + $0x20] sm:%s252]
                %270 = vst [vmem:[%s260 + $0x20] sm:%s252] %v269
                %v271 = vld [vmem:[%s259 + $0x28] sm:%s252]
                %272 = vst [vmem:[%s260 + $0x28] sm:%s252] %v271
                %v273 = vld [vmem:[%s259 + $0x30] sm:%s252]
                %274 = vst [vmem:[%s260 + $0x30] sm:%s252] %v273
                %v275 = vld [vmem:[%s259 + $0x38] sm:%s252]
                %276 = vst [vmem:[%s260 + $0x38] sm:%s252] %v275
                %v277 = vld [vmem:[%s259 + $0x40] sm:%s252]
                %278 = vst [vmem:[%s260 + $0x40] sm:%s252] %v277
                %v279 = vld [vmem:[%s259 + $0x48] sm:%s252]
                %280 = vst [vmem:[%s260 + $0x48] sm:%s252] %v279
                %v281 = vld [vmem:[%s259 + $0xa0] sm:%s252]
                %282 = vst [vmem:[%s260 + $0x50] sm:%s252] %v281
                %v283 = vld [vmem:[%s259 + $0xa8] sm:%s252]
                %284 = vst [vmem:[%s260 + $0x58] sm:%s252] %v283
                %v285 = vld [vmem:[%s259 + $0xb0] sm:%s252]
                %286 = vst [vmem:[%s260 + $0x60] sm:%s252] %v285
                %v287 = vld [vmem:[%s259 + $0xb8] sm:%s252]
                %288 = vst [vmem:[%s260 + $0x68] sm:%s252] %v287
                %v289 = vld [vmem:[%s259 + $0xc0] sm:%s252]
                %290 = vst [vmem:[%s260 + $0x70] sm:%s252] %v289
                %v291 = vld [vmem:[%s259 + $0xc8] sm:%s252]
                %292 = vst [vmem:[%s260 + $0x78] sm:%s252] %v291
                %v293 = vld [vmem:[%s259 + $0xd0] sm:%s252]
                %294 = vst [vmem:[%s260 + $0x80] sm:%s252] %v293
                %v295 = vld [vmem:[%s259 + $0xd8] sm:%s252]
                %296 = vst [vmem:[%s260 + $0x88] sm:%s252] %v295
                %v297 = vld [vmem:[%s259 + $0xe0] sm:%s252]
                %298 = vst [vmem:[%s260 + $0x90] sm:%s252] %v297
                %v299 = vld [vmem:[%s259 + $0xe8] sm:%s252]
                %300 = vst [vmem:[%s260 + $0x98] sm:%s252] %v299
                %v301 = vld [vmem:[%s259 + $0x140] sm:%s252]
                %302 = vst [vmem:[%s260 + $0xa0] sm:%s252] %v301
                %v303 = vld [vmem:[%s259 + $0x148] sm:%s252]
                %304 = vst [vmem:[%s260 + $0xa8] sm:%s252] %v303
                %v305 = vld [vmem:[%s259 + $0x150] sm:%s252]
                %306 = vst [vmem:[%s260 + $0xb0] sm:%s252] %v305
                %v307 = vld [vmem:[%s259 + $0x158] sm:%s252]
                %308 = vst [vmem:[%s260 + $0xb8] sm:%s252] %v307
                %v309 = vld [vmem:[%s259 + $0x160] sm:%s252]
                %310 = vst [vmem:[%s260 + $0xc0] sm:%s252] %v309
                %v311 = vld [vmem:[%s259 + $0x168] sm:%s252]
                %312 = vst [vmem:[%s260 + $0xc8] sm:%s252] %v311
                %v313 = vld [vmem:[%s259 + $0x170] sm:%s252]
                %314 = vst [vmem:[%s260 + $0xd0] sm:%s252] %v313
                %v315 = vld [vmem:[%s259 + $0x178] sm:%s252]
                %316 = vst [vmem:[%s260 + $0xd8] sm:%s252] %v315
                %v317 = vld [vmem:[%s259 + $0x180] sm:%s252]
                %318 = vst [vmem:[%s260 + $0xe0] sm:%s252] %v317
                %v319 = vld [vmem:[%s259 + $0x188] sm:%s252]
                %320 = vst [vmem:[%s260 + $0xe8] sm:%s252] %v319
              $region45: #{seareader_forward.3} parent=39 // loop_footer
                %s258 = sadd.s32 1, %s254
              $region46: #{seareader_forward.3} parent=39 // loop_footer_branch
                %253 = sbr.rel target = $region42
              $region47: #{seareader_forward.3} parent=39 // loop_exit
                _
            $region40: #{seareader_forward.3} parent=31 // pred_fallthru
              _
          $region32: #{seareader_forward.3} parent=27 // pred_fallthru
            _
          %393 = vnop
        $region28: #{seareader_forward.3} parent=15 // pred_fallthru
          _
        // Predicated region
        $region63: #{seareader_forward.3} parent=15 // pred_check
          %p394 = pneg %p125
        $region64: #{seareader_forward.3} parent=15 // pred_check_branch
          %396 = sbr.rel (%p394) target = $region66
        $region65: #{seareader_forward.3} parent=15 // pred_region
          %s397 = sand.u32 %s115, 1
          %s398 = sand.u32 %s115, 1
          %s399 = smul.addr %s398, 240
          %s400 = scalar_lea.vmem [#allocation3], %s399
          %s401 = smul.u32 5, %s18
          %s402 = smul.addr %s401, 4
          %s403 = smul.addr %s402, 4
          %s404 = scalar_lea.vmem %s3, %s403
          // Predicated region
          $region67: #{seareader_forward.3} parent=65 // pred_check
            _
          $region68: #{seareader_forward.3} parent=65 // pred_check_branch
            %406 = sbr.rel (0) target = $region70
          $region69: #{seareader_forward.3} parent=65 // pred_region
            // Predicated region
            $region71: #{seareader_forward.3} parent=69 // pred_check
              _
            $region72: #{seareader_forward.3} parent=69 // pred_check_branch
              %408 = sbr.rel (0) target = $region74
            $region73: #{seareader_forward.3} parent=69 // pred_region
              // Predicated region
              $region86: #{seareader_forward.3} parent=73 // pred_check
                _
              $region87: #{seareader_forward.3} parent=73 // pred_check_branch
                %482 = sbr.rel (0) target = $region89
              $region88: #{seareader_forward.3} parent=73 // pred_region
                loop: start=0, step=1, limit=1
                $region90: #{seareader_forward.3} parent=88 // loop_pre_header
                  _
                $region91: #{seareader_forward.3} parent=88 // loop_header
                  %s484 = sphi 0, %s488
                  %p485 = scmp.ge.s32.totalorder %s484, 1
                  %s489 = sphi %s404, %s404
                  %s490 = sphi %s400, %s400
                $region92: #{seareader_forward.3} parent=88 // loop_header_branch
                  %487 = sbr.rel (%p485) target = $region96
                $region93: #{seareader_forward.3} parent=88 // loop_body
                  %v491 = vld [vmem:[%s489] sm:$0xff]
                  %492 = vst [vmem:[%s490] sm:$0xff] %v491
                  %v493 = vld [vmem:[%s489 + $0x8] sm:$0xff]
                  %494 = vst [vmem:[%s490 + $0x8] sm:$0xff] %v493
                  %v495 = vld [vmem:[%s489 + $0x10] sm:$0xff]
                  %496 = vst [vmem:[%s490 + $0x10] sm:$0xff] %v495
                  %v497 = vld [vmem:[%s489 + $0x18] sm:$0xff]
                  %498 = vst [vmem:[%s490 + $0x18] sm:$0xff] %v497
                  %v499 = vld [vmem:[%s489 + $0x20] sm:$0xff]
                  %500 = vst [vmem:[%s490 + $0x20] sm:$0xff] %v499
                  %v501 = vld [vmem:[%s489 + $0x28] sm:$0xff]
                  %502 = vst [vmem:[%s490 + $0x28] sm:$0xff] %v501
                  %v503 = vld [vmem:[%s489 + $0x30] sm:$0xff]
                  %504 = vst [vmem:[%s490 + $0x30] sm:$0xff] %v503
                  %v505 = vld [vmem:[%s489 + $0x38] sm:$0xff]
                  %506 = vst [vmem:[%s490 + $0x38] sm:$0xff] %v505
                  %v507 = vld [vmem:[%s489 + $0x40] sm:$0xff]
                  %508 = vst [vmem:[%s490 + $0x40] sm:$0xff] %v507
                  %v509 = vld [vmem:[%s489 + $0x48] sm:$0xff]
                  %510 = vst [vmem:[%s490 + $0x48] sm:$0xff] %v509
                  %v511 = vld [vmem:[%s489 + $0xa0] sm:$0xff]
                  %512 = vst [vmem:[%s490 + $0x50] sm:$0xff] %v511
                  %v513 = vld [vmem:[%s489 + $0xa8] sm:$0xff]
                  %514 = vst [vmem:[%s490 + $0x58] sm:$0xff] %v513
                  %v515 = vld [vmem:[%s489 + $0xb0] sm:$0xff]
                  %516 = vst [vmem:[%s490 + $0x60] sm:$0xff] %v515
                  %v517 = vld [vmem:[%s489 + $0xb8] sm:$0xff]
                  %518 = vst [vmem:[%s490 + $0x68] sm:$0xff] %v517
                  %v519 = vld [vmem:[%s489 + $0xc0] sm:$0xff]
                  %520 = vst [vmem:[%s490 + $0x70] sm:$0xff] %v519
                  %v521 = vld [vmem:[%s489 + $0xc8] sm:$0xff]
                  %522 = vst [vmem:[%s490 + $0x78] sm:$0xff] %v521
                  %v523 = vld [vmem:[%s489 + $0xd0] sm:$0xff]
                  %524 = vst [vmem:[%s490 + $0x80] sm:$0xff] %v523
                  %v525 = vld [vmem:[%s489 + $0xd8] sm:$0xff]
                  %526 = vst [vmem:[%s490 + $0x88] sm:$0xff] %v525
                  %v527 = vld [vmem:[%s489 + $0xe0] sm:$0xff]
                  %528 = vst [vmem:[%s490 + $0x90] sm:$0xff] %v527
                  %v529 = vld [vmem:[%s489 + $0xe8] sm:$0xff]
                  %530 = vst [vmem:[%s490 + $0x98] sm:$0xff] %v529
                  %v531 = vld [vmem:[%s489 + $0x140] sm:$0xff]
                  %532 = vst [vmem:[%s490 + $0xa0] sm:$0xff] %v531
                  %v533 = vld [vmem:[%s489 + $0x148] sm:$0xff]
                  %534 = vst [vmem:[%s490 + $0xa8] sm:$0xff] %v533
                  %v535 = vld [vmem:[%s489 + $0x150] sm:$0xff]
                  %536 = vst [vmem:[%s490 + $0xb0] sm:$0xff] %v535
                  %v537 = vld [vmem:[%s489 + $0x158] sm:$0xff]
                  %538 = vst [vmem:[%s490 + $0xb8] sm:$0xff] %v537
                  %v539 = vld [vmem:[%s489 + $0x160] sm:$0xff]
                  %540 = vst [vmem:[%s490 + $0xc0] sm:$0xff] %v539
                  %v541 = vld [vmem:[%s489 + $0x168] sm:$0xff]
                  %542 = vst [vmem:[%s490 + $0xc8] sm:$0xff] %v541
                  %v543 = vld [vmem:[%s489 + $0x170] sm:$0xff]
                  %544 = vst [vmem:[%s490 + $0xd0] sm:$0xff] %v543
                  %v545 = vld [vmem:[%s489 + $0x178] sm:$0xff]
                  %546 = vst [vmem:[%s490 + $0xd8] sm:$0xff] %v545
                  %v547 = vld [vmem:[%s489 + $0x180] sm:$0xff]
                  %548 = vst [vmem:[%s490 + $0xe0] sm:$0xff] %v547
                  %v549 = vld [vmem:[%s489 + $0x188] sm:$0xff]
                  %550 = vst [vmem:[%s490 + $0xe8] sm:$0xff] %v549
                $region94: #{seareader_forward.3} parent=88 // loop_footer
                  %s488 = sadd.s32 1, %s484
                $region95: #{seareader_forward.3} parent=88 // loop_footer_branch
                  %483 = sbr.rel target = $region91
                $region96: #{seareader_forward.3} parent=88 // loop_exit
                  _
              $region89: #{seareader_forward.3} parent=73 // pred_fallthru
                _
              // Predicated region
              $region97: #{seareader_forward.3} parent=73 // pred_check
                _
              $region98: #{seareader_forward.3} parent=73 // pred_check_branch
                %552 = sbr.rel target = $region100
              $region99: #{seareader_forward.3} parent=73 // pred_region
                _
              $region100: #{seareader_forward.3} parent=73 // pred_fallthru
                _
            $region74: #{seareader_forward.3} parent=69 // pred_fallthru
              _
            // Predicated region
            $region75: #{seareader_forward.3} parent=69 // pred_check
              _
            $region76: #{seareader_forward.3} parent=69 // pred_check_branch
              %410 = sbr.rel target = $region78
            $region77: #{seareader_forward.3} parent=69 // pred_region
              %s412 = ssub.s32 256, 1
              loop: start=0, step=1, limit=1
              $region79: #{seareader_forward.3} parent=77 // loop_pre_header
                _
              $region80: #{seareader_forward.3} parent=77 // loop_header
                %s414 = sphi 0, %s418
                %p415 = scmp.ge.s32.totalorder %s414, 1
                %s419 = sphi %s404, %s404
                %s420 = sphi %s400, %s400
              $region81: #{seareader_forward.3} parent=77 // loop_header_branch
                %417 = sbr.rel (%p415) target = $region85
              $region82: #{seareader_forward.3} parent=77 // loop_body
                %v421 = vld [vmem:[%s419] sm:%s412]
                %422 = vst [vmem:[%s420] sm:%s412] %v421
                %v423 = vld [vmem:[%s419 + $0x8] sm:%s412]
                %424 = vst [vmem:[%s420 + $0x8] sm:%s412] %v423
                %v425 = vld [vmem:[%s419 + $0x10] sm:%s412]
                %426 = vst [vmem:[%s420 + $0x10] sm:%s412] %v425
                %v427 = vld [vmem:[%s419 + $0x18] sm:%s412]
                %428 = vst [vmem:[%s420 + $0x18] sm:%s412] %v427
                %v429 = vld [vmem:[%s419 + $0x20] sm:%s412]
                %430 = vst [vmem:[%s420 + $0x20] sm:%s412] %v429
                %v431 = vld [vmem:[%s419 + $0x28] sm:%s412]
                %432 = vst [vmem:[%s420 + $0x28] sm:%s412] %v431
                %v433 = vld [vmem:[%s419 + $0x30] sm:%s412]
                %434 = vst [vmem:[%s420 + $0x30] sm:%s412] %v433
                %v435 = vld [vmem:[%s419 + $0x38] sm:%s412]
                %436 = vst [vmem:[%s420 + $0x38] sm:%s412] %v435
                %v437 = vld [vmem:[%s419 + $0x40] sm:%s412]
                %438 = vst [vmem:[%s420 + $0x40] sm:%s412] %v437
                %v439 = vld [vmem:[%s419 + $0x48] sm:%s412]
                %440 = vst [vmem:[%s420 + $0x48] sm:%s412] %v439
                %v441 = vld [vmem:[%s419 + $0xa0] sm:%s412]
                %442 = vst [vmem:[%s420 + $0x50] sm:%s412] %v441
                %v443 = vld [vmem:[%s419 + $0xa8] sm:%s412]
                %444 = vst [vmem:[%s420 + $0x58] sm:%s412] %v443
                %v445 = vld [vmem:[%s419 + $0xb0] sm:%s412]
                %446 = vst [vmem:[%s420 + $0x60] sm:%s412] %v445
                %v447 = vld [vmem:[%s419 + $0xb8] sm:%s412]
                %448 = vst [vmem:[%s420 + $0x68] sm:%s412] %v447
                %v449 = vld [vmem:[%s419 + $0xc0] sm:%s412]
                %450 = vst [vmem:[%s420 + $0x70] sm:%s412] %v449
                %v451 = vld [vmem:[%s419 + $0xc8] sm:%s412]
                %452 = vst [vmem:[%s420 + $0x78] sm:%s412] %v451
                %v453 = vld [vmem:[%s419 + $0xd0] sm:%s412]
                %454 = vst [vmem:[%s420 + $0x80] sm:%s412] %v453
                %v455 = vld [vmem:[%s419 + $0xd8] sm:%s412]
                %456 = vst [vmem:[%s420 + $0x88] sm:%s412] %v455
                %v457 = vld [vmem:[%s419 + $0xe0] sm:%s412]
                %458 = vst [vmem:[%s420 + $0x90] sm:%s412] %v457
                %v459 = vld [vmem:[%s419 + $0xe8] sm:%s412]
                %460 = vst [vmem:[%s420 + $0x98] sm:%s412] %v459
                %v461 = vld [vmem:[%s419 + $0x140] sm:%s412]
                %462 = vst [vmem:[%s420 + $0xa0] sm:%s412] %v461
                %v463 = vld [vmem:[%s419 + $0x148] sm:%s412]
                %464 = vst [vmem:[%s420 + $0xa8] sm:%s412] %v463
                %v465 = vld [vmem:[%s419 + $0x150] sm:%s412]
                %466 = vst [vmem:[%s420 + $0xb0] sm:%s412] %v465
                %v467 = vld [vmem:[%s419 + $0x158] sm:%s412]
                %468 = vst [vmem:[%s420 + $0xb8] sm:%s412] %v467
                %v469 = vld [vmem:[%s419 + $0x160] sm:%s412]
                %470 = vst [vmem:[%s420 + $0xc0] sm:%s412] %v469
                %v471 = vld [vmem:[%s419 + $0x168] sm:%s412]
                %472 = vst [vmem:[%s420 + $0xc8] sm:%s412] %v471
                %v473 = vld [vmem:[%s419 + $0x170] sm:%s412]
                %474 = vst [vmem:[%s420 + $0xd0] sm:%s412] %v473
                %v475 = vld [vmem:[%s419 + $0x178] sm:%s412]
                %476 = vst [vmem:[%s420 + $0xd8] sm:%s412] %v475
                %v477 = vld [vmem:[%s419 + $0x180] sm:%s412]
                %478 = vst [vmem:[%s420 + $0xe0] sm:%s412] %v477
                %v479 = vld [vmem:[%s419 + $0x188] sm:%s412]
                %480 = vst [vmem:[%s420 + $0xe8] sm:%s412] %v479
              $region83: #{seareader_forward.3} parent=77 // loop_footer
                %s418 = sadd.s32 1, %s414
              $region84: #{seareader_forward.3} parent=77 // loop_footer_branch
                %413 = sbr.rel target = $region80
              $region85: #{seareader_forward.3} parent=77 // loop_exit
                _
            $region78: #{seareader_forward.3} parent=69 // pred_fallthru
              _
          $region70: #{seareader_forward.3} parent=65 // pred_fallthru
            _
          %553 = vnop
        $region66: #{seareader_forward.3} parent=15 // pred_fallthru
          _
        // Predicated region
        $region101: #{seareader_forward.3} parent=15 // pred_check
          %p554 = pneg %p153
        $region102: #{seareader_forward.3} parent=15 // pred_check_branch
          %556 = sbr.rel (%p554) target = $region104
        $region103: #{seareader_forward.3} parent=15 // pred_region
          %s557 = smul.u32 5, %s18
          %p558 = scmp.lt.s32.totalorder %s19, 2
          %s559 = scalar_select %p558, %s19, 2
          %p560 = scmp.lt.s32.totalorder %s557, 9
          %s561 = scalar_select %p560, %s557, 9
          %s562 = smul.addr %s561, 2
          %s563 = smul.addr %s559, 20
          %s564 = sadd.s32 %s562, %s563
          %s565 = smul.addr %s564, 8
          %s566 = scalar_lea.vmem %s4, %s565
          %s567 = smul.u32 5, %s18
        $region104: #{seareader_forward.3} parent=15 // pred_fallthru
          _
      $region16: #{seareader_forward.3} parent=5 // pred_fallthru
        _
      %p568 = scmp.le.s32.totalorder 1, %s11
      %p569 = scmp.lt.s32.totalorder %s11, 7
      %p570 = pnand %p568, %p569
      %p571 = pneg %p570
      // Predicated region
      $region105: #{seareader_forward.3} parent=5 // pred_check
        _
      $region106: #{seareader_forward.3} parent=5 // pred_check_branch
        %573 = sbr.rel (%p570) target = $region108
      $region107: #{seareader_forward.3} parent=5 // pred_region
        %s574 = ssub.s32 %s11, 1
        %s575 = sand.u32 %s92, 1
        %s576 = sand.u32 %s92, 1
        %s577 = smul.addr %s576, 240
        %s578 = scalar_lea.vmem [#allocation2], %s577
        // Predicated region
        $region109: #{seareader_forward.3} parent=107 // pred_check
          %p579 = pneg %p105
        $region110: #{seareader_forward.3} parent=107 // pred_check_branch
          %581 = sbr.rel (%p579) target = $region112
        $region111: #{seareader_forward.3} parent=107 // pred_region
          _
        $region112: #{seareader_forward.3} parent=107 // pred_fallthru
          _
        %s582 = sand.u32 %s118, 1
        %s583 = sand.u32 %s118, 1
        %s584 = smul.addr %s583, 240
        %s585 = scalar_lea.vmem [#allocation3], %s584
        // Predicated region
        $region113: #{seareader_forward.3} parent=107 // pred_check
          %p586 = pneg %p131
        $region114: #{seareader_forward.3} parent=107 // pred_check_branch
          %588 = sbr.rel (%p586) target = $region116
        $region115: #{seareader_forward.3} parent=107 // pred_region
          _
        $region116: #{seareader_forward.3} parent=107 // pred_fallthru
          _
        %s589 = smul.u32 5, %s20
        %p590 = scmp.lt.s32.totalorder %s21, 2
        %s591 = scalar_select %p590, %s21, 2
        %p592 = scmp.lt.s32.totalorder %s589, 9
        %s593 = scalar_select %p592, %s589, 9
        %s594 = smul.addr %s593, 4
        %s595 = smul.addr %s591, 40
        %s596 = sadd.s32 %s594, %s595
        %s597 = smul.addr %s596, 4
        %s598 = scalar_lea.vmem %s0, %s597
        %p599 = pneg %p51
        %p600 = pneg %p48
        %s601 = smul.u32 5, %s20
        %p602 = scmp.lt.s32.totalorder %s21, 2
        %s603 = scalar_select %p602, %s21, 2
        %p604 = scmp.lt.s32.totalorder %s601, 9
        %s605 = scalar_select %p604, %s601, 9
        %s606 = smul.addr %s605, 4
        %s607 = smul.addr %s603, 40
        %s608 = sadd.s32 %s606, %s607
        %s609 = smul.addr %s608, 4
        %s610 = scalar_lea.vmem %s1, %s609
        %p611 = pneg %p79
        %p612 = pneg %p76
        %s613 = sand.u32 %s92, 1
        %s614 = sand.u32 %s92, 1
        %s615 = smul.addr %s614, 240
        %s616 = scalar_lea.vmem [#allocation2], %s615
        %p617 = pneg %p105
        %p618 = pneg %p102
        %s619 = sand.u32 %s118, 1
        %s620 = sand.u32 %s118, 1
        %s621 = smul.addr %s620, 240
        %s622 = scalar_lea.vmem [#allocation3], %s621
        %p623 = pneg %p131
        %p624 = pneg %p128
        %s625 = smul.u32 5, %s20
        %p626 = scmp.lt.s32.totalorder %s21, 2
        %s627 = scalar_select %p626, %s21, 2
        %p628 = scmp.lt.s32.totalorder %s625, 9
        %s629 = scalar_select %p628, %s625, 9
        %s630 = smul.addr %s629, 2
        %s631 = smul.addr %s627, 20
        %s632 = sadd.s32 %s630, %s631
        %s633 = smul.addr %s632, 8
        %s634 = scalar_lea.vmem %s4, %s633
        %p635 = pneg %p159
        %p636 = pneg %p156
        %p637 = pneg %p187
        %p638 = pneg %p184
        %s639 = smul.u32 5, %s20
        %p640 = scmp.lt.s32.totalorder %s21, 2
        %s641 = scalar_select %p640, %s21, 2
        %p642 = scmp.lt.s32.totalorder %s639, 9
        %s643 = scalar_select %p642, %s639, 9
        %s644 = smul.addr %s643, 8
        %s645 = smul.addr %s641, 80
        %s646 = sadd.s32 %s644, %s645
        %s647 = smul.addr %s646, 8
        %s648 = scalar_lea.vmem %s5, %s647
        %s649 = smul.u32 5, %s20
        %p650 = scmp.lt.s32.totalorder %s21, 2
        %s651 = scalar_select %p650, %s21, 2
        %p652 = scmp.lt.s32.totalorder %s649, 9
        %s653 = scalar_select %p652, %s649, 9
        %s654 = smul.addr %s653, 4
        %s655 = smul.addr %s651, 40
        %s656 = sadd.s32 %s654, %s655
        %s657 = smul.addr %s656, 4
        %s658 = scalar_lea.vmem %s0, %s657
        %s659 = smul.u32 5, %s20
        %s660 = smul.u32 5, %s20
        %p661 = scmp.lt.s32.totalorder %s21, 2
        %s662 = scalar_select %p661, %s21, 2
        %p663 = scmp.lt.s32.totalorder %s660, 9
        %s664 = scalar_select %p663, %s660, 9
        %s665 = smul.addr %s664, 4
        %s666 = smul.addr %s662, 40
        %s667 = sadd.s32 %s665, %s666
        %s668 = smul.addr %s667, 4
        %s669 = scalar_lea.vmem %s1, %s668
        %s670 = smul.u32 5, %s20
        %s671 = smul.u32 5, %s20
        %s672 = smul.u32 5, %s20
        %s673 = smul.u32 5, %s20
        %p674 = scmp.lt.s32.totalorder %s21, 2
        %s675 = scalar_select %p674, %s21, 2
        %p676 = scmp.lt.s32.totalorder %s673, 9
        %s677 = scalar_select %p676, %s673, 9
        %s678 = smul.addr %s677, 2
        %s679 = smul.addr %s675, 20
        %s680 = sadd.s32 %s678, %s679
        %s681 = smul.addr %s680, 8
        %s682 = scalar_lea.vmem %s4, %s681
        %s683 = smul.u32 5, %s20
        %s684 = smul.u32 5, %s20
        %p685 = scmp.lt.s32.totalorder %s21, 2
        %s686 = scalar_select %p685, %s21, 2
        %p687 = scmp.lt.s32.totalorder %s684, 9
        %s688 = scalar_select %p687, %s684, 9
        %s689 = smul.addr %s688, 8
        %s690 = smul.addr %s686, 80
        %s691 = sadd.s32 %s689, %s690
        %s692 = smul.addr %s691, 8
        %s693 = scalar_lea.vmem %s5, %s692
        %s694 = smul.u32 5, %s20
        %v696 = vld [vmem:[%s658] sm:$0xff]
        %v697 = vld [vmem:[%s658 + $0x8] sm:$0xff]
        %v698 = vld [vmem:[%s658 + $0x10] sm:$0xff]
        %v699 = vld [vmem:[%s658 + $0x18] sm:$0xff]
        %v700 = vld [vmem:[%s658 + $0x20] sm:$0xff]
        %v701 = vld [vmem:[%s658 + $0x28] sm:$0xff]
        %v702 = vld [vmem:[%s658 + $0x30] sm:$0xff]
        %v703 = vld [vmem:[%s658 + $0x38] sm:$0xff]
        %v704 = vld [vmem:[%s658 + $0x40] sm:$0xff]
        %v705 = vld [vmem:[%s658 + $0x48] sm:$0xff]
        %v706 = vld [vmem:[%s669] sm:$0xff]
        %v707 = vld [vmem:[%s669 + $0x8] sm:$0xff]
        %v708 = vld [vmem:[%s669 + $0x10] sm:$0xff]
        %v709 = vld [vmem:[%s669 + $0x18] sm:$0xff]
        %v710 = vld [vmem:[%s669 + $0x20] sm:$0xff]
        %v711 = vld [vmem:[%s669 + $0x28] sm:$0xff]
        %v712 = vld [vmem:[%s669 + $0x30] sm:$0xff]
        %v713 = vld [vmem:[%s669 + $0x38] sm:$0xff]
        %v714 = vld [vmem:[%s669 + $0x40] sm:$0xff]
        %v715 = vld [vmem:[%s669 + $0x48] sm:$0xff]
        %v716 = vld [vmem:[%s578] sm:$0xff]
        %v717 = vld [vmem:[%s578 + $0x8] sm:$0xff]
        %v718 = vld [vmem:[%s578 + $0x10] sm:$0xff]
        %v719 = vld [vmem:[%s578 + $0x18] sm:$0xff]
        %v720 = vld [vmem:[%s578 + $0x20] sm:$0xff]
        %v721 = vld [vmem:[%s578 + $0x28] sm:$0xff]
        %v722 = vld [vmem:[%s578 + $0x30] sm:$0xff]
        %v723 = vld [vmem:[%s578 + $0x38] sm:$0xff]
        %v724 = vld [vmem:[%s578 + $0x40] sm:$0xff]
        %v725 = vld [vmem:[%s578 + $0x48] sm:$0xff]
        %s726 = scalar_lea.vmem %s578, 80 [#allocation2]
        %v727 = vld [vmem:[%s726] sm:$0xff]
        %v728 = vld [vmem:[%s726 + $0x8] sm:$0xff]
        %v729 = vld [vmem:[%s726 + $0x10] sm:$0xff]
        %v730 = vld [vmem:[%s726 + $0x18] sm:$0xff]
        %v731 = vld [vmem:[%s726 + $0x20] sm:$0xff]
        %v732 = vld [vmem:[%s726 + $0x28] sm:$0xff]
        %v733 = vld [vmem:[%s726 + $0x30] sm:$0xff]
        %v734 = vld [vmem:[%s726 + $0x38] sm:$0xff]
        %v735 = vld [vmem:[%s726 + $0x40] sm:$0xff]
        %v736 = vld [vmem:[%s726 + $0x48] sm:$0xff]
        %s737 = scalar_lea.vmem %s578, 160 [#allocation2]
        %v738 = vld [vmem:[%s737] sm:$0xff]
        %v739 = vld [vmem:[%s737 + $0x8] sm:$0xff]
        %v740 = vld [vmem:[%s737 + $0x10] sm:$0xff]
        %v741 = vld [vmem:[%s737 + $0x18] sm:$0xff]
        %v742 = vld [vmem:[%s737 + $0x20] sm:$0xff]
        %v743 = vld [vmem:[%s737 + $0x28] sm:$0xff]
        %v744 = vld [vmem:[%s737 + $0x30] sm:$0xff]
        %v745 = vld [vmem:[%s737 + $0x38] sm:$0xff]
        %v746 = vld [vmem:[%s737 + $0x40] sm:$0xff]
        %v747 = vld [vmem:[%s737 + $0x48] sm:$0xff]
        %v748 = vld [vmem:[%s585] sm:$0xff]
        %v749 = vld [vmem:[%s585 + $0x8] sm:$0xff]
        %v750 = vld [vmem:[%s585 + $0x10] sm:$0xff]
        %v751 = vld [vmem:[%s585 + $0x18] sm:$0xff]
        %v752 = vld [vmem:[%s585 + $0x20] sm:$0xff]
        %v753 = vld [vmem:[%s585 + $0x28] sm:$0xff]
        %v754 = vld [vmem:[%s585 + $0x30] sm:$0xff]
        %v755 = vld [vmem:[%s585 + $0x38] sm:$0xff]
        %v756 = vld [vmem:[%s585 + $0x40] sm:$0xff]
        %v757 = vld [vmem:[%s585 + $0x48] sm:$0xff]
        %s758 = scalar_lea.vmem %s585, 80 [#allocation3]
        %v759 = vld [vmem:[%s758] sm:$0xff]
        %v760 = vld [vmem:[%s758 + $0x8] sm:$0xff]
        %v761 = vld [vmem:[%s758 + $0x10] sm:$0xff]
        %v762 = vld [vmem:[%s758 + $0x18] sm:$0xff]
        %v763 = vld [vmem:[%s758 + $0x20] sm:$0xff]
        %v764 = vld [vmem:[%s758 + $0x28] sm:$0xff]
        %v765 = vld [vmem:[%s758 + $0x30] sm:$0xff]
        %v766 = vld [vmem:[%s758 + $0x38] sm:$0xff]
        %v767 = vld [vmem:[%s758 + $0x40] sm:$0xff]
        %v768 = vld [vmem:[%s758 + $0x48] sm:$0xff]
        %s769 = scalar_lea.vmem %s585, 160 [#allocation3]
        %v770 = vld [vmem:[%s769] sm:$0xff]
        %v771 = vld [vmem:[%s769 + $0x8] sm:$0xff]
        %v772 = vld [vmem:[%s769 + $0x10] sm:$0xff]
        %v773 = vld [vmem:[%s769 + $0x18] sm:$0xff]
        %v774 = vld [vmem:[%s769 + $0x20] sm:$0xff]
        %v775 = vld [vmem:[%s769 + $0x28] sm:$0xff]
        %v776 = vld [vmem:[%s769 + $0x30] sm:$0xff]
        %v777 = vld [vmem:[%s769 + $0x38] sm:$0xff]
        %v778 = vld [vmem:[%s769 + $0x40] sm:$0xff]
        %v779 = vld [vmem:[%s769 + $0x48] sm:$0xff]
        %v782 = vunpack.c.l.b16 %v706
        %v783 = vunpack.c.h.b16 %v706
        %v784 = vunpack.c.l.b16 %v707
        %v785 = vunpack.c.h.b16 %v707
        %v786 = vpack.c.b16 %v784, %v782
        %v787 = vpack.c.b16 %v785, %v783
        %v792 = vunpack.c.l.b16 %v748
        %v793 = vunpack.c.h.b16 %v748
        %v794 = vunpack.c.l.b16 %v749
        %v795 = vunpack.c.h.b16 %v749
        %v796 = vpack.c.b16 %v794, %v792
        %v797 = vpack.c.b16 %v795, %v793
        %800 = vmatprep.subr.bf16.mxu0 0
        %801 = vmatpush1.bf16.xpose.msra.mxu0 0
        %802 = vmatprep.subr.bf16.mxu0 0
        %803 = vmatpush1.bf16.xpose.msra.mxu0 0
        %804 = vmatprep.subr.bf16.mxu0 0
        %805 = vmatpush1.bf16.xpose.msra.mxu0 0
        %806 = vmatprep.subr.bf16.mxu0 0
        %807 = vmatpush1.bf16.xpose.msra.mxu0 0
        %808 = vmatprep.subr.bf16.mxu0 0
        %809 = vmatpush1.bf16.xpose.msra.mxu0 0
        %810 = vmatprep.subr.bf16.mxu0 0
        %811 = vmatpush1.bf16.xpose.msra.mxu0 0
        %812 = vmatprep.subr.bf16.mxu0 0
        %813 = vmatpush1.bf16.xpose.msra.mxu0 0
        %814 = vmatprep.subr.bf16.mxu0 %v797
        %815 = vmatpush1.bf16.xpose.msra.mxu0 %v796
        %816 = vmatprep.subr.bf16.mxu0 0
        %817 = vmatpush2.bf16.xpose.msra.mxu0 0
        %818 = vmatprep.subr.bf16.mxu0 0
        %819 = vmatpush2.bf16.xpose.msra.mxu0 0
        %820 = vmatprep.subr.bf16.mxu0 0
        %821 = vmatpush2.bf16.xpose.msra.mxu0 0
        %822 = vmatprep.subr.bf16.mxu0 0
        %823 = vmatpush2.bf16.xpose.msra.mxu0 0
        %824 = vmatprep.subr.bf16.mxu0 0
        %825 = vmatpush2.bf16.xpose.msra.mxu0 0
        %826 = vmatprep.subr.bf16.mxu0 0
        %827 = vmatpush2.bf16.xpose.msra.mxu0 0
        %828 = vmatprep.subr.bf16.mxu0 0
        %829 = vmatpush2.bf16.xpose.msra.mxu0 0
        %830 = vmatprep.subr.bf16.mxu0 0
        %831 = vmatpush2.bf16.xpose.msra.mxu0 0
        %832 = vmatprep.mubr.bf16.mxu0 %v787
        %833 = vmatmul.mubr.bf16.gmra.mxu0 %v786
        %v834 = vpop.f32.mrf.mxu0
        %v835 = vadd.f32 0.0, %v834
        %v836 = vpop.f32.mrf.mxu0
        %v837 = vpop.f32.mrf.mxu0
        %v838 = vadd.f32 0.0, %v837
        %v839 = vpop.f32.mrf.mxu0
        %840 = vdwg.mxu0
        %v843 = vunpack.c.l.b16 %v708
        %v844 = vunpack.c.h.b16 %v708
        %v845 = vunpack.c.l.b16 %v709
        %v846 = vunpack.c.h.b16 %v709
        %v847 = vpack.c.b16 %v845, %v843
        %v848 = vpack.c.b16 %v846, %v844
        %v853 = vunpack.c.l.b16 %v750
        %v854 = vunpack.c.h.b16 %v750
        %v855 = vunpack.c.l.b16 %v751
        %v856 = vunpack.c.h.b16 %v751
        %v857 = vpack.c.b16 %v855, %v853
        %v858 = vpack.c.b16 %v856, %v854
        %861 = vmatprep.subr.bf16.mxu0 0
        %862 = vmatpush1.bf16.xpose.msra.mxu0 0
        %863 = vmatprep.subr.bf16.mxu0 0
        %864 = vmatpush1.bf16.xpose.msra.mxu0 0
        %865 = vmatprep.subr.bf16.mxu0 0
        %866 = vmatpush1.bf16.xpose.msra.mxu0 0
        %867 = vmatprep.subr.bf16.mxu0 0
        %868 = vmatpush1.bf16.xpose.msra.mxu0 0
        %869 = vmatprep.subr.bf16.mxu0 0
        %870 = vmatpush1.bf16.xpose.msra.mxu0 0
        %871 = vmatprep.subr.bf16.mxu0 0
        %872 = vmatpush1.bf16.xpose.msra.mxu0 0
        %873 = vmatprep.subr.bf16.mxu0 0
        %874 = vmatpush1.bf16.xpose.msra.mxu0 0
        %875 = vmatprep.subr.bf16.mxu0 %v858
        %876 = vmatpush1.bf16.xpose.msra.mxu0 %v857
        %877 = vmatprep.subr.bf16.mxu0 0
        %878 = vmatpush2.bf16.xpose.msra.mxu0 0
        %879 = vmatprep.subr.bf16.mxu0 0
        %880 = vmatpush2.bf16.xpose.msra.mxu0 0
        %881 = vmatprep.subr.bf16.mxu0 0
        %882 = vmatpush2.bf16.xpose.msra.mxu0 0
        %883 = vmatprep.subr.bf16.mxu0 0
        %884 = vmatpush2.bf16.xpose.msra.mxu0 0
        %885 = vmatprep.subr.bf16.mxu0 0
        %886 = vmatpush2.bf16.xpose.msra.mxu0 0
        %887 = vmatprep.subr.bf16.mxu0 0
        %888 = vmatpush2.bf16.xpose.msra.mxu0 0
        %889 = vmatprep.subr.bf16.mxu0 0
        %890 = vmatpush2.bf16.xpose.msra.mxu0 0
        %891 = vmatprep.subr.bf16.mxu0 0
        %892 = vmatpush2.bf16.xpose.msra.mxu0 0
        %893 = vmatprep.mubr.bf16.mxu0 %v848
        %894 = vmatmul.mubr.bf16.gmra.mxu0 %v847
        %v895 = vpop.f32.mrf.mxu0
        %v896 = vadd.f32 0.0, %v895
        %v897 = vpop.f32.mrf.mxu0
        %v898 = vpop.f32.mrf.mxu0
        %v899 = vadd.f32 0.0, %v898
        %v900 = vpop.f32.mrf.mxu0
        %901 = vdwg.mxu0
        %v904 = vunpack.c.l.b16 %v710
        %v905 = vunpack.c.h.b16 %v710
        %v906 = vunpack.c.l.b16 %v711
        %v907 = vunpack.c.h.b16 %v711
        %v908 = vpack.c.b16 %v906, %v904
        %v909 = vpack.c.b16 %v907, %v905
        %v914 = vunpack.c.l.b16 %v752
        %v915 = vunpack.c.h.b16 %v752
        %v916 = vunpack.c.l.b16 %v753
        %v917 = vunpack.c.h.b16 %v753
        %v918 = vpack.c.b16 %v916, %v914
        %v919 = vpack.c.b16 %v917, %v915
        %922 = vmatprep.subr.bf16.mxu0 0
        %923 = vmatpush1.bf16.xpose.msra.mxu0 0
        %924 = vmatprep.subr.bf16.mxu0 0
        %925 = vmatpush1.bf16.xpose.msra.mxu0 0
        %926 = vmatprep.subr.bf16.mxu0 0
        %927 = vmatpush1.bf16.xpose.msra.mxu0 0
        %928 = vmatprep.subr.bf16.mxu0 0
        %929 = vmatpush1.bf16.xpose.msra.mxu0 0
        %930 = vmatprep.subr.bf16.mxu0 0
        %931 = vmatpush1.bf16.xpose.msra.mxu0 0
        %932 = vmatprep.subr.bf16.mxu0 0
        %933 = vmatpush1.bf16.xpose.msra.mxu0 0
        %934 = vmatprep.subr.bf16.mxu0 0
        %935 = vmatpush1.bf16.xpose.msra.mxu0 0
        %936 = vmatprep.subr.bf16.mxu0 %v919
        %937 = vmatpush1.bf16.xpose.msra.mxu0 %v918
        %938 = vmatprep.subr.bf16.mxu0 0
        %939 = vmatpush2.bf16.xpose.msra.mxu0 0
        %940 = vmatprep.subr.bf16.mxu0 0
        %941 = vmatpush2.bf16.xpose.msra.mxu0 0
        %942 = vmatprep.subr.bf16.mxu0 0
        %943 = vmatpush2.bf16.xpose.msra.mxu0 0
        %944 = vmatprep.subr.bf16.mxu0 0
        %945 = vmatpush2.bf16.xpose.msra.mxu0 0
        %946 = vmatprep.subr.bf16.mxu0 0
        %947 = vmatpush2.bf16.xpose.msra.mxu0 0
        %948 = vmatprep.subr.bf16.mxu0 0
        %949 = vmatpush2.bf16.xpose.msra.mxu0 0
        %950 = vmatprep.subr.bf16.mxu0 0
        %951 = vmatpush2.bf16.xpose.msra.mxu0 0
        %952 = vmatprep.subr.bf16.mxu0 0
        %953 = vmatpush2.bf16.xpose.msra.mxu0 0
        %954 = vmatprep.mubr.bf16.mxu0 %v909
        %955 = vmatmul.mubr.bf16.gmra.mxu0 %v908
        %v956 = vpop.f32.mrf.mxu0
        %v957 = vadd.f32 0.0, %v956
        %v958 = vpop.f32.mrf.mxu0
        %v959 = vpop.f32.mrf.mxu0
        %v960 = vadd.f32 0.0, %v959
        %v961 = vpop.f32.mrf.mxu0
        %962 = vdwg.mxu0
        %v965 = vunpack.c.l.b16 %v712
        %v966 = vunpack.c.h.b16 %v712
        %v967 = vunpack.c.l.b16 %v713
        %v968 = vunpack.c.h.b16 %v713
        %v969 = vpack.c.b16 %v967, %v965
        %v970 = vpack.c.b16 %v968, %v966
        %v975 = vunpack.c.l.b16 %v754
        %v976 = vunpack.c.h.b16 %v754
        %v977 = vunpack.c.l.b16 %v755
        %v978 = vunpack.c.h.b16 %v755
        %v979 = vpack.c.b16 %v977, %v975
        %v980 = vpack.c.b16 %v978, %v976
        %983 = vmatprep.subr.bf16.mxu0 0
        %984 = vmatpush1.bf16.xpose.msra.mxu0 0
        %985 = vmatprep.subr.bf16.mxu0 0
        %986 = vmatpush1.bf16.xpose.msra.mxu0 0
        %987 = vmatprep.subr.bf16.mxu0 0
        %988 = vmatpush1.bf16.xpose.msra.mxu0 0
        %989 = vmatprep.subr.bf16.mxu0 0
        %990 = vmatpush1.bf16.xpose.msra.mxu0 0
        %991 = vmatprep.subr.bf16.mxu0 0
        %992 = vmatpush1.bf16.xpose.msra.mxu0 0
        %993 = vmatprep.subr.bf16.mxu0 0
        %994 = vmatpush1.bf16.xpose.msra.mxu0 0
        %995 = vmatprep.subr.bf16.mxu0 0
        %996 = vmatpush1.bf16.xpose.msra.mxu0 0
        %997 = vmatprep.subr.bf16.mxu0 %v980
        %998 = vmatpush1.bf16.xpose.msra.mxu0 %v979
        %999 = vmatprep.subr.bf16.mxu0 0
        %1000 = vmatpush2.bf16.xpose.msra.mxu0 0
        %1001 = vmatprep.subr.bf16.mxu0 0
        %1002 = vmatpush2.bf16.xpose.msra.mxu0 0
        %1003 = vmatprep.subr.bf16.mxu0 0
        %1004 = vmatpush2.bf16.xpose.msra.mxu0 0
        %1005 = vmatprep.subr.bf16.mxu0 0
        %1006 = vmatpush2.bf16.xpose.msra.mxu0 0
        %1007 = vmatprep.subr.bf16.mxu0 0
        %1008 = vmatpush2.bf16.xpose.msra.mxu0 0
        %1009 = vmatprep.subr.bf16.mxu0 0
        %1010 = vmatpush2.bf16.xpose.msra.mxu0 0
        %1011 = vmatprep.subr.bf16.mxu0 0
        %1012 = vmatpush2.bf16.xpose.msra.mxu0 0
        %1013 = vmatprep.subr.bf16.mxu0 0
        %1014 = vmatpush2.bf16.xpose.msra.mxu0 0
        %1015 = vmatprep.mubr.bf16.mxu0 %v970
        %1016 = vmatmul.mubr.bf16.gmra.mxu0 %v969
        %v1017 = vpop.f32.mrf.mxu0
        %v1018 = vadd.f32 0.0, %v1017
        %v1019 = vpop.f32.mrf.mxu0
        %v1020 = vpop.f32.mrf.mxu0
        %v1021 = vadd.f32 0.0, %v1020
        %v1022 = vpop.f32.mrf.mxu0
        %1023 = vdwg.mxu0
        %v1026 = vunpack.c.l.b16 %v714
        %v1027 = vunpack.c.h.b16 %v714
        %v1028 = vunpack.c.l.b16 %v715
        %v1029 = vunpack.c.h.b16 %v715
        %v1030 = vpack.c.b16 %v1028, %v1026
        %v1031 = vpack.c.b16 %v1029, %v1027
        %v1036 = vunpack.c.l.b16 %v756
        %v1037 = vunpack.c.h.b16 %v756
        %v1038 = vunpack.c.l.b16 %v757
        %v1039 = vunpack.c.h.b16 %v757
        %v1040 = vpack.c.b16 %v1038, %v1036
        %v1041 = vpack.c.b16 %v1039, %v1037
        %1044 = vmatprep.subr.bf16.mxu0 0
        %1045 = vmatpush1.bf16.xpose.msra.mxu0 0
        %1046 = vmatprep.subr.bf16.mxu0 0
        %1047 = vmatpush1.bf16.xpose.msra.mxu0 0
        %1048 = vmatprep.subr.bf16.mxu0 0
        %1049 = vmatpush1.bf16.xpose.msra.mxu0 0
        %1050 = vmatprep.subr.bf16.mxu0 0
        %1051 = vmatpush1.bf16.xpose.msra.mxu0 0
        %1052 = vmatprep.subr.bf16.mxu0 0
        %1053 = vmatpush1.bf16.xpose.msra.mxu0 0
        %1054 = vmatprep.subr.bf16.mxu0 0
        %1055 = vmatpush1.bf16.xpose.msra.mxu0 0
        %1056 = vmatprep.subr.bf16.mxu0 0
        %1057 = vmatpush1.bf16.xpose.msra.mxu0 0
        %1058 = vmatprep.subr.bf16.mxu0 %v1041
        %1059 = vmatpush1.bf16.xpose.msra.mxu0 %v1040
        %1060 = vmatprep.subr.bf16.mxu0 0
        %1061 = vmatpush2.bf16.xpose.msra.mxu0 0
        %1062 = vmatprep.subr.bf16.mxu0 0
        %1063 = vmatpush2.bf16.xpose.msra.mxu0 0
        %1064 = vmatprep.subr.bf16.mxu0 0
        %1065 = vmatpush2.bf16.xpose.msra.mxu0 0
        %1066 = vmatprep.subr.bf16.mxu0 0
        %1067 = vmatpush2.bf16.xpose.msra.mxu0 0
        %1068 = vmatprep.subr.bf16.mxu0 0
        %1069 = vmatpush2.bf16.xpose.msra.mxu0 0
        %1070 = vmatprep.subr.bf16.mxu0 0
        %1071 = vmatpush2.bf16.xpose.msra.mxu0 0
        %1072 = vmatprep.subr.bf16.mxu0 0
        %1073 = vmatpush2.bf16.xpose.msra.mxu0 0
        %1074 = vmatprep.subr.bf16.mxu0 0
        %1075 = vmatpush2.bf16.xpose.msra.mxu0 0
        %1076 = vmatprep.mubr.bf16.mxu0 %v1031
        %1077 = vmatmul.mubr.bf16.gmra.mxu0 %v1030
        %v1078 = vpop.f32.mrf.mxu0
        %v1079 = vadd.f32 0.0, %v1078
        %v1080 = vpop.f32.mrf.mxu0
        %v1081 = vpop.f32.mrf.mxu0
        %v1082 = vadd.f32 0.0, %v1081
        %v1083 = vpop.f32.mrf.mxu0
        %1084 = vdwg.mxu0
        %v1087 = vunpack.c.l.b16 %v696
        %v1088 = vunpack.c.h.b16 %v696
        %v1089 = vunpack.c.l.b16 %v697
        %v1090 = vunpack.c.h.b16 %v697
        %v1091 = vpack.c.b16 %v1089, %v1087
        %v1092 = vpack.c.b16 %v1090, %v1088
        %v1097 = vunpack.c.l.b16 %v716
        %v1098 = vunpack.c.h.b16 %v716
        %v1099 = vunpack.c.l.b16 %v717
        %v1100 = vunpack.c.h.b16 %v717
        %v1101 = vpack.c.b16 %v1099, %v1097
        %v1102 = vpack.c.b16 %v1100, %v1098
        %1105 = vmatprep.subr.bf16.mxu0 0
        %1106 = vmatpush1.bf16.xpose.msra.mxu0 0
        %1107 = vmatprep.subr.bf16.mxu0 0
        %1108 = vmatpush1.bf16.xpose.msra.mxu0 0
        %1109 = vmatprep.subr.bf16.mxu0 0
        %1110 = vmatpush1.bf16.xpose.msra.mxu0 0
        %1111 = vmatprep.subr.bf16.mxu0 0
        %1112 = vmatpush1.bf16.xpose.msra.mxu0 0
        %1113 = vmatprep.subr.bf16.mxu0 0
        %1114 = vmatpush1.bf16.xpose.msra.mxu0 0
        %1115 = vmatprep.subr.bf16.mxu0 0
        %1116 = vmatpush1.bf16.xpose.msra.mxu0 0
        %1117 = vmatprep.subr.bf16.mxu0 0
        %1118 = vmatpush1.bf16.xpose.msra.mxu0 0
        %1119 = vmatprep.subr.bf16.mxu0 %v1102
        %1120 = vmatpush1.bf16.xpose.msra.mxu0 %v1101
        %1121 = vmatprep.subr.bf16.mxu0 0
        %1122 = vmatpush2.bf16.xpose.msra.mxu0 0
        %1123 = vmatprep.subr.bf16.mxu0 0
        %1124 = vmatpush2.bf16.xpose.msra.mxu0 0
        %1125 = vmatprep.subr.bf16.mxu0 0
        %1126 = vmatpush2.bf16.xpose.msra.mxu0 0
        %1127 = vmatprep.subr.bf16.mxu0 0
        %1128 = vmatpush2.bf16.xpose.msra.mxu0 0
        %1129 = vmatprep.subr.bf16.mxu0 0
        %1130 = vmatpush2.bf16.xpose.msra.mxu0 0
        %1131 = vmatprep.subr.bf16.mxu0 0
        %1132 = vmatpush2.bf16.xpose.msra.mxu0 0
        %1133 = vmatprep.subr.bf16.mxu0 0
        %1134 = vmatpush2.bf16.xpose.msra.mxu0 0
        %1135 = vmatprep.subr.bf16.mxu0 0
        %1136 = vmatpush2.bf16.xpose.msra.mxu0 0
        %1137 = vmatprep.mubr.bf16.mxu0 %v1092
        %1138 = vmatmul.mubr.bf16.gmra.mxu0 %v1091
        %v1139 = vpop.f32.mrf.mxu0
        %v1140 = vadd.f32 %v835, %v1139
        %v1141 = vpop.f32.mrf.mxu0
        %v1142 = vpop.f32.mrf.mxu0
        %v1143 = vadd.f32 %v838, %v1142
        %v1144 = vpop.f32.mrf.mxu0
        %1145 = vdwg.mxu0
        %v1148 = vunpack.c.l.b16 %v698
        %v1149 = vunpack.c.h.b16 %v698
        %v1150 = vunpack.c.l.b16 %v699
        %v1151 = vunpack.c.h.b16 %v699
        %v1152 = vpack.c.b16 %v1150, %v1148
        %v1153 = vpack.c.b16 %v1151, %v1149
        %v1158 = vunpack.c.l.b16 %v718
        %v1159 = vunpack.c.h.b16 %v718
        %v1160 = vunpack.c.l.b16 %v719
        %v1161 = vunpack.c.h.b16 %v719
        %v1162 = vpack.c.b16 %v1160, %v1158
        %v1163 = vpack.c.b16 %v1161, %v1159
        %1166 = vmatprep.subr.bf16.mxu0 0
        %1167 = vmatpush1.bf16.xpose.msra.mxu0 0
        %1168 = vmatprep.subr.bf16.mxu0 0
        %1169 = vmatpush1.bf16.xpose.msra.mxu0 0
        %1170 = vmatprep.subr.bf16.mxu0 0
        %1171 = vmatpush1.bf16.xpose.msra.mxu0 0
        %1172 = vmatprep.subr.bf16.mxu0 0
        %1173 = vmatpush1.bf16.xpose.msra.mxu0 0
        %1174 = vmatprep.subr.bf16.mxu0 0
        %1175 = vmatpush1.bf16.xpose.msra.mxu0 0
        %1176 = vmatprep.subr.bf16.mxu0 0
        %1177 = vmatpush1.bf16.xpose.msra.mxu0 0
        %1178 = vmatprep.subr.bf16.mxu0 0
        %1179 = vmatpush1.bf16.xpose.msra.mxu0 0
        %1180 = vmatprep.subr.bf16.mxu0 %v1163
        %1181 = vmatpush1.bf16.xpose.msra.mxu0 %v1162
        %1182 = vmatprep.subr.bf16.mxu0 0
        %1183 = vmatpush2.bf16.xpose.msra.mxu0 0
        %1184 = vmatprep.subr.bf16.mxu0 0
        %1185 = vmatpush2.bf16.xpose.msra.mxu0 0
        %1186 = vmatprep.subr.bf16.mxu0 0
        %1187 = vmatpush2.bf16.xpose.msra.mxu0 0
        %1188 = vmatprep.subr.bf16.mxu0 0
        %1189 = vmatpush2.bf16.xpose.msra.mxu0 0
        %1190 = vmatprep.subr.bf16.mxu0 0
        %1191 = vmatpush2.bf16.xpose.msra.mxu0 0
        %1192 = vmatprep.subr.bf16.mxu0 0
        %1193 = vmatpush2.bf16.xpose.msra.mxu0 0
        %1194 = vmatprep.subr.bf16.mxu0 0
        %1195 = vmatpush2.bf16.xpose.msra.mxu0 0
        %1196 = vmatprep.subr.bf16.mxu0 0
        %1197 = vmatpush2.bf16.xpose.msra.mxu0 0
        %1198 = vmatprep.mubr.bf16.mxu0 %v1153
        %1199 = vmatmul.mubr.bf16.gmra.mxu0 %v1152
        %v1200 = vpop.f32.mrf.mxu0
        %v1201 = vadd.f32 %v896, %v1200
        %v1202 = vpop.f32.mrf.mxu0
        %v1203 = vpop.f32.mrf.mxu0
        %v1204 = vadd.f32 %v899, %v1203
        %v1205 = vpop.f32.mrf.mxu0
        %1206 = vdwg.mxu0
        %v1209 = vunpack.c.l.b16 %v700
        %v1210 = vunpack.c.h.b16 %v700
        %v1211 = vunpack.c.l.b16 %v701
        %v1212 = vunpack.c.h.b16 %v701
        %v1213 = vpack.c.b16 %v1211, %v1209
        %v1214 = vpack.c.b16 %v1212, %v1210
        %v1219 = vunpack.c.l.b16 %v720
        %v1220 = vunpack.c.h.b16 %v720
        %v1221 = vunpack.c.l.b16 %v721
        %v1222 = vunpack.c.h.b16 %v721
        %v1223 = vpack.c.b16 %v1221, %v1219
        %v1224 = vpack.c.b16 %v1222, %v1220
        %1227 = vmatprep.subr.bf16.mxu0 0
        %1228 = vmatpush1.bf16.xpose.msra.mxu0 0
        %1229 = vmatprep.subr.bf16.mxu0 0
        %1230 = vmatpush1.bf16.xpose.msra.mxu0 0
        %1231 = vmatprep.subr.bf16.mxu0 0
        %1232 = vmatpush1.bf16.xpose.msra.mxu0 0
        %1233 = vmatprep.subr.bf16.mxu0 0
        %1234 = vmatpush1.bf16.xpose.msra.mxu0 0
        %1235 = vmatprep.subr.bf16.mxu0 0
        %1236 = vmatpush1.bf16.xpose.msra.mxu0 0
        %1237 = vmatprep.subr.bf16.mxu0 0
        %1238 = vmatpush1.bf16.xpose.msra.mxu0 0
        %1239 = vmatprep.subr.bf16.mxu0 0
        %1240 = vmatpush1.bf16.xpose.msra.mxu0 0
        %1241 = vmatprep.subr.bf16.mxu0 %v1224
        %1242 = vmatpush1.bf16.xpose.msra.mxu0 %v1223
        %1243 = vmatprep.subr.bf16.mxu0 0
        %1244 = vmatpush2.bf16.xpose.msra.mxu0 0
        %1245 = vmatprep.subr.bf16.mxu0 0
        %1246 = vmatpush2.bf16.xpose.msra.mxu0 0
        %1247 = vmatprep.subr.bf16.mxu0 0
        %1248 = vmatpush2.bf16.xpose.msra.mxu0 0
        %1249 = vmatprep.subr.bf16.mxu0 0
        %1250 = vmatpush2.bf16.xpose.msra.mxu0 0
        %1251 = vmatprep.subr.bf16.mxu0 0
        %1252 = vmatpush2.bf16.xpose.msra.mxu0 0
        %1253 = vmatprep.subr.bf16.mxu0 0
        %1254 = vmatpush2.bf16.xpose.msra.mxu0 0
        %1255 = vmatprep.subr.bf16.mxu0 0
        %1256 = vmatpush2.bf16.xpose.msra.mxu0 0
        %1257 = vmatprep.subr.bf16.mxu0 0
        %1258 = vmatpush2.bf16.xpose.msra.mxu0 0
        %1259 = vmatprep.mubr.bf16.mxu0 %v1214
        %1260 = vmatmul.mubr.bf16.gmra.mxu0 %v1213
        %v1261 = vpop.f32.mrf.mxu0
        %v1262 = vadd.f32 %v957, %v1261
        %v1263 = vpop.f32.mrf.mxu0
        %v1264 = vpop.f32.mrf.mxu0
        %v1265 = vadd.f32 %v960, %v1264
        %v1266 = vpop.f32.mrf.mxu0
        %1267 = vdwg.mxu0
        %v1270 = vunpack.c.l.b16 %v702
        %v1271 = vunpack.c.h.b16 %v702
        %v1272 = vunpack.c.l.b16 %v703
        %v1273 = vunpack.c.h.b16 %v703
        %v1274 = vpack.c.b16 %v1272, %v1270
        %v1275 = vpack.c.b16 %v1273, %v1271
        %v1280 = vunpack.c.l.b16 %v722
        %v1281 = vunpack.c.h.b16 %v722
        %v1282 = vunpack.c.l.b16 %v723
        %v1283 = vunpack.c.h.b16 %v723
        %v1284 = vpack.c.b16 %v1282, %v1280
        %v1285 = vpack.c.b16 %v1283, %v1281
        %1288 = vmatprep.subr.bf16.mxu0 0
        %1289 = vmatpush1.bf16.xpose.msra.mxu0 0
        %1290 = vmatprep.subr.bf16.mxu0 0
        %1291 = vmatpush1.bf16.xpose.msra.mxu0 0
        %1292 = vmatprep.subr.bf16.mxu0 0
        %1293 = vmatpush1.bf16.xpose.msra.mxu0 0
        %1294 = vmatprep.subr.bf16.mxu0 0
        %1295 = vmatpush1.bf16.xpose.msra.mxu0 0
        %1296 = vmatprep.subr.bf16.mxu0 0
        %1297 = vmatpush1.bf16.xpose.msra.mxu0 0
        %1298 = vmatprep.subr.bf16.mxu0 0
        %1299 = vmatpush1.bf16.xpose.msra.mxu0 0
        %1300 = vmatprep.subr.bf16.mxu0 0
        %1301 = vmatpush1.bf16.xpose.msra.mxu0 0
        %1302 = vmatprep.subr.bf16.mxu0 %v1285
        %1303 = vmatpush1.bf16.xpose.msra.mxu0 %v1284
        %1304 = vmatprep.subr.bf16.mxu0 0
        %1305 = vmatpush2.bf16.xpose.msra.mxu0 0
        %1306 = vmatprep.subr.bf16.mxu0 0
        %1307 = vmatpush2.bf16.xpose.msra.mxu0 0
        %1308 = vmatprep.subr.bf16.mxu0 0
        %1309 = vmatpush2.bf16.xpose.msra.mxu0 0
        %1310 = vmatprep.subr.bf16.mxu0 0
        %1311 = vmatpush2.bf16.xpose.msra.mxu0 0
        %1312 = vmatprep.subr.bf16.mxu0 0
        %1313 = vmatpush2.bf16.xpose.msra.mxu0 0
        %1314 = vmatprep.subr.bf16.mxu0 0
        %1315 = vmatpush2.bf16.xpose.msra.mxu0 0
        %1316 = vmatprep.subr.bf16.mxu0 0
        %1317 = vmatpush2.bf16.xpose.msra.mxu0 0
        %1318 = vmatprep.subr.bf16.mxu0 0
        %1319 = vmatpush2.bf16.xpose.msra.mxu0 0
        %1320 = vmatprep.mubr.bf16.mxu0 %v1275
        %1321 = vmatmul.mubr.bf16.gmra.mxu0 %v1274
        %v1322 = vpop.f32.mrf.mxu0
        %v1323 = vadd.f32 %v1018, %v1322
        %v1324 = vpop.f32.mrf.mxu0
        %v1325 = vpop.f32.mrf.mxu0
        %v1326 = vadd.f32 %v1021, %v1325
        %v1327 = vpop.f32.mrf.mxu0
        %1328 = vdwg.mxu0
        %v1331 = vunpack.c.l.b16 %v704
        %v1332 = vunpack.c.h.b16 %v704
        %v1333 = vunpack.c.l.b16 %v705
        %v1334 = vunpack.c.h.b16 %v705
        %v1335 = vpack.c.b16 %v1333, %v1331
        %v1336 = vpack.c.b16 %v1334, %v1332
        %v1341 = vunpack.c.l.b16 %v724
        %v1342 = vunpack.c.h.b16 %v724
        %v1343 = vunpack.c.l.b16 %v725
        %v1344 = vunpack.c.h.b16 %v725
        %v1345 = vpack.c.b16 %v1343, %v1341
        %v1346 = vpack.c.b16 %v1344, %v1342
        %1349 = vmatprep.subr.bf16.mxu0 0
        %1350 = vmatpush1.bf16.xpose.msra.mxu0 0
        %1351 = vmatprep.subr.bf16.mxu0 0
        %1352 = vmatpush1.bf16.xpose.msra.mxu0 0
        %1353 = vmatprep.subr.bf16.mxu0 0
        %1354 = vmatpush1.bf16.xpose.msra.mxu0 0
        %1355 = vmatprep.subr.bf16.mxu0 0
        %1356 = vmatpush1.bf16.xpose.msra.mxu0 0
        %1357 = vmatprep.subr.bf16.mxu0 0
        %1358 = vmatpush1.bf16.xpose.msra.mxu0 0
        %1359 = vmatprep.subr.bf16.mxu0 0
        %1360 = vmatpush1.bf16.xpose.msra.mxu0 0
        %1361 = vmatprep.subr.bf16.mxu0 0
        %1362 = vmatpush1.bf16.xpose.msra.mxu0 0
        %1363 = vmatprep.subr.bf16.mxu0 %v1346
        %1364 = vmatpush1.bf16.xpose.msra.mxu0 %v1345
        %1365 = vmatprep.subr.bf16.mxu0 0
        %1366 = vmatpush2.bf16.xpose.msra.mxu0 0
        %1367 = vmatprep.subr.bf16.mxu0 0
        %1368 = vmatpush2.bf16.xpose.msra.mxu0 0
        %1369 = vmatprep.subr.bf16.mxu0 0
        %1370 = vmatpush2.bf16.xpose.msra.mxu0 0
        %1371 = vmatprep.subr.bf16.mxu0 0
        %1372 = vmatpush2.bf16.xpose.msra.mxu0 0
        %1373 = vmatprep.subr.bf16.mxu0 0
        %1374 = vmatpush2.bf16.xpose.msra.mxu0 0
        %1375 = vmatprep.subr.bf16.mxu0 0
        %1376 = vmatpush2.bf16.xpose.msra.mxu0 0
        %1377 = vmatprep.subr.bf16.mxu0 0
        %1378 = vmatpush2.bf16.xpose.msra.mxu0 0
        %1379 = vmatprep.subr.bf16.mxu0 0
        %1380 = vmatpush2.bf16.xpose.msra.mxu0 0
        %1381 = vmatprep.mubr.bf16.mxu0 %v1336
        %1382 = vmatmul.mubr.bf16.gmra.mxu0 %v1335
        %v1383 = vpop.f32.mrf.mxu0
        %v1384 = vadd.f32 %v1079, %v1383
        %v1385 = vpop.f32.mrf.mxu0
        %v1386 = vpop.f32.mrf.mxu0
        %v1387 = vadd.f32 %v1082, %v1386
        %v1388 = vpop.f32.mrf.mxu0
        %1389 = vdwg.mxu0
        %v1392 = vunpack.c.l.b16 %v759
        %v1393 = vunpack.c.h.b16 %v759
        %v1394 = vunpack.c.l.b16 %v760
        %v1395 = vunpack.c.h.b16 %v760
        %v1396 = vpack.c.b16 %v1394, %v1392
        %v1397 = vpack.c.b16 %v1395, %v1393
        %1400 = vmatprep.subr.bf16.mxu0 0
        %1401 = vmatpush1.bf16.xpose.msra.mxu0 0
        %1402 = vmatprep.subr.bf16.mxu0 0
        %1403 = vmatpush1.bf16.xpose.msra.mxu0 0
        %1404 = vmatprep.subr.bf16.mxu0 0
        %1405 = vmatpush1.bf16.xpose.msra.mxu0 0
        %1406 = vmatprep.subr.bf16.mxu0 0
        %1407 = vmatpush1.bf16.xpose.msra.mxu0 0
        %1408 = vmatprep.subr.bf16.mxu0 0
        %1409 = vmatpush1.bf16.xpose.msra.mxu0 0
        %1410 = vmatprep.subr.bf16.mxu0 0
        %1411 = vmatpush1.bf16.xpose.msra.mxu0 0
        %1412 = vmatprep.subr.bf16.mxu0 0
        %1413 = vmatpush1.bf16.xpose.msra.mxu0 0
        %1414 = vmatprep.subr.bf16.mxu0 %v1397
        %1415 = vmatpush1.bf16.xpose.msra.mxu0 %v1396
        %1416 = vmatprep.subr.bf16.mxu0 0
        %1417 = vmatpush2.bf16.xpose.msra.mxu0 0
        %1418 = vmatprep.subr.bf16.mxu0 0
        %1419 = vmatpush2.bf16.xpose.msra.mxu0 0
        %1420 = vmatprep.subr.bf16.mxu0 0
        %1421 = vmatpush2.bf16.xpose.msra.mxu0 0
        %1422 = vmatprep.subr.bf16.mxu0 0
        %1423 = vmatpush2.bf16.xpose.msra.mxu0 0
        %1424 = vmatprep.subr.bf16.mxu0 0
        %1425 = vmatpush2.bf16.xpose.msra.mxu0 0
        %1426 = vmatprep.subr.bf16.mxu0 0
        %1427 = vmatpush2.bf16.xpose.msra.mxu0 0
        %1428 = vmatprep.subr.bf16.mxu0 0
        %1429 = vmatpush2.bf16.xpose.msra.mxu0 0
        %1430 = vmatprep.subr.bf16.mxu0 0
        %1431 = vmatpush2.bf16.xpose.msra.mxu0 0
        %1432 = vmatprep.mubr.bf16.mxu0 %v787
        %1433 = vmatmul.mubr.bf16.gmra.mxu0 %v786
        %v1434 = vpop.f32.mrf.mxu0
        %v1435 = vadd.f32 0.0, %v1434
        %v1436 = vpop.f32.mrf.mxu0
        %v1437 = vpop.f32.mrf.mxu0
        %v1438 = vadd.f32 0.0, %v1437
        %v1439 = vpop.f32.mrf.mxu0
        %1440 = vdwg.mxu0
        %v1443 = vunpack.c.l.b16 %v761
        %v1444 = vunpack.c.h.b16 %v761
        %v1445 = vunpack.c.l.b16 %v762
        %v1446 = vunpack.c.h.b16 %v762
        %v1447 = vpack.c.b16 %v1445, %v1443
        %v1448 = vpack.c.b16 %v1446, %v1444
        %1451 = vmatprep.subr.bf16.mxu0 0
        %1452 = vmatpush1.bf16.xpose.msra.mxu0 0
        %1453 = vmatprep.subr.bf16.mxu0 0
        %1454 = vmatpush1.bf16.xpose.msra.mxu0 0
        %1455 = vmatprep.subr.bf16.mxu0 0
        %1456 = vmatpush1.bf16.xpose.msra.mxu0 0
        %1457 = vmatprep.subr.bf16.mxu0 0
        %1458 = vmatpush1.bf16.xpose.msra.mxu0 0
        %1459 = vmatprep.subr.bf16.mxu0 0
        %1460 = vmatpush1.bf16.xpose.msra.mxu0 0
        %1461 = vmatprep.subr.bf16.mxu0 0
        %1462 = vmatpush1.bf16.xpose.msra.mxu0 0
        %1463 = vmatprep.subr.bf16.mxu0 0
        %1464 = vmatpush1.bf16.xpose.msra.mxu0 0
        %1465 = vmatprep.subr.bf16.mxu0 %v1448
        %1466 = vmatpush1.bf16.xpose.msra.mxu0 %v1447
        %1467 = vmatprep.subr.bf16.mxu0 0
        %1468 = vmatpush2.bf16.xpose.msra.mxu0 0
        %1469 = vmatprep.subr.bf16.mxu0 0
        %1470 = vmatpush2.bf16.xpose.msra.mxu0 0
        %1471 = vmatprep.subr.bf16.mxu0 0
        %1472 = vmatpush2.bf16.xpose.msra.mxu0 0
        %1473 = vmatprep.subr.bf16.mxu0 0
        %1474 = vmatpush2.bf16.xpose.msra.mxu0 0
        %1475 = vmatprep.subr.bf16.mxu0 0
        %1476 = vmatpush2.bf16.xpose.msra.mxu0 0
        %1477 = vmatprep.subr.bf16.mxu0 0
        %1478 = vmatpush2.bf16.xpose.msra.mxu0 0
        %1479 = vmatprep.subr.bf16.mxu0 0
        %1480 = vmatpush2.bf16.xpose.msra.mxu0 0
        %1481 = vmatprep.subr.bf16.mxu0 0
        %1482 = vmatpush2.bf16.xpose.msra.mxu0 0
        %1483 = vmatprep.mubr.bf16.mxu0 %v848
        %1484 = vmatmul.mubr.bf16.gmra.mxu0 %v847
        %v1485 = vpop.f32.mrf.mxu0
        %v1486 = vadd.f32 0.0, %v1485
        %v1487 = vpop.f32.mrf.mxu0
        %v1488 = vpop.f32.mrf.mxu0
        %v1489 = vadd.f32 0.0, %v1488
        %v1490 = vpop.f32.mrf.mxu0
        %1491 = vdwg.mxu0
        %v1494 = vunpack.c.l.b16 %v763
        %v1495 = vunpack.c.h.b16 %v763
        %v1496 = vunpack.c.l.b16 %v764
        %v1497 = vunpack.c.h.b16 %v764
        %v1498 = vpack.c.b16 %v1496, %v1494
        %v1499 = vpack.c.b16 %v1497, %v1495
        %1502 = vmatprep.subr.bf16.mxu0 0
        %1503 = vmatpush1.bf16.xpose.msra.mxu0 0
        %1504 = vmatprep.subr.bf16.mxu0 0
        %1505 = vmatpush1.bf16.xpose.msra.mxu0 0
        %1506 = vmatprep.subr.bf16.mxu0 0
        %1507 = vmatpush1.bf16.xpose.msra.mxu0 0
        %1508 = vmatprep.subr.bf16.mxu0 0
        %1509 = vmatpush1.bf16.xpose.msra.mxu0 0
        %1510 = vmatprep.subr.bf16.mxu0 0
        %1511 = vmatpush1.bf16.xpose.msra.mxu0 0
        %1512 = vmatprep.subr.bf16.mxu0 0
        %1513 = vmatpush1.bf16.xpose.msra.mxu0 0
        %1514 = vmatprep.subr.bf16.mxu0 0
        %1515 = vmatpush1.bf16.xpose.msra.mxu0 0
        %1516 = vmatprep.subr.bf16.mxu0 %v1499
        %1517 = vmatpush1.bf16.xpose.msra.mxu0 %v1498
        %1518 = vmatprep.subr.bf16.mxu0 0
        %1519 = vmatpush2.bf16.xpose.msra.mxu0 0
        %1520 = vmatprep.subr.bf16.mxu0 0
        %1521 = vmatpush2.bf16.xpose.msra.mxu0 0
        %1522 = vmatprep.subr.bf16.mxu0 0
        %1523 = vmatpush2.bf16.xpose.msra.mxu0 0
        %1524 = vmatprep.subr.bf16.mxu0 0
        %1525 = vmatpush2.bf16.xpose.msra.mxu0 0
        %1526 = vmatprep.subr.bf16.mxu0 0
        %1527 = vmatpush2.bf16.xpose.msra.mxu0 0
        %1528 = vmatprep.subr.bf16.mxu0 0
        %1529 = vmatpush2.bf16.xpose.msra.mxu0 0
        %1530 = vmatprep.subr.bf16.mxu0 0
        %1531 = vmatpush2.bf16.xpose.msra.mxu0 0
        %1532 = vmatprep.subr.bf16.mxu0 0
        %1533 = vmatpush2.bf16.xpose.msra.mxu0 0
        %1534 = vmatprep.mubr.bf16.mxu0 %v909
        %1535 = vmatmul.mubr.bf16.gmra.mxu0 %v908
        %v1536 = vpop.f32.mrf.mxu0
        %v1537 = vadd.f32 0.0, %v1536
        %v1538 = vpop.f32.mrf.mxu0
        %v1539 = vpop.f32.mrf.mxu0
        %v1540 = vadd.f32 0.0, %v1539
        %v1541 = vpop.f32.mrf.mxu0
        %1542 = vdwg.mxu0
        %v1545 = vunpack.c.l.b16 %v765
        %v1546 = vunpack.c.h.b16 %v765
        %v1547 = vunpack.c.l.b16 %v766
        %v1548 = vunpack.c.h.b16 %v766
        %v1549 = vpack.c.b16 %v1547, %v1545
        %v1550 = vpack.c.b16 %v1548, %v1546
        %1553 = vmatprep.subr.bf16.mxu0 0
        %1554 = vmatpush1.bf16.xpose.msra.mxu0 0
        %1555 = vmatprep.subr.bf16.mxu0 0
        %1556 = vmatpush1.bf16.xpose.msra.mxu0 0
        %1557 = vmatprep.subr.bf16.mxu0 0
        %1558 = vmatpush1.bf16.xpose.msra.mxu0 0
        %1559 = vmatprep.subr.bf16.mxu0 0
        %1560 = vmatpush1.bf16.xpose.msra.mxu0 0
        %1561 = vmatprep.subr.bf16.mxu0 0
        %1562 = vmatpush1.bf16.xpose.msra.mxu0 0
        %1563 = vmatprep.subr.bf16.mxu0 0
        %1564 = vmatpush1.bf16.xpose.msra.mxu0 0
        %1565 = vmatprep.subr.bf16.mxu0 0
        %1566 = vmatpush1.bf16.xpose.msra.mxu0 0
        %1567 = vmatprep.subr.bf16.mxu0 %v1550
        %1568 = vmatpush1.bf16.xpose.msra.mxu0 %v1549
        %1569 = vmatprep.subr.bf16.mxu0 0
        %1570 = vmatpush2.bf16.xpose.msra.mxu0 0
        %1571 = vmatprep.subr.bf16.mxu0 0
        %1572 = vmatpush2.bf16.xpose.msra.mxu0 0
        %1573 = vmatprep.subr.bf16.mxu0 0
        %1574 = vmatpush2.bf16.xpose.msra.mxu0 0
        %1575 = vmatprep.subr.bf16.mxu0 0
        %1576 = vmatpush2.bf16.xpose.msra.mxu0 0
        %1577 = vmatprep.subr.bf16.mxu0 0
        %1578 = vmatpush2.bf16.xpose.msra.mxu0 0
        %1579 = vmatprep.subr.bf16.mxu0 0
        %1580 = vmatpush2.bf16.xpose.msra.mxu0 0
        %1581 = vmatprep.subr.bf16.mxu0 0
        %1582 = vmatpush2.bf16.xpose.msra.mxu0 0
        %1583 = vmatprep.subr.bf16.mxu0 0
        %1584 = vmatpush2.bf16.xpose.msra.mxu0 0
        %1585 = vmatprep.mubr.bf16.mxu0 %v970
        %1586 = vmatmul.mubr.bf16.gmra.mxu0 %v969
        %v1587 = vpop.f32.mrf.mxu0
        %v1588 = vadd.f32 0.0, %v1587
        %v1589 = vpop.f32.mrf.mxu0
        %v1590 = vpop.f32.mrf.mxu0
        %v1591 = vadd.f32 0.0, %v1590
        %v1592 = vpop.f32.mrf.mxu0
        %1593 = vdwg.mxu0
        %v1596 = vunpack.c.l.b16 %v767
        %v1597 = vunpack.c.h.b16 %v767
        %v1598 = vunpack.c.l.b16 %v768
        %v1599 = vunpack.c.h.b16 %v768
        %v1600 = vpack.c.b16 %v1598, %v1596
        %v1601 = vpack.c.b16 %v1599, %v1597
        %1604 = vmatprep.subr.bf16.mxu0 0
        %1605 = vmatpush1.bf16.xpose.msra.mxu0 0
        %1606 = vmatprep.subr.bf16.mxu0 0
        %1607 = vmatpush1.bf16.xpose.msra.mxu0 0
        %1608 = vmatprep.subr.bf16.mxu0 0
        %1609 = vmatpush1.bf16.xpose.msra.mxu0 0
        %1610 = vmatprep.subr.bf16.mxu0 0
        %1611 = vmatpush1.bf16.xpose.msra.mxu0 0
        %1612 = vmatprep.subr.bf16.mxu0 0
        %1613 = vmatpush1.bf16.xpose.msra.mxu0 0
        %1614 = vmatprep.subr.bf16.mxu0 0
        %1615 = vmatpush1.bf16.xpose.msra.mxu0 0
        %1616 = vmatprep.subr.bf16.mxu0 0
        %1617 = vmatpush1.bf16.xpose.msra.mxu0 0
        %1618 = vmatprep.subr.bf16.mxu0 %v1601
        %1619 = vmatpush1.bf16.xpose.msra.mxu0 %v1600
        %1620 = vmatprep.subr.bf16.mxu0 0
        %1621 = vmatpush2.bf16.xpose.msra.mxu0 0
        %1622 = vmatprep.subr.bf16.mxu0 0
        %1623 = vmatpush2.bf16.xpose.msra.mxu0 0
        %1624 = vmatprep.subr.bf16.mxu0 0
        %1625 = vmatpush2.bf16.xpose.msra.mxu0 0
        %1626 = vmatprep.subr.bf16.mxu0 0
        %1627 = vmatpush2.bf16.xpose.msra.mxu0 0
        %1628 = vmatprep.subr.bf16.mxu0 0
        %1629 = vmatpush2.bf16.xpose.msra.mxu0 0
        %1630 = vmatprep.subr.bf16.mxu0 0
        %1631 = vmatpush2.bf16.xpose.msra.mxu0 0
        %1632 = vmatprep.subr.bf16.mxu0 0
        %1633 = vmatpush2.bf16.xpose.msra.mxu0 0
        %1634 = vmatprep.subr.bf16.mxu0 0
        %1635 = vmatpush2.bf16.xpose.msra.mxu0 0
        %1636 = vmatprep.mubr.bf16.mxu0 %v1031
        %1637 = vmatmul.mubr.bf16.gmra.mxu0 %v1030
        %v1638 = vpop.f32.mrf.mxu0
        %v1639 = vadd.f32 0.0, %v1638
        %v1640 = vpop.f32.mrf.mxu0
        %v1641 = vpop.f32.mrf.mxu0
        %v1642 = vadd.f32 0.0, %v1641
        %v1643 = vpop.f32.mrf.mxu0
        %1644 = vdwg.mxu0
        %v1647 = vunpack.c.l.b16 %v727
        %v1648 = vunpack.c.h.b16 %v727
        %v1649 = vunpack.c.l.b16 %v728
        %v1650 = vunpack.c.h.b16 %v728
        %v1651 = vpack.c.b16 %v1649, %v1647
        %v1652 = vpack.c.b16 %v1650, %v1648
        %1655 = vmatprep.subr.bf16.mxu0 0
        %1656 = vmatpush1.bf16.xpose.msra.mxu0 0
        %1657 = vmatprep.subr.bf16.mxu0 0
        %1658 = vmatpush1.bf16.xpose.msra.mxu0 0
        %1659 = vmatprep.subr.bf16.mxu0 0
        %1660 = vmatpush1.bf16.xpose.msra.mxu0 0
        %1661 = vmatprep.subr.bf16.mxu0 0
        %1662 = vmatpush1.bf16.xpose.msra.mxu0 0
        %1663 = vmatprep.subr.bf16.mxu0 0
        %1664 = vmatpush1.bf16.xpose.msra.mxu0 0
        %1665 = vmatprep.subr.bf16.mxu0 0
        %1666 = vmatpush1.bf16.xpose.msra.mxu0 0
        %1667 = vmatprep.subr.bf16.mxu0 0
        %1668 = vmatpush1.bf16.xpose.msra.mxu0 0
        %1669 = vmatprep.subr.bf16.mxu0 %v1652
        %1670 = vmatpush1.bf16.xpose.msra.mxu0 %v1651
        %1671 = vmatprep.subr.bf16.mxu0 0
        %1672 = vmatpush2.bf16.xpose.msra.mxu0 0
        %1673 = vmatprep.subr.bf16.mxu0 0
        %1674 = vmatpush2.bf16.xpose.msra.mxu0 0
        %1675 = vmatprep.subr.bf16.mxu0 0
        %1676 = vmatpush2.bf16.xpose.msra.mxu0 0
        %1677 = vmatprep.subr.bf16.mxu0 0
        %1678 = vmatpush2.bf16.xpose.msra.mxu0 0
        %1679 = vmatprep.subr.bf16.mxu0 0
        %1680 = vmatpush2.bf16.xpose.msra.mxu0 0
        %1681 = vmatprep.subr.bf16.mxu0 0
        %1682 = vmatpush2.bf16.xpose.msra.mxu0 0
        %1683 = vmatprep.subr.bf16.mxu0 0
        %1684 = vmatpush2.bf16.xpose.msra.mxu0 0
        %1685 = vmatprep.subr.bf16.mxu0 0
        %1686 = vmatpush2.bf16.xpose.msra.mxu0 0
        %1687 = vmatprep.mubr.bf16.mxu0 %v1092
        %1688 = vmatmul.mubr.bf16.gmra.mxu0 %v1091
        %v1689 = vpop.f32.mrf.mxu0
        %v1690 = vadd.f32 %v1435, %v1689
        %v1691 = vpop.f32.mrf.mxu0
        %v1692 = vpop.f32.mrf.mxu0
        %v1693 = vadd.f32 %v1438, %v1692
        %v1694 = vpop.f32.mrf.mxu0
        %1695 = vdwg.mxu0
        %v1698 = vunpack.c.l.b16 %v729
        %v1699 = vunpack.c.h.b16 %v729
        %v1700 = vunpack.c.l.b16 %v730
        %v1701 = vunpack.c.h.b16 %v730
        %v1702 = vpack.c.b16 %v1700, %v1698
        %v1703 = vpack.c.b16 %v1701, %v1699
        %1706 = vmatprep.subr.bf16.mxu0 0
        %1707 = vmatpush1.bf16.xpose.msra.mxu0 0
        %1708 = vmatprep.subr.bf16.mxu0 0
        %1709 = vmatpush1.bf16.xpose.msra.mxu0 0
        %1710 = vmatprep.subr.bf16.mxu0 0
        %1711 = vmatpush1.bf16.xpose.msra.mxu0 0
        %1712 = vmatprep.subr.bf16.mxu0 0
        %1713 = vmatpush1.bf16.xpose.msra.mxu0 0
        %1714 = vmatprep.subr.bf16.mxu0 0
        %1715 = vmatpush1.bf16.xpose.msra.mxu0 0
        %1716 = vmatprep.subr.bf16.mxu0 0
        %1717 = vmatpush1.bf16.xpose.msra.mxu0 0
        %1718 = vmatprep.subr.bf16.mxu0 0
        %1719 = vmatpush1.bf16.xpose.msra.mxu0 0
        %1720 = vmatprep.subr.bf16.mxu0 %v1703
        %1721 = vmatpush1.bf16.xpose.msra.mxu0 %v1702
        %1722 = vmatprep.subr.bf16.mxu0 0
        %1723 = vmatpush2.bf16.xpose.msra.mxu0 0
        %1724 = vmatprep.subr.bf16.mxu0 0
        %1725 = vmatpush2.bf16.xpose.msra.mxu0 0
        %1726 = vmatprep.subr.bf16.mxu0 0
        %1727 = vmatpush2.bf16.xpose.msra.mxu0 0
        %1728 = vmatprep.subr.bf16.mxu0 0
        %1729 = vmatpush2.bf16.xpose.msra.mxu0 0
        %1730 = vmatprep.subr.bf16.mxu0 0
        %1731 = vmatpush2.bf16.xpose.msra.mxu0 0
        %1732 = vmatprep.subr.bf16.mxu0 0
        %1733 = vmatpush2.bf16.xpose.msra.mxu0 0
        %1734 = vmatprep.subr.bf16.mxu0 0
        %1735 = vmatpush2.bf16.xpose.msra.mxu0 0
        %1736 = vmatprep.subr.bf16.mxu0 0
        %1737 = vmatpush2.bf16.xpose.msra.mxu0 0
        %1738 = vmatprep.mubr.bf16.mxu0 %v1153
        %1739 = vmatmul.mubr.bf16.gmra.mxu0 %v1152
        %v1740 = vpop.f32.mrf.mxu0
        %v1741 = vadd.f32 %v1486, %v1740
        %v1742 = vpop.f32.mrf.mxu0
        %v1743 = vpop.f32.mrf.mxu0
        %v1744 = vadd.f32 %v1489, %v1743
        %v1745 = vpop.f32.mrf.mxu0
        %1746 = vdwg.mxu0
        %v1749 = vunpack.c.l.b16 %v731
        %v1750 = vunpack.c.h.b16 %v731
        %v1751 = vunpack.c.l.b16 %v732
        %v1752 = vunpack.c.h.b16 %v732
        %v1753 = vpack.c.b16 %v1751, %v1749
        %v1754 = vpack.c.b16 %v1752, %v1750
        %1757 = vmatprep.subr.bf16.mxu0 0
        %1758 = vmatpush1.bf16.xpose.msra.mxu0 0
        %1759 = vmatprep.subr.bf16.mxu0 0
        %1760 = vmatpush1.bf16.xpose.msra.mxu0 0
        %1761 = vmatprep.subr.bf16.mxu0 0
        %1762 = vmatpush1.bf16.xpose.msra.mxu0 0
        %1763 = vmatprep.subr.bf16.mxu0 0
        %1764 = vmatpush1.bf16.xpose.msra.mxu0 0
        %1765 = vmatprep.subr.bf16.mxu0 0
        %1766 = vmatpush1.bf16.xpose.msra.mxu0 0
        %1767 = vmatprep.subr.bf16.mxu0 0
        %1768 = vmatpush1.bf16.xpose.msra.mxu0 0
        %1769 = vmatprep.subr.bf16.mxu0 0
        %1770 = vmatpush1.bf16.xpose.msra.mxu0 0
        %1771 = vmatprep.subr.bf16.mxu0 %v1754
        %1772 = vmatpush1.bf16.xpose.msra.mxu0 %v1753
        %1773 = vmatprep.subr.bf16.mxu0 0
        %1774 = vmatpush2.bf16.xpose.msra.mxu0 0
        %1775 = vmatprep.subr.bf16.mxu0 0
        %1776 = vmatpush2.bf16.xpose.msra.mxu0 0
        %1777 = vmatprep.subr.bf16.mxu0 0
        %1778 = vmatpush2.bf16.xpose.msra.mxu0 0
        %1779 = vmatprep.subr.bf16.mxu0 0
        %1780 = vmatpush2.bf16.xpose.msra.mxu0 0
        %1781 = vmatprep.subr.bf16.mxu0 0
        %1782 = vmatpush2.bf16.xpose.msra.mxu0 0
        %1783 = vmatprep.subr.bf16.mxu0 0
        %1784 = vmatpush2.bf16.xpose.msra.mxu0 0
        %1785 = vmatprep.subr.bf16.mxu0 0
        %1786 = vmatpush2.bf16.xpose.msra.mxu0 0
        %1787 = vmatprep.subr.bf16.mxu0 0
        %1788 = vmatpush2.bf16.xpose.msra.mxu0 0
        %1789 = vmatprep.mubr.bf16.mxu0 %v1214
        %1790 = vmatmul.mubr.bf16.gmra.mxu0 %v1213
        %v1791 = vpop.f32.mrf.mxu0
        %v1792 = vadd.f32 %v1537, %v1791
        %v1793 = vpop.f32.mrf.mxu0
        %v1794 = vpop.f32.mrf.mxu0
        %v1795 = vadd.f32 %v1540, %v1794
        %v1796 = vpop.f32.mrf.mxu0
        %1797 = vdwg.mxu0
        %v1800 = vunpack.c.l.b16 %v733
        %v1801 = vunpack.c.h.b16 %v733
        %v1802 = vunpack.c.l.b16 %v734
        %v1803 = vunpack.c.h.b16 %v734
        %v1804 = vpack.c.b16 %v1802, %v1800
        %v1805 = vpack.c.b16 %v1803, %v1801
        %1808 = vmatprep.subr.bf16.mxu0 0
        %1809 = vmatpush1.bf16.xpose.msra.mxu0 0
        %1810 = vmatprep.subr.bf16.mxu0 0
        %1811 = vmatpush1.bf16.xpose.msra.mxu0 0
        %1812 = vmatprep.subr.bf16.mxu0 0
        %1813 = vmatpush1.bf16.xpose.msra.mxu0 0
        %1814 = vmatprep.subr.bf16.mxu0 0
        %1815 = vmatpush1.bf16.xpose.msra.mxu0 0
        %1816 = vmatprep.subr.bf16.mxu0 0
        %1817 = vmatpush1.bf16.xpose.msra.mxu0 0
        %1818 = vmatprep.subr.bf16.mxu0 0
        %1819 = vmatpush1.bf16.xpose.msra.mxu0 0
        %1820 = vmatprep.subr.bf16.mxu0 0
        %1821 = vmatpush1.bf16.xpose.msra.mxu0 0
        %1822 = vmatprep.subr.bf16.mxu0 %v1805
        %1823 = vmatpush1.bf16.xpose.msra.mxu0 %v1804
        %1824 = vmatprep.subr.bf16.mxu0 0
        %1825 = vmatpush2.bf16.xpose.msra.mxu0 0
        %1826 = vmatprep.subr.bf16.mxu0 0
        %1827 = vmatpush2.bf16.xpose.msra.mxu0 0
        %1828 = vmatprep.subr.bf16.mxu0 0
        %1829 = vmatpush2.bf16.xpose.msra.mxu0 0
        %1830 = vmatprep.subr.bf16.mxu0 0
        %1831 = vmatpush2.bf16.xpose.msra.mxu0 0
        %1832 = vmatprep.subr.bf16.mxu0 0
        %1833 = vmatpush2.bf16.xpose.msra.mxu0 0
        %1834 = vmatprep.subr.bf16.mxu0 0
        %1835 = vmatpush2.bf16.xpose.msra.mxu0 0
        %1836 = vmatprep.subr.bf16.mxu0 0
        %1837 = vmatpush2.bf16.xpose.msra.mxu0 0
        %1838 = vmatprep.subr.bf16.mxu0 0
        %1839 = vmatpush2.bf16.xpose.msra.mxu0 0
        %1840 = vmatprep.mubr.bf16.mxu0 %v1275
        %1841 = vmatmul.mubr.bf16.gmra.mxu0 %v1274
        %v1842 = vpop.f32.mrf.mxu0
        %v1843 = vadd.f32 %v1588, %v1842
        %v1844 = vpop.f32.mrf.mxu0
        %v1845 = vpop.f32.mrf.mxu0
        %v1846 = vadd.f32 %v1591, %v1845
        %v1847 = vpop.f32.mrf.mxu0
        %1848 = vdwg.mxu0
        %v1851 = vunpack.c.l.b16 %v735
        %v1852 = vunpack.c.h.b16 %v735
        %v1853 = vunpack.c.l.b16 %v736
        %v1854 = vunpack.c.h.b16 %v736
        %v1855 = vpack.c.b16 %v1853, %v1851
        %v1856 = vpack.c.b16 %v1854, %v1852
        %1859 = vmatprep.subr.bf16.mxu0 0
        %1860 = vmatpush1.bf16.xpose.msra.mxu0 0
        %1861 = vmatprep.subr.bf16.mxu0 0
        %1862 = vmatpush1.bf16.xpose.msra.mxu0 0
        %1863 = vmatprep.subr.bf16.mxu0 0
        %1864 = vmatpush1.bf16.xpose.msra.mxu0 0
        %1865 = vmatprep.subr.bf16.mxu0 0
        %1866 = vmatpush1.bf16.xpose.msra.mxu0 0
        %1867 = vmatprep.subr.bf16.mxu0 0
        %1868 = vmatpush1.bf16.xpose.msra.mxu0 0
        %1869 = vmatprep.subr.bf16.mxu0 0
        %1870 = vmatpush1.bf16.xpose.msra.mxu0 0
        %1871 = vmatprep.subr.bf16.mxu0 0
        %1872 = vmatpush1.bf16.xpose.msra.mxu0 0
        %1873 = vmatprep.subr.bf16.mxu0 %v1856
        %1874 = vmatpush1.bf16.xpose.msra.mxu0 %v1855
        %1875 = vmatprep.subr.bf16.mxu0 0
        %1876 = vmatpush2.bf16.xpose.msra.mxu0 0
        %1877 = vmatprep.subr.bf16.mxu0 0
        %1878 = vmatpush2.bf16.xpose.msra.mxu0 0
        %1879 = vmatprep.subr.bf16.mxu0 0
        %1880 = vmatpush2.bf16.xpose.msra.mxu0 0
        %1881 = vmatprep.subr.bf16.mxu0 0
        %1882 = vmatpush2.bf16.xpose.msra.mxu0 0
        %1883 = vmatprep.subr.bf16.mxu0 0
        %1884 = vmatpush2.bf16.xpose.msra.mxu0 0
        %1885 = vmatprep.subr.bf16.mxu0 0
        %1886 = vmatpush2.bf16.xpose.msra.mxu0 0
        %1887 = vmatprep.subr.bf16.mxu0 0
        %1888 = vmatpush2.bf16.xpose.msra.mxu0 0
        %1889 = vmatprep.subr.bf16.mxu0 0
        %1890 = vmatpush2.bf16.xpose.msra.mxu0 0
        %1891 = vmatprep.mubr.bf16.mxu0 %v1336
        %1892 = vmatmul.mubr.bf16.gmra.mxu0 %v1335
        %v1893 = vpop.f32.mrf.mxu0
        %v1894 = vadd.f32 %v1639, %v1893
        %v1895 = vpop.f32.mrf.mxu0
        %v1896 = vpop.f32.mrf.mxu0
        %v1897 = vadd.f32 %v1642, %v1896
        %v1898 = vpop.f32.mrf.mxu0
        %1899 = vdwg.mxu0
        %v1902 = vunpack.c.l.b16 %v770
        %v1903 = vunpack.c.h.b16 %v770
        %v1904 = vunpack.c.l.b16 %v771
        %v1905 = vunpack.c.h.b16 %v771
        %v1906 = vpack.c.b16 %v1904, %v1902
        %v1907 = vpack.c.b16 %v1905, %v1903
        %1910 = vmatprep.subr.bf16.mxu0 0
        %1911 = vmatpush1.bf16.xpose.msra.mxu0 0
        %1912 = vmatprep.subr.bf16.mxu0 0
        %1913 = vmatpush1.bf16.xpose.msra.mxu0 0
        %1914 = vmatprep.subr.bf16.mxu0 0
        %1915 = vmatpush1.bf16.xpose.msra.mxu0 0
        %1916 = vmatprep.subr.bf16.mxu0 0
        %1917 = vmatpush1.bf16.xpose.msra.mxu0 0
        %1918 = vmatprep.subr.bf16.mxu0 0
        %1919 = vmatpush1.bf16.xpose.msra.mxu0 0
        %1920 = vmatprep.subr.bf16.mxu0 0
        %1921 = vmatpush1.bf16.xpose.msra.mxu0 0
        %1922 = vmatprep.subr.bf16.mxu0 0
        %1923 = vmatpush1.bf16.xpose.msra.mxu0 0
        %1924 = vmatprep.subr.bf16.mxu0 %v1907
        %1925 = vmatpush1.bf16.xpose.msra.mxu0 %v1906
        %1926 = vmatprep.subr.bf16.mxu0 0
        %1927 = vmatpush2.bf16.xpose.msra.mxu0 0
        %1928 = vmatprep.subr.bf16.mxu0 0
        %1929 = vmatpush2.bf16.xpose.msra.mxu0 0
        %1930 = vmatprep.subr.bf16.mxu0 0
        %1931 = vmatpush2.bf16.xpose.msra.mxu0 0
        %1932 = vmatprep.subr.bf16.mxu0 0
        %1933 = vmatpush2.bf16.xpose.msra.mxu0 0
        %1934 = vmatprep.subr.bf16.mxu0 0
        %1935 = vmatpush2.bf16.xpose.msra.mxu0 0
        %1936 = vmatprep.subr.bf16.mxu0 0
        %1937 = vmatpush2.bf16.xpose.msra.mxu0 0
        %1938 = vmatprep.subr.bf16.mxu0 0
        %1939 = vmatpush2.bf16.xpose.msra.mxu0 0
        %1940 = vmatprep.subr.bf16.mxu0 0
        %1941 = vmatpush2.bf16.xpose.msra.mxu0 0
        %1942 = vmatprep.mubr.bf16.mxu0 %v787
        %1943 = vmatmul.mubr.bf16.gmra.mxu0 %v786
        %v1944 = vpop.f32.mrf.mxu0
        %v1945 = vadd.f32 0.0, %v1944
        %v1946 = vpop.f32.mrf.mxu0
        %v1947 = vpop.f32.mrf.mxu0
        %v1948 = vadd.f32 0.0, %v1947
        %v1949 = vpop.f32.mrf.mxu0
        %1950 = vdwg.mxu0
        %v1953 = vunpack.c.l.b16 %v772
        %v1954 = vunpack.c.h.b16 %v772
        %v1955 = vunpack.c.l.b16 %v773
        %v1956 = vunpack.c.h.b16 %v773
        %v1957 = vpack.c.b16 %v1955, %v1953
        %v1958 = vpack.c.b16 %v1956, %v1954
        %1961 = vmatprep.subr.bf16.mxu0 0
        %1962 = vmatpush1.bf16.xpose.msra.mxu0 0
        %1963 = vmatprep.subr.bf16.mxu0 0
        %1964 = vmatpush1.bf16.xpose.msra.mxu0 0
        %1965 = vmatprep.subr.bf16.mxu0 0
        %1966 = vmatpush1.bf16.xpose.msra.mxu0 0
        %1967 = vmatprep.subr.bf16.mxu0 0
        %1968 = vmatpush1.bf16.xpose.msra.mxu0 0
        %1969 = vmatprep.subr.bf16.mxu0 0
        %1970 = vmatpush1.bf16.xpose.msra.mxu0 0
        %1971 = vmatprep.subr.bf16.mxu0 0
        %1972 = vmatpush1.bf16.xpose.msra.mxu0 0
        %1973 = vmatprep.subr.bf16.mxu0 0
        %1974 = vmatpush1.bf16.xpose.msra.mxu0 0
        %1975 = vmatprep.subr.bf16.mxu0 %v1958
        %1976 = vmatpush1.bf16.xpose.msra.mxu0 %v1957
        %1977 = vmatprep.subr.bf16.mxu0 0
        %1978 = vmatpush2.bf16.xpose.msra.mxu0 0
        %1979 = vmatprep.subr.bf16.mxu0 0
        %1980 = vmatpush2.bf16.xpose.msra.mxu0 0
        %1981 = vmatprep.subr.bf16.mxu0 0
        %1982 = vmatpush2.bf16.xpose.msra.mxu0 0
        %1983 = vmatprep.subr.bf16.mxu0 0
        %1984 = vmatpush2.bf16.xpose.msra.mxu0 0
        %1985 = vmatprep.subr.bf16.mxu0 0
        %1986 = vmatpush2.bf16.xpose.msra.mxu0 0
        %1987 = vmatprep.subr.bf16.mxu0 0
        %1988 = vmatpush2.bf16.xpose.msra.mxu0 0
        %1989 = vmatprep.subr.bf16.mxu0 0
        %1990 = vmatpush2.bf16.xpose.msra.mxu0 0
        %1991 = vmatprep.subr.bf16.mxu0 0
        %1992 = vmatpush2.bf16.xpose.msra.mxu0 0
        %1993 = vmatprep.mubr.bf16.mxu0 %v848
        %1994 = vmatmul.mubr.bf16.gmra.mxu0 %v847
        %v1995 = vpop.f32.mrf.mxu0
        %v1996 = vadd.f32 0.0, %v1995
        %v1997 = vpop.f32.mrf.mxu0
        %v1998 = vpop.f32.mrf.mxu0
        %v1999 = vadd.f32 0.0, %v1998
        %v2000 = vpop.f32.mrf.mxu0
        %2001 = vdwg.mxu0
        %v2004 = vunpack.c.l.b16 %v774
        %v2005 = vunpack.c.h.b16 %v774
        %v2006 = vunpack.c.l.b16 %v775
        %v2007 = vunpack.c.h.b16 %v775
        %v2008 = vpack.c.b16 %v2006, %v2004
        %v2009 = vpack.c.b16 %v2007, %v2005
        %2012 = vmatprep.subr.bf16.mxu0 0
        %2013 = vmatpush1.bf16.xpose.msra.mxu0 0
        %2014 = vmatprep.subr.bf16.mxu0 0
        %2015 = vmatpush1.bf16.xpose.msra.mxu0 0
        %2016 = vmatprep.subr.bf16.mxu0 0
        %2017 = vmatpush1.bf16.xpose.msra.mxu0 0
        %2018 = vmatprep.subr.bf16.mxu0 0
        %2019 = vmatpush1.bf16.xpose.msra.mxu0 0
        %2020 = vmatprep.subr.bf16.mxu0 0
        %2021 = vmatpush1.bf16.xpose.msra.mxu0 0
        %2022 = vmatprep.subr.bf16.mxu0 0
        %2023 = vmatpush1.bf16.xpose.msra.mxu0 0
        %2024 = vmatprep.subr.bf16.mxu0 0
        %2025 = vmatpush1.bf16.xpose.msra.mxu0 0
        %2026 = vmatprep.subr.bf16.mxu0 %v2009
        %2027 = vmatpush1.bf16.xpose.msra.mxu0 %v2008
        %2028 = vmatprep.subr.bf16.mxu0 0
        %2029 = vmatpush2.bf16.xpose.msra.mxu0 0
        %2030 = vmatprep.subr.bf16.mxu0 0
        %2031 = vmatpush2.bf16.xpose.msra.mxu0 0
        %2032 = vmatprep.subr.bf16.mxu0 0
        %2033 = vmatpush2.bf16.xpose.msra.mxu0 0
        %2034 = vmatprep.subr.bf16.mxu0 0
        %2035 = vmatpush2.bf16.xpose.msra.mxu0 0
        %2036 = vmatprep.subr.bf16.mxu0 0
        %2037 = vmatpush2.bf16.xpose.msra.mxu0 0
        %2038 = vmatprep.subr.bf16.mxu0 0
        %2039 = vmatpush2.bf16.xpose.msra.mxu0 0
        %2040 = vmatprep.subr.bf16.mxu0 0
        %2041 = vmatpush2.bf16.xpose.msra.mxu0 0
        %2042 = vmatprep.subr.bf16.mxu0 0
        %2043 = vmatpush2.bf16.xpose.msra.mxu0 0
        %2044 = vmatprep.mubr.bf16.mxu0 %v909
        %2045 = vmatmul.mubr.bf16.gmra.mxu0 %v908
        %v2046 = vpop.f32.mrf.mxu0
        %v2047 = vadd.f32 0.0, %v2046
        %v2048 = vpop.f32.mrf.mxu0
        %v2049 = vpop.f32.mrf.mxu0
        %v2050 = vadd.f32 0.0, %v2049
        %v2051 = vpop.f32.mrf.mxu0
        %2052 = vdwg.mxu0
        %v2055 = vunpack.c.l.b16 %v776
        %v2056 = vunpack.c.h.b16 %v776
        %v2057 = vunpack.c.l.b16 %v777
        %v2058 = vunpack.c.h.b16 %v777
        %v2059 = vpack.c.b16 %v2057, %v2055
        %v2060 = vpack.c.b16 %v2058, %v2056
        %2063 = vmatprep.subr.bf16.mxu0 0
        %2064 = vmatpush1.bf16.xpose.msra.mxu0 0
        %2065 = vmatprep.subr.bf16.mxu0 0
        %2066 = vmatpush1.bf16.xpose.msra.mxu0 0
        %2067 = vmatprep.subr.bf16.mxu0 0
        %2068 = vmatpush1.bf16.xpose.msra.mxu0 0
        %2069 = vmatprep.subr.bf16.mxu0 0
        %2070 = vmatpush1.bf16.xpose.msra.mxu0 0
        %2071 = vmatprep.subr.bf16.mxu0 0
        %2072 = vmatpush1.bf16.xpose.msra.mxu0 0
        %2073 = vmatprep.subr.bf16.mxu0 0
        %2074 = vmatpush1.bf16.xpose.msra.mxu0 0
        %2075 = vmatprep.subr.bf16.mxu0 0
        %2076 = vmatpush1.bf16.xpose.msra.mxu0 0
        %2077 = vmatprep.subr.bf16.mxu0 %v2060
        %2078 = vmatpush1.bf16.xpose.msra.mxu0 %v2059
        %2079 = vmatprep.subr.bf16.mxu0 0
        %2080 = vmatpush2.bf16.xpose.msra.mxu0 0
        %2081 = vmatprep.subr.bf16.mxu0 0
        %2082 = vmatpush2.bf16.xpose.msra.mxu0 0
        %2083 = vmatprep.subr.bf16.mxu0 0
        %2084 = vmatpush2.bf16.xpose.msra.mxu0 0
        %2085 = vmatprep.subr.bf16.mxu0 0
        %2086 = vmatpush2.bf16.xpose.msra.mxu0 0
        %2087 = vmatprep.subr.bf16.mxu0 0
        %2088 = vmatpush2.bf16.xpose.msra.mxu0 0
        %2089 = vmatprep.subr.bf16.mxu0 0
        %2090 = vmatpush2.bf16.xpose.msra.mxu0 0
        %2091 = vmatprep.subr.bf16.mxu0 0
        %2092 = vmatpush2.bf16.xpose.msra.mxu0 0
        %2093 = vmatprep.subr.bf16.mxu0 0
        %2094 = vmatpush2.bf16.xpose.msra.mxu0 0
        %2095 = vmatprep.mubr.bf16.mxu0 %v970
        %2096 = vmatmul.mubr.bf16.gmra.mxu0 %v969
        %v2097 = vpop.f32.mrf.mxu0
        %v2098 = vadd.f32 0.0, %v2097
        %v2099 = vpop.f32.mrf.mxu0
        %v2100 = vpop.f32.mrf.mxu0
        %v2101 = vadd.f32 0.0, %v2100
        %v2102 = vpop.f32.mrf.mxu0
        %2103 = vdwg.mxu0
        %v2106 = vunpack.c.l.b16 %v778
        %v2107 = vunpack.c.h.b16 %v778
        %v2108 = vunpack.c.l.b16 %v779
        %v2109 = vunpack.c.h.b16 %v779
        %v2110 = vpack.c.b16 %v2108, %v2106
        %v2111 = vpack.c.b16 %v2109, %v2107
        %2114 = vmatprep.subr.bf16.mxu0 0
        %2115 = vmatpush1.bf16.xpose.msra.mxu0 0
        %2116 = vmatprep.subr.bf16.mxu0 0
        %2117 = vmatpush1.bf16.xpose.msra.mxu0 0
        %2118 = vmatprep.subr.bf16.mxu0 0
        %2119 = vmatpush1.bf16.xpose.msra.mxu0 0
        %2120 = vmatprep.subr.bf16.mxu0 0
        %2121 = vmatpush1.bf16.xpose.msra.mxu0 0
        %2122 = vmatprep.subr.bf16.mxu0 0
        %2123 = vmatpush1.bf16.xpose.msra.mxu0 0
        %2124 = vmatprep.subr.bf16.mxu0 0
        %2125 = vmatpush1.bf16.xpose.msra.mxu0 0
        %2126 = vmatprep.subr.bf16.mxu0 0
        %2127 = vmatpush1.bf16.xpose.msra.mxu0 0
        %2128 = vmatprep.subr.bf16.mxu0 %v2111
        %2129 = vmatpush1.bf16.xpose.msra.mxu0 %v2110
        %2130 = vmatprep.subr.bf16.mxu0 0
        %2131 = vmatpush2.bf16.xpose.msra.mxu0 0
        %2132 = vmatprep.subr.bf16.mxu0 0
        %2133 = vmatpush2.bf16.xpose.msra.mxu0 0
        %2134 = vmatprep.subr.bf16.mxu0 0
        %2135 = vmatpush2.bf16.xpose.msra.mxu0 0
        %2136 = vmatprep.subr.bf16.mxu0 0
        %2137 = vmatpush2.bf16.xpose.msra.mxu0 0
        %2138 = vmatprep.subr.bf16.mxu0 0
        %2139 = vmatpush2.bf16.xpose.msra.mxu0 0
        %2140 = vmatprep.subr.bf16.mxu0 0
        %2141 = vmatpush2.bf16.xpose.msra.mxu0 0
        %2142 = vmatprep.subr.bf16.mxu0 0
        %2143 = vmatpush2.bf16.xpose.msra.mxu0 0
        %2144 = vmatprep.subr.bf16.mxu0 0
        %2145 = vmatpush2.bf16.xpose.msra.mxu0 0
        %2146 = vmatprep.mubr.bf16.mxu0 %v1031
        %2147 = vmatmul.mubr.bf16.gmra.mxu0 %v1030
        %v2148 = vpop.f32.mrf.mxu0
        %v2149 = vadd.f32 0.0, %v2148
        %v2150 = vpop.f32.mrf.mxu0
        %v2151 = vpop.f32.mrf.mxu0
        %v2152 = vadd.f32 0.0, %v2151
        %v2153 = vpop.f32.mrf.mxu0
        %2154 = vdwg.mxu0
        %v2157 = vunpack.c.l.b16 %v738
        %v2158 = vunpack.c.h.b16 %v738
        %v2159 = vunpack.c.l.b16 %v739
        %v2160 = vunpack.c.h.b16 %v739
        %v2161 = vpack.c.b16 %v2159, %v2157
        %v2162 = vpack.c.b16 %v2160, %v2158
        %2165 = vmatprep.subr.bf16.mxu0 0
        %2166 = vmatpush1.bf16.xpose.msra.mxu0 0
        %2167 = vmatprep.subr.bf16.mxu0 0
        %2168 = vmatpush1.bf16.xpose.msra.mxu0 0
        %2169 = vmatprep.subr.bf16.mxu0 0
        %2170 = vmatpush1.bf16.xpose.msra.mxu0 0
        %2171 = vmatprep.subr.bf16.mxu0 0
        %2172 = vmatpush1.bf16.xpose.msra.mxu0 0
        %2173 = vmatprep.subr.bf16.mxu0 0
        %2174 = vmatpush1.bf16.xpose.msra.mxu0 0
        %2175 = vmatprep.subr.bf16.mxu0 0
        %2176 = vmatpush1.bf16.xpose.msra.mxu0 0
        %2177 = vmatprep.subr.bf16.mxu0 0
        %2178 = vmatpush1.bf16.xpose.msra.mxu0 0
        %2179 = vmatprep.subr.bf16.mxu0 %v2162
        %2180 = vmatpush1.bf16.xpose.msra.mxu0 %v2161
        %2181 = vmatprep.subr.bf16.mxu0 0
        %2182 = vmatpush2.bf16.xpose.msra.mxu0 0
        %2183 = vmatprep.subr.bf16.mxu0 0
        %2184 = vmatpush2.bf16.xpose.msra.mxu0 0
        %2185 = vmatprep.subr.bf16.mxu0 0
        %2186 = vmatpush2.bf16.xpose.msra.mxu0 0
        %2187 = vmatprep.subr.bf16.mxu0 0
        %2188 = vmatpush2.bf16.xpose.msra.mxu0 0
        %2189 = vmatprep.subr.bf16.mxu0 0
        %2190 = vmatpush2.bf16.xpose.msra.mxu0 0
        %2191 = vmatprep.subr.bf16.mxu0 0
        %2192 = vmatpush2.bf16.xpose.msra.mxu0 0
        %2193 = vmatprep.subr.bf16.mxu0 0
        %2194 = vmatpush2.bf16.xpose.msra.mxu0 0
        %2195 = vmatprep.subr.bf16.mxu0 0
        %2196 = vmatpush2.bf16.xpose.msra.mxu0 0
        %2197 = vmatprep.mubr.bf16.mxu0 %v1092
        %2198 = vmatmul.mubr.bf16.gmra.mxu0 %v1091
        %v2199 = vpop.f32.mrf.mxu0
        %v2200 = vadd.f32 %v1945, %v2199
        %v2201 = vpop.f32.mrf.mxu0
        %v2202 = vpop.f32.mrf.mxu0
        %v2203 = vadd.f32 %v1948, %v2202
        %v2204 = vpop.f32.mrf.mxu0
        %2205 = vdwg.mxu0
        %v2208 = vunpack.c.l.b16 %v740
        %v2209 = vunpack.c.h.b16 %v740
        %v2210 = vunpack.c.l.b16 %v741
        %v2211 = vunpack.c.h.b16 %v741
        %v2212 = vpack.c.b16 %v2210, %v2208
        %v2213 = vpack.c.b16 %v2211, %v2209
        %2216 = vmatprep.subr.bf16.mxu0 0
        %2217 = vmatpush1.bf16.xpose.msra.mxu0 0
        %2218 = vmatprep.subr.bf16.mxu0 0
        %2219 = vmatpush1.bf16.xpose.msra.mxu0 0
        %2220 = vmatprep.subr.bf16.mxu0 0
        %2221 = vmatpush1.bf16.xpose.msra.mxu0 0
        %2222 = vmatprep.subr.bf16.mxu0 0
        %2223 = vmatpush1.bf16.xpose.msra.mxu0 0
        %2224 = vmatprep.subr.bf16.mxu0 0
        %2225 = vmatpush1.bf16.xpose.msra.mxu0 0
        %2226 = vmatprep.subr.bf16.mxu0 0
        %2227 = vmatpush1.bf16.xpose.msra.mxu0 0
        %2228 = vmatprep.subr.bf16.mxu0 0
        %2229 = vmatpush1.bf16.xpose.msra.mxu0 0
        %2230 = vmatprep.subr.bf16.mxu0 %v2213
        %2231 = vmatpush1.bf16.xpose.msra.mxu0 %v2212
        %2232 = vmatprep.subr.bf16.mxu0 0
        %2233 = vmatpush2.bf16.xpose.msra.mxu0 0
        %2234 = vmatprep.subr.bf16.mxu0 0
        %2235 = vmatpush2.bf16.xpose.msra.mxu0 0
        %2236 = vmatprep.subr.bf16.mxu0 0
        %2237 = vmatpush2.bf16.xpose.msra.mxu0 0
        %2238 = vmatprep.subr.bf16.mxu0 0
        %2239 = vmatpush2.bf16.xpose.msra.mxu0 0
        %2240 = vmatprep.subr.bf16.mxu0 0
        %2241 = vmatpush2.bf16.xpose.msra.mxu0 0
        %2242 = vmatprep.subr.bf16.mxu0 0
        %2243 = vmatpush2.bf16.xpose.msra.mxu0 0
        %2244 = vmatprep.subr.bf16.mxu0 0
        %2245 = vmatpush2.bf16.xpose.msra.mxu0 0
        %2246 = vmatprep.subr.bf16.mxu0 0
        %2247 = vmatpush2.bf16.xpose.msra.mxu0 0
        %2248 = vmatprep.mubr.bf16.mxu0 %v1153
        %2249 = vmatmul.mubr.bf16.gmra.mxu0 %v1152
        %v2250 = vpop.f32.mrf.mxu0
        %v2251 = vadd.f32 %v1996, %v2250
        %v2252 = vpop.f32.mrf.mxu0
        %v2253 = vpop.f32.mrf.mxu0
        %v2254 = vadd.f32 %v1999, %v2253
        %v2255 = vpop.f32.mrf.mxu0
        %2256 = vdwg.mxu0
        %v2259 = vunpack.c.l.b16 %v742
        %v2260 = vunpack.c.h.b16 %v742
        %v2261 = vunpack.c.l.b16 %v743
        %v2262 = vunpack.c.h.b16 %v743
        %v2263 = vpack.c.b16 %v2261, %v2259
        %v2264 = vpack.c.b16 %v2262, %v2260
        %2267 = vmatprep.subr.bf16.mxu0 0
        %2268 = vmatpush1.bf16.xpose.msra.mxu0 0
        %2269 = vmatprep.subr.bf16.mxu0 0
        %2270 = vmatpush1.bf16.xpose.msra.mxu0 0
        %2271 = vmatprep.subr.bf16.mxu0 0
        %2272 = vmatpush1.bf16.xpose.msra.mxu0 0
        %2273 = vmatprep.subr.bf16.mxu0 0
        %2274 = vmatpush1.bf16.xpose.msra.mxu0 0
        %2275 = vmatprep.subr.bf16.mxu0 0
        %2276 = vmatpush1.bf16.xpose.msra.mxu0 0
        %2277 = vmatprep.subr.bf16.mxu0 0
        %2278 = vmatpush1.bf16.xpose.msra.mxu0 0
        %2279 = vmatprep.subr.bf16.mxu0 0
        %2280 = vmatpush1.bf16.xpose.msra.mxu0 0
        %2281 = vmatprep.subr.bf16.mxu0 %v2264
        %2282 = vmatpush1.bf16.xpose.msra.mxu0 %v2263
        %2283 = vmatprep.subr.bf16.mxu0 0
        %2284 = vmatpush2.bf16.xpose.msra.mxu0 0
        %2285 = vmatprep.subr.bf16.mxu0 0
        %2286 = vmatpush2.bf16.xpose.msra.mxu0 0
        %2287 = vmatprep.subr.bf16.mxu0 0
        %2288 = vmatpush2.bf16.xpose.msra.mxu0 0
        %2289 = vmatprep.subr.bf16.mxu0 0
        %2290 = vmatpush2.bf16.xpose.msra.mxu0 0
        %2291 = vmatprep.subr.bf16.mxu0 0
        %2292 = vmatpush2.bf16.xpose.msra.mxu0 0
        %2293 = vmatprep.subr.bf16.mxu0 0
        %2294 = vmatpush2.bf16.xpose.msra.mxu0 0
        %2295 = vmatprep.subr.bf16.mxu0 0
        %2296 = vmatpush2.bf16.xpose.msra.mxu0 0
        %2297 = vmatprep.subr.bf16.mxu0 0
        %2298 = vmatpush2.bf16.xpose.msra.mxu0 0
        %2299 = vmatprep.mubr.bf16.mxu0 %v1214
        %2300 = vmatmul.mubr.bf16.gmra.mxu0 %v1213
        %v2301 = vpop.f32.mrf.mxu0
        %v2302 = vadd.f32 %v2047, %v2301
        %v2303 = vpop.f32.mrf.mxu0
        %v2304 = vpop.f32.mrf.mxu0
        %v2305 = vadd.f32 %v2050, %v2304
        %v2306 = vpop.f32.mrf.mxu0
        %2307 = vdwg.mxu0
        %v2310 = vunpack.c.l.b16 %v744
        %v2311 = vunpack.c.h.b16 %v744
        %v2312 = vunpack.c.l.b16 %v745
        %v2313 = vunpack.c.h.b16 %v745
        %v2314 = vpack.c.b16 %v2312, %v2310
        %v2315 = vpack.c.b16 %v2313, %v2311
        %2318 = vmatprep.subr.bf16.mxu0 0
        %2319 = vmatpush1.bf16.xpose.msra.mxu0 0
        %2320 = vmatprep.subr.bf16.mxu0 0
        %2321 = vmatpush1.bf16.xpose.msra.mxu0 0
        %2322 = vmatprep.subr.bf16.mxu0 0
        %2323 = vmatpush1.bf16.xpose.msra.mxu0 0
        %2324 = vmatprep.subr.bf16.mxu0 0
        %2325 = vmatpush1.bf16.xpose.msra.mxu0 0
        %2326 = vmatprep.subr.bf16.mxu0 0
        %2327 = vmatpush1.bf16.xpose.msra.mxu0 0
        %2328 = vmatprep.subr.bf16.mxu0 0
        %2329 = vmatpush1.bf16.xpose.msra.mxu0 0
        %2330 = vmatprep.subr.bf16.mxu0 0
        %2331 = vmatpush1.bf16.xpose.msra.mxu0 0
        %2332 = vmatprep.subr.bf16.mxu0 %v2315
        %2333 = vmatpush1.bf16.xpose.msra.mxu0 %v2314
        %2334 = vmatprep.subr.bf16.mxu0 0
        %2335 = vmatpush2.bf16.xpose.msra.mxu0 0
        %2336 = vmatprep.subr.bf16.mxu0 0
        %2337 = vmatpush2.bf16.xpose.msra.mxu0 0
        %2338 = vmatprep.subr.bf16.mxu0 0
        %2339 = vmatpush2.bf16.xpose.msra.mxu0 0
        %2340 = vmatprep.subr.bf16.mxu0 0
        %2341 = vmatpush2.bf16.xpose.msra.mxu0 0
        %2342 = vmatprep.subr.bf16.mxu0 0
        %2343 = vmatpush2.bf16.xpose.msra.mxu0 0
        %2344 = vmatprep.subr.bf16.mxu0 0
        %2345 = vmatpush2.bf16.xpose.msra.mxu0 0
        %2346 = vmatprep.subr.bf16.mxu0 0
        %2347 = vmatpush2.bf16.xpose.msra.mxu0 0
        %2348 = vmatprep.subr.bf16.mxu0 0
        %2349 = vmatpush2.bf16.xpose.msra.mxu0 0
        %2350 = vmatprep.mubr.bf16.mxu0 %v1275
        %2351 = vmatmul.mubr.bf16.gmra.mxu0 %v1274
        %v2352 = vpop.f32.mrf.mxu0
        %v2353 = vadd.f32 %v2098, %v2352
        %v2354 = vpop.f32.mrf.mxu0
        %v2355 = vpop.f32.mrf.mxu0
        %v2356 = vadd.f32 %v2101, %v2355
        %v2357 = vpop.f32.mrf.mxu0
        %2358 = vdwg.mxu0
        %v2361 = vunpack.c.l.b16 %v746
        %v2362 = vunpack.c.h.b16 %v746
        %v2363 = vunpack.c.l.b16 %v747
        %v2364 = vunpack.c.h.b16 %v747
        %v2365 = vpack.c.b16 %v2363, %v2361
        %v2366 = vpack.c.b16 %v2364, %v2362
        %2369 = vmatprep.subr.bf16.mxu0 0
        %2370 = vmatpush1.bf16.xpose.msra.mxu0 0
        %2371 = vmatprep.subr.bf16.mxu0 0
        %2372 = vmatpush1.bf16.xpose.msra.mxu0 0
        %2373 = vmatprep.subr.bf16.mxu0 0
        %2374 = vmatpush1.bf16.xpose.msra.mxu0 0
        %2375 = vmatprep.subr.bf16.mxu0 0
        %2376 = vmatpush1.bf16.xpose.msra.mxu0 0
        %2377 = vmatprep.subr.bf16.mxu0 0
        %2378 = vmatpush1.bf16.xpose.msra.mxu0 0
        %2379 = vmatprep.subr.bf16.mxu0 0
        %2380 = vmatpush1.bf16.xpose.msra.mxu0 0
        %2381 = vmatprep.subr.bf16.mxu0 0
        %2382 = vmatpush1.bf16.xpose.msra.mxu0 0
        %2383 = vmatprep.subr.bf16.mxu0 %v2366
        %2384 = vmatpush1.bf16.xpose.msra.mxu0 %v2365
        %2385 = vmatprep.subr.bf16.mxu0 0
        %2386 = vmatpush2.bf16.xpose.msra.mxu0 0
        %2387 = vmatprep.subr.bf16.mxu0 0
        %2388 = vmatpush2.bf16.xpose.msra.mxu0 0
        %2389 = vmatprep.subr.bf16.mxu0 0
        %2390 = vmatpush2.bf16.xpose.msra.mxu0 0
        %2391 = vmatprep.subr.bf16.mxu0 0
        %2392 = vmatpush2.bf16.xpose.msra.mxu0 0
        %2393 = vmatprep.subr.bf16.mxu0 0
        %2394 = vmatpush2.bf16.xpose.msra.mxu0 0
        %2395 = vmatprep.subr.bf16.mxu0 0
        %2396 = vmatpush2.bf16.xpose.msra.mxu0 0
        %2397 = vmatprep.subr.bf16.mxu0 0
        %2398 = vmatpush2.bf16.xpose.msra.mxu0 0
        %2399 = vmatprep.subr.bf16.mxu0 0
        %2400 = vmatpush2.bf16.xpose.msra.mxu0 0
        %2401 = vmatprep.mubr.bf16.mxu0 %v1336
        %2402 = vmatmul.mubr.bf16.gmra.mxu0 %v1335
        %v2403 = vpop.f32.mrf.mxu0
        %v2404 = vadd.f32 %v2149, %v2403
        %v2405 = vpop.f32.mrf.mxu0
        %v2406 = vpop.f32.mrf.mxu0
        %v2407 = vadd.f32 %v2152, %v2406
        %v2408 = vpop.f32.mrf.mxu0
        %2409 = vdwg.mxu0
        %vm2410 = vcmask 130048
        %v2411 = vsel %vm2410, %v1140, -inf
        %2412 = vmax.xlane.f32.xlu0 %v2411
        %v2413 = vpop.xlane.xlu0 %2412
        %v2414 = vsel %vm2410, %v1143, -inf
        %2415 = vmax.xlane.f32.xlu0 %v2414
        %v2416 = vpop.xlane.xlu0 %2415
        %v2417 = vsel %vm2410, %v1201, -inf
        %2418 = vmax.xlane.f32.xlu0 %v2417
        %v2419 = vpop.xlane.xlu0 %2418
        %v2420 = vsel %vm2410, %v1204, -inf
        %2421 = vmax.xlane.f32.xlu0 %v2420
        %v2422 = vpop.xlane.xlu0 %2421
        %v2423 = vsel %vm2410, %v1262, -inf
        %2424 = vmax.xlane.f32.xlu0 %v2423
        %v2425 = vpop.xlane.xlu0 %2424
        %v2426 = vsel %vm2410, %v1265, -inf
        %2427 = vmax.xlane.f32.xlu0 %v2426
        %v2428 = vpop.xlane.xlu0 %2427
        %v2429 = vsel %vm2410, %v1323, -inf
        %2430 = vmax.xlane.f32.xlu0 %v2429
        %v2431 = vpop.xlane.xlu0 %2430
        %v2432 = vsel %vm2410, %v1326, -inf
        %2433 = vmax.xlane.f32.xlu0 %v2432
        %v2434 = vpop.xlane.xlu0 %2433
        %v2435 = vsel %vm2410, %v1384, -inf
        %2436 = vmax.xlane.f32.xlu0 %v2435
        %v2437 = vpop.xlane.xlu0 %2436
        %v2438 = vsel %vm2410, %v1387, -inf
        %2439 = vmax.xlane.f32.xlu0 %v2438
        %v2440 = vpop.xlane.xlu0 %2439
        %v2441 = vsel %vm2410, %v1690, -inf
        %2442 = vmax.xlane.f32.xlu0 %v2441
        %v2443 = vpop.xlane.xlu0 %2442
        %v2444 = vsel %vm2410, %v1693, -inf
        %2445 = vmax.xlane.f32.xlu0 %v2444
        %v2446 = vpop.xlane.xlu0 %2445
        %v2447 = vsel %vm2410, %v1741, -inf
        %2448 = vmax.xlane.f32.xlu0 %v2447
        %v2449 = vpop.xlane.xlu0 %2448
        %v2450 = vsel %vm2410, %v1744, -inf
        %2451 = vmax.xlane.f32.xlu0 %v2450
        %v2452 = vpop.xlane.xlu0 %2451
        %v2453 = vsel %vm2410, %v1792, -inf
        %2454 = vmax.xlane.f32.xlu0 %v2453
        %v2455 = vpop.xlane.xlu0 %2454
        %v2456 = vsel %vm2410, %v1795, -inf
        %2457 = vmax.xlane.f32.xlu0 %v2456
        %v2458 = vpop.xlane.xlu0 %2457
        %v2459 = vsel %vm2410, %v1843, -inf
        %2460 = vmax.xlane.f32.xlu0 %v2459
        %v2461 = vpop.xlane.xlu0 %2460
        %v2462 = vsel %vm2410, %v1846, -inf
        %2463 = vmax.xlane.f32.xlu0 %v2462
        %v2464 = vpop.xlane.xlu0 %2463
        %v2465 = vsel %vm2410, %v1894, -inf
        %2466 = vmax.xlane.f32.xlu0 %v2465
        %v2467 = vpop.xlane.xlu0 %2466
        %v2468 = vsel %vm2410, %v1897, -inf
        %2469 = vmax.xlane.f32.xlu0 %v2468
        %v2470 = vpop.xlane.xlu0 %2469
        %v2471 = vmax.f32 %v2413, %v2443
        %v2472 = vmax.f32 %v2416, %v2446
        %v2473 = vmax.f32 %v2419, %v2449
        %v2474 = vmax.f32 %v2422, %v2452
        %v2475 = vmax.f32 %v2425, %v2455
        %v2476 = vmax.f32 %v2428, %v2458
        %v2477 = vmax.f32 %v2431, %v2461
        %v2478 = vmax.f32 %v2434, %v2464
        %v2479 = vmax.f32 %v2437, %v2467
        %v2480 = vmax.f32 %v2440, %v2470
        %v2481 = vsel %vm2410, %v2200, -inf
        %2482 = vmax.xlane.f32.xlu0 %v2481
        %v2483 = vpop.xlane.xlu0 %2482
        %v2484 = vsel %vm2410, %v2203, -inf
        %2485 = vmax.xlane.f32.xlu0 %v2484
        %v2486 = vpop.xlane.xlu0 %2485
        %v2487 = vsel %vm2410, %v2251, -inf
        %2488 = vmax.xlane.f32.xlu0 %v2487
        %v2489 = vpop.xlane.xlu0 %2488
        %v2490 = vsel %vm2410, %v2254, -inf
        %2491 = vmax.xlane.f32.xlu0 %v2490
        %v2492 = vpop.xlane.xlu0 %2491
        %v2493 = vsel %vm2410, %v2302, -inf
        %2494 = vmax.xlane.f32.xlu0 %v2493
        %v2495 = vpop.xlane.xlu0 %2494
        %v2496 = vsel %vm2410, %v2305, -inf
        %2497 = vmax.xlane.f32.xlu0 %v2496
        %v2498 = vpop.xlane.xlu0 %2497
        %v2499 = vsel %vm2410, %v2353, -inf
        %2500 = vmax.xlane.f32.xlu0 %v2499
        %v2501 = vpop.xlane.xlu0 %2500
        %v2502 = vsel %vm2410, %v2356, -inf
        %2503 = vmax.xlane.f32.xlu0 %v2502
        %v2504 = vpop.xlane.xlu0 %2503
        %v2505 = vsel %vm2410, %v2404, -inf
        %2506 = vmax.xlane.f32.xlu0 %v2505
        %v2507 = vpop.xlane.xlu0 %2506
        %v2508 = vsel %vm2410, %v2407, -inf
        %2509 = vmax.xlane.f32.xlu0 %v2508
        %v2510 = vpop.xlane.xlu0 %2509
        %v2511 = vmax.f32 %v2471, %v2483
        %v2512 = vmax.f32 %v2472, %v2486
        %v2513 = vmax.f32 %v2473, %v2489
        %v2514 = vmax.f32 %v2474, %v2492
        %v2515 = vmax.f32 %v2475, %v2495
        %v2516 = vmax.f32 %v2476, %v2498
        %v2517 = vmax.f32 %v2477, %v2501
        %v2518 = vmax.f32 %v2478, %v2504
        %v2519 = vmax.f32 %v2479, %v2507
        %v2520 = vmax.f32 %v2480, %v2510
        %v2521 = vsub.f32 %v1140, %v2511
        %v2522 = vsub.f32 %v1143, %v2512
        %v2523 = vsub.f32 %v1201, %v2513
        %v2524 = vsub.f32 %v1204, %v2514
        %v2525 = vsub.f32 %v1262, %v2515
        %v2526 = vsub.f32 %v1265, %v2516
        %v2527 = vsub.f32 %v1323, %v2517
        %v2528 = vsub.f32 %v1326, %v2518
        %v2529 = vsub.f32 %v1384, %v2519
        %v2530 = vsub.f32 %v1387, %v2520
        %v2531 = vmul.f32 %v2521, 1.442695
        %v2532 = vpow.pop %v2531
        %v2533 = vmul.f32 %v2522, 1.442695
        %v2534 = vpow.pop %v2533
        %v2535 = vmul.f32 %v2523, 1.442695
        %v2536 = vpow.pop %v2535
        %v2537 = vmul.f32 %v2524, 1.442695
        %v2538 = vpow.pop %v2537
        %v2539 = vmul.f32 %v2525, 1.442695
        %v2540 = vpow.pop %v2539
        %v2541 = vmul.f32 %v2526, 1.442695
        %v2542 = vpow.pop %v2541
        %v2543 = vmul.f32 %v2527, 1.442695
        %v2544 = vpow.pop %v2543
        %v2545 = vmul.f32 %v2528, 1.442695
        %v2546 = vpow.pop %v2545
        %v2547 = vmul.f32 %v2529, 1.442695
        %v2548 = vpow.pop %v2547
        %v2549 = vmul.f32 %v2530, 1.442695
        %v2550 = vpow.pop %v2549
        %v2551 = vsub.f32 %v1690, %v2511
        %v2552 = vsub.f32 %v1693, %v2512
        %v2553 = vsub.f32 %v1741, %v2513
        %v2554 = vsub.f32 %v1744, %v2514
        %v2555 = vsub.f32 %v1792, %v2515
        %v2556 = vsub.f32 %v1795, %v2516
        %v2557 = vsub.f32 %v1843, %v2517
        %v2558 = vsub.f32 %v1846, %v2518
        %v2559 = vsub.f32 %v1894, %v2519
        %v2560 = vsub.f32 %v1897, %v2520
        %v2561 = vmul.f32 %v2551, 1.442695
        %v2562 = vpow.pop %v2561
        %v2563 = vmul.f32 %v2552, 1.442695
        %v2564 = vpow.pop %v2563
        %v2565 = vmul.f32 %v2553, 1.442695
        %v2566 = vpow.pop %v2565
        %v2567 = vmul.f32 %v2554, 1.442695
        %v2568 = vpow.pop %v2567
        %v2569 = vmul.f32 %v2555, 1.442695
        %v2570 = vpow.pop %v2569
        %v2571 = vmul.f32 %v2556, 1.442695
        %v2572 = vpow.pop %v2571
        %v2573 = vmul.f32 %v2557, 1.442695
        %v2574 = vpow.pop %v2573
        %v2575 = vmul.f32 %v2558, 1.442695
        %v2576 = vpow.pop %v2575
        %v2577 = vmul.f32 %v2559, 1.442695
        %v2578 = vpow.pop %v2577
        %v2579 = vmul.f32 %v2560, 1.442695
        %v2580 = vpow.pop %v2579
        %v2581 = vsub.f32 %v2200, %v2511
        %v2582 = vsub.f32 %v2203, %v2512
        %v2583 = vsub.f32 %v2251, %v2513
        %v2584 = vsub.f32 %v2254, %v2514
        %v2585 = vsub.f32 %v2302, %v2515
        %v2586 = vsub.f32 %v2305, %v2516
        %v2587 = vsub.f32 %v2353, %v2517
        %v2588 = vsub.f32 %v2356, %v2518
        %v2589 = vsub.f32 %v2404, %v2519
        %v2590 = vsub.f32 %v2407, %v2520
        %v2591 = vmul.f32 %v2581, 1.442695
        %v2592 = vpow.pop %v2591
        %v2593 = vmul.f32 %v2582, 1.442695
        %v2594 = vpow.pop %v2593
        %v2595 = vmul.f32 %v2583, 1.442695
        %v2596 = vpow.pop %v2595
        %v2597 = vmul.f32 %v2584, 1.442695
        %v2598 = vpow.pop %v2597
        %v2599 = vmul.f32 %v2585, 1.442695
        %v2600 = vpow.pop %v2599
        %v2601 = vmul.f32 %v2586, 1.442695
        %v2602 = vpow.pop %v2601
        %v2603 = vmul.f32 %v2587, 1.442695
        %v2604 = vpow.pop %v2603
        %v2605 = vmul.f32 %v2588, 1.442695
        %v2606 = vpow.pop %v2605
        %v2607 = vmul.f32 %v2589, 1.442695
        %v2608 = vpow.pop %v2607
        %v2609 = vmul.f32 %v2590, 1.442695
        %v2610 = vpow.pop %v2609
        %v2611 = vsel %vm2410, %v2532, 0.0
        %2612 = vadd.xlane.f32.xlu0 %v2611
        %v2613 = vpop.xlane.xlu0 %2612
        %v2614 = vsel %vm2410, %v2534, 0.0
        %2615 = vadd.xlane.f32.xlu0 %v2614
        %v2616 = vpop.xlane.xlu0 %2615
        %v2617 = vsel %vm2410, %v2536, 0.0
        %2618 = vadd.xlane.f32.xlu0 %v2617
        %v2619 = vpop.xlane.xlu0 %2618
        %v2620 = vsel %vm2410, %v2538, 0.0
        %2621 = vadd.xlane.f32.xlu0 %v2620
        %v2622 = vpop.xlane.xlu0 %2621
        %v2623 = vsel %vm2410, %v2540, 0.0
        %2624 = vadd.xlane.f32.xlu0 %v2623
        %v2625 = vpop.xlane.xlu0 %2624
        %v2626 = vsel %vm2410, %v2542, 0.0
        %2627 = vadd.xlane.f32.xlu0 %v2626
        %v2628 = vpop.xlane.xlu0 %2627
        %v2629 = vsel %vm2410, %v2544, 0.0
        %2630 = vadd.xlane.f32.xlu0 %v2629
        %v2631 = vpop.xlane.xlu0 %2630
        %v2632 = vsel %vm2410, %v2546, 0.0
        %2633 = vadd.xlane.f32.xlu0 %v2632
        %v2634 = vpop.xlane.xlu0 %2633
        %v2635 = vsel %vm2410, %v2548, 0.0
        %2636 = vadd.xlane.f32.xlu0 %v2635
        %v2637 = vpop.xlane.xlu0 %2636
        %v2638 = vsel %vm2410, %v2550, 0.0
        %2639 = vadd.xlane.f32.xlu0 %v2638
        %v2640 = vpop.xlane.xlu0 %2639
        %v2641 = vsel %vm2410, %v2562, 0.0
        %2642 = vadd.xlane.f32.xlu0 %v2641
        %v2643 = vpop.xlane.xlu0 %2642
        %v2644 = vsel %vm2410, %v2564, 0.0
        %2645 = vadd.xlane.f32.xlu0 %v2644
        %v2646 = vpop.xlane.xlu0 %2645
        %v2647 = vsel %vm2410, %v2566, 0.0
        %2648 = vadd.xlane.f32.xlu0 %v2647
        %v2649 = vpop.xlane.xlu0 %2648
        %v2650 = vsel %vm2410, %v2568, 0.0
        %2651 = vadd.xlane.f32.xlu0 %v2650
        %v2652 = vpop.xlane.xlu0 %2651
        %v2653 = vsel %vm2410, %v2570, 0.0
        %2654 = vadd.xlane.f32.xlu0 %v2653
        %v2655 = vpop.xlane.xlu0 %2654
        %v2656 = vsel %vm2410, %v2572, 0.0
        %2657 = vadd.xlane.f32.xlu0 %v2656
        %v2658 = vpop.xlane.xlu0 %2657
        %v2659 = vsel %vm2410, %v2574, 0.0
        %2660 = vadd.xlane.f32.xlu0 %v2659
        %v2661 = vpop.xlane.xlu0 %2660
        %v2662 = vsel %vm2410, %v2576, 0.0
        %2663 = vadd.xlane.f32.xlu0 %v2662
        %v2664 = vpop.xlane.xlu0 %2663
        %v2665 = vsel %vm2410, %v2578, 0.0
        %2666 = vadd.xlane.f32.xlu0 %v2665
        %v2667 = vpop.xlane.xlu0 %2666
        %v2668 = vsel %vm2410, %v2580, 0.0
        %2669 = vadd.xlane.f32.xlu0 %v2668
        %v2670 = vpop.xlane.xlu0 %2669
        %v2671 = vadd.f32 %v2613, %v2643
        %v2672 = vadd.f32 %v2616, %v2646
        %v2673 = vadd.f32 %v2619, %v2649
        %v2674 = vadd.f32 %v2622, %v2652
        %v2675 = vadd.f32 %v2625, %v2655
        %v2676 = vadd.f32 %v2628, %v2658
        %v2677 = vadd.f32 %v2631, %v2661
        %v2678 = vadd.f32 %v2634, %v2664
        %v2679 = vadd.f32 %v2637, %v2667
        %v2680 = vadd.f32 %v2640, %v2670
        %v2681 = vsel %vm2410, %v2592, 0.0
        %2682 = vadd.xlane.f32.xlu0 %v2681
        %v2683 = vpop.xlane.xlu0 %2682
        %v2684 = vsel %vm2410, %v2594, 0.0
        %2685 = vadd.xlane.f32.xlu0 %v2684
        %v2686 = vpop.xlane.xlu0 %2685
        %v2687 = vsel %vm2410, %v2596, 0.0
        %2688 = vadd.xlane.f32.xlu0 %v2687
        %v2689 = vpop.xlane.xlu0 %2688
        %v2690 = vsel %vm2410, %v2598, 0.0
        %2691 = vadd.xlane.f32.xlu0 %v2690
        %v2692 = vpop.xlane.xlu0 %2691
        %v2693 = vsel %vm2410, %v2600, 0.0
        %2694 = vadd.xlane.f32.xlu0 %v2693
        %v2695 = vpop.xlane.xlu0 %2694
        %v2696 = vsel %vm2410, %v2602, 0.0
        %2697 = vadd.xlane.f32.xlu0 %v2696
        %v2698 = vpop.xlane.xlu0 %2697
        %v2699 = vsel %vm2410, %v2604, 0.0
        %2700 = vadd.xlane.f32.xlu0 %v2699
        %v2701 = vpop.xlane.xlu0 %2700
        %v2702 = vsel %vm2410, %v2606, 0.0
        %2703 = vadd.xlane.f32.xlu0 %v2702
        %v2704 = vpop.xlane.xlu0 %2703
        %v2705 = vsel %vm2410, %v2608, 0.0
        %2706 = vadd.xlane.f32.xlu0 %v2705
        %v2707 = vpop.xlane.xlu0 %2706
        %v2708 = vsel %vm2410, %v2610, 0.0
        %2709 = vadd.xlane.f32.xlu0 %v2708
        %v2710 = vpop.xlane.xlu0 %2709
        %v2711 = vadd.f32 %v2671, %v2683
        %v2712 = vadd.f32 %v2672, %v2686
        %v2713 = vadd.f32 %v2673, %v2689
        %v2714 = vadd.f32 %v2674, %v2692
        %v2715 = vadd.f32 %v2675, %v2695
        %v2716 = vadd.f32 %v2676, %v2698
        %v2717 = vadd.f32 %v2677, %v2701
        %v2718 = vadd.f32 %v2678, %v2704
        %v2719 = vadd.f32 %v2679, %v2707
        %v2720 = vadd.f32 %v2680, %v2710
        %v2721 = vrcp.pop %v2711
        %v2722 = vmul.f32 1.0, %v2721
        %v2723 = vrcp.pop %v2712
        %v2724 = vmul.f32 1.0, %v2723
        %v2725 = vrcp.pop %v2713
        %v2726 = vmul.f32 1.0, %v2725
        %v2727 = vrcp.pop %v2714
        %v2728 = vmul.f32 1.0, %v2727
        %v2729 = vrcp.pop %v2715
        %v2730 = vmul.f32 1.0, %v2729
        %v2731 = vrcp.pop %v2716
        %v2732 = vmul.f32 1.0, %v2731
        %v2733 = vrcp.pop %v2717
        %v2734 = vmul.f32 1.0, %v2733
        %v2735 = vrcp.pop %v2718
        %v2736 = vmul.f32 1.0, %v2735
        %v2737 = vrcp.pop %v2719
        %v2738 = vmul.f32 1.0, %v2737
        %v2739 = vrcp.pop %v2720
        %v2740 = vmul.f32 1.0, %v2739
        %v2741 = vpack.c.bf16 %v2534, %v2532
        %v2742 = vpack.c.bf16 %v2538, %v2536
        %v2743 = vpack.c.bf16 %v2542, %v2540
        %v2744 = vpack.c.bf16 %v2546, %v2544
        %v2745 = vpack.c.bf16 %v2550, %v2548
        %v2746 = vpack.c.bf16 %v2564, %v2562
        %v2747 = vpack.c.bf16 %v2568, %v2566
        %v2748 = vpack.c.bf16 %v2572, %v2570
        %v2749 = vpack.c.bf16 %v2576, %v2574
        %v2750 = vpack.c.bf16 %v2580, %v2578
        %v2752 = vsel %vm2410, %v2746, 0
        %2754 = vmatprep.subr.bf16.mxu0 0
        %2755 = vmatpush1.bf16.msra.mxu0 0
        %2756 = vmatprep.subr.bf16.mxu0 0
        %2757 = vmatpush1.bf16.msra.mxu0 0
        %2758 = vmatprep.subr.bf16.mxu0 0
        %2759 = vmatpush1.bf16.msra.mxu0 0
        %2760 = vmatprep.subr.bf16.mxu0 0
        %2761 = vmatpush1.bf16.msra.mxu0 0
        %2762 = vmatprep.subr.bf16.mxu0 0
        %2763 = vmatpush1.bf16.msra.mxu0 0
        %2764 = vmatprep.subr.bf16.mxu0 0
        %2765 = vmatpush1.bf16.msra.mxu0 0
        %2766 = vmatprep.subr.bf16.mxu0 0
        %2767 = vmatpush1.bf16.msra.mxu0 0
        %2768 = vmatprep.subr.bf16.mxu0 %v1652
        %2769 = vmatpush1.bf16.msra.mxu0 %v1651
        %2770 = vmatprep.subr.bf16.mxu0 0
        %2771 = vmatpush2.bf16.msra.mxu0 0
        %2772 = vmatprep.subr.bf16.mxu0 0
        %2773 = vmatpush2.bf16.msra.mxu0 0
        %2774 = vmatprep.subr.bf16.mxu0 0
        %2775 = vmatpush2.bf16.msra.mxu0 0
        %2776 = vmatprep.subr.bf16.mxu0 0
        %2777 = vmatpush2.bf16.msra.mxu0 0
        %2778 = vmatprep.subr.bf16.mxu0 0
        %2779 = vmatpush2.bf16.msra.mxu0 0
        %2780 = vmatprep.subr.bf16.mxu0 0
        %2781 = vmatpush2.bf16.msra.mxu0 0
        %2782 = vmatprep.subr.bf16.mxu0 0
        %2783 = vmatpush2.bf16.msra.mxu0 0
        %2784 = vmatprep.subr.bf16.mxu0 0
        %2785 = vmatpush2.bf16.msra.mxu0 0
        %2786 = vmatprep.mubr.bf16.mxu0 0
        %2787 = vmatmul.mubr.bf16.gmra.mxu0 %v2752
        %v2788 = vpop.f32.mrf.mxu0
        %v2789 = vadd.f32 0.0, %v2788
        %v2790 = vpop.f32.mrf.mxu0
        %v2791 = vadd.f32 0.0, %v2790
        %v2792 = vpop.f32.mrf.mxu0
        %v2793 = vadd.f32 0.0, %v2792
        %v2794 = vpop.f32.mrf.mxu0
        %v2795 = vadd.f32 0.0, %v2794
        %2796 = vdwg.mxu0
        %v2798 = vsel %vm2410, %v2747, 0
        %2800 = vmatprep.subr.bf16.mxu0 0
        %2801 = vmatpush1.bf16.msra.mxu0 0
        %2802 = vmatprep.subr.bf16.mxu0 0
        %2803 = vmatpush1.bf16.msra.mxu0 0
        %2804 = vmatprep.subr.bf16.mxu0 0
        %2805 = vmatpush1.bf16.msra.mxu0 0
        %2806 = vmatprep.subr.bf16.mxu0 0
        %2807 = vmatpush1.bf16.msra.mxu0 0
        %2808 = vmatprep.subr.bf16.mxu0 0
        %2809 = vmatpush1.bf16.msra.mxu0 0
        %2810 = vmatprep.subr.bf16.mxu0 0
        %2811 = vmatpush1.bf16.msra.mxu0 0
        %2812 = vmatprep.subr.bf16.mxu0 0
        %2813 = vmatpush1.bf16.msra.mxu0 0
        %2814 = vmatprep.subr.bf16.mxu0 %v1703
        %2815 = vmatpush1.bf16.msra.mxu0 %v1702
        %2816 = vmatprep.subr.bf16.mxu0 0
        %2817 = vmatpush2.bf16.msra.mxu0 0
        %2818 = vmatprep.subr.bf16.mxu0 0
        %2819 = vmatpush2.bf16.msra.mxu0 0
        %2820 = vmatprep.subr.bf16.mxu0 0
        %2821 = vmatpush2.bf16.msra.mxu0 0
        %2822 = vmatprep.subr.bf16.mxu0 0
        %2823 = vmatpush2.bf16.msra.mxu0 0
        %2824 = vmatprep.subr.bf16.mxu0 0
        %2825 = vmatpush2.bf16.msra.mxu0 0
        %2826 = vmatprep.subr.bf16.mxu0 0
        %2827 = vmatpush2.bf16.msra.mxu0 0
        %2828 = vmatprep.subr.bf16.mxu0 0
        %2829 = vmatpush2.bf16.msra.mxu0 0
        %2830 = vmatprep.subr.bf16.mxu0 0
        %2831 = vmatpush2.bf16.msra.mxu0 0
        %2832 = vmatprep.mubr.bf16.mxu0 0
        %2833 = vmatmul.mubr.bf16.gmra.mxu0 %v2798
        %v2834 = vpop.f32.mrf.mxu0
        %v2835 = vadd.f32 0.0, %v2834
        %v2836 = vpop.f32.mrf.mxu0
        %v2837 = vadd.f32 0.0, %v2836
        %v2838 = vpop.f32.mrf.mxu0
        %v2839 = vadd.f32 0.0, %v2838
        %v2840 = vpop.f32.mrf.mxu0
        %v2841 = vadd.f32 0.0, %v2840
        %2842 = vdwg.mxu0
        %v2844 = vsel %vm2410, %v2748, 0
        %2846 = vmatprep.subr.bf16.mxu0 0
        %2847 = vmatpush1.bf16.msra.mxu0 0
        %2848 = vmatprep.subr.bf16.mxu0 0
        %2849 = vmatpush1.bf16.msra.mxu0 0
        %2850 = vmatprep.subr.bf16.mxu0 0
        %2851 = vmatpush1.bf16.msra.mxu0 0
        %2852 = vmatprep.subr.bf16.mxu0 0
        %2853 = vmatpush1.bf16.msra.mxu0 0
        %2854 = vmatprep.subr.bf16.mxu0 0
        %2855 = vmatpush1.bf16.msra.mxu0 0
        %2856 = vmatprep.subr.bf16.mxu0 0
        %2857 = vmatpush1.bf16.msra.mxu0 0
        %2858 = vmatprep.subr.bf16.mxu0 0
        %2859 = vmatpush1.bf16.msra.mxu0 0
        %2860 = vmatprep.subr.bf16.mxu0 %v1754
        %2861 = vmatpush1.bf16.msra.mxu0 %v1753
        %2862 = vmatprep.subr.bf16.mxu0 0
        %2863 = vmatpush2.bf16.msra.mxu0 0
        %2864 = vmatprep.subr.bf16.mxu0 0
        %2865 = vmatpush2.bf16.msra.mxu0 0
        %2866 = vmatprep.subr.bf16.mxu0 0
        %2867 = vmatpush2.bf16.msra.mxu0 0
        %2868 = vmatprep.subr.bf16.mxu0 0
        %2869 = vmatpush2.bf16.msra.mxu0 0
        %2870 = vmatprep.subr.bf16.mxu0 0
        %2871 = vmatpush2.bf16.msra.mxu0 0
        %2872 = vmatprep.subr.bf16.mxu0 0
        %2873 = vmatpush2.bf16.msra.mxu0 0
        %2874 = vmatprep.subr.bf16.mxu0 0
        %2875 = vmatpush2.bf16.msra.mxu0 0
        %2876 = vmatprep.subr.bf16.mxu0 0
        %2877 = vmatpush2.bf16.msra.mxu0 0
        %2878 = vmatprep.mubr.bf16.mxu0 0
        %2879 = vmatmul.mubr.bf16.gmra.mxu0 %v2844
        %v2880 = vpop.f32.mrf.mxu0
        %v2881 = vadd.f32 0.0, %v2880
        %v2882 = vpop.f32.mrf.mxu0
        %v2883 = vadd.f32 0.0, %v2882
        %v2884 = vpop.f32.mrf.mxu0
        %v2885 = vadd.f32 0.0, %v2884
        %v2886 = vpop.f32.mrf.mxu0
        %v2887 = vadd.f32 0.0, %v2886
        %2888 = vdwg.mxu0
        %v2890 = vsel %vm2410, %v2749, 0
        %2892 = vmatprep.subr.bf16.mxu0 0
        %2893 = vmatpush1.bf16.msra.mxu0 0
        %2894 = vmatprep.subr.bf16.mxu0 0
        %2895 = vmatpush1.bf16.msra.mxu0 0
        %2896 = vmatprep.subr.bf16.mxu0 0
        %2897 = vmatpush1.bf16.msra.mxu0 0
        %2898 = vmatprep.subr.bf16.mxu0 0
        %2899 = vmatpush1.bf16.msra.mxu0 0
        %2900 = vmatprep.subr.bf16.mxu0 0
        %2901 = vmatpush1.bf16.msra.mxu0 0
        %2902 = vmatprep.subr.bf16.mxu0 0
        %2903 = vmatpush1.bf16.msra.mxu0 0
        %2904 = vmatprep.subr.bf16.mxu0 0
        %2905 = vmatpush1.bf16.msra.mxu0 0
        %2906 = vmatprep.subr.bf16.mxu0 %v1805
        %2907 = vmatpush1.bf16.msra.mxu0 %v1804
        %2908 = vmatprep.subr.bf16.mxu0 0
        %2909 = vmatpush2.bf16.msra.mxu0 0
        %2910 = vmatprep.subr.bf16.mxu0 0
        %2911 = vmatpush2.bf16.msra.mxu0 0
        %2912 = vmatprep.subr.bf16.mxu0 0
        %2913 = vmatpush2.bf16.msra.mxu0 0
        %2914 = vmatprep.subr.bf16.mxu0 0
        %2915 = vmatpush2.bf16.msra.mxu0 0
        %2916 = vmatprep.subr.bf16.mxu0 0
        %2917 = vmatpush2.bf16.msra.mxu0 0
        %2918 = vmatprep.subr.bf16.mxu0 0
        %2919 = vmatpush2.bf16.msra.mxu0 0
        %2920 = vmatprep.subr.bf16.mxu0 0
        %2921 = vmatpush2.bf16.msra.mxu0 0
        %2922 = vmatprep.subr.bf16.mxu0 0
        %2923 = vmatpush2.bf16.msra.mxu0 0
        %2924 = vmatprep.mubr.bf16.mxu0 0
        %2925 = vmatmul.mubr.bf16.gmra.mxu0 %v2890
        %v2926 = vpop.f32.mrf.mxu0
        %v2927 = vadd.f32 0.0, %v2926
        %v2928 = vpop.f32.mrf.mxu0
        %v2929 = vadd.f32 0.0, %v2928
        %v2930 = vpop.f32.mrf.mxu0
        %v2931 = vadd.f32 0.0, %v2930
        %v2932 = vpop.f32.mrf.mxu0
        %v2933 = vadd.f32 0.0, %v2932
        %2934 = vdwg.mxu0
        %v2936 = vsel %vm2410, %v2750, 0
        %2938 = vmatprep.subr.bf16.mxu0 0
        %2939 = vmatpush1.bf16.msra.mxu0 0
        %2940 = vmatprep.subr.bf16.mxu0 0
        %2941 = vmatpush1.bf16.msra.mxu0 0
        %2942 = vmatprep.subr.bf16.mxu0 0
        %2943 = vmatpush1.bf16.msra.mxu0 0
        %2944 = vmatprep.subr.bf16.mxu0 0
        %2945 = vmatpush1.bf16.msra.mxu0 0
        %2946 = vmatprep.subr.bf16.mxu0 0
        %2947 = vmatpush1.bf16.msra.mxu0 0
        %2948 = vmatprep.subr.bf16.mxu0 0
        %2949 = vmatpush1.bf16.msra.mxu0 0
        %2950 = vmatprep.subr.bf16.mxu0 0
        %2951 = vmatpush1.bf16.msra.mxu0 0
        %2952 = vmatprep.subr.bf16.mxu0 %v1856
        %2953 = vmatpush1.bf16.msra.mxu0 %v1855
        %2954 = vmatprep.subr.bf16.mxu0 0
        %2955 = vmatpush2.bf16.msra.mxu0 0
        %2956 = vmatprep.subr.bf16.mxu0 0
        %2957 = vmatpush2.bf16.msra.mxu0 0
        %2958 = vmatprep.subr.bf16.mxu0 0
        %2959 = vmatpush2.bf16.msra.mxu0 0
        %2960 = vmatprep.subr.bf16.mxu0 0
        %2961 = vmatpush2.bf16.msra.mxu0 0
        %2962 = vmatprep.subr.bf16.mxu0 0
        %2963 = vmatpush2.bf16.msra.mxu0 0
        %2964 = vmatprep.subr.bf16.mxu0 0
        %2965 = vmatpush2.bf16.msra.mxu0 0
        %2966 = vmatprep.subr.bf16.mxu0 0
        %2967 = vmatpush2.bf16.msra.mxu0 0
        %2968 = vmatprep.subr.bf16.mxu0 0
        %2969 = vmatpush2.bf16.msra.mxu0 0
        %2970 = vmatprep.mubr.bf16.mxu0 0
        %2971 = vmatmul.mubr.bf16.gmra.mxu0 %v2936
        %v2972 = vpop.f32.mrf.mxu0
        %v2973 = vadd.f32 0.0, %v2972
        %v2974 = vpop.f32.mrf.mxu0
        %v2975 = vadd.f32 0.0, %v2974
        %v2976 = vpop.f32.mrf.mxu0
        %v2977 = vadd.f32 0.0, %v2976
        %v2978 = vpop.f32.mrf.mxu0
        %v2979 = vadd.f32 0.0, %v2978
        %2980 = vdwg.mxu0
        %2981 = vmatprep.subr.bf16.mxu0 0
        %2982 = vmatpush1.bf16.msra.mxu0 0
        %2983 = vmatprep.subr.bf16.mxu0 0
        %2984 = vmatpush1.bf16.msra.mxu0 0
        %2985 = vmatprep.subr.bf16.mxu0 0
        %2986 = vmatpush1.bf16.msra.mxu0 0
        %2987 = vmatprep.subr.bf16.mxu0 0
        %2988 = vmatpush1.bf16.msra.mxu0 0
        %2989 = vmatprep.subr.bf16.mxu0 0
        %2990 = vmatpush1.bf16.msra.mxu0 0
        %2991 = vmatprep.subr.bf16.mxu0 0
        %2992 = vmatpush1.bf16.msra.mxu0 0
        %2993 = vmatprep.subr.bf16.mxu0 0
        %2994 = vmatpush1.bf16.msra.mxu0 0
        %2995 = vmatprep.subr.bf16.mxu0 %v1397
        %2996 = vmatpush1.bf16.msra.mxu0 %v1396
        %2997 = vmatprep.subr.bf16.mxu0 0
        %2998 = vmatpush2.bf16.msra.mxu0 0
        %2999 = vmatprep.subr.bf16.mxu0 0
        %3000 = vmatpush2.bf16.msra.mxu0 0
        %3001 = vmatprep.subr.bf16.mxu0 0
        %3002 = vmatpush2.bf16.msra.mxu0 0
        %3003 = vmatprep.subr.bf16.mxu0 0
        %3004 = vmatpush2.bf16.msra.mxu0 0
        %3005 = vmatprep.subr.bf16.mxu0 0
        %3006 = vmatpush2.bf16.msra.mxu0 0
        %3007 = vmatprep.subr.bf16.mxu0 0
        %3008 = vmatpush2.bf16.msra.mxu0 0
        %3009 = vmatprep.subr.bf16.mxu0 0
        %3010 = vmatpush2.bf16.msra.mxu0 0
        %3011 = vmatprep.subr.bf16.mxu0 0
        %3012 = vmatpush2.bf16.msra.mxu0 0
        %3013 = vmatprep.mubr.bf16.mxu0 0
        %3014 = vmatmul.mubr.bf16.gmra.mxu0 %v2752
        %v3015 = vpop.f32.mrf.mxu0
        %v3016 = vadd.f32 0.0, %v3015
        %v3017 = vpop.f32.mrf.mxu0
        %v3018 = vadd.f32 0.0, %v3017
        %v3019 = vpop.f32.mrf.mxu0
        %v3020 = vadd.f32 0.0, %v3019
        %v3021 = vpop.f32.mrf.mxu0
        %v3022 = vadd.f32 0.0, %v3021
        %3023 = vdwg.mxu0
        %3024 = vmatprep.subr.bf16.mxu0 0
        %3025 = vmatpush1.bf16.msra.mxu0 0
        %3026 = vmatprep.subr.bf16.mxu0 0
        %3027 = vmatpush1.bf16.msra.mxu0 0
        %3028 = vmatprep.subr.bf16.mxu0 0
        %3029 = vmatpush1.bf16.msra.mxu0 0
        %3030 = vmatprep.subr.bf16.mxu0 0
        %3031 = vmatpush1.bf16.msra.mxu0 0
        %3032 = vmatprep.subr.bf16.mxu0 0
        %3033 = vmatpush1.bf16.msra.mxu0 0
        %3034 = vmatprep.subr.bf16.mxu0 0
        %3035 = vmatpush1.bf16.msra.mxu0 0
        %3036 = vmatprep.subr.bf16.mxu0 0
        %3037 = vmatpush1.bf16.msra.mxu0 0
        %3038 = vmatprep.subr.bf16.mxu0 %v1448
        %3039 = vmatpush1.bf16.msra.mxu0 %v1447
        %3040 = vmatprep.subr.bf16.mxu0 0
        %3041 = vmatpush2.bf16.msra.mxu0 0
        %3042 = vmatprep.subr.bf16.mxu0 0
        %3043 = vmatpush2.bf16.msra.mxu0 0
        %3044 = vmatprep.subr.bf16.mxu0 0
        %3045 = vmatpush2.bf16.msra.mxu0 0
        %3046 = vmatprep.subr.bf16.mxu0 0
        %3047 = vmatpush2.bf16.msra.mxu0 0
        %3048 = vmatprep.subr.bf16.mxu0 0
        %3049 = vmatpush2.bf16.msra.mxu0 0
        %3050 = vmatprep.subr.bf16.mxu0 0
        %3051 = vmatpush2.bf16.msra.mxu0 0
        %3052 = vmatprep.subr.bf16.mxu0 0
        %3053 = vmatpush2.bf16.msra.mxu0 0
        %3054 = vmatprep.subr.bf16.mxu0 0
        %3055 = vmatpush2.bf16.msra.mxu0 0
        %3056 = vmatprep.mubr.bf16.mxu0 0
        %3057 = vmatmul.mubr.bf16.gmra.mxu0 %v2798
        %v3058 = vpop.f32.mrf.mxu0
        %v3059 = vadd.f32 0.0, %v3058
        %v3060 = vpop.f32.mrf.mxu0
        %v3061 = vadd.f32 0.0, %v3060
        %v3062 = vpop.f32.mrf.mxu0
        %v3063 = vadd.f32 0.0, %v3062
        %v3064 = vpop.f32.mrf.mxu0
        %v3065 = vadd.f32 0.0, %v3064
        %3066 = vdwg.mxu0
        %3067 = vmatprep.subr.bf16.mxu0 0
        %3068 = vmatpush1.bf16.msra.mxu0 0
        %3069 = vmatprep.subr.bf16.mxu0 0
        %3070 = vmatpush1.bf16.msra.mxu0 0
        %3071 = vmatprep.subr.bf16.mxu0 0
        %3072 = vmatpush1.bf16.msra.mxu0 0
        %3073 = vmatprep.subr.bf16.mxu0 0
        %3074 = vmatpush1.bf16.msra.mxu0 0
        %3075 = vmatprep.subr.bf16.mxu0 0
        %3076 = vmatpush1.bf16.msra.mxu0 0
        %3077 = vmatprep.subr.bf16.mxu0 0
        %3078 = vmatpush1.bf16.msra.mxu0 0
        %3079 = vmatprep.subr.bf16.mxu0 0
        %3080 = vmatpush1.bf16.msra.mxu0 0
        %3081 = vmatprep.subr.bf16.mxu0 %v1499
        %3082 = vmatpush1.bf16.msra.mxu0 %v1498
        %3083 = vmatprep.subr.bf16.mxu0 0
        %3084 = vmatpush2.bf16.msra.mxu0 0
        %3085 = vmatprep.subr.bf16.mxu0 0
        %3086 = vmatpush2.bf16.msra.mxu0 0
        %3087 = vmatprep.subr.bf16.mxu0 0
        %3088 = vmatpush2.bf16.msra.mxu0 0
        %3089 = vmatprep.subr.bf16.mxu0 0
        %3090 = vmatpush2.bf16.msra.mxu0 0
        %3091 = vmatprep.subr.bf16.mxu0 0
        %3092 = vmatpush2.bf16.msra.mxu0 0
        %3093 = vmatprep.subr.bf16.mxu0 0
        %3094 = vmatpush2.bf16.msra.mxu0 0
        %3095 = vmatprep.subr.bf16.mxu0 0
        %3096 = vmatpush2.bf16.msra.mxu0 0
        %3097 = vmatprep.subr.bf16.mxu0 0
        %3098 = vmatpush2.bf16.msra.mxu0 0
        %3099 = vmatprep.mubr.bf16.mxu0 0
        %3100 = vmatmul.mubr.bf16.gmra.mxu0 %v2844
        %v3101 = vpop.f32.mrf.mxu0
        %v3102 = vadd.f32 0.0, %v3101
        %v3103 = vpop.f32.mrf.mxu0
        %v3104 = vadd.f32 0.0, %v3103
        %v3105 = vpop.f32.mrf.mxu0
        %v3106 = vadd.f32 0.0, %v3105
        %v3107 = vpop.f32.mrf.mxu0
        %v3108 = vadd.f32 0.0, %v3107
        %3109 = vdwg.mxu0
        %3110 = vmatprep.subr.bf16.mxu0 0
        %3111 = vmatpush1.bf16.msra.mxu0 0
        %3112 = vmatprep.subr.bf16.mxu0 0
        %3113 = vmatpush1.bf16.msra.mxu0 0
        %3114 = vmatprep.subr.bf16.mxu0 0
        %3115 = vmatpush1.bf16.msra.mxu0 0
        %3116 = vmatprep.subr.bf16.mxu0 0
        %3117 = vmatpush1.bf16.msra.mxu0 0
        %3118 = vmatprep.subr.bf16.mxu0 0
        %3119 = vmatpush1.bf16.msra.mxu0 0
        %3120 = vmatprep.subr.bf16.mxu0 0
        %3121 = vmatpush1.bf16.msra.mxu0 0
        %3122 = vmatprep.subr.bf16.mxu0 0
        %3123 = vmatpush1.bf16.msra.mxu0 0
        %3124 = vmatprep.subr.bf16.mxu0 %v1550
        %3125 = vmatpush1.bf16.msra.mxu0 %v1549
        %3126 = vmatprep.subr.bf16.mxu0 0
        %3127 = vmatpush2.bf16.msra.mxu0 0
        %3128 = vmatprep.subr.bf16.mxu0 0
        %3129 = vmatpush2.bf16.msra.mxu0 0
        %3130 = vmatprep.subr.bf16.mxu0 0
        %3131 = vmatpush2.bf16.msra.mxu0 0
        %3132 = vmatprep.subr.bf16.mxu0 0
        %3133 = vmatpush2.bf16.msra.mxu0 0
        %3134 = vmatprep.subr.bf16.mxu0 0
        %3135 = vmatpush2.bf16.msra.mxu0 0
        %3136 = vmatprep.subr.bf16.mxu0 0
        %3137 = vmatpush2.bf16.msra.mxu0 0
        %3138 = vmatprep.subr.bf16.mxu0 0
        %3139 = vmatpush2.bf16.msra.mxu0 0
        %3140 = vmatprep.subr.bf16.mxu0 0
        %3141 = vmatpush2.bf16.msra.mxu0 0
        %3142 = vmatprep.mubr.bf16.mxu0 0
        %3143 = vmatmul.mubr.bf16.gmra.mxu0 %v2890
        %v3144 = vpop.f32.mrf.mxu0
        %v3145 = vadd.f32 0.0, %v3144
        %v3146 = vpop.f32.mrf.mxu0
        %v3147 = vadd.f32 0.0, %v3146
        %v3148 = vpop.f32.mrf.mxu0
        %v3149 = vadd.f32 0.0, %v3148
        %v3150 = vpop.f32.mrf.mxu0
        %v3151 = vadd.f32 0.0, %v3150
        %3152 = vdwg.mxu0
        %3153 = vmatprep.subr.bf16.mxu0 0
        %3154 = vmatpush1.bf16.msra.mxu0 0
        %3155 = vmatprep.subr.bf16.mxu0 0
        %3156 = vmatpush1.bf16.msra.mxu0 0
        %3157 = vmatprep.subr.bf16.mxu0 0
        %3158 = vmatpush1.bf16.msra.mxu0 0
        %3159 = vmatprep.subr.bf16.mxu0 0
        %3160 = vmatpush1.bf16.msra.mxu0 0
        %3161 = vmatprep.subr.bf16.mxu0 0
        %3162 = vmatpush1.bf16.msra.mxu0 0
        %3163 = vmatprep.subr.bf16.mxu0 0
        %3164 = vmatpush1.bf16.msra.mxu0 0
        %3165 = vmatprep.subr.bf16.mxu0 0
        %3166 = vmatpush1.bf16.msra.mxu0 0
        %3167 = vmatprep.subr.bf16.mxu0 %v1601
        %3168 = vmatpush1.bf16.msra.mxu0 %v1600
        %3169 = vmatprep.subr.bf16.mxu0 0
        %3170 = vmatpush2.bf16.msra.mxu0 0
        %3171 = vmatprep.subr.bf16.mxu0 0
        %3172 = vmatpush2.bf16.msra.mxu0 0
        %3173 = vmatprep.subr.bf16.mxu0 0
        %3174 = vmatpush2.bf16.msra.mxu0 0
        %3175 = vmatprep.subr.bf16.mxu0 0
        %3176 = vmatpush2.bf16.msra.mxu0 0
        %3177 = vmatprep.subr.bf16.mxu0 0
        %3178 = vmatpush2.bf16.msra.mxu0 0
        %3179 = vmatprep.subr.bf16.mxu0 0
        %3180 = vmatpush2.bf16.msra.mxu0 0
        %3181 = vmatprep.subr.bf16.mxu0 0
        %3182 = vmatpush2.bf16.msra.mxu0 0
        %3183 = vmatprep.subr.bf16.mxu0 0
        %3184 = vmatpush2.bf16.msra.mxu0 0
        %3185 = vmatprep.mubr.bf16.mxu0 0
        %3186 = vmatmul.mubr.bf16.gmra.mxu0 %v2936
        %v3187 = vpop.f32.mrf.mxu0
        %v3188 = vadd.f32 0.0, %v3187
        %v3189 = vpop.f32.mrf.mxu0
        %v3190 = vadd.f32 0.0, %v3189
        %v3191 = vpop.f32.mrf.mxu0
        %v3192 = vadd.f32 0.0, %v3191
        %v3193 = vpop.f32.mrf.mxu0
        %v3194 = vadd.f32 0.0, %v3193
        %3195 = vdwg.mxu0
        %v3197 = vsel %vm2410, %v2741, 0
        %3199 = vmatprep.subr.bf16.mxu0 0
        %3200 = vmatpush1.bf16.msra.mxu0 0
        %3201 = vmatprep.subr.bf16.mxu0 0
        %3202 = vmatpush1.bf16.msra.mxu0 0
        %3203 = vmatprep.subr.bf16.mxu0 0
        %3204 = vmatpush1.bf16.msra.mxu0 0
        %3205 = vmatprep.subr.bf16.mxu0 0
        %3206 = vmatpush1.bf16.msra.mxu0 0
        %3207 = vmatprep.subr.bf16.mxu0 0
        %3208 = vmatpush1.bf16.msra.mxu0 0
        %3209 = vmatprep.subr.bf16.mxu0 0
        %3210 = vmatpush1.bf16.msra.mxu0 0
        %3211 = vmatprep.subr.bf16.mxu0 0
        %3212 = vmatpush1.bf16.msra.mxu0 0
        %3213 = vmatprep.subr.bf16.mxu0 %v1102
        %3214 = vmatpush1.bf16.msra.mxu0 %v1101
        %3215 = vmatprep.subr.bf16.mxu0 0
        %3216 = vmatpush2.bf16.msra.mxu0 0
        %3217 = vmatprep.subr.bf16.mxu0 0
        %3218 = vmatpush2.bf16.msra.mxu0 0
        %3219 = vmatprep.subr.bf16.mxu0 0
        %3220 = vmatpush2.bf16.msra.mxu0 0
        %3221 = vmatprep.subr.bf16.mxu0 0
        %3222 = vmatpush2.bf16.msra.mxu0 0
        %3223 = vmatprep.subr.bf16.mxu0 0
        %3224 = vmatpush2.bf16.msra.mxu0 0
        %3225 = vmatprep.subr.bf16.mxu0 0
        %3226 = vmatpush2.bf16.msra.mxu0 0
        %3227 = vmatprep.subr.bf16.mxu0 0
        %3228 = vmatpush2.bf16.msra.mxu0 0
        %3229 = vmatprep.subr.bf16.mxu0 0
        %3230 = vmatpush2.bf16.msra.mxu0 0
        %3231 = vmatprep.mubr.bf16.mxu0 0
        %3232 = vmatmul.mubr.bf16.gmra.mxu0 %v3197
        %v3233 = vpop.f32.mrf.mxu0
        %v3234 = vadd.f32 %v2789, %v3233
        %v3235 = vpop.f32.mrf.mxu0
        %v3236 = vadd.f32 %v2791, %v3235
        %v3237 = vpop.f32.mrf.mxu0
        %v3238 = vadd.f32 %v2793, %v3237
        %v3239 = vpop.f32.mrf.mxu0
        %v3240 = vadd.f32 %v2795, %v3239
        %3241 = vdwg.mxu0
        %v3243 = vsel %vm2410, %v2742, 0
        %3245 = vmatprep.subr.bf16.mxu0 0
        %3246 = vmatpush1.bf16.msra.mxu0 0
        %3247 = vmatprep.subr.bf16.mxu0 0
        %3248 = vmatpush1.bf16.msra.mxu0 0
        %3249 = vmatprep.subr.bf16.mxu0 0
        %3250 = vmatpush1.bf16.msra.mxu0 0
        %3251 = vmatprep.subr.bf16.mxu0 0
        %3252 = vmatpush1.bf16.msra.mxu0 0
        %3253 = vmatprep.subr.bf16.mxu0 0
        %3254 = vmatpush1.bf16.msra.mxu0 0
        %3255 = vmatprep.subr.bf16.mxu0 0
        %3256 = vmatpush1.bf16.msra.mxu0 0
        %3257 = vmatprep.subr.bf16.mxu0 0
        %3258 = vmatpush1.bf16.msra.mxu0 0
        %3259 = vmatprep.subr.bf16.mxu0 %v1163
        %3260 = vmatpush1.bf16.msra.mxu0 %v1162
        %3261 = vmatprep.subr.bf16.mxu0 0
        %3262 = vmatpush2.bf16.msra.mxu0 0
        %3263 = vmatprep.subr.bf16.mxu0 0
        %3264 = vmatpush2.bf16.msra.mxu0 0
        %3265 = vmatprep.subr.bf16.mxu0 0
        %3266 = vmatpush2.bf16.msra.mxu0 0
        %3267 = vmatprep.subr.bf16.mxu0 0
        %3268 = vmatpush2.bf16.msra.mxu0 0
        %3269 = vmatprep.subr.bf16.mxu0 0
        %3270 = vmatpush2.bf16.msra.mxu0 0
        %3271 = vmatprep.subr.bf16.mxu0 0
        %3272 = vmatpush2.bf16.msra.mxu0 0
        %3273 = vmatprep.subr.bf16.mxu0 0
        %3274 = vmatpush2.bf16.msra.mxu0 0
        %3275 = vmatprep.subr.bf16.mxu0 0
        %3276 = vmatpush2.bf16.msra.mxu0 0
        %3277 = vmatprep.mubr.bf16.mxu0 0
        %3278 = vmatmul.mubr.bf16.gmra.mxu0 %v3243
        %v3279 = vpop.f32.mrf.mxu0
        %v3280 = vadd.f32 %v2835, %v3279
        %v3281 = vpop.f32.mrf.mxu0
        %v3282 = vadd.f32 %v2837, %v3281
        %v3283 = vpop.f32.mrf.mxu0
        %v3284 = vadd.f32 %v2839, %v3283
        %v3285 = vpop.f32.mrf.mxu0
        %v3286 = vadd.f32 %v2841, %v3285
        %3287 = vdwg.mxu0
        %v3289 = vsel %vm2410, %v2743, 0
        %3291 = vmatprep.subr.bf16.mxu0 0
        %3292 = vmatpush1.bf16.msra.mxu0 0
        %3293 = vmatprep.subr.bf16.mxu0 0
        %3294 = vmatpush1.bf16.msra.mxu0 0
        %3295 = vmatprep.subr.bf16.mxu0 0
        %3296 = vmatpush1.bf16.msra.mxu0 0
        %3297 = vmatprep.subr.bf16.mxu0 0
        %3298 = vmatpush1.bf16.msra.mxu0 0
        %3299 = vmatprep.subr.bf16.mxu0 0
        %3300 = vmatpush1.bf16.msra.mxu0 0
        %3301 = vmatprep.subr.bf16.mxu0 0
        %3302 = vmatpush1.bf16.msra.mxu0 0
        %3303 = vmatprep.subr.bf16.mxu0 0
        %3304 = vmatpush1.bf16.msra.mxu0 0
        %3305 = vmatprep.subr.bf16.mxu0 %v1224
        %3306 = vmatpush1.bf16.msra.mxu0 %v1223
        %3307 = vmatprep.subr.bf16.mxu0 0
        %3308 = vmatpush2.bf16.msra.mxu0 0
        %3309 = vmatprep.subr.bf16.mxu0 0
        %3310 = vmatpush2.bf16.msra.mxu0 0
        %3311 = vmatprep.subr.bf16.mxu0 0
        %3312 = vmatpush2.bf16.msra.mxu0 0
        %3313 = vmatprep.subr.bf16.mxu0 0
        %3314 = vmatpush2.bf16.msra.mxu0 0
        %3315 = vmatprep.subr.bf16.mxu0 0
        %3316 = vmatpush2.bf16.msra.mxu0 0
        %3317 = vmatprep.subr.bf16.mxu0 0
        %3318 = vmatpush2.bf16.msra.mxu0 0
        %3319 = vmatprep.subr.bf16.mxu0 0
        %3320 = vmatpush2.bf16.msra.mxu0 0
        %3321 = vmatprep.subr.bf16.mxu0 0
        %3322 = vmatpush2.bf16.msra.mxu0 0
        %3323 = vmatprep.mubr.bf16.mxu0 0
        %3324 = vmatmul.mubr.bf16.gmra.mxu0 %v3289
        %v3325 = vpop.f32.mrf.mxu0
        %v3326 = vadd.f32 %v2881, %v3325
        %v3327 = vpop.f32.mrf.mxu0
        %v3328 = vadd.f32 %v2883, %v3327
        %v3329 = vpop.f32.mrf.mxu0
        %v3330 = vadd.f32 %v2885, %v3329
        %v3331 = vpop.f32.mrf.mxu0
        %v3332 = vadd.f32 %v2887, %v3331
        %3333 = vdwg.mxu0
        %v3335 = vsel %vm2410, %v2744, 0
        %3337 = vmatprep.subr.bf16.mxu0 0
        %3338 = vmatpush1.bf16.msra.mxu0 0
        %3339 = vmatprep.subr.bf16.mxu0 0
        %3340 = vmatpush1.bf16.msra.mxu0 0
        %3341 = vmatprep.subr.bf16.mxu0 0
        %3342 = vmatpush1.bf16.msra.mxu0 0
        %3343 = vmatprep.subr.bf16.mxu0 0
        %3344 = vmatpush1.bf16.msra.mxu0 0
        %3345 = vmatprep.subr.bf16.mxu0 0
        %3346 = vmatpush1.bf16.msra.mxu0 0
        %3347 = vmatprep.subr.bf16.mxu0 0
        %3348 = vmatpush1.bf16.msra.mxu0 0
        %3349 = vmatprep.subr.bf16.mxu0 0
        %3350 = vmatpush1.bf16.msra.mxu0 0
        %3351 = vmatprep.subr.bf16.mxu0 %v1285
        %3352 = vmatpush1.bf16.msra.mxu0 %v1284
        %3353 = vmatprep.subr.bf16.mxu0 0
        %3354 = vmatpush2.bf16.msra.mxu0 0
        %3355 = vmatprep.subr.bf16.mxu0 0
        %3356 = vmatpush2.bf16.msra.mxu0 0
        %3357 = vmatprep.subr.bf16.mxu0 0
        %3358 = vmatpush2.bf16.msra.mxu0 0
        %3359 = vmatprep.subr.bf16.mxu0 0
        %3360 = vmatpush2.bf16.msra.mxu0 0
        %3361 = vmatprep.subr.bf16.mxu0 0
        %3362 = vmatpush2.bf16.msra.mxu0 0
        %3363 = vmatprep.subr.bf16.mxu0 0
        %3364 = vmatpush2.bf16.msra.mxu0 0
        %3365 = vmatprep.subr.bf16.mxu0 0
        %3366 = vmatpush2.bf16.msra.mxu0 0
        %3367 = vmatprep.subr.bf16.mxu0 0
        %3368 = vmatpush2.bf16.msra.mxu0 0
        %3369 = vmatprep.mubr.bf16.mxu0 0
        %3370 = vmatmul.mubr.bf16.gmra.mxu0 %v3335
        %v3371 = vpop.f32.mrf.mxu0
        %v3372 = vadd.f32 %v2927, %v3371
        %v3373 = vpop.f32.mrf.mxu0
        %v3374 = vadd.f32 %v2929, %v3373
        %v3375 = vpop.f32.mrf.mxu0
        %v3376 = vadd.f32 %v2931, %v3375
        %v3377 = vpop.f32.mrf.mxu0
        %v3378 = vadd.f32 %v2933, %v3377
        %3379 = vdwg.mxu0
        %v3381 = vsel %vm2410, %v2745, 0
        %3383 = vmatprep.subr.bf16.mxu0 0
        %3384 = vmatpush1.bf16.msra.mxu0 0
        %3385 = vmatprep.subr.bf16.mxu0 0
        %3386 = vmatpush1.bf16.msra.mxu0 0
        %3387 = vmatprep.subr.bf16.mxu0 0
        %3388 = vmatpush1.bf16.msra.mxu0 0
        %3389 = vmatprep.subr.bf16.mxu0 0
        %3390 = vmatpush1.bf16.msra.mxu0 0
        %3391 = vmatprep.subr.bf16.mxu0 0
        %3392 = vmatpush1.bf16.msra.mxu0 0
        %3393 = vmatprep.subr.bf16.mxu0 0
        %3394 = vmatpush1.bf16.msra.mxu0 0
        %3395 = vmatprep.subr.bf16.mxu0 0
        %3396 = vmatpush1.bf16.msra.mxu0 0
        %3397 = vmatprep.subr.bf16.mxu0 %v1346
        %3398 = vmatpush1.bf16.msra.mxu0 %v1345
        %3399 = vmatprep.subr.bf16.mxu0 0
        %3400 = vmatpush2.bf16.msra.mxu0 0
        %3401 = vmatprep.subr.bf16.mxu0 0
        %3402 = vmatpush2.bf16.msra.mxu0 0
        %3403 = vmatprep.subr.bf16.mxu0 0
        %3404 = vmatpush2.bf16.msra.mxu0 0
        %3405 = vmatprep.subr.bf16.mxu0 0
        %3406 = vmatpush2.bf16.msra.mxu0 0
        %3407 = vmatprep.subr.bf16.mxu0 0
        %3408 = vmatpush2.bf16.msra.mxu0 0
        %3409 = vmatprep.subr.bf16.mxu0 0
        %3410 = vmatpush2.bf16.msra.mxu0 0
        %3411 = vmatprep.subr.bf16.mxu0 0
        %3412 = vmatpush2.bf16.msra.mxu0 0
        %3413 = vmatprep.subr.bf16.mxu0 0
        %3414 = vmatpush2.bf16.msra.mxu0 0
        %3415 = vmatprep.mubr.bf16.mxu0 0
        %3416 = vmatmul.mubr.bf16.gmra.mxu0 %v3381
        %v3417 = vpop.f32.mrf.mxu0
        %v3418 = vadd.f32 %v2973, %v3417
        %v3419 = vpop.f32.mrf.mxu0
        %v3420 = vadd.f32 %v2975, %v3419
        %v3421 = vpop.f32.mrf.mxu0
        %v3422 = vadd.f32 %v2977, %v3421
        %v3423 = vpop.f32.mrf.mxu0
        %v3424 = vadd.f32 %v2979, %v3423
        %3425 = vdwg.mxu0
        %3426 = vmatprep.subr.bf16.mxu0 0
        %3427 = vmatpush1.bf16.msra.mxu0 0
        %3428 = vmatprep.subr.bf16.mxu0 0
        %3429 = vmatpush1.bf16.msra.mxu0 0
        %3430 = vmatprep.subr.bf16.mxu0 0
        %3431 = vmatpush1.bf16.msra.mxu0 0
        %3432 = vmatprep.subr.bf16.mxu0 0
        %3433 = vmatpush1.bf16.msra.mxu0 0
        %3434 = vmatprep.subr.bf16.mxu0 0
        %3435 = vmatpush1.bf16.msra.mxu0 0
        %3436 = vmatprep.subr.bf16.mxu0 0
        %3437 = vmatpush1.bf16.msra.mxu0 0
        %3438 = vmatprep.subr.bf16.mxu0 0
        %3439 = vmatpush1.bf16.msra.mxu0 0
        %3440 = vmatprep.subr.bf16.mxu0 %v797
        %3441 = vmatpush1.bf16.msra.mxu0 %v796
        %3442 = vmatprep.subr.bf16.mxu0 0
        %3443 = vmatpush2.bf16.msra.mxu0 0
        %3444 = vmatprep.subr.bf16.mxu0 0
        %3445 = vmatpush2.bf16.msra.mxu0 0
        %3446 = vmatprep.subr.bf16.mxu0 0
        %3447 = vmatpush2.bf16.msra.mxu0 0
        %3448 = vmatprep.subr.bf16.mxu0 0
        %3449 = vmatpush2.bf16.msra.mxu0 0
        %3450 = vmatprep.subr.bf16.mxu0 0
        %3451 = vmatpush2.bf16.msra.mxu0 0
        %3452 = vmatprep.subr.bf16.mxu0 0
        %3453 = vmatpush2.bf16.msra.mxu0 0
        %3454 = vmatprep.subr.bf16.mxu0 0
        %3455 = vmatpush2.bf16.msra.mxu0 0
        %3456 = vmatprep.subr.bf16.mxu0 0
        %3457 = vmatpush2.bf16.msra.mxu0 0
        %3458 = vmatprep.mubr.bf16.mxu0 0
        %3459 = vmatmul.mubr.bf16.gmra.mxu0 %v3197
        %v3460 = vpop.f32.mrf.mxu0
        %v3461 = vadd.f32 %v3016, %v3460
        %v3462 = vpop.f32.mrf.mxu0
        %v3463 = vadd.f32 %v3018, %v3462
        %v3464 = vpop.f32.mrf.mxu0
        %v3465 = vadd.f32 %v3020, %v3464
        %v3466 = vpop.f32.mrf.mxu0
        %v3467 = vadd.f32 %v3022, %v3466
        %3468 = vdwg.mxu0
        %3469 = vmatprep.subr.bf16.mxu0 0
        %3470 = vmatpush1.bf16.msra.mxu0 0
        %3471 = vmatprep.subr.bf16.mxu0 0
        %3472 = vmatpush1.bf16.msra.mxu0 0
        %3473 = vmatprep.subr.bf16.mxu0 0
        %3474 = vmatpush1.bf16.msra.mxu0 0
        %3475 = vmatprep.subr.bf16.mxu0 0
        %3476 = vmatpush1.bf16.msra.mxu0 0
        %3477 = vmatprep.subr.bf16.mxu0 0
        %3478 = vmatpush1.bf16.msra.mxu0 0
        %3479 = vmatprep.subr.bf16.mxu0 0
        %3480 = vmatpush1.bf16.msra.mxu0 0
        %3481 = vmatprep.subr.bf16.mxu0 0
        %3482 = vmatpush1.bf16.msra.mxu0 0
        %3483 = vmatprep.subr.bf16.mxu0 %v858
        %3484 = vmatpush1.bf16.msra.mxu0 %v857
        %3485 = vmatprep.subr.bf16.mxu0 0
        %3486 = vmatpush2.bf16.msra.mxu0 0
        %3487 = vmatprep.subr.bf16.mxu0 0
        %3488 = vmatpush2.bf16.msra.mxu0 0
        %3489 = vmatprep.subr.bf16.mxu0 0
        %3490 = vmatpush2.bf16.msra.mxu0 0
        %3491 = vmatprep.subr.bf16.mxu0 0
        %3492 = vmatpush2.bf16.msra.mxu0 0
        %3493 = vmatprep.subr.bf16.mxu0 0
        %3494 = vmatpush2.bf16.msra.mxu0 0
        %3495 = vmatprep.subr.bf16.mxu0 0
        %3496 = vmatpush2.bf16.msra.mxu0 0
        %3497 = vmatprep.subr.bf16.mxu0 0
        %3498 = vmatpush2.bf16.msra.mxu0 0
        %3499 = vmatprep.subr.bf16.mxu0 0
        %3500 = vmatpush2.bf16.msra.mxu0 0
        %3501 = vmatprep.mubr.bf16.mxu0 0
        %3502 = vmatmul.mubr.bf16.gmra.mxu0 %v3243
        %v3503 = vpop.f32.mrf.mxu0
        %v3504 = vadd.f32 %v3059, %v3503
        %v3505 = vpop.f32.mrf.mxu0
        %v3506 = vadd.f32 %v3061, %v3505
        %v3507 = vpop.f32.mrf.mxu0
        %v3508 = vadd.f32 %v3063, %v3507
        %v3509 = vpop.f32.mrf.mxu0
        %v3510 = vadd.f32 %v3065, %v3509
        %3511 = vdwg.mxu0
        %3512 = vmatprep.subr.bf16.mxu0 0
        %3513 = vmatpush1.bf16.msra.mxu0 0
        %3514 = vmatprep.subr.bf16.mxu0 0
        %3515 = vmatpush1.bf16.msra.mxu0 0
        %3516 = vmatprep.subr.bf16.mxu0 0
        %3517 = vmatpush1.bf16.msra.mxu0 0
        %3518 = vmatprep.subr.bf16.mxu0 0
        %3519 = vmatpush1.bf16.msra.mxu0 0
        %3520 = vmatprep.subr.bf16.mxu0 0
        %3521 = vmatpush1.bf16.msra.mxu0 0
        %3522 = vmatprep.subr.bf16.mxu0 0
        %3523 = vmatpush1.bf16.msra.mxu0 0
        %3524 = vmatprep.subr.bf16.mxu0 0
        %3525 = vmatpush1.bf16.msra.mxu0 0
        %3526 = vmatprep.subr.bf16.mxu0 %v919
        %3527 = vmatpush1.bf16.msra.mxu0 %v918
        %3528 = vmatprep.subr.bf16.mxu0 0
        %3529 = vmatpush2.bf16.msra.mxu0 0
        %3530 = vmatprep.subr.bf16.mxu0 0
        %3531 = vmatpush2.bf16.msra.mxu0 0
        %3532 = vmatprep.subr.bf16.mxu0 0
        %3533 = vmatpush2.bf16.msra.mxu0 0
        %3534 = vmatprep.subr.bf16.mxu0 0
        %3535 = vmatpush2.bf16.msra.mxu0 0
        %3536 = vmatprep.subr.bf16.mxu0 0
        %3537 = vmatpush2.bf16.msra.mxu0 0
        %3538 = vmatprep.subr.bf16.mxu0 0
        %3539 = vmatpush2.bf16.msra.mxu0 0
        %3540 = vmatprep.subr.bf16.mxu0 0
        %3541 = vmatpush2.bf16.msra.mxu0 0
        %3542 = vmatprep.subr.bf16.mxu0 0
        %3543 = vmatpush2.bf16.msra.mxu0 0
        %3544 = vmatprep.mubr.bf16.mxu0 0
        %3545 = vmatmul.mubr.bf16.gmra.mxu0 %v3289
        %v3546 = vpop.f32.mrf.mxu0
        %v3547 = vadd.f32 %v3102, %v3546
        %v3548 = vpop.f32.mrf.mxu0
        %v3549 = vadd.f32 %v3104, %v3548
        %v3550 = vpop.f32.mrf.mxu0
        %v3551 = vadd.f32 %v3106, %v3550
        %v3552 = vpop.f32.mrf.mxu0
        %v3553 = vadd.f32 %v3108, %v3552
        %3554 = vdwg.mxu0
        %3555 = vmatprep.subr.bf16.mxu0 0
        %3556 = vmatpush1.bf16.msra.mxu0 0
        %3557 = vmatprep.subr.bf16.mxu0 0
        %3558 = vmatpush1.bf16.msra.mxu0 0
        %3559 = vmatprep.subr.bf16.mxu0 0
        %3560 = vmatpush1.bf16.msra.mxu0 0
        %3561 = vmatprep.subr.bf16.mxu0 0
        %3562 = vmatpush1.bf16.msra.mxu0 0
        %3563 = vmatprep.subr.bf16.mxu0 0
        %3564 = vmatpush1.bf16.msra.mxu0 0
        %3565 = vmatprep.subr.bf16.mxu0 0
        %3566 = vmatpush1.bf16.msra.mxu0 0
        %3567 = vmatprep.subr.bf16.mxu0 0
        %3568 = vmatpush1.bf16.msra.mxu0 0
        %3569 = vmatprep.subr.bf16.mxu0 %v980
        %3570 = vmatpush1.bf16.msra.mxu0 %v979
        %3571 = vmatprep.subr.bf16.mxu0 0
        %3572 = vmatpush2.bf16.msra.mxu0 0
        %3573 = vmatprep.subr.bf16.mxu0 0
        %3574 = vmatpush2.bf16.msra.mxu0 0
        %3575 = vmatprep.subr.bf16.mxu0 0
        %3576 = vmatpush2.bf16.msra.mxu0 0
        %3577 = vmatprep.subr.bf16.mxu0 0
        %3578 = vmatpush2.bf16.msra.mxu0 0
        %3579 = vmatprep.subr.bf16.mxu0 0
        %3580 = vmatpush2.bf16.msra.mxu0 0
        %3581 = vmatprep.subr.bf16.mxu0 0
        %3582 = vmatpush2.bf16.msra.mxu0 0
        %3583 = vmatprep.subr.bf16.mxu0 0
        %3584 = vmatpush2.bf16.msra.mxu0 0
        %3585 = vmatprep.subr.bf16.mxu0 0
        %3586 = vmatpush2.bf16.msra.mxu0 0
        %3587 = vmatprep.mubr.bf16.mxu0 0
        %3588 = vmatmul.mubr.bf16.gmra.mxu0 %v3335
        %v3589 = vpop.f32.mrf.mxu0
        %v3590 = vadd.f32 %v3145, %v3589
        %v3591 = vpop.f32.mrf.mxu0
        %v3592 = vadd.f32 %v3147, %v3591
        %v3593 = vpop.f32.mrf.mxu0
        %v3594 = vadd.f32 %v3149, %v3593
        %v3595 = vpop.f32.mrf.mxu0
        %v3596 = vadd.f32 %v3151, %v3595
        %3597 = vdwg.mxu0
        %3598 = vmatprep.subr.bf16.mxu0 0
        %3599 = vmatpush1.bf16.msra.mxu0 0
        %3600 = vmatprep.subr.bf16.mxu0 0
        %3601 = vmatpush1.bf16.msra.mxu0 0
        %3602 = vmatprep.subr.bf16.mxu0 0
        %3603 = vmatpush1.bf16.msra.mxu0 0
        %3604 = vmatprep.subr.bf16.mxu0 0
        %3605 = vmatpush1.bf16.msra.mxu0 0
        %3606 = vmatprep.subr.bf16.mxu0 0
        %3607 = vmatpush1.bf16.msra.mxu0 0
        %3608 = vmatprep.subr.bf16.mxu0 0
        %3609 = vmatpush1.bf16.msra.mxu0 0
        %3610 = vmatprep.subr.bf16.mxu0 0
        %3611 = vmatpush1.bf16.msra.mxu0 0
        %3612 = vmatprep.subr.bf16.mxu0 %v1041
        %3613 = vmatpush1.bf16.msra.mxu0 %v1040
        %3614 = vmatprep.subr.bf16.mxu0 0
        %3615 = vmatpush2.bf16.msra.mxu0 0
        %3616 = vmatprep.subr.bf16.mxu0 0
        %3617 = vmatpush2.bf16.msra.mxu0 0
        %3618 = vmatprep.subr.bf16.mxu0 0
        %3619 = vmatpush2.bf16.msra.mxu0 0
        %3620 = vmatprep.subr.bf16.mxu0 0
        %3621 = vmatpush2.bf16.msra.mxu0 0
        %3622 = vmatprep.subr.bf16.mxu0 0
        %3623 = vmatpush2.bf16.msra.mxu0 0
        %3624 = vmatprep.subr.bf16.mxu0 0
        %3625 = vmatpush2.bf16.msra.mxu0 0
        %3626 = vmatprep.subr.bf16.mxu0 0
        %3627 = vmatpush2.bf16.msra.mxu0 0
        %3628 = vmatprep.subr.bf16.mxu0 0
        %3629 = vmatpush2.bf16.msra.mxu0 0
        %3630 = vmatprep.mubr.bf16.mxu0 0
        %3631 = vmatmul.mubr.bf16.gmra.mxu0 %v3381
        %v3632 = vpop.f32.mrf.mxu0
        %v3633 = vadd.f32 %v3188, %v3632
        %v3634 = vpop.f32.mrf.mxu0
        %v3635 = vadd.f32 %v3190, %v3634
        %v3636 = vpop.f32.mrf.mxu0
        %v3637 = vadd.f32 %v3192, %v3636
        %v3638 = vpop.f32.mrf.mxu0
        %v3639 = vadd.f32 %v3194, %v3638
        %3640 = vdwg.mxu0
        %v3641 = vpack.c.bf16 %v2594, %v2592
        %v3642 = vpack.c.bf16 %v2598, %v2596
        %v3643 = vpack.c.bf16 %v2602, %v2600
        %v3644 = vpack.c.bf16 %v2606, %v2604
        %v3645 = vpack.c.bf16 %v2610, %v2608
        %v3647 = vsel %vm2410, %v3641, 0
        %3649 = vmatprep.subr.bf16.mxu0 0
        %3650 = vmatpush1.bf16.msra.mxu0 0
        %3651 = vmatprep.subr.bf16.mxu0 0
        %3652 = vmatpush1.bf16.msra.mxu0 0
        %3653 = vmatprep.subr.bf16.mxu0 0
        %3654 = vmatpush1.bf16.msra.mxu0 0
        %3655 = vmatprep.subr.bf16.mxu0 0
        %3656 = vmatpush1.bf16.msra.mxu0 0
        %3657 = vmatprep.subr.bf16.mxu0 0
        %3658 = vmatpush1.bf16.msra.mxu0 0
        %3659 = vmatprep.subr.bf16.mxu0 0
        %3660 = vmatpush1.bf16.msra.mxu0 0
        %3661 = vmatprep.subr.bf16.mxu0 0
        %3662 = vmatpush1.bf16.msra.mxu0 0
        %3663 = vmatprep.subr.bf16.mxu0 %v2162
        %3664 = vmatpush1.bf16.msra.mxu0 %v2161
        %3665 = vmatprep.subr.bf16.mxu0 0
        %3666 = vmatpush2.bf16.msra.mxu0 0
        %3667 = vmatprep.subr.bf16.mxu0 0
        %3668 = vmatpush2.bf16.msra.mxu0 0
        %3669 = vmatprep.subr.bf16.mxu0 0
        %3670 = vmatpush2.bf16.msra.mxu0 0
        %3671 = vmatprep.subr.bf16.mxu0 0
        %3672 = vmatpush2.bf16.msra.mxu0 0
        %3673 = vmatprep.subr.bf16.mxu0 0
        %3674 = vmatpush2.bf16.msra.mxu0 0
        %3675 = vmatprep.subr.bf16.mxu0 0
        %3676 = vmatpush2.bf16.msra.mxu0 0
        %3677 = vmatprep.subr.bf16.mxu0 0
        %3678 = vmatpush2.bf16.msra.mxu0 0
        %3679 = vmatprep.subr.bf16.mxu0 0
        %3680 = vmatpush2.bf16.msra.mxu0 0
        %3681 = vmatprep.mubr.bf16.mxu0 0
        %3682 = vmatmul.mubr.bf16.gmra.mxu0 %v3647
        %v3683 = vpop.f32.mrf.mxu0
        %v3684 = vadd.f32 0.0, %v3683
        %v3685 = vpop.f32.mrf.mxu0
        %v3686 = vadd.f32 0.0, %v3685
        %v3687 = vpop.f32.mrf.mxu0
        %v3688 = vadd.f32 0.0, %v3687
        %v3689 = vpop.f32.mrf.mxu0
        %v3690 = vadd.f32 0.0, %v3689
        %3691 = vdwg.mxu0
        %v3693 = vsel %vm2410, %v3642, 0
        %3695 = vmatprep.subr.bf16.mxu0 0
        %3696 = vmatpush1.bf16.msra.mxu0 0
        %3697 = vmatprep.subr.bf16.mxu0 0
        %3698 = vmatpush1.bf16.msra.mxu0 0
        %3699 = vmatprep.subr.bf16.mxu0 0
        %3700 = vmatpush1.bf16.msra.mxu0 0
        %3701 = vmatprep.subr.bf16.mxu0 0
        %3702 = vmatpush1.bf16.msra.mxu0 0
        %3703 = vmatprep.subr.bf16.mxu0 0
        %3704 = vmatpush1.bf16.msra.mxu0 0
        %3705 = vmatprep.subr.bf16.mxu0 0
        %3706 = vmatpush1.bf16.msra.mxu0 0
        %3707 = vmatprep.subr.bf16.mxu0 0
        %3708 = vmatpush1.bf16.msra.mxu0 0
        %3709 = vmatprep.subr.bf16.mxu0 %v2213
        %3710 = vmatpush1.bf16.msra.mxu0 %v2212
        %3711 = vmatprep.subr.bf16.mxu0 0
        %3712 = vmatpush2.bf16.msra.mxu0 0
        %3713 = vmatprep.subr.bf16.mxu0 0
        %3714 = vmatpush2.bf16.msra.mxu0 0
        %3715 = vmatprep.subr.bf16.mxu0 0
        %3716 = vmatpush2.bf16.msra.mxu0 0
        %3717 = vmatprep.subr.bf16.mxu0 0
        %3718 = vmatpush2.bf16.msra.mxu0 0
        %3719 = vmatprep.subr.bf16.mxu0 0
        %3720 = vmatpush2.bf16.msra.mxu0 0
        %3721 = vmatprep.subr.bf16.mxu0 0
        %3722 = vmatpush2.bf16.msra.mxu0 0
        %3723 = vmatprep.subr.bf16.mxu0 0
        %3724 = vmatpush2.bf16.msra.mxu0 0
        %3725 = vmatprep.subr.bf16.mxu0 0
        %3726 = vmatpush2.bf16.msra.mxu0 0
        %3727 = vmatprep.mubr.bf16.mxu0 0
        %3728 = vmatmul.mubr.bf16.gmra.mxu0 %v3693
        %v3729 = vpop.f32.mrf.mxu0
        %v3730 = vadd.f32 0.0, %v3729
        %v3731 = vpop.f32.mrf.mxu0
        %v3732 = vadd.f32 0.0, %v3731
        %v3733 = vpop.f32.mrf.mxu0
        %v3734 = vadd.f32 0.0, %v3733
        %v3735 = vpop.f32.mrf.mxu0
        %v3736 = vadd.f32 0.0, %v3735
        %3737 = vdwg.mxu0
        %v3739 = vsel %vm2410, %v3643, 0
        %3741 = vmatprep.subr.bf16.mxu0 0
        %3742 = vmatpush1.bf16.msra.mxu0 0
        %3743 = vmatprep.subr.bf16.mxu0 0
        %3744 = vmatpush1.bf16.msra.mxu0 0
        %3745 = vmatprep.subr.bf16.mxu0 0
        %3746 = vmatpush1.bf16.msra.mxu0 0
        %3747 = vmatprep.subr.bf16.mxu0 0
        %3748 = vmatpush1.bf16.msra.mxu0 0
        %3749 = vmatprep.subr.bf16.mxu0 0
        %3750 = vmatpush1.bf16.msra.mxu0 0
        %3751 = vmatprep.subr.bf16.mxu0 0
        %3752 = vmatpush1.bf16.msra.mxu0 0
        %3753 = vmatprep.subr.bf16.mxu0 0
        %3754 = vmatpush1.bf16.msra.mxu0 0
        %3755 = vmatprep.subr.bf16.mxu0 %v2264
        %3756 = vmatpush1.bf16.msra.mxu0 %v2263
        %3757 = vmatprep.subr.bf16.mxu0 0
        %3758 = vmatpush2.bf16.msra.mxu0 0
        %3759 = vmatprep.subr.bf16.mxu0 0
        %3760 = vmatpush2.bf16.msra.mxu0 0
        %3761 = vmatprep.subr.bf16.mxu0 0
        %3762 = vmatpush2.bf16.msra.mxu0 0
        %3763 = vmatprep.subr.bf16.mxu0 0
        %3764 = vmatpush2.bf16.msra.mxu0 0
        %3765 = vmatprep.subr.bf16.mxu0 0
        %3766 = vmatpush2.bf16.msra.mxu0 0
        %3767 = vmatprep.subr.bf16.mxu0 0
        %3768 = vmatpush2.bf16.msra.mxu0 0
        %3769 = vmatprep.subr.bf16.mxu0 0
        %3770 = vmatpush2.bf16.msra.mxu0 0
        %3771 = vmatprep.subr.bf16.mxu0 0
        %3772 = vmatpush2.bf16.msra.mxu0 0
        %3773 = vmatprep.mubr.bf16.mxu0 0
        %3774 = vmatmul.mubr.bf16.gmra.mxu0 %v3739
        %v3775 = vpop.f32.mrf.mxu0
        %v3776 = vadd.f32 0.0, %v3775
        %v3777 = vpop.f32.mrf.mxu0
        %v3778 = vadd.f32 0.0, %v3777
        %v3779 = vpop.f32.mrf.mxu0
        %v3780 = vadd.f32 0.0, %v3779
        %v3781 = vpop.f32.mrf.mxu0
        %v3782 = vadd.f32 0.0, %v3781
        %3783 = vdwg.mxu0
        %v3785 = vsel %vm2410, %v3644, 0
        %3787 = vmatprep.subr.bf16.mxu0 0
        %3788 = vmatpush1.bf16.msra.mxu0 0
        %3789 = vmatprep.subr.bf16.mxu0 0
        %3790 = vmatpush1.bf16.msra.mxu0 0
        %3791 = vmatprep.subr.bf16.mxu0 0
        %3792 = vmatpush1.bf16.msra.mxu0 0
        %3793 = vmatprep.subr.bf16.mxu0 0
        %3794 = vmatpush1.bf16.msra.mxu0 0
        %3795 = vmatprep.subr.bf16.mxu0 0
        %3796 = vmatpush1.bf16.msra.mxu0 0
        %3797 = vmatprep.subr.bf16.mxu0 0
        %3798 = vmatpush1.bf16.msra.mxu0 0
        %3799 = vmatprep.subr.bf16.mxu0 0
        %3800 = vmatpush1.bf16.msra.mxu0 0
        %3801 = vmatprep.subr.bf16.mxu0 %v2315
        %3802 = vmatpush1.bf16.msra.mxu0 %v2314
        %3803 = vmatprep.subr.bf16.mxu0 0
        %3804 = vmatpush2.bf16.msra.mxu0 0
        %3805 = vmatprep.subr.bf16.mxu0 0
        %3806 = vmatpush2.bf16.msra.mxu0 0
        %3807 = vmatprep.subr.bf16.mxu0 0
        %3808 = vmatpush2.bf16.msra.mxu0 0
        %3809 = vmatprep.subr.bf16.mxu0 0
        %3810 = vmatpush2.bf16.msra.mxu0 0
        %3811 = vmatprep.subr.bf16.mxu0 0
        %3812 = vmatpush2.bf16.msra.mxu0 0
        %3813 = vmatprep.subr.bf16.mxu0 0
        %3814 = vmatpush2.bf16.msra.mxu0 0
        %3815 = vmatprep.subr.bf16.mxu0 0
        %3816 = vmatpush2.bf16.msra.mxu0 0
        %3817 = vmatprep.subr.bf16.mxu0 0
        %3818 = vmatpush2.bf16.msra.mxu0 0
        %3819 = vmatprep.mubr.bf16.mxu0 0
        %3820 = vmatmul.mubr.bf16.gmra.mxu0 %v3785
        %v3821 = vpop.f32.mrf.mxu0
        %v3822 = vadd.f32 0.0, %v3821
        %v3823 = vpop.f32.mrf.mxu0
        %v3824 = vadd.f32 0.0, %v3823
        %v3825 = vpop.f32.mrf.mxu0
        %v3826 = vadd.f32 0.0, %v3825
        %v3827 = vpop.f32.mrf.mxu0
        %v3828 = vadd.f32 0.0, %v3827
        %3829 = vdwg.mxu0
        %v3831 = vsel %vm2410, %v3645, 0
        %3833 = vmatprep.subr.bf16.mxu0 0
        %3834 = vmatpush1.bf16.msra.mxu0 0
        %3835 = vmatprep.subr.bf16.mxu0 0
        %3836 = vmatpush1.bf16.msra.mxu0 0
        %3837 = vmatprep.subr.bf16.mxu0 0
        %3838 = vmatpush1.bf16.msra.mxu0 0
        %3839 = vmatprep.subr.bf16.mxu0 0
        %3840 = vmatpush1.bf16.msra.mxu0 0
        %3841 = vmatprep.subr.bf16.mxu0 0
        %3842 = vmatpush1.bf16.msra.mxu0 0
        %3843 = vmatprep.subr.bf16.mxu0 0
        %3844 = vmatpush1.bf16.msra.mxu0 0
        %3845 = vmatprep.subr.bf16.mxu0 0
        %3846 = vmatpush1.bf16.msra.mxu0 0
        %3847 = vmatprep.subr.bf16.mxu0 %v2366
        %3848 = vmatpush1.bf16.msra.mxu0 %v2365
        %3849 = vmatprep.subr.bf16.mxu0 0
        %3850 = vmatpush2.bf16.msra.mxu0 0
        %3851 = vmatprep.subr.bf16.mxu0 0
        %3852 = vmatpush2.bf16.msra.mxu0 0
        %3853 = vmatprep.subr.bf16.mxu0 0
        %3854 = vmatpush2.bf16.msra.mxu0 0
        %3855 = vmatprep.subr.bf16.mxu0 0
        %3856 = vmatpush2.bf16.msra.mxu0 0
        %3857 = vmatprep.subr.bf16.mxu0 0
        %3858 = vmatpush2.bf16.msra.mxu0 0
        %3859 = vmatprep.subr.bf16.mxu0 0
        %3860 = vmatpush2.bf16.msra.mxu0 0
        %3861 = vmatprep.subr.bf16.mxu0 0
        %3862 = vmatpush2.bf16.msra.mxu0 0
        %3863 = vmatprep.subr.bf16.mxu0 0
        %3864 = vmatpush2.bf16.msra.mxu0 0
        %3865 = vmatprep.mubr.bf16.mxu0 0
        %3866 = vmatmul.mubr.bf16.gmra.mxu0 %v3831
        %v3867 = vpop.f32.mrf.mxu0
        %v3868 = vadd.f32 0.0, %v3867
        %v3869 = vpop.f32.mrf.mxu0
        %v3870 = vadd.f32 0.0, %v3869
        %v3871 = vpop.f32.mrf.mxu0
        %v3872 = vadd.f32 0.0, %v3871
        %v3873 = vpop.f32.mrf.mxu0
        %v3874 = vadd.f32 0.0, %v3873
        %3875 = vdwg.mxu0
        %3876 = vmatprep.subr.bf16.mxu0 0
        %3877 = vmatpush1.bf16.msra.mxu0 0
        %3878 = vmatprep.subr.bf16.mxu0 0
        %3879 = vmatpush1.bf16.msra.mxu0 0
        %3880 = vmatprep.subr.bf16.mxu0 0
        %3881 = vmatpush1.bf16.msra.mxu0 0
        %3882 = vmatprep.subr.bf16.mxu0 0
        %3883 = vmatpush1.bf16.msra.mxu0 0
        %3884 = vmatprep.subr.bf16.mxu0 0
        %3885 = vmatpush1.bf16.msra.mxu0 0
        %3886 = vmatprep.subr.bf16.mxu0 0
        %3887 = vmatpush1.bf16.msra.mxu0 0
        %3888 = vmatprep.subr.bf16.mxu0 0
        %3889 = vmatpush1.bf16.msra.mxu0 0
        %3890 = vmatprep.subr.bf16.mxu0 %v1907
        %3891 = vmatpush1.bf16.msra.mxu0 %v1906
        %3892 = vmatprep.subr.bf16.mxu0 0
        %3893 = vmatpush2.bf16.msra.mxu0 0
        %3894 = vmatprep.subr.bf16.mxu0 0
        %3895 = vmatpush2.bf16.msra.mxu0 0
        %3896 = vmatprep.subr.bf16.mxu0 0
        %3897 = vmatpush2.bf16.msra.mxu0 0
        %3898 = vmatprep.subr.bf16.mxu0 0
        %3899 = vmatpush2.bf16.msra.mxu0 0
        %3900 = vmatprep.subr.bf16.mxu0 0
        %3901 = vmatpush2.bf16.msra.mxu0 0
        %3902 = vmatprep.subr.bf16.mxu0 0
        %3903 = vmatpush2.bf16.msra.mxu0 0
        %3904 = vmatprep.subr.bf16.mxu0 0
        %3905 = vmatpush2.bf16.msra.mxu0 0
        %3906 = vmatprep.subr.bf16.mxu0 0
        %3907 = vmatpush2.bf16.msra.mxu0 0
        %3908 = vmatprep.mubr.bf16.mxu0 0
        %3909 = vmatmul.mubr.bf16.gmra.mxu0 %v3647
        %v3910 = vpop.f32.mrf.mxu0
        %v3911 = vadd.f32 0.0, %v3910
        %v3912 = vpop.f32.mrf.mxu0
        %v3913 = vadd.f32 0.0, %v3912
        %v3914 = vpop.f32.mrf.mxu0
        %v3915 = vadd.f32 0.0, %v3914
        %v3916 = vpop.f32.mrf.mxu0
        %v3917 = vadd.f32 0.0, %v3916
        %3918 = vdwg.mxu0
        %3919 = vmatprep.subr.bf16.mxu0 0
        %3920 = vmatpush1.bf16.msra.mxu0 0
        %3921 = vmatprep.subr.bf16.mxu0 0
        %3922 = vmatpush1.bf16.msra.mxu0 0
        %3923 = vmatprep.subr.bf16.mxu0 0
        %3924 = vmatpush1.bf16.msra.mxu0 0
        %3925 = vmatprep.subr.bf16.mxu0 0
        %3926 = vmatpush1.bf16.msra.mxu0 0
        %3927 = vmatprep.subr.bf16.mxu0 0
        %3928 = vmatpush1.bf16.msra.mxu0 0
        %3929 = vmatprep.subr.bf16.mxu0 0
        %3930 = vmatpush1.bf16.msra.mxu0 0
        %3931 = vmatprep.subr.bf16.mxu0 0
        %3932 = vmatpush1.bf16.msra.mxu0 0
        %3933 = vmatprep.subr.bf16.mxu0 %v1958
        %3934 = vmatpush1.bf16.msra.mxu0 %v1957
        %3935 = vmatprep.subr.bf16.mxu0 0
        %3936 = vmatpush2.bf16.msra.mxu0 0
        %3937 = vmatprep.subr.bf16.mxu0 0
        %3938 = vmatpush2.bf16.msra.mxu0 0
        %3939 = vmatprep.subr.bf16.mxu0 0
        %3940 = vmatpush2.bf16.msra.mxu0 0
        %3941 = vmatprep.subr.bf16.mxu0 0
        %3942 = vmatpush2.bf16.msra.mxu0 0
        %3943 = vmatprep.subr.bf16.mxu0 0
        %3944 = vmatpush2.bf16.msra.mxu0 0
        %3945 = vmatprep.subr.bf16.mxu0 0
        %3946 = vmatpush2.bf16.msra.mxu0 0
        %3947 = vmatprep.subr.bf16.mxu0 0
        %3948 = vmatpush2.bf16.msra.mxu0 0
        %3949 = vmatprep.subr.bf16.mxu0 0
        %3950 = vmatpush2.bf16.msra.mxu0 0
        %3951 = vmatprep.mubr.bf16.mxu0 0
        %3952 = vmatmul.mubr.bf16.gmra.mxu0 %v3693
        %v3953 = vpop.f32.mrf.mxu0
        %v3954 = vadd.f32 0.0, %v3953
        %v3955 = vpop.f32.mrf.mxu0
        %v3956 = vadd.f32 0.0, %v3955
        %v3957 = vpop.f32.mrf.mxu0
        %v3958 = vadd.f32 0.0, %v3957
        %v3959 = vpop.f32.mrf.mxu0
        %v3960 = vadd.f32 0.0, %v3959
        %3961 = vdwg.mxu0
        %3962 = vmatprep.subr.bf16.mxu0 0
        %3963 = vmatpush1.bf16.msra.mxu0 0
        %3964 = vmatprep.subr.bf16.mxu0 0
        %3965 = vmatpush1.bf16.msra.mxu0 0
        %3966 = vmatprep.subr.bf16.mxu0 0
        %3967 = vmatpush1.bf16.msra.mxu0 0
        %3968 = vmatprep.subr.bf16.mxu0 0
        %3969 = vmatpush1.bf16.msra.mxu0 0
        %3970 = vmatprep.subr.bf16.mxu0 0
        %3971 = vmatpush1.bf16.msra.mxu0 0
        %3972 = vmatprep.subr.bf16.mxu0 0
        %3973 = vmatpush1.bf16.msra.mxu0 0
        %3974 = vmatprep.subr.bf16.mxu0 0
        %3975 = vmatpush1.bf16.msra.mxu0 0
        %3976 = vmatprep.subr.bf16.mxu0 %v2009
        %3977 = vmatpush1.bf16.msra.mxu0 %v2008
        %3978 = vmatprep.subr.bf16.mxu0 0
        %3979 = vmatpush2.bf16.msra.mxu0 0
        %3980 = vmatprep.subr.bf16.mxu0 0
        %3981 = vmatpush2.bf16.msra.mxu0 0
        %3982 = vmatprep.subr.bf16.mxu0 0
        %3983 = vmatpush2.bf16.msra.mxu0 0
        %3984 = vmatprep.subr.bf16.mxu0 0
        %3985 = vmatpush2.bf16.msra.mxu0 0
        %3986 = vmatprep.subr.bf16.mxu0 0
        %3987 = vmatpush2.bf16.msra.mxu0 0
        %3988 = vmatprep.subr.bf16.mxu0 0
        %3989 = vmatpush2.bf16.msra.mxu0 0
        %3990 = vmatprep.subr.bf16.mxu0 0
        %3991 = vmatpush2.bf16.msra.mxu0 0
        %3992 = vmatprep.subr.bf16.mxu0 0
        %3993 = vmatpush2.bf16.msra.mxu0 0
        %3994 = vmatprep.mubr.bf16.mxu0 0
        %3995 = vmatmul.mubr.bf16.gmra.mxu0 %v3739
        %v3996 = vpop.f32.mrf.mxu0
        %v3997 = vadd.f32 0.0, %v3996
        %v3998 = vpop.f32.mrf.mxu0
        %v3999 = vadd.f32 0.0, %v3998
        %v4000 = vpop.f32.mrf.mxu0
        %v4001 = vadd.f32 0.0, %v4000
        %v4002 = vpop.f32.mrf.mxu0
        %v4003 = vadd.f32 0.0, %v4002
        %4004 = vdwg.mxu0
        %4005 = vmatprep.subr.bf16.mxu0 0
        %4006 = vmatpush1.bf16.msra.mxu0 0
        %4007 = vmatprep.subr.bf16.mxu0 0
        %4008 = vmatpush1.bf16.msra.mxu0 0
        %4009 = vmatprep.subr.bf16.mxu0 0
        %4010 = vmatpush1.bf16.msra.mxu0 0
        %4011 = vmatprep.subr.bf16.mxu0 0
        %4012 = vmatpush1.bf16.msra.mxu0 0
        %4013 = vmatprep.subr.bf16.mxu0 0
        %4014 = vmatpush1.bf16.msra.mxu0 0
        %4015 = vmatprep.subr.bf16.mxu0 0
        %4016 = vmatpush1.bf16.msra.mxu0 0
        %4017 = vmatprep.subr.bf16.mxu0 0
        %4018 = vmatpush1.bf16.msra.mxu0 0
        %4019 = vmatprep.subr.bf16.mxu0 %v2060
        %4020 = vmatpush1.bf16.msra.mxu0 %v2059
        %4021 = vmatprep.subr.bf16.mxu0 0
        %4022 = vmatpush2.bf16.msra.mxu0 0
        %4023 = vmatprep.subr.bf16.mxu0 0
        %4024 = vmatpush2.bf16.msra.mxu0 0
        %4025 = vmatprep.subr.bf16.mxu0 0
        %4026 = vmatpush2.bf16.msra.mxu0 0
        %4027 = vmatprep.subr.bf16.mxu0 0
        %4028 = vmatpush2.bf16.msra.mxu0 0
        %4029 = vmatprep.subr.bf16.mxu0 0
        %4030 = vmatpush2.bf16.msra.mxu0 0
        %4031 = vmatprep.subr.bf16.mxu0 0
        %4032 = vmatpush2.bf16.msra.mxu0 0
        %4033 = vmatprep.subr.bf16.mxu0 0
        %4034 = vmatpush2.bf16.msra.mxu0 0
        %4035 = vmatprep.subr.bf16.mxu0 0
        %4036 = vmatpush2.bf16.msra.mxu0 0
        %4037 = vmatprep.mubr.bf16.mxu0 0
        %4038 = vmatmul.mubr.bf16.gmra.mxu0 %v3785
        %v4039 = vpop.f32.mrf.mxu0
        %v4040 = vadd.f32 0.0, %v4039
        %v4041 = vpop.f32.mrf.mxu0
        %v4042 = vadd.f32 0.0, %v4041
        %v4043 = vpop.f32.mrf.mxu0
        %v4044 = vadd.f32 0.0, %v4043
        %v4045 = vpop.f32.mrf.mxu0
        %v4046 = vadd.f32 0.0, %v4045
        %4047 = vdwg.mxu0
        %4048 = vmatprep.subr.bf16.mxu0 0
        %4049 = vmatpush1.bf16.msra.mxu0 0
        %4050 = vmatprep.subr.bf16.mxu0 0
        %4051 = vmatpush1.bf16.msra.mxu0 0
        %4052 = vmatprep.subr.bf16.mxu0 0
        %4053 = vmatpush1.bf16.msra.mxu0 0
        %4054 = vmatprep.subr.bf16.mxu0 0
        %4055 = vmatpush1.bf16.msra.mxu0 0
        %4056 = vmatprep.subr.bf16.mxu0 0
        %4057 = vmatpush1.bf16.msra.mxu0 0
        %4058 = vmatprep.subr.bf16.mxu0 0
        %4059 = vmatpush1.bf16.msra.mxu0 0
        %4060 = vmatprep.subr.bf16.mxu0 0
        %4061 = vmatpush1.bf16.msra.mxu0 0
        %4062 = vmatprep.subr.bf16.mxu0 %v2111
        %4063 = vmatpush1.bf16.msra.mxu0 %v2110
        %4064 = vmatprep.subr.bf16.mxu0 0
        %4065 = vmatpush2.bf16.msra.mxu0 0
        %4066 = vmatprep.subr.bf16.mxu0 0
        %4067 = vmatpush2.bf16.msra.mxu0 0
        %4068 = vmatprep.subr.bf16.mxu0 0
        %4069 = vmatpush2.bf16.msra.mxu0 0
        %4070 = vmatprep.subr.bf16.mxu0 0
        %4071 = vmatpush2.bf16.msra.mxu0 0
        %4072 = vmatprep.subr.bf16.mxu0 0
        %4073 = vmatpush2.bf16.msra.mxu0 0
        %4074 = vmatprep.subr.bf16.mxu0 0
        %4075 = vmatpush2.bf16.msra.mxu0 0
        %4076 = vmatprep.subr.bf16.mxu0 0
        %4077 = vmatpush2.bf16.msra.mxu0 0
        %4078 = vmatprep.subr.bf16.mxu0 0
        %4079 = vmatpush2.bf16.msra.mxu0 0
        %4080 = vmatprep.mubr.bf16.mxu0 0
        %4081 = vmatmul.mubr.bf16.gmra.mxu0 %v3831
        %v4082 = vpop.f32.mrf.mxu0
        %v4083 = vadd.f32 0.0, %v4082
        %v4084 = vpop.f32.mrf.mxu0
        %v4085 = vadd.f32 0.0, %v4084
        %v4086 = vpop.f32.mrf.mxu0
        %v4087 = vadd.f32 0.0, %v4086
        %v4088 = vpop.f32.mrf.mxu0
        %v4089 = vadd.f32 0.0, %v4088
        %4090 = vdwg.mxu0
        %v4091 = vadd.f32 %v3234, %v3684
        %v4092 = vadd.f32 %v3236, %v3686
        %v4093 = vadd.f32 %v3238, %v3688
        %v4094 = vadd.f32 %v3240, %v3690
        %v4095 = vadd.f32 %v3280, %v3730
        %v4096 = vadd.f32 %v3282, %v3732
        %v4097 = vadd.f32 %v3284, %v3734
        %v4098 = vadd.f32 %v3286, %v3736
        %v4099 = vadd.f32 %v3326, %v3776
        %v4100 = vadd.f32 %v3328, %v3778
        %v4101 = vadd.f32 %v3330, %v3780
        %v4102 = vadd.f32 %v3332, %v3782
        %v4103 = vadd.f32 %v3372, %v3822
        %v4104 = vadd.f32 %v3374, %v3824
        %v4105 = vadd.f32 %v3376, %v3826
        %v4106 = vadd.f32 %v3378, %v3828
        %v4107 = vadd.f32 %v3418, %v3868
        %v4108 = vadd.f32 %v3420, %v3870
        %v4109 = vadd.f32 %v3422, %v3872
        %v4110 = vadd.f32 %v3424, %v3874
        %v4111 = vadd.f32 %v3461, %v3911
        %v4112 = vadd.f32 %v3463, %v3913
        %v4113 = vadd.f32 %v3465, %v3915
        %v4114 = vadd.f32 %v3467, %v3917
        %v4115 = vadd.f32 %v3504, %v3954
        %v4116 = vadd.f32 %v3506, %v3956
        %v4117 = vadd.f32 %v3508, %v3958
        %v4118 = vadd.f32 %v3510, %v3960
        %v4119 = vadd.f32 %v3547, %v3997
        %v4120 = vadd.f32 %v3549, %v3999
        %v4121 = vadd.f32 %v3551, %v4001
        %v4122 = vadd.f32 %v3553, %v4003
        %v4123 = vadd.f32 %v3590, %v4040
        %v4124 = vadd.f32 %v3592, %v4042
        %v4125 = vadd.f32 %v3594, %v4044
        %v4126 = vadd.f32 %v3596, %v4046
        %v4127 = vadd.f32 %v3633, %v4083
        %v4128 = vadd.f32 %v3635, %v4085
        %v4129 = vadd.f32 %v3637, %v4087
        %v4130 = vadd.f32 %v3639, %v4089
        %v4131 = vld [vmem:[%s682] sm:$0xff]
        %v4132 = vld [vmem:[%s682 + $0x8] sm:$0xff]
        %v4133 = vld [vmem:[%s682 + $0x10] sm:$0xff]
        %v4134 = vld [vmem:[%s682 + $0x18] sm:$0xff]
        %v4135 = vld [vmem:[%s682 + $0x20] sm:$0xff]
        %v4136 = vld [vmem:[%s682 + $0x28] sm:$0xff]
        %v4137 = vld [vmem:[%s682 + $0x30] sm:$0xff]
        %v4138 = vld [vmem:[%s682 + $0x38] sm:$0xff]
        %v4139 = vld [vmem:[%s682 + $0x40] sm:$0xff]
        %v4140 = vld [vmem:[%s682 + $0x48] sm:$0xff]
        %v4141 = vmul.f32 %v4091, %v2722
        %v4142 = vmul.f32 %v4092, %v2722
        %v4143 = vmul.f32 %v4093, %v2724
        %v4144 = vmul.f32 %v4094, %v2724
        %v4145 = vmul.f32 %v4095, %v2726
        %v4146 = vmul.f32 %v4096, %v2726
        %v4147 = vmul.f32 %v4097, %v2728
        %v4148 = vmul.f32 %v4098, %v2728
        %v4149 = vmul.f32 %v4099, %v2730
        %v4150 = vmul.f32 %v4100, %v2730
        %v4151 = vmul.f32 %v4101, %v2732
        %v4152 = vmul.f32 %v4102, %v2732
        %v4153 = vmul.f32 %v4103, %v2734
        %v4154 = vmul.f32 %v4104, %v2734
        %v4155 = vmul.f32 %v4105, %v2736
        %v4156 = vmul.f32 %v4106, %v2736
        %v4157 = vmul.f32 %v4107, %v2738
        %v4158 = vmul.f32 %v4108, %v2738
        %v4159 = vmul.f32 %v4109, %v2740
        %v4160 = vmul.f32 %v4110, %v2740
        %4162 = vset.pattern.permute.xlu0 0
        %4163 = vperm.xlu0 %4162, %v4131
        %v4164 = vpop.permute.xlu0 %4163
        %4167 = vset.pattern.permute.xlu0 0
        %4168 = vperm.xlu0 %4167, %v4132
        %v4169 = vpop.permute.xlu0 %4168
        %4172 = vset.pattern.permute.xlu0 0
        %4173 = vperm.xlu0 %4172, %v4133
        %v4174 = vpop.permute.xlu0 %4173
        %4177 = vset.pattern.permute.xlu0 0
        %4178 = vperm.xlu0 %4177, %v4134
        %v4179 = vpop.permute.xlu0 %4178
        %4182 = vset.pattern.permute.xlu0 0
        %4183 = vperm.xlu0 %4182, %v4135
        %v4184 = vpop.permute.xlu0 %4183
        %4187 = vset.pattern.permute.xlu0 0
        %4188 = vperm.xlu0 %4187, %v4136
        %v4189 = vpop.permute.xlu0 %4188
        %4192 = vset.pattern.permute.xlu0 0
        %4193 = vperm.xlu0 %4192, %v4137
        %v4194 = vpop.permute.xlu0 %4193
        %4197 = vset.pattern.permute.xlu0 0
        %4198 = vperm.xlu0 %4197, %v4138
        %v4199 = vpop.permute.xlu0 %4198
        %4202 = vset.pattern.permute.xlu0 0
        %4203 = vperm.xlu0 %4202, %v4139
        %v4204 = vpop.permute.xlu0 %4203
        %4207 = vset.pattern.permute.xlu0 0
        %4208 = vperm.xlu0 %4207, %v4140
        %v4209 = vpop.permute.xlu0 %4208
        %v4211 = vmul.f32 %v4141, %v4164
        %v4212 = vmul.f32 %v4142, %v4164
        %v4213 = vmul.f32 %v4143, %v4169
        %v4214 = vmul.f32 %v4144, %v4169
        %v4215 = vmul.f32 %v4145, %v4174
        %v4216 = vmul.f32 %v4146, %v4174
        %v4217 = vmul.f32 %v4147, %v4179
        %v4218 = vmul.f32 %v4148, %v4179
        %v4219 = vmul.f32 %v4149, %v4184
        %v4220 = vmul.f32 %v4150, %v4184
        %v4221 = vmul.f32 %v4151, %v4189
        %v4222 = vmul.f32 %v4152, %v4189
        %v4223 = vmul.f32 %v4153, %v4194
        %v4224 = vmul.f32 %v4154, %v4194
        %v4225 = vmul.f32 %v4155, %v4199
        %v4226 = vmul.f32 %v4156, %v4199
        %v4227 = vmul.f32 %v4157, %v4204
        %v4228 = vmul.f32 %v4158, %v4204
        %v4229 = vmul.f32 %v4159, %v4209
        %v4230 = vmul.f32 %v4160, %v4209
        %4231 = vst [vmem:[%s693] sm:$0xff] %v4211
        %4232 = vst [vmem:[%s693 + $0x8] sm:$0xff] %v4212
        %4233 = vst [vmem:[%s693 + $0x20] sm:$0xff] %v4213
        %4234 = vst [vmem:[%s693 + $0x28] sm:$0xff] %v4214
        %4235 = vst [vmem:[%s693 + $0x40] sm:$0xff] %v4215
        %4236 = vst [vmem:[%s693 + $0x48] sm:$0xff] %v4216
        %4237 = vst [vmem:[%s693 + $0x60] sm:$0xff] %v4217
        %4238 = vst [vmem:[%s693 + $0x68] sm:$0xff] %v4218
        %4239 = vst [vmem:[%s693 + $0x80] sm:$0xff] %v4219
        %4240 = vst [vmem:[%s693 + $0x88] sm:$0xff] %v4220
        %4241 = vst [vmem:[%s693 + $0xa0] sm:$0xff] %v4221
        %4242 = vst [vmem:[%s693 + $0xa8] sm:$0xff] %v4222
        %4243 = vst [vmem:[%s693 + $0xc0] sm:$0xff] %v4223
        %4244 = vst [vmem:[%s693 + $0xc8] sm:$0xff] %v4224
        %4245 = vst [vmem:[%s693 + $0xe0] sm:$0xff] %v4225
        %4246 = vst [vmem:[%s693 + $0xe8] sm:$0xff] %v4226
        %4247 = vst [vmem:[%s693 + $0x100] sm:$0xff] %v4227
        %4248 = vst [vmem:[%s693 + $0x108] sm:$0xff] %v4228
        %4249 = vst [vmem:[%s693 + $0x120] sm:$0xff] %v4229
        %4250 = vst [vmem:[%s693 + $0x128] sm:$0xff] %v4230
        %v4251 = vmul.f32 %v4111, %v2722
        %v4252 = vmul.f32 %v4112, %v2722
        %v4253 = vmul.f32 %v4113, %v2724
        %v4254 = vmul.f32 %v4114, %v2724
        %v4255 = vmul.f32 %v4115, %v2726
        %v4256 = vmul.f32 %v4116, %v2726
        %v4257 = vmul.f32 %v4117, %v2728
        %v4258 = vmul.f32 %v4118, %v2728
        %v4259 = vmul.f32 %v4119, %v2730
        %v4260 = vmul.f32 %v4120, %v2730
        %v4261 = vmul.f32 %v4121, %v2732
        %v4262 = vmul.f32 %v4122, %v2732
        %v4263 = vmul.f32 %v4123, %v2734
        %v4264 = vmul.f32 %v4124, %v2734
        %v4265 = vmul.f32 %v4125, %v2736
        %v4266 = vmul.f32 %v4126, %v2736
        %v4267 = vmul.f32 %v4127, %v2738
        %v4268 = vmul.f32 %v4128, %v2738
        %v4269 = vmul.f32 %v4129, %v2740
        %v4270 = vmul.f32 %v4130, %v2740
        %v4271 = vmul.f32 %v4251, %v4164
        %v4272 = vmul.f32 %v4252, %v4164
        %v4273 = vmul.f32 %v4253, %v4169
        %v4274 = vmul.f32 %v4254, %v4169
        %v4275 = vmul.f32 %v4255, %v4174
        %v4276 = vmul.f32 %v4256, %v4174
        %v4277 = vmul.f32 %v4257, %v4179
        %v4278 = vmul.f32 %v4258, %v4179
        %v4279 = vmul.f32 %v4259, %v4184
        %v4280 = vmul.f32 %v4260, %v4184
        %v4281 = vmul.f32 %v4261, %v4189
        %v4282 = vmul.f32 %v4262, %v4189
        %v4283 = vmul.f32 %v4263, %v4194
        %v4284 = vmul.f32 %v4264, %v4194
        %v4285 = vmul.f32 %v4265, %v4199
        %v4286 = vmul.f32 %v4266, %v4199
        %v4287 = vmul.f32 %v4267, %v4204
        %v4288 = vmul.f32 %v4268, %v4204
        %v4289 = vmul.f32 %v4269, %v4209
        %v4290 = vmul.f32 %v4270, %v4209
        %4291 = vst [vmem:[%s693 + $0x10] sm:$0xff] %v4271
        %4292 = vst [vmem:[%s693 + $0x18] sm:$0xff] %v4272
        %4293 = vst [vmem:[%s693 + $0x30] sm:$0xff] %v4273
        %4294 = vst [vmem:[%s693 + $0x38] sm:$0xff] %v4274
        %4295 = vst [vmem:[%s693 + $0x50] sm:$0xff] %v4275
        %4296 = vst [vmem:[%s693 + $0x58] sm:$0xff] %v4276
        %4297 = vst [vmem:[%s693 + $0x70] sm:$0xff] %v4277
        %4298 = vst [vmem:[%s693 + $0x78] sm:$0xff] %v4278
        %4299 = vst [vmem:[%s693 + $0x90] sm:$0xff] %v4279
        %4300 = vst [vmem:[%s693 + $0x98] sm:$0xff] %v4280
        %4301 = vst [vmem:[%s693 + $0xb0] sm:$0xff] %v4281
        %4302 = vst [vmem:[%s693 + $0xb8] sm:$0xff] %v4282
        %4303 = vst [vmem:[%s693 + $0xd0] sm:$0xff] %v4283
        %4304 = vst [vmem:[%s693 + $0xd8] sm:$0xff] %v4284
        %4305 = vst [vmem:[%s693 + $0xf0] sm:$0xff] %v4285
        %4306 = vst [vmem:[%s693 + $0xf8] sm:$0xff] %v4286
        %4307 = vst [vmem:[%s693 + $0x110] sm:$0xff] %v4287
        %4308 = vst [vmem:[%s693 + $0x118] sm:$0xff] %v4288
        %4309 = vst [vmem:[%s693 + $0x130] sm:$0xff] %v4289
        %4310 = vst [vmem:[%s693 + $0x138] sm:$0xff] %v4290
        %s4311 = smul.u32 5, %s20
        %p4312 = scmp.lt.s32.totalorder %s21, 2
        %s4313 = scalar_select %p4312, %s21, 2
        %p4314 = scmp.lt.s32.totalorder %s4311, 9
        %s4315 = scalar_select %p4314, %s4311, 9
        %s4316 = smul.addr %s4315, 8
        %s4317 = smul.addr %s4313, 80
        %s4318 = sadd.s32 %s4316, %s4317
        %s4319 = smul.addr %s4318, 8
        %s4320 = scalar_lea.vmem %s5, %s4319
        // Predicated region
        $region117: #{seareader_forward.3} parent=107 // pred_check
          %p4321 = pneg %p184
        $region118: #{seareader_forward.3} parent=107 // pred_check_branch
          %4323 = sbr.rel (%p4321) target = $region120
        $region119: #{seareader_forward.3} parent=107 // pred_region
          %s4324 = smul.u32 5, %s20
        $region120: #{seareader_forward.3} parent=107 // pred_fallthru
          _
      $region108: #{seareader_forward.3} parent=5 // pred_fallthru
        _
      %p4325 = scmp.le.s32.totalorder 2, %s11
      // Predicated region
      $region121: #{seareader_forward.3} parent=5 // pred_check
        %p4326 = pneg %p4325
      $region122: #{seareader_forward.3} parent=5 // pred_check_branch
        %4328 = sbr.rel (%p4326) target = $region124
      $region123: #{seareader_forward.3} parent=5 // pred_region
        %s4329 = ssub.s32 %s11, 2
        // Predicated region
        $region125: #{seareader_forward.3} parent=123 // pred_check
          %p4330 = pneg %p190
        $region126: #{seareader_forward.3} parent=123 // pred_check_branch
          %4332 = sbr.rel (%p4330) target = $region128
        $region127: #{seareader_forward.3} parent=123 // pred_region
          %s4333 = smul.u32 5, %s22
          %p4334 = scmp.lt.s32.totalorder %s23, 2
          %s4335 = scalar_select %p4334, %s23, 2
          %p4336 = scmp.lt.s32.totalorder %s4333, 9
          %s4337 = scalar_select %p4336, %s4333, 9
          %s4338 = smul.addr %s4337, 8
          %s4339 = smul.addr %s4335, 80
          %s4340 = sadd.s32 %s4338, %s4339
          %s4341 = smul.addr %s4340, 8
          %s4342 = scalar_lea.vmem %s5, %s4341
        $region128: #{seareader_forward.3} parent=123 // pred_fallthru
          _
      $region124: #{seareader_forward.3} parent=5 // pred_fallthru
        _
    $region6: #{seareader_forward.3} parent=1 // loop_footer
      %s15 = sadd.s32 1, %s11
    $region7: #{seareader_forward.3} parent=1 // loop_footer_branch
      %10 = sbr.rel target = $region3
    $region8: #{seareader_forward.3} parent=1 // loop_exit
      _

</llo_original>
